<compile_context>
chip_gen: v7x
topology: tpu7x:2x2x1
jax: 0.10.0
libtpu: 0.0.40
codegen_flags: <defaults>
</compile_context>

<pallas_src>
import functools

import jax
import jax.numpy as jnp
from jax.experimental import pallas as pl
from jax.experimental.pallas import tpu as pltpu


def _double_conv2d_kernel(x_ref, w1_ref, w2_ref, p_ref, o_ref, pad_ref, *, linear):
    eps = 1e-5
    N, H, W, C = x_ref.shape          # C == Cpad (lane-dense, multiple of 128)
    M = N * H * W

    def reflect_pad_to_scratch(val_nhwc):
        # interior
        pad_ref[:, 1:H + 1, 1:W + 1, :] = val_nhwc
        # reflect rows (pad=1): padded[-1] = x[1], padded[H] = x[H-2]
        pad_ref[:, 0:1, :, :] = pad_ref[:, 2:3, :, :]
        pad_ref[:, H + 1:H + 2, :, :] = pad_ref[:, H - 1:H, :, :]
        # reflect cols (also fixes the corners, matching torch reflect padding)
        pad_ref[:, :, 0:1, :] = pad_ref[:, :, 2:3, :]
        pad_ref[:, :, W + 1:W + 2, :] = pad_ref[:, :, W - 1:W, :]

    def conv3x3(w_ref, b_row):
        # im2col: one lane-aligned Cpad-wide block per tap -> single MXU matmul
        cols = []
        for dy in range(3):
            for dx in range(3):
                cols.append(pad_ref[:, dy:dy + H, dx:dx + W, :].reshape(M, C))
        slab = jnp.concatenate(cols, axis=-1)                     # (M, 9*Cpad)
        # NOTE: cast slab/w to bf16 here for production channel counts on
        # v6e/v7x; kept f32 for exact parity with the PyTorch f32 forward.
        y = jnp.dot(slab, w_ref[...], preferred_element_type=jnp.float32)
        return y + b_row                                          # (M, Cpad)

    def bn_act(h, g_row, be_row):
        # training-mode BatchNorm2d: batch stats over (N, H, W), biased var,
        # folded into a single scale/shift
        mean = jnp.mean(h, axis=0, keepdims=True)                 # (1, Cpad)
        d = h - mean
        var = jnp.mean(d * d, axis=0, keepdims=True)
        s = g_row * jax.lax.rsqrt(var + eps)
        y = d * s + be_row
        return y if linear else jnp.maximum(y, 0.0)

    # block 1: conv -> BN -> (ReLU)
    reflect_pad_to_scratch(x_ref[...].astype(jnp.float32))
    h = bn_act(conv3x3(w1_ref, p_ref[0:1, :]), p_ref[1:2, :], p_ref[2:3, :])

    # block 2: conv -> BN -> (ReLU)   (padded channels of h are exactly zero)
    reflect_pad_to_scratch(h.reshape(N, H, W, C))
    y = bn_act(conv3x3(w2_ref, p_ref[3:4, :]), p_ref[4:5, :], p_ref[5:6, :])

    o_ref[...] = y.reshape(N, H, W, C).astype(o_ref.dtype)


def reflective_double_conv(x_nchw, params, *, linear=False):
    """x_nchw: (N, C_in, H, W) float32 (PyTorch layout). Returns (N, C_out, H, W)."""
    w1, b1, g1, be1, w2, b2, g2, be2 = params   # PyTorch shapes: w (cout, cin, 3, 3)
    N, Cin, H, W = x_nchw.shape
    Cout = w1.shape[0]
    Cpad = ((max(Cin, Cout) + 127) // 128) * 128   # lane-dense channel padding

    # channels-last + zero-pad channels (lane-dense kernel layout)
    x_nhwc = jnp.transpose(x_nchw, (0, 2, 3, 1)).astype(jnp.float32)
    x_p = jnp.pad(x_nhwc, ((0, 0), (0, 0), (0, 0), (0, Cpad - Cin)))

    def im2col_weight(w):
        cout, cin = w.shape[0], w.shape[1]
        wt = jnp.transpose(w, (2, 3, 1, 0)).astype(jnp.float32)   # (3, 3, cin, cout)
        wt = jnp.pad(wt, ((0, 0), (0, 0), (0, Cpad - cin), (0, Cpad - cout)))
        return wt.reshape(9 * Cpad, Cpad)                          # (9*Cpad, Cpad)

    w1m = im2col_weight(w1)
    w2m = im2col_weight(w2)

    def row(v):
        return jnp.pad(v.astype(jnp.float32), (0, Cpad - v.shape[0]))

    zero = jnp.zeros((Cpad,), jnp.float32)
    # all six per-channel vectors in one array -> one DMA
    pvec = jnp.stack([row(b1), row(g1), row(be1), row(b2), row(g2), row(be2), zero, zero])

    grid_spec = pltpu.PrefetchScalarGridSpec(
        num_scalar_prefetch=0,
        grid=(1,),
        in_specs=[
            pl.BlockSpec((N, H, W, Cpad), lambda i: (0, 0, 0, 0)),
            pl.BlockSpec((9 * Cpad, Cpad), lambda i: (0, 0)),
            pl.BlockSpec((9 * Cpad, Cpad), lambda i: (0, 0)),
            pl.BlockSpec((8, Cpad), lambda i: (0, 0)),
        ],
        out_specs=pl.BlockSpec((N, H, W, Cpad), lambda i: (0, 0, 0, 0)),
        scratch_shapes=[pltpu.VMEM((N, H + 2, W + 2, Cpad), jnp.float32)],
    )

    out_p = pl.pallas_call(
        functools.partial(_double_conv2d_kernel, linear=linear),
        out_shape=jax.ShapeDtypeStruct((N, H, W, Cpad), jnp.float32),
        grid_spec=grid_spec,
        compiler_params=pltpu.CompilerParams(
            dimension_semantics=("arbitrary",),
            vmem_limit_bytes=32 * 1024 * 1024,
        ),
    )(x_p, w1m, w2m, pvec)

    # back to PyTorch NCHW, real channels only
    return jnp.transpose(out_p[..., :Cout], (0, 3, 1, 2))


def init_params(key, in_ch, out_ch, kernsize=3):
    """Deterministic init matching nn.Conv2d / nn.BatchNorm2d defaults (PyTorch layouts)."""
    k1, k2, k3, k4 = jax.random.split(key, 4)
    bound1 = 1.0 / float((in_ch * kernsize * kernsize) ** 0.5)
    w1 = jax.random.uniform(k1, (out_ch, in_ch, kernsize, kernsize), jnp.float32,
                            -bound1, bound1)
    b1 = jax.random.uniform(k2, (out_ch,), jnp.float32, -bound1, bound1)
    bound2 = 1.0 / float((out_ch * kernsize * kernsize) ** 0.5)
    w2 = jax.random.uniform(k3, (out_ch, out_ch, kernsize, kernsize), jnp.float32,
                            -bound2, bound2)
    b2 = jax.random.uniform(k4, (out_ch,), jnp.float32, -bound2, bound2)
    g1 = jnp.ones((out_ch,), jnp.float32)
    be1 = jnp.zeros((out_ch,), jnp.float32)
    g2 = jnp.ones((out_ch,), jnp.float32)
    be2 = jnp.zeros((out_ch,), jnp.float32)
    return (w1, b1, g1, be1, w2, b2, g2, be2)


def _reference(x_nchw, params, *, linear=False):
    """Pure-JAX reference of the PyTorch forward (reflect pad, training-mode BN)."""
    w1, b1, g1, be1, w2, b2, g2, be2 = params

    def conv(x, w, b):
        xp = jnp.pad(x, ((0, 0), (0, 0), (1, 1), (1, 1)), mode='reflect')
        y = jax.lax.conv_general_dilated(
            xp, w, window_strides=(1, 1), padding='VALID',
            dimension_numbers=('NCHW', 'OIHW', 'NCHW'))
        return y + b[None, :, None, None]

    def bn_act(x, g, be):
        mean = jnp.mean(x, axis=(0, 2, 3), keepdims=True)
        var = jnp.mean((x - mean) ** 2, axis=(0, 2, 3), keepdims=True)
        y = (x - mean) * jax.lax.rsqrt(var + 1e-5)
        y = y * g[None, :, None, None] + be[None, :, None, None]
        return y if linear else jnp.maximum(y, 0.0)

    h = bn_act(conv(x_nchw, w1, b1), g1, be1)
    return bn_act(conv(h, w2, b2), g2, be2)


if __name__ == "__main__":
    N, in_ch, out_ch, H, W = 2, 4, 8, 16, 16
    key = jax.random.PRNGKey(0)
    kx, kp = jax.random.split(key)
    x = jax.random.normal(kx, (N, in_ch, H, W), jnp.float32)   # PyTorch NCHW layout
    params = init_params(kp, in_ch, out_ch)

    fwd = jax.jit(functools.partial(reflective_double_conv, linear=False))
    out = jax.block_until_ready(fwd(x, params))

    ref = _reference(x, params, linear=False)
    assert out.shape == (N, out_ch, H, W)
    max_err = jnp.max(jnp.abs(out - ref))
    assert jnp.allclose(out, ref, rtol=2e-3, atol=2e-3), f"max abs err {max_err}"

    print("KERNEL_OK")
</pallas_src>

<mosaic_0001>
module attributes {stable_mosaic.version = 11 : i64} {
  func.func @_double_conv2d_kernel(%arg0: i32, %arg1: memref<2x16x16x128xf32, #tpu.memory_space<vmem>>, %arg2: memref<1152x128xf32, #tpu.memory_space<vmem>>, %arg3: memref<1152x128xf32, #tpu.memory_space<vmem>>, %arg4: memref<8x128xf32, #tpu.memory_space<vmem>>, %arg5: memref<2x16x16x128xf32, #tpu.memory_space<vmem>>, %arg6: memref<2x18x18x128xf32, #tpu.memory_space<vmem>>) attributes {dimension_semantics = [#tpu.dimension_semantics<arbitrary>], iteration_bounds = array<i64: 1>, scalar_prefetch = 0 : i64, scratch_operands = 1 : i64, tpu.core_type = #tpu.core_type<tc>, window_params = [{pipeline_mode = #tpu.pipeline_mode<synchronous>, transform_indices = @transform_0, window_bounds = array<i64: 2, 16, 16, 128>}, {pipeline_mode = #tpu.pipeline_mode<synchronous>, transform_indices = @transform_1, window_bounds = array<i64: 1152, 128>}, {pipeline_mode = #tpu.pipeline_mode<synchronous>, transform_indices = @transform_2, window_bounds = array<i64: 1152, 128>}, {pipeline_mode = #tpu.pipeline_mode<synchronous>, transform_indices = @transform_3, window_bounds = array<i64: 8, 128>}, {pipeline_mode = #tpu.pipeline_mode<synchronous>, transform_indices = @transform_4, window_bounds = array<i64: 2, 16, 16, 128>}]} {
    %c0 = arith.constant 0 : index
    %c0_0 = arith.constant 0 : index
    %c0_1 = arith.constant 0 : index
    %c0_2 = arith.constant 0 : index
    %0 = vector.load %arg1[%c0, %c0_0, %c0_1, %c0_2] : memref<2x16x16x128xf32, #tpu.memory_space<vmem>>, vector<2x16x16x128xf32>
    %c0_3 = arith.constant 0 : index
    %c1 = arith.constant 1 : index
    %c1_4 = arith.constant 1 : index
    %c0_5 = arith.constant 0 : index
    %1 = vector.load %arg6[%c0_3, %c1, %c1_4, %c0_5] : memref<2x18x18x128xf32, #tpu.memory_space<vmem>>, vector<2x16x16x128xf32>
    tpu.vector_store %arg6[%c0_3, %c1, %c1_4, %c0_5], %0 {strides = array<i32>} : memref<2x18x18x128xf32, #tpu.memory_space<vmem>>, vector<2x16x16x128xf32>,
    %c0_6 = arith.constant 0 : index
    %c2 = arith.constant 2 : index
    %c0_7 = arith.constant 0 : index
    %c0_8 = arith.constant 0 : index
    %2 = vector.load %arg6[%c0_6, %c2, %c0_7, %c0_8] : memref<2x18x18x128xf32, #tpu.memory_space<vmem>>, vector<2x1x18x128xf32>
    %c0_9 = arith.constant 0 : index
    %c0_10 = arith.constant 0 : index
    %c0_11 = arith.constant 0 : index
    %c0_12 = arith.constant 0 : index
    %3 = vector.load %arg6[%c0_9, %c0_10, %c0_11, %c0_12] : memref<2x18x18x128xf32, #tpu.memory_space<vmem>>, vector<2x1x18x128xf32>
    tpu.vector_store %arg6[%c0_9, %c0_10, %c0_11, %c0_12], %2 {strides = array<i32>} : memref<2x18x18x128xf32, #tpu.memory_space<vmem>>, vector<2x1x18x128xf32>,
    %c0_13 = arith.constant 0 : index
    %c15 = arith.constant 15 : index
    %c0_14 = arith.constant 0 : index
    %c0_15 = arith.constant 0 : index
    %4 = vector.load %arg6[%c0_13, %c15, %c0_14, %c0_15] : memref<2x18x18x128xf32, #tpu.memory_space<vmem>>, vector<2x1x18x128xf32>
    %c0_16 = arith.constant 0 : index
    %c17 = arith.constant 17 : index
    %c0_17 = arith.constant 0 : index
    %c0_18 = arith.constant 0 : index
    %5 = vector.load %arg6[%c0_16, %c17, %c0_17, %c0_18] : memref<2x18x18x128xf32, #tpu.memory_space<vmem>>, vector<2x1x18x128xf32>
    tpu.vector_store %arg6[%c0_16, %c17, %c0_17, %c0_18], %4 {strides = array<i32>} : memref<2x18x18x128xf32, #tpu.memory_space<vmem>>, vector<2x1x18x128xf32>,
    %c0_19 = arith.constant 0 : index
    %c0_20 = arith.constant 0 : index
    %c2_21 = arith.constant 2 : index
    %c0_22 = arith.constant 0 : index
    %6 = vector.load %arg6[%c0_19, %c0_20, %c2_21, %c0_22] : memref<2x18x18x128xf32, #tpu.memory_space<vmem>>, vector<2x18x1x128xf32>
    %c0_23 = arith.constant 0 : index
    %c0_24 = arith.constant 0 : index
    %c0_25 = arith.constant 0 : index
    %c0_26 = arith.constant 0 : index
    %7 = vector.load %arg6[%c0_23, %c0_24, %c0_25, %c0_26] : memref<2x18x18x128xf32, #tpu.memory_space<vmem>>, vector<2x18x1x128xf32>
    tpu.vector_store %arg6[%c0_23, %c0_24, %c0_25, %c0_26], %6 {strides = array<i32>} : memref<2x18x18x128xf32, #tpu.memory_space<vmem>>, vector<2x18x1x128xf32>,
    %c0_27 = arith.constant 0 : index
    %c0_28 = arith.constant 0 : index
    %c15_29 = arith.constant 15 : index
    %c0_30 = arith.constant 0 : index
    %8 = vector.load %arg6[%c0_27, %c0_28, %c15_29, %c0_30] : memref<2x18x18x128xf32, #tpu.memory_space<vmem>>, vector<2x18x1x128xf32>
    %c0_31 = arith.constant 0 : index
    %c0_32 = arith.constant 0 : index
    %c17_33 = arith.constant 17 : index
    %c0_34 = arith.constant 0 : index
    %9 = vector.load %arg6[%c0_31, %c0_32, %c17_33, %c0_34] : memref<2x18x18x128xf32, #tpu.memory_space<vmem>>, vector<2x18x1x128xf32>
    tpu.vector_store %arg6[%c0_31, %c0_32, %c17_33, %c0_34], %8 {strides = array<i32>} : memref<2x18x18x128xf32, #tpu.memory_space<vmem>>, vector<2x18x1x128xf32>,
    %c0_35 = arith.constant 0 : index
    %c0_36 = arith.constant 0 : index
    %10 = vector.load %arg4[%c0_35, %c0_36] : memref<8x128xf32, #tpu.memory_space<vmem>>, vector<1x128xf32>
    %c0_37 = arith.constant 0 : index
    %c0_38 = arith.constant 0 : index
    %c0_39 = arith.constant 0 : index
    %c0_40 = arith.constant 0 : index
    %11 = vector.load %arg6[%c0_37, %c0_38, %c0_39, %c0_40] : memref<2x18x18x128xf32, #tpu.memory_space<vmem>>, vector<2x16x16x128xf32>
    %12 = vector.shape_cast %11 : vector<2x16x16x128xf32> to vector<512x128xf32>
    %c0_41 = arith.constant 0 : index
    %c0_42 = arith.constant 0 : index
    %c1_43 = arith.constant 1 : index
    %c0_44 = arith.constant 0 : index
    %13 = vector.load %arg6[%c0_41, %c0_42, %c1_43, %c0_44] : memref<2x18x18x128xf32, #tpu.memory_space<vmem>>, vector<2x16x16x128xf32>
    %14 = vector.shape_cast %13 : vector<2x16x16x128xf32> to vector<512x128xf32>
    %c0_45 = arith.constant 0 : index
    %c0_46 = arith.constant 0 : index
    %c2_47 = arith.constant 2 : index
    %c0_48 = arith.constant 0 : index
    %15 = vector.load %arg6[%c0_45, %c0_46, %c2_47, %c0_48] : memref<2x18x18x128xf32, #tpu.memory_space<vmem>>, vector<2x16x16x128xf32>
    %16 = vector.shape_cast %15 : vector<2x16x16x128xf32> to vector<512x128xf32>
    %c0_49 = arith.constant 0 : index
    %c1_50 = arith.constant 1 : index
    %c0_51 = arith.constant 0 : index
    %c0_52 = arith.constant 0 : index
    %17 = vector.load %arg6[%c0_49, %c1_50, %c0_51, %c0_52] : memref<2x18x18x128xf32, #tpu.memory_space<vmem>>, vector<2x16x16x128xf32>
    %18 = vector.shape_cast %17 : vector<2x16x16x128xf32> to vector<512x128xf32>
    %c0_53 = arith.constant 0 : index
    %c1_54 = arith.constant 1 : index
    %c1_55 = arith.constant 1 : index
    %c0_56 = arith.constant 0 : index
    %19 = vector.load %arg6[%c0_53, %c1_54, %c1_55, %c0_56] : memref<2x18x18x128xf32, #tpu.memory_space<vmem>>, vector<2x16x16x128xf32>
    %20 = vector.shape_cast %19 : vector<2x16x16x128xf32> to vector<512x128xf32>
    %c0_57 = arith.constant 0 : index
    %c1_58 = arith.constant 1 : index
    %c2_59 = arith.constant 2 : index
    %c0_60 = arith.constant 0 : index
    %21 = vector.load %arg6[%c0_57, %c1_58, %c2_59, %c0_60] : memref<2x18x18x128xf32, #tpu.memory_space<vmem>>, vector<2x16x16x128xf32>
    %22 = vector.shape_cast %21 : vector<2x16x16x128xf32> to vector<512x128xf32>
    %c0_61 = arith.constant 0 : index
    %c2_62 = arith.constant 2 : index
    %c0_63 = arith.constant 0 : index
    %c0_64 = arith.constant 0 : index
    %23 = vector.load %arg6[%c0_61, %c2_62, %c0_63, %c0_64] : memref<2x18x18x128xf32, #tpu.memory_space<vmem>>, vector<2x16x16x128xf32>
    %24 = vector.shape_cast %23 : vector<2x16x16x128xf32> to vector<512x128xf32>
    %c0_65 = arith.constant 0 : index
    %c2_66 = arith.constant 2 : index
    %c1_67 = arith.constant 1 : index
    %c0_68 = arith.constant 0 : index
    %25 = vector.load %arg6[%c0_65, %c2_66, %c1_67, %c0_68] : memref<2x18x18x128xf32, #tpu.memory_space<vmem>>, vector<2x16x16x128xf32>
    %26 = vector.shape_cast %25 : vector<2x16x16x128xf32> to vector<512x128xf32>
    %c0_69 = arith.constant 0 : index
    %c2_70 = arith.constant 2 : index
    %c2_71 = arith.constant 2 : index
    %c0_72 = arith.constant 0 : index
    %27 = vector.load %arg6[%c0_69, %c2_70, %c2_71, %c0_72] : memref<2x18x18x128xf32, #tpu.memory_space<vmem>>, vector<2x16x16x128xf32>
    %28 = vector.shape_cast %27 : vector<2x16x16x128xf32> to vector<512x128xf32>
    %29 = tpu.concatenate %12, %14, %16, %18, %20, %22, %24, %26, %28 in 1 : vector<512x128xf32>, vector<512x128xf32>, vector<512x128xf32>, vector<512x128xf32>, vector<512x128xf32>, vector<512x128xf32>, vector<512x128xf32>, vector<512x128xf32>, vector<512x128xf32> -> vector<512x1152xf32>
    %c0_73 = arith.constant 0 : index
    %c0_74 = arith.constant 0 : index
    %30 = vector.load %arg2[%c0_73, %c0_74] : memref<1152x128xf32, #tpu.memory_space<vmem>>, vector<1152x128xf32>
    %cst = arith.constant dense<0.000000e+00> : vector<512x128xf32>
    %31 = tpu.matmul %29, %30, %cst {dimension_numbers = #tpu.dot_dimension_numbers<[1], [0], [0], [1], [0, 0, 1, 1], [], []>} : vector<512x1152xf32>, vector<1152x128xf32>, vector<512x128xf32> -> vector<512x128xf32>
    %32 = vector.broadcast %10 : vector<1x128xf32> to vector<512x128xf32>
    %33 = arith.addf %31, %32 : vector<512x128xf32>
    %c1_75 = arith.constant 1 : index
    %c0_76 = arith.constant 0 : index
    %34 = vector.load %arg4[%c1_75, %c0_76] : memref<8x128xf32, #tpu.memory_space<vmem>>, vector<1x128xf32>
    %c2_77 = arith.constant 2 : index
    %c0_78 = arith.constant 0 : index
    %35 = vector.load %arg4[%c2_77, %c0_78] : memref<8x128xf32, #tpu.memory_space<vmem>>, vector<1x128xf32>
    %cst_79 = arith.constant dense<0.000000e+00> : vector<128xf32>
    %36 = vector.multi_reduction <add>, %33, %cst_79 [0] : vector<512x128xf32> to vector<128xf32>
    %37 = vector.shape_cast %36 : vector<128xf32> to vector<1x128xf32>
    %cst_80 = arith.constant 5.120000e+02 : f32
    %38 = vector.broadcast %cst_80 : f32 to vector<1x128xf32>
    %39 = arith.divf %37, %38 : vector<1x128xf32>
    %40 = vector.broadcast %39 : vector<1x128xf32> to vector<512x128xf32>
    %41 = arith.subf %33, %40 : vector<512x128xf32>
    %42 = arith.mulf %41, %41 : vector<512x128xf32>
    %cst_81 = arith.constant dense<0.000000e+00> : vector<128xf32>
    %43 = vector.multi_reduction <add>, %42, %cst_81 [0] : vector<512x128xf32> to vector<128xf32>
    %44 = vector.shape_cast %43 : vector<128xf32> to vector<1x128xf32>
    %cst_82 = arith.constant 5.120000e+02 : f32
    %45 = vector.broadcast %cst_82 : f32 to vector<1x128xf32>
    %46 = arith.divf %44, %45 : vector<1x128xf32>
    %cst_83 = arith.constant 9.99999974E-6 : f32
    %47 = vector.broadcast %cst_83 : f32 to vector<1x128xf32>
    %48 = arith.addf %46, %47 : vector<1x128xf32>
    %49 = math.rsqrt %48 : vector<1x128xf32>
    %50 = arith.mulf %34, %49 : vector<1x128xf32>
    %51 = vector.broadcast %50 : vector<1x128xf32> to vector<512x128xf32>
    %52 = arith.mulf %41, %51 : vector<512x128xf32>
    %53 = vector.broadcast %35 : vector<1x128xf32> to vector<512x128xf32>
    %54 = arith.addf %52, %53 : vector<512x128xf32>
    %cst_84 = arith.constant 0.000000e+00 : f32
    %55 = vector.broadcast %cst_84 : f32 to vector<512x128xf32>
    %56 = arith.maximumf %54, %55 : vector<512x128xf32>
    %57 = vector.shape_cast %56 : vector<512x128xf32> to vector<2x16x16x128xf32>
    %c0_85 = arith.constant 0 : index
    %c1_86 = arith.constant 1 : index
    %c1_87 = arith.constant 1 : index
    %c0_88 = arith.constant 0 : index
    %58 = vector.load %arg6[%c0_85, %c1_86, %c1_87, %c0_88] : memref<2x18x18x128xf32, #tpu.memory_space<vmem>>, vector<2x16x16x128xf32>
    tpu.vector_store %arg6[%c0_85, %c1_86, %c1_87, %c0_88], %57 {strides = array<i32>} : memref<2x18x18x128xf32, #tpu.memory_space<vmem>>, vector<2x16x16x128xf32>,
    %c0_89 = arith.constant 0 : index
    %c2_90 = arith.constant 2 : index
    %c0_91 = arith.constant 0 : index
    %c0_92 = arith.constant 0 : index
    %59 = vector.load %arg6[%c0_89, %c2_90, %c0_91, %c0_92] : memref<2x18x18x128xf32, #tpu.memory_space<vmem>>, vector<2x1x18x128xf32>
    %c0_93 = arith.constant 0 : index
    %c0_94 = arith.constant 0 : index
    %c0_95 = arith.constant 0 : index
    %c0_96 = arith.constant 0 : index
    %60 = vector.load %arg6[%c0_93, %c0_94, %c0_95, %c0_96] : memref<2x18x18x128xf32, #tpu.memory_space<vmem>>, vector<2x1x18x128xf32>
    tpu.vector_store %arg6[%c0_93, %c0_94, %c0_95, %c0_96], %59 {strides = array<i32>} : memref<2x18x18x128xf32, #tpu.memory_space<vmem>>, vector<2x1x18x128xf32>,
    %c0_97 = arith.constant 0 : index
    %c15_98 = arith.constant 15 : index
    %c0_99 = arith.constant 0 : index
    %c0_100 = arith.constant 0 : index
    %61 = vector.load %arg6[%c0_97, %c15_98, %c0_99, %c0_100] : memref<2x18x18x128xf32, #tpu.memory_space<vmem>>, vector<2x1x18x128xf32>
    %c0_101 = arith.constant 0 : index
    %c17_102 = arith.constant 17 : index
    %c0_103 = arith.constant 0 : index
    %c0_104 = arith.constant 0 : index
    %62 = vector.load %arg6[%c0_101, %c17_102, %c0_103, %c0_104] : memref<2x18x18x128xf32, #tpu.memory_space<vmem>>, vector<2x1x18x128xf32>
    tpu.vector_store %arg6[%c0_101, %c17_102, %c0_103, %c0_104], %61 {strides = array<i32>} : memref<2x18x18x128xf32, #tpu.memory_space<vmem>>, vector<2x1x18x128xf32>,
    %c0_105 = arith.constant 0 : index
    %c0_106 = arith.constant 0 : index
    %c2_107 = arith.constant 2 : index
    %c0_108 = arith.constant 0 : index
    %63 = vector.load %arg6[%c0_105, %c0_106, %c2_107, %c0_108] : memref<2x18x18x128xf32, #tpu.memory_space<vmem>>, vector<2x18x1x128xf32>
    %c0_109 = arith.constant 0 : index
    %c0_110 = arith.constant 0 : index
    %c0_111 = arith.constant 0 : index
    %c0_112 = arith.constant 0 : index
    %64 = vector.load %arg6[%c0_109, %c0_110, %c0_111, %c0_112] : memref<2x18x18x128xf32, #tpu.memory_space<vmem>>, vector<2x18x1x128xf32>
    tpu.vector_store %arg6[%c0_109, %c0_110, %c0_111, %c0_112], %63 {strides = array<i32>} : memref<2x18x18x128xf32, #tpu.memory_space<vmem>>, vector<2x18x1x128xf32>,
    %c0_113 = arith.constant 0 : index
    %c0_114 = arith.constant 0 : index
    %c15_115 = arith.constant 15 : index
    %c0_116 = arith.constant 0 : index
    %65 = vector.load %arg6[%c0_113, %c0_114, %c15_115, %c0_116] : memref<2x18x18x128xf32, #tpu.memory_space<vmem>>, vector<2x18x1x128xf32>
    %c0_117 = arith.constant 0 : index
    %c0_118 = arith.constant 0 : index
    %c17_119 = arith.constant 17 : index
    %c0_120 = arith.constant 0 : index
    %66 = vector.load %arg6[%c0_117, %c0_118, %c17_119, %c0_120] : memref<2x18x18x128xf32, #tpu.memory_space<vmem>>, vector<2x18x1x128xf32>
    tpu.vector_store %arg6[%c0_117, %c0_118, %c17_119, %c0_120], %65 {strides = array<i32>} : memref<2x18x18x128xf32, #tpu.memory_space<vmem>>, vector<2x18x1x128xf32>,
    %c3 = arith.constant 3 : index
    %c0_121 = arith.constant 0 : index
    %67 = vector.load %arg4[%c3, %c0_121] : memref<8x128xf32, #tpu.memory_space<vmem>>, vector<1x128xf32>
    %c0_122 = arith.constant 0 : index
    %c0_123 = arith.constant 0 : index
    %c0_124 = arith.constant 0 : index
    %c0_125 = arith.constant 0 : index
    %68 = vector.load %arg6[%c0_122, %c0_123, %c0_124, %c0_125] : memref<2x18x18x128xf32, #tpu.memory_space<vmem>>, vector<2x16x16x128xf32>
    %69 = vector.shape_cast %68 : vector<2x16x16x128xf32> to vector<512x128xf32>
    %c0_126 = arith.constant 0 : index
    %c0_127 = arith.constant 0 : index
    %c1_128 = arith.constant 1 : index
    %c0_129 = arith.constant 0 : index
    %70 = vector.load %arg6[%c0_126, %c0_127, %c1_128, %c0_129] : memref<2x18x18x128xf32, #tpu.memory_space<vmem>>, vector<2x16x16x128xf32>
    %71 = vector.shape_cast %70 : vector<2x16x16x128xf32> to vector<512x128xf32>
    %c0_130 = arith.constant 0 : index
    %c0_131 = arith.constant 0 : index
    %c2_132 = arith.constant 2 : index
    %c0_133 = arith.constant 0 : index
    %72 = vector.load %arg6[%c0_130, %c0_131, %c2_132, %c0_133] : memref<2x18x18x128xf32, #tpu.memory_space<vmem>>, vector<2x16x16x128xf32>
    %73 = vector.shape_cast %72 : vector<2x16x16x128xf32> to vector<512x128xf32>
    %c0_134 = arith.constant 0 : index
    %c1_135 = arith.constant 1 : index
    %c0_136 = arith.constant 0 : index
    %c0_137 = arith.constant 0 : index
    %74 = vector.load %arg6[%c0_134, %c1_135, %c0_136, %c0_137] : memref<2x18x18x128xf32, #tpu.memory_space<vmem>>, vector<2x16x16x128xf32>
    %75 = vector.shape_cast %74 : vector<2x16x16x128xf32> to vector<512x128xf32>
    %c0_138 = arith.constant 0 : index
    %c1_139 = arith.constant 1 : index
    %c1_140 = arith.constant 1 : index
    %c0_141 = arith.constant 0 : index
    %76 = vector.load %arg6[%c0_138, %c1_139, %c1_140, %c0_141] : memref<2x18x18x128xf32, #tpu.memory_space<vmem>>, vector<2x16x16x128xf32>
    %77 = vector.shape_cast %76 : vector<2x16x16x128xf32> to vector<512x128xf32>
    %c0_142 = arith.constant 0 : index
    %c1_143 = arith.constant 1 : index
    %c2_144 = arith.constant 2 : index
    %c0_145 = arith.constant 0 : index
    %78 = vector.load %arg6[%c0_142, %c1_143, %c2_144, %c0_145] : memref<2x18x18x128xf32, #tpu.memory_space<vmem>>, vector<2x16x16x128xf32>
    %79 = vector.shape_cast %78 : vector<2x16x16x128xf32> to vector<512x128xf32>
    %c0_146 = arith.constant 0 : index
    %c2_147 = arith.constant 2 : index
    %c0_148 = arith.constant 0 : index
    %c0_149 = arith.constant 0 : index
    %80 = vector.load %arg6[%c0_146, %c2_147, %c0_148, %c0_149] : memref<2x18x18x128xf32, #tpu.memory_space<vmem>>, vector<2x16x16x128xf32>
    %81 = vector.shape_cast %80 : vector<2x16x16x128xf32> to vector<512x128xf32>
    %c0_150 = arith.constant 0 : index
    %c2_151 = arith.constant 2 : index
    %c1_152 = arith.constant 1 : index
    %c0_153 = arith.constant 0 : index
    %82 = vector.load %arg6[%c0_150, %c2_151, %c1_152, %c0_153] : memref<2x18x18x128xf32, #tpu.memory_space<vmem>>, vector<2x16x16x128xf32>
    %83 = vector.shape_cast %82 : vector<2x16x16x128xf32> to vector<512x128xf32>
    %c0_154 = arith.constant 0 : index
    %c2_155 = arith.constant 2 : index
    %c2_156 = arith.constant 2 : index
    %c0_157 = arith.constant 0 : index
    %84 = vector.load %arg6[%c0_154, %c2_155, %c2_156, %c0_157] : memref<2x18x18x128xf32, #tpu.memory_space<vmem>>, vector<2x16x16x128xf32>
    %85 = vector.shape_cast %84 : vector<2x16x16x128xf32> to vector<512x128xf32>
    %86 = tpu.concatenate %69, %71, %73, %75, %77, %79, %81, %83, %85 in 1 : vector<512x128xf32>, vector<512x128xf32>, vector<512x128xf32>, vector<512x128xf32>, vector<512x128xf32>, vector<512x128xf32>, vector<512x128xf32>, vector<512x128xf32>, vector<512x128xf32> -> vector<512x1152xf32>
    %c0_158 = arith.constant 0 : index
    %c0_159 = arith.constant 0 : index
    %87 = vector.load %arg3[%c0_158, %c0_159] : memref<1152x128xf32, #tpu.memory_space<vmem>>, vector<1152x128xf32>
    %cst_160 = arith.constant dense<0.000000e+00> : vector<512x128xf32>
    %88 = tpu.matmul %86, %87, %cst_160 {dimension_numbers = #tpu.dot_dimension_numbers<[1], [0], [0], [1], [0, 0, 1, 1], [], []>} : vector<512x1152xf32>, vector<1152x128xf32>, vector<512x128xf32> -> vector<512x128xf32>
    %89 = vector.broadcast %67 : vector<1x128xf32> to vector<512x128xf32>
    %90 = arith.addf %88, %89 : vector<512x128xf32>
    %c4 = arith.constant 4 : index
    %c0_161 = arith.constant 0 : index
    %91 = vector.load %arg4[%c4, %c0_161] : memref<8x128xf32, #tpu.memory_space<vmem>>, vector<1x128xf32>
    %c5 = arith.constant 5 : index
    %c0_162 = arith.constant 0 : index
    %92 = vector.load %arg4[%c5, %c0_162] : memref<8x128xf32, #tpu.memory_space<vmem>>, vector<1x128xf32>
    %cst_163 = arith.constant dense<0.000000e+00> : vector<128xf32>
    %93 = vector.multi_reduction <add>, %90, %cst_163 [0] : vector<512x128xf32> to vector<128xf32>
    %94 = vector.shape_cast %93 : vector<128xf32> to vector<1x128xf32>
    %cst_164 = arith.constant 5.120000e+02 : f32
    %95 = vector.broadcast %cst_164 : f32 to vector<1x128xf32>
    %96 = arith.divf %94, %95 : vector<1x128xf32>
    %97 = vector.broadcast %96 : vector<1x128xf32> to vector<512x128xf32>
    %98 = arith.subf %90, %97 : vector<512x128xf32>
    %99 = arith.mulf %98, %98 : vector<512x128xf32>
    %cst_165 = arith.constant dense<0.000000e+00> : vector<128xf32>
    %100 = vector.multi_reduction <add>, %99, %cst_165 [0] : vector<512x128xf32> to vector<128xf32>
    %101 = vector.shape_cast %100 : vector<128xf32> to vector<1x128xf32>
    %cst_166 = arith.constant 5.120000e+02 : f32
    %102 = vector.broadcast %cst_166 : f32 to vector<1x128xf32>
    %103 = arith.divf %101, %102 : vector<1x128xf32>
    %cst_167 = arith.constant 9.99999974E-6 : f32
    %104 = vector.broadcast %cst_167 : f32 to vector<1x128xf32>
    %105 = arith.addf %103, %104 : vector<1x128xf32>
    %106 = math.rsqrt %105 : vector<1x128xf32>
    %107 = arith.mulf %91, %106 : vector<1x128xf32>
    %108 = vector.broadcast %107 : vector<1x128xf32> to vector<512x128xf32>
    %109 = arith.mulf %98, %108 : vector<512x128xf32>
    %110 = vector.broadcast %92 : vector<1x128xf32> to vector<512x128xf32>
    %111 = arith.addf %109, %110 : vector<512x128xf32>
    %cst_168 = arith.constant 0.000000e+00 : f32
    %112 = vector.broadcast %cst_168 : f32 to vector<512x128xf32>
    %113 = arith.maximumf %111, %112 : vector<512x128xf32>
    %114 = vector.shape_cast %113 : vector<512x128xf32> to vector<2x16x16x128xf32>
    %c0_169 = arith.constant 0 : index
    %c0_170 = arith.constant 0 : index
    %c0_171 = arith.constant 0 : index
    %c0_172 = arith.constant 0 : index
    %115 = vector.load %arg5[%c0_169, %c0_170, %c0_171, %c0_172] : memref<2x16x16x128xf32, #tpu.memory_space<vmem>>, vector<2x16x16x128xf32>
    tpu.vector_store %arg5[%c0_169, %c0_170, %c0_171, %c0_172], %114 {strides = array<i32>} : memref<2x16x16x128xf32, #tpu.memory_space<vmem>>, vector<2x16x16x128xf32>,
    return
  }
  func.func @transform_0(%arg0: i32) -> (i32, i32, i32, i32) {
    %c0_i32 = arith.constant 0 : i32
    %c0_i32_0 = arith.constant 0 : i32
    %c0_i32_1 = arith.constant 0 : i32
    %c0_i32_2 = arith.constant 0 : i32
    %c0_i32_3 = arith.constant 0 : i32
    return %c0_i32, %c0_i32_0, %c0_i32_1, %c0_i32_2 : i32, i32, i32, i32
  }
  func.func @transform_1(%arg0: i32) -> (i32, i32) {
    %c0_i32 = arith.constant 0 : i32
    %c0_i32_0 = arith.constant 0 : i32
    %c0_i32_1 = arith.constant 0 : i32
    return %c0_i32, %c0_i32_0 : i32, i32
  }
  func.func @transform_2(%arg0: i32) -> (i32, i32) {
    %c0_i32 = arith.constant 0 : i32
    %c0_i32_0 = arith.constant 0 : i32
    %c0_i32_1 = arith.constant 0 : i32
    return %c0_i32, %c0_i32_0 : i32, i32
  }
  func.func @transform_3(%arg0: i32) -> (i32, i32) {
    %c0_i32 = arith.constant 0 : i32
    %c0_i32_0 = arith.constant 0 : i32
    %c0_i32_1 = arith.constant 0 : i32
    return %c0_i32, %c0_i32_0 : i32, i32
  }
  func.func @transform_4(%arg0: i32) -> (i32, i32, i32, i32) {
    %c0_i32 = arith.constant 0 : i32
    %c0_i32_0 = arith.constant 0 : i32
    %c0_i32_1 = arith.constant 0 : i32
    %c0_i32_2 = arith.constant 0 : i32
    %c0_i32_3 = arith.constant 0 : i32
    return %c0_i32, %c0_i32_0, %c0_i32_1, %c0_i32_2 : i32, i32, i32, i32
  }
}

</mosaic_0001>

<llo_original>
// kernel: reflective_double_conv.1
$region0: #{reflective_double_conv.1}
  #allocation0 [shape = 'u32[]', space=smem, size = 0x4, offset = 0x4, fixed_abs, tag = 'smem constant byte address 0x4 - core index']
  #allocation1 [shape = 'u32[144,128]{1,0:T(1,128)}', space=vmem, size = 0x12000, scoped, tag = 'internal scratch']
  #allocation2 [shape = 'f32[2,18,18,128]{3,2,1,0:T(8,128)}', space=vmem, size = 0x6c000, scoped, tag = 'scratch operand']
  %s0 = inlined_call_operand.vmem [shape: f32[2,16,16,128], index: 0, kind: input, shape index: {}]
  %s1 = inlined_call_operand.vmem [shape: f32[1152,128], index: 1, kind: input, shape index: {}]
  %s2 = inlined_call_operand.vmem [shape: f32[1152,128], index: 2, kind: input, shape index: {}]
  %s3 = inlined_call_operand.vmem [shape: f32[8,128], index: 3, kind: input, shape index: {}]
  %s4 = inlined_call_operand.vmem [shape: f32[2,16,16,128], index: 4, kind: output, shape index: {}]
  %s5 = sld [smem:[#allocation0]]
  $region26: #{reflective_double_conv.1} parent=0
    _
  %s7 = ssub.s32 1, %s5
  %s8 = scalar_select 0, %s7, %s5
  // Predicated region
  $region2: #{reflective_double_conv.1} parent=0 // pred_check
    _
  $region3: #{reflective_double_conv.1} parent=0 // pred_check_branch
    %10 = sbr.rel (0) target = $region5
  $region4: #{reflective_double_conv.1} parent=0 // pred_region
    _
  $region5: #{reflective_double_conv.1} parent=0 // pred_fallthru
    _
  // Predicated region
  $region6: #{reflective_double_conv.1} parent=0 // pred_check
    _
  $region7: #{reflective_double_conv.1} parent=0 // pred_check_branch
    %12 = sbr.rel (0) target = $region9
  $region8: #{reflective_double_conv.1} parent=0 // pred_region
    _
  $region9: #{reflective_double_conv.1} parent=0 // pred_fallthru
    _
  // Predicated region
  $region10: #{reflective_double_conv.1} parent=0 // pred_check
    _
  $region11: #{reflective_double_conv.1} parent=0 // pred_check_branch
    %14 = sbr.rel (0) target = $region13
  $region12: #{reflective_double_conv.1} parent=0 // pred_region
    _
  $region13: #{reflective_double_conv.1} parent=0 // pred_fallthru
    _
  // Predicated region
  $region14: #{reflective_double_conv.1} parent=0 // pred_check
    _
  $region15: #{reflective_double_conv.1} parent=0 // pred_check_branch
    %16 = sbr.rel (0) target = $region17
  $region16: #{reflective_double_conv.1} parent=0 // pred_region
    _
  $region17: #{reflective_double_conv.1} parent=0 // pred_fallthru
    _
  %v17 = vld [vmem:[%s0] sm:$0xff]
  %v18 = vld [vmem:[%s0 + $0x8] sm:$0xff]
  %v19 = vld [vmem:[%s0 + $0x10] sm:$0xff]
  %v20 = vld [vmem:[%s0 + $0x18] sm:$0xff]
  %v21 = vld [vmem:[%s0 + $0x20] sm:$0xff]
  %v22 = vld [vmem:[%s0 + $0x28] sm:$0xff]
  %v23 = vld [vmem:[%s0 + $0x30] sm:$0xff]
  %v24 = vld [vmem:[%s0 + $0x38] sm:$0xff]
  %v25 = vld [vmem:[%s0 + $0x40] sm:$0xff]
  %v26 = vld [vmem:[%s0 + $0x48] sm:$0xff]
  %v27 = vld [vmem:[%s0 + $0x50] sm:$0xff]
  %v28 = vld [vmem:[%s0 + $0x58] sm:$0xff]
  %v29 = vld [vmem:[%s0 + $0x60] sm:$0xff]
  %v30 = vld [vmem:[%s0 + $0x68] sm:$0xff]
  %v31 = vld [vmem:[%s0 + $0x70] sm:$0xff]
  %v32 = vld [vmem:[%s0 + $0x78] sm:$0xff]
  %v33 = vld [vmem:[%s0 + $0x80] sm:$0xff]
  %v34 = vld [vmem:[%s0 + $0x88] sm:$0xff]
  %v35 = vld [vmem:[%s0 + $0x90] sm:$0xff]
  %v36 = vld [vmem:[%s0 + $0x98] sm:$0xff]
  %v37 = vld [vmem:[%s0 + $0xa0] sm:$0xff]
  %v38 = vld [vmem:[%s0 + $0xa8] sm:$0xff]
  %v39 = vld [vmem:[%s0 + $0xb0] sm:$0xff]
  %v40 = vld [vmem:[%s0 + $0xb8] sm:$0xff]
  %v41 = vld [vmem:[%s0 + $0xc0] sm:$0xff]
  %v42 = vld [vmem:[%s0 + $0xc8] sm:$0xff]
  %v43 = vld [vmem:[%s0 + $0xd0] sm:$0xff]
  %v44 = vld [vmem:[%s0 + $0xd8] sm:$0xff]
  %v45 = vld [vmem:[%s0 + $0xe0] sm:$0xff]
  %v46 = vld [vmem:[%s0 + $0xe8] sm:$0xff]
  %v47 = vld [vmem:[%s0 + $0xf0] sm:$0xff]
  %v48 = vld [vmem:[%s0 + $0xf8] sm:$0xff]
  %v49 = vld [vmem:[%s0 + $0x100] sm:$0xff]
  %v50 = vld [vmem:[%s0 + $0x108] sm:$0xff]
  %v51 = vld [vmem:[%s0 + $0x110] sm:$0xff]
  %v52 = vld [vmem:[%s0 + $0x118] sm:$0xff]
  %v53 = vld [vmem:[%s0 + $0x120] sm:$0xff]
  %v54 = vld [vmem:[%s0 + $0x128] sm:$0xff]
  %v55 = vld [vmem:[%s0 + $0x130] sm:$0xff]
  %v56 = vld [vmem:[%s0 + $0x138] sm:$0xff]
  %v57 = vld [vmem:[%s0 + $0x140] sm:$0xff]
  %v58 = vld [vmem:[%s0 + $0x148] sm:$0xff]
  %v59 = vld [vmem:[%s0 + $0x150] sm:$0xff]
  %v60 = vld [vmem:[%s0 + $0x158] sm:$0xff]
  %v61 = vld [vmem:[%s0 + $0x160] sm:$0xff]
  %v62 = vld [vmem:[%s0 + $0x168] sm:$0xff]
  %v63 = vld [vmem:[%s0 + $0x170] sm:$0xff]
  %v64 = vld [vmem:[%s0 + $0x178] sm:$0xff]
  %v65 = vld [vmem:[%s0 + $0x180] sm:$0xff]
  %v66 = vld [vmem:[%s0 + $0x188] sm:$0xff]
  %v67 = vld [vmem:[%s0 + $0x190] sm:$0xff]
  %v68 = vld [vmem:[%s0 + $0x198] sm:$0xff]
  %v69 = vld [vmem:[%s0 + $0x1a0] sm:$0xff]
  %v70 = vld [vmem:[%s0 + $0x1a8] sm:$0xff]
  %v71 = vld [vmem:[%s0 + $0x1b0] sm:$0xff]
  %v72 = vld [vmem:[%s0 + $0x1b8] sm:$0xff]
  %v73 = vld [vmem:[%s0 + $0x1c0] sm:$0xff]
  %v74 = vld [vmem:[%s0 + $0x1c8] sm:$0xff]
  %v75 = vld [vmem:[%s0 + $0x1d0] sm:$0xff]
  %v76 = vld [vmem:[%s0 + $0x1d8] sm:$0xff]
  %v77 = vld [vmem:[%s0 + $0x1e0] sm:$0xff]
  %v78 = vld [vmem:[%s0 + $0x1e8] sm:$0xff]
  %v79 = vld [vmem:[%s0 + $0x1f0] sm:$0xff]
  %v80 = vld [vmem:[%s0 + $0x1f8] sm:$0xff]
  %s81 = scalar_lea.vmem [#allocation2], 24
  %82 = vst [vmem:[%s81 + $0x1] sm:$0xff] %v17
  %83 = vst [vmem:[%s81 + $0x9] sm:$0xff] %v18
  %84 = vst [vmem:[%s81 + $0x19] sm:$0xff] %v19
  %85 = vst [vmem:[%s81 + $0x21] sm:$0xff] %v20
  %86 = vst [vmem:[%s81 + $0x31] sm:$0xff] %v21
  %87 = vst [vmem:[%s81 + $0x39] sm:$0xff] %v22
  %88 = vst [vmem:[%s81 + $0x49] sm:$0xff] %v23
  %89 = vst [vmem:[%s81 + $0x51] sm:$0xff] %v24
  %90 = vst [vmem:[%s81 + $0x61] sm:$0xff] %v25
  %91 = vst [vmem:[%s81 + $0x69] sm:$0xff] %v26
  %92 = vst [vmem:[%s81 + $0x79] sm:$0xff] %v27
  %93 = vst [vmem:[%s81 + $0x81] sm:$0xff] %v28
  %94 = vst [vmem:[%s81 + $0x91] sm:$0xff] %v29
  %95 = vst [vmem:[%s81 + $0x99] sm:$0xff] %v30
  %96 = vst [vmem:[%s81 + $0xa9] sm:$0xff] %v31
  %97 = vst [vmem:[%s81 + $0xb1] sm:$0xff] %v32
  %98 = vst [vmem:[%s81 + $0xc1] sm:$0xff] %v33
  %99 = vst [vmem:[%s81 + $0xc9] sm:$0xff] %v34
  %100 = vst [vmem:[%s81 + $0xd9] sm:$0xff] %v35
  %101 = vst [vmem:[%s81 + $0xe1] sm:$0xff] %v36
  %102 = vst [vmem:[%s81 + $0xf1] sm:$0xff] %v37
  %103 = vst [vmem:[%s81 + $0xf9] sm:$0xff] %v38
  %104 = vst [vmem:[%s81 + $0x109] sm:$0xff] %v39
  %105 = vst [vmem:[%s81 + $0x111] sm:$0xff] %v40
  %106 = vst [vmem:[%s81 + $0x121] sm:$0xff] %v41
  %107 = vst [vmem:[%s81 + $0x129] sm:$0xff] %v42
  %108 = vst [vmem:[%s81 + $0x139] sm:$0xff] %v43
  %109 = vst [vmem:[%s81 + $0x141] sm:$0xff] %v44
  %110 = vst [vmem:[%s81 + $0x151] sm:$0xff] %v45
  %111 = vst [vmem:[%s81 + $0x159] sm:$0xff] %v46
  %112 = vst [vmem:[%s81 + $0x169] sm:$0xff] %v47
  %113 = vst [vmem:[%s81 + $0x171] sm:$0xff] %v48
  %114 = vst [vmem:[%s81 + $0x1b1] sm:$0xff] %v49
  %115 = vst [vmem:[%s81 + $0x1b9] sm:$0xff] %v50
  %116 = vst [vmem:[%s81 + $0x1c9] sm:$0xff] %v51
  %117 = vst [vmem:[%s81 + $0x1d1] sm:$0xff] %v52
  %118 = vst [vmem:[%s81 + $0x1e1] sm:$0xff] %v53
  %119 = vst [vmem:[%s81 + $0x1e9] sm:$0xff] %v54
  %120 = vst [vmem:[%s81 + $0x1f9] sm:$0xff] %v55
  %121 = vst [vmem:[%s81 + $0x201] sm:$0xff] %v56
  %122 = vst [vmem:[%s81 + $0x211] sm:$0xff] %v57
  %123 = vst [vmem:[%s81 + $0x219] sm:$0xff] %v58
  %124 = vst [vmem:[%s81 + $0x229] sm:$0xff] %v59
  %125 = vst [vmem:[%s81 + $0x231] sm:$0xff] %v60
  %126 = vst [vmem:[%s81 + $0x241] sm:$0xff] %v61
  %127 = vst [vmem:[%s81 + $0x249] sm:$0xff] %v62
  %128 = vst [vmem:[%s81 + $0x259] sm:$0xff] %v63
  %129 = vst [vmem:[%s81 + $0x261] sm:$0xff] %v64
  %130 = vst [vmem:[%s81 + $0x271] sm:$0xff] %v65
  %131 = vst [vmem:[%s81 + $0x279] sm:$0xff] %v66
  %132 = vst [vmem:[%s81 + $0x289] sm:$0xff] %v67
  %133 = vst [vmem:[%s81 + $0x291] sm:$0xff] %v68
  %134 = vst [vmem:[%s81 + $0x2a1] sm:$0xff] %v69
  %135 = vst [vmem:[%s81 + $0x2a9] sm:$0xff] %v70
  %136 = vst [vmem:[%s81 + $0x2b9] sm:$0xff] %v71
  %137 = vst [vmem:[%s81 + $0x2c1] sm:$0xff] %v72
  %138 = vst [vmem:[%s81 + $0x2d1] sm:$0xff] %v73
  %139 = vst [vmem:[%s81 + $0x2d9] sm:$0xff] %v74
  %140 = vst [vmem:[%s81 + $0x2e9] sm:$0xff] %v75
  %141 = vst [vmem:[%s81 + $0x2f1] sm:$0xff] %v76
  %142 = vst [vmem:[%s81 + $0x301] sm:$0xff] %v77
  %143 = vst [vmem:[%s81 + $0x309] sm:$0xff] %v78
  %144 = vst [vmem:[%s81 + $0x319] sm:$0xff] %v79
  %145 = vst [vmem:[%s81 + $0x321] sm:$0xff] %v80
  %s146 = scalar_lea.vmem [#allocation2], 48
  %v147 = vld [vmem:[%s146] sm:$0xff]
  %v148 = vld [vmem:[%s146 + $0x8] sm:$0xff]
  %v149 = vld [vmem:[%s146 + $0x10] sm:$0x3]
  %v150 = vld [vmem:[%s146 + $0x1b0] sm:$0xff]
  %v151 = vld [vmem:[%s146 + $0x1b8] sm:$0xff]
  %v152 = vld [vmem:[%s146 + $0x1c0] sm:$0x3]
  %153 = vst [vmem:[#allocation2] sm:$0xff] %v147
  %154 = vst [vmem:[#allocation2 + $0x8] sm:$0xff] %v148
  %155 = vst [vmem:[#allocation2 + $0x10] sm:$0x3] %v149
  %156 = vst [vmem:[#allocation2 + $0x1b0] sm:$0xff] %v150
  %157 = vst [vmem:[#allocation2 + $0x1b8] sm:$0xff] %v151
  %158 = vst [vmem:[#allocation2 + $0x1c0] sm:$0x3] %v152
  %s159 = scalar_lea.vmem [#allocation2], 360
  %v160 = vld [vmem:[%s159] sm:$0xff]
  %v161 = vld [vmem:[%s159 + $0x8] sm:$0xff]
  %v162 = vld [vmem:[%s159 + $0x10] sm:$0x3]
  %v163 = vld [vmem:[%s159 + $0x1b0] sm:$0xff]
  %v164 = vld [vmem:[%s159 + $0x1b8] sm:$0xff]
  %v165 = vld [vmem:[%s159 + $0x1c0] sm:$0x3]
  %s166 = scalar_lea.vmem [#allocation2], 408
  %167 = vst [vmem:[%s166] sm:$0xff] %v160
  %168 = vst [vmem:[%s166 + $0x8] sm:$0xff] %v161
  %169 = vst [vmem:[%s166 + $0x10] sm:$0x3] %v162
  %170 = vst [vmem:[%s166 + $0x1b0] sm:$0xff] %v163
  %171 = vst [vmem:[%s166 + $0x1b8] sm:$0xff] %v164
  %172 = vst [vmem:[%s166 + $0x1c0] sm:$0x3] %v165
  %v173 = vld [vmem:[#allocation2 + $0x2] sm:$0x1]
  %v174 = vld [vmem:[#allocation2 + $0x1a] sm:$0x1]
  %v175 = vld [vmem:[#allocation2 + $0x32] sm:$0x1]
  %v176 = vld [vmem:[#allocation2 + $0x4a] sm:$0x1]
  %v177 = vld [vmem:[#allocation2 + $0x62] sm:$0x1]
  %v178 = vld [vmem:[#allocation2 + $0x7a] sm:$0x1]
  %v179 = vld [vmem:[#allocation2 + $0x92] sm:$0x1]
  %v180 = vld [vmem:[#allocation2 + $0xaa] sm:$0x1]
  %v181 = vld [vmem:[#allocation2 + $0xc2] sm:$0x1]
  %v182 = vld [vmem:[#allocation2 + $0xda] sm:$0x1]
  %v183 = vld [vmem:[#allocation2 + $0xf2] sm:$0x1]
  %v184 = vld [vmem:[#allocation2 + $0x10a] sm:$0x1]
  %v185 = vld [vmem:[#allocation2 + $0x122] sm:$0x1]
  %v186 = vld [vmem:[#allocation2 + $0x13a] sm:$0x1]
  %v187 = vld [vmem:[#allocation2 + $0x152] sm:$0x1]
  %v188 = vld [vmem:[#allocation2 + $0x16a] sm:$0x1]
  %v189 = vld [vmem:[#allocation2 + $0x182] sm:$0x1]
  %v190 = vld [vmem:[#allocation2 + $0x19a] sm:$0x1]
  %v191 = vld [vmem:[#allocation2 + $0x1b2] sm:$0x1]
  %v192 = vld [vmem:[#allocation2 + $0x1ca] sm:$0x1]
  %v193 = vld [vmem:[#allocation2 + $0x1e2] sm:$0x1]
  %v194 = vld [vmem:[#allocation2 + $0x1fa] sm:$0x1]
  %v195 = vld [vmem:[#allocation2 + $0x212] sm:$0x1]
  %v196 = vld [vmem:[#allocation2 + $0x22a] sm:$0x1]
  %v197 = vld [vmem:[#allocation2 + $0x242] sm:$0x1]
  %v198 = vld [vmem:[#allocation2 + $0x25a] sm:$0x1]
  %v199 = vld [vmem:[#allocation2 + $0x272] sm:$0x1]
  %v200 = vld [vmem:[#allocation2 + $0x28a] sm:$0x1]
  %v201 = vld [vmem:[#allocation2 + $0x2a2] sm:$0x1]
  %v202 = vld [vmem:[#allocation2 + $0x2ba] sm:$0x1]
  %v203 = vld [vmem:[#allocation2 + $0x2d2] sm:$0x1]
  %v204 = vld [vmem:[#allocation2 + $0x2ea] sm:$0x1]
  %v205 = vld [vmem:[#allocation2 + $0x302] sm:$0x1]
  %v206 = vld [vmem:[#allocation2 + $0x31a] sm:$0x1]
  %v207 = vld [vmem:[#allocation2 + $0x332] sm:$0x1]
  %v208 = vld [vmem:[#allocation2 + $0x34a] sm:$0x1]
  %209 = vst [vmem:[#allocation2] sm:$0x1] %v173
  %210 = vst [vmem:[#allocation2 + $0x18] sm:$0x1] %v174
  %211 = vst [vmem:[#allocation2 + $0x30] sm:$0x1] %v175
  %212 = vst [vmem:[#allocation2 + $0x48] sm:$0x1] %v176
  %213 = vst [vmem:[#allocation2 + $0x60] sm:$0x1] %v177
  %214 = vst [vmem:[#allocation2 + $0x78] sm:$0x1] %v178
  %215 = vst [vmem:[#allocation2 + $0x90] sm:$0x1] %v179
  %216 = vst [vmem:[#allocation2 + $0xa8] sm:$0x1] %v180
  %217 = vst [vmem:[#allocation2 + $0xc0] sm:$0x1] %v181
  %218 = vst [vmem:[#allocation2 + $0xd8] sm:$0x1] %v182
  %219 = vst [vmem:[#allocation2 + $0xf0] sm:$0x1] %v183
  %220 = vst [vmem:[#allocation2 + $0x108] sm:$0x1] %v184
  %221 = vst [vmem:[#allocation2 + $0x120] sm:$0x1] %v185
  %222 = vst [vmem:[#allocation2 + $0x138] sm:$0x1] %v186
  %223 = vst [vmem:[#allocation2 + $0x150] sm:$0x1] %v187
  %224 = vst [vmem:[#allocation2 + $0x168] sm:$0x1] %v188
  %225 = vst [vmem:[#allocation2 + $0x180] sm:$0x1] %v189
  %226 = vst [vmem:[#allocation2 + $0x198] sm:$0x1] %v190
  %227 = vst [vmem:[#allocation2 + $0x1b0] sm:$0x1] %v191
  %228 = vst [vmem:[#allocation2 + $0x1c8] sm:$0x1] %v192
  %229 = vst [vmem:[#allocation2 + $0x1e0] sm:$0x1] %v193
  %230 = vst [vmem:[#allocation2 + $0x1f8] sm:$0x1] %v194
  %231 = vst [vmem:[#allocation2 + $0x210] sm:$0x1] %v195
  %232 = vst [vmem:[#allocation2 + $0x228] sm:$0x1] %v196
  %233 = vst [vmem:[#allocation2 + $0x240] sm:$0x1] %v197
  %234 = vst [vmem:[#allocation2 + $0x258] sm:$0x1] %v198
  %235 = vst [vmem:[#allocation2 + $0x270] sm:$0x1] %v199
  %236 = vst [vmem:[#allocation2 + $0x288] sm:$0x1] %v200
  %237 = vst [vmem:[#allocation2 + $0x2a0] sm:$0x1] %v201
  %238 = vst [vmem:[#allocation2 + $0x2b8] sm:$0x1] %v202
  %239 = vst [vmem:[#allocation2 + $0x2d0] sm:$0x1] %v203
  %240 = vst [vmem:[#allocation2 + $0x2e8] sm:$0x1] %v204
  %241 = vst [vmem:[#allocation2 + $0x300] sm:$0x1] %v205
  %242 = vst [vmem:[#allocation2 + $0x318] sm:$0x1] %v206
  %243 = vst [vmem:[#allocation2 + $0x330] sm:$0x1] %v207
  %244 = vst [vmem:[#allocation2 + $0x348] sm:$0x1] %v208
  %v245 = vld [vmem:[#allocation2 + $0xf] sm:$0x1]
  %v246 = vld [vmem:[#allocation2 + $0x27] sm:$0x1]
  %v247 = vld [vmem:[#allocation2 + $0x3f] sm:$0x1]
  %v248 = vld [vmem:[#allocation2 + $0x57] sm:$0x1]
  %v249 = vld [vmem:[#allocation2 + $0x6f] sm:$0x1]
  %v250 = vld [vmem:[#allocation2 + $0x87] sm:$0x1]
  %v251 = vld [vmem:[#allocation2 + $0x9f] sm:$0x1]
  %v252 = vld [vmem:[#allocation2 + $0xb7] sm:$0x1]
  %v253 = vld [vmem:[#allocation2 + $0xcf] sm:$0x1]
  %v254 = vld [vmem:[#allocation2 + $0xe7] sm:$0x1]
  %v255 = vld [vmem:[#allocation2 + $0xff] sm:$0x1]
  %v256 = vld [vmem:[#allocation2 + $0x117] sm:$0x1]
  %v257 = vld [vmem:[#allocation2 + $0x12f] sm:$0x1]
  %v258 = vld [vmem:[#allocation2 + $0x147] sm:$0x1]
  %v259 = vld [vmem:[#allocation2 + $0x15f] sm:$0x1]
  %v260 = vld [vmem:[#allocation2 + $0x177] sm:$0x1]
  %v261 = vld [vmem:[#allocation2 + $0x18f] sm:$0x1]
  %v262 = vld [vmem:[#allocation2 + $0x1a7] sm:$0x1]
  %v263 = vld [vmem:[#allocation2 + $0x1bf] sm:$0x1]
  %v264 = vld [vmem:[#allocation2 + $0x1d7] sm:$0x1]
  %v265 = vld [vmem:[#allocation2 + $0x1ef] sm:$0x1]
  %v266 = vld [vmem:[#allocation2 + $0x207] sm:$0x1]
  %v267 = vld [vmem:[#allocation2 + $0x21f] sm:$0x1]
  %v268 = vld [vmem:[#allocation2 + $0x237] sm:$0x1]
  %v269 = vld [vmem:[#allocation2 + $0x24f] sm:$0x1]
  %v270 = vld [vmem:[#allocation2 + $0x267] sm:$0x1]
  %v271 = vld [vmem:[#allocation2 + $0x27f] sm:$0x1]
  %v272 = vld [vmem:[#allocation2 + $0x297] sm:$0x1]
  %v273 = vld [vmem:[#allocation2 + $0x2af] sm:$0x1]
  %v274 = vld [vmem:[#allocation2 + $0x2c7] sm:$0x1]
  %v275 = vld [vmem:[#allocation2 + $0x2df] sm:$0x1]
  %v276 = vld [vmem:[#allocation2 + $0x2f7] sm:$0x1]
  %v277 = vld [vmem:[#allocation2 + $0x30f] sm:$0x1]
  %v278 = vld [vmem:[#allocation2 + $0x327] sm:$0x1]
  %v279 = vld [vmem:[#allocation2 + $0x33f] sm:$0x1]
  %v280 = vld [vmem:[#allocation2 + $0x357] sm:$0x1]
  %281 = vst [vmem:[#allocation2 + $0x11] sm:$0x1] %v245
  %282 = vst [vmem:[#allocation2 + $0x29] sm:$0x1] %v246
  %283 = vst [vmem:[#allocation2 + $0x41] sm:$0x1] %v247
  %284 = vst [vmem:[#allocation2 + $0x59] sm:$0x1] %v248
  %285 = vst [vmem:[#allocation2 + $0x71] sm:$0x1] %v249
  %286 = vst [vmem:[#allocation2 + $0x89] sm:$0x1] %v250
  %287 = vst [vmem:[#allocation2 + $0xa1] sm:$0x1] %v251
  %288 = vst [vmem:[#allocation2 + $0xb9] sm:$0x1] %v252
  %289 = vst [vmem:[#allocation2 + $0xd1] sm:$0x1] %v253
  %290 = vst [vmem:[#allocation2 + $0xe9] sm:$0x1] %v254
  %291 = vst [vmem:[#allocation2 + $0x101] sm:$0x1] %v255
  %292 = vst [vmem:[#allocation2 + $0x119] sm:$0x1] %v256
  %293 = vst [vmem:[#allocation2 + $0x131] sm:$0x1] %v257
  %294 = vst [vmem:[#allocation2 + $0x149] sm:$0x1] %v258
  %295 = vst [vmem:[#allocation2 + $0x161] sm:$0x1] %v259
  %296 = vst [vmem:[#allocation2 + $0x179] sm:$0x1] %v260
  %297 = vst [vmem:[#allocation2 + $0x191] sm:$0x1] %v261
  %298 = vst [vmem:[#allocation2 + $0x1a9] sm:$0x1] %v262
  %299 = vst [vmem:[#allocation2 + $0x1c1] sm:$0x1] %v263
  %300 = vst [vmem:[#allocation2 + $0x1d9] sm:$0x1] %v264
  %301 = vst [vmem:[#allocation2 + $0x1f1] sm:$0x1] %v265
  %302 = vst [vmem:[#allocation2 + $0x209] sm:$0x1] %v266
  %303 = vst [vmem:[#allocation2 + $0x221] sm:$0x1] %v267
  %304 = vst [vmem:[#allocation2 + $0x239] sm:$0x1] %v268
  %305 = vst [vmem:[#allocation2 + $0x251] sm:$0x1] %v269
  %306 = vst [vmem:[#allocation2 + $0x269] sm:$0x1] %v270
  %307 = vst [vmem:[#allocation2 + $0x281] sm:$0x1] %v271
  %308 = vst [vmem:[#allocation2 + $0x299] sm:$0x1] %v272
  %309 = vst [vmem:[#allocation2 + $0x2b1] sm:$0x1] %v273
  %310 = vst [vmem:[#allocation2 + $0x2c9] sm:$0x1] %v274
  %311 = vst [vmem:[#allocation2 + $0x2e1] sm:$0x1] %v275
  %312 = vst [vmem:[#allocation2 + $0x2f9] sm:$0x1] %v276
  %313 = vst [vmem:[#allocation2 + $0x311] sm:$0x1] %v277
  %314 = vst [vmem:[#allocation2 + $0x329] sm:$0x1] %v278
  %315 = vst [vmem:[#allocation2 + $0x341] sm:$0x1] %v279
  %316 = vst [vmem:[#allocation2 + $0x359] sm:$0x1] %v280
  %v317 = vld [vmem:[%s3] sm:$0x1]
  %v318 = vld [vmem:[#allocation2] sm:$0xff]
  %v319 = vld [vmem:[#allocation2 + $0x8] sm:$0xff]
  %v320 = vld [vmem:[#allocation2 + $0x18] sm:$0xff]
  %v321 = vld [vmem:[#allocation2 + $0x20] sm:$0xff]
  %v322 = vld [vmem:[#allocation2 + $0x30] sm:$0xff]
  %v323 = vld [vmem:[#allocation2 + $0x38] sm:$0xff]
  %v324 = vld [vmem:[#allocation2 + $0x48] sm:$0xff]
  %v325 = vld [vmem:[#allocation2 + $0x50] sm:$0xff]
  %v326 = vld [vmem:[#allocation2 + $0x60] sm:$0xff]
  %v327 = vld [vmem:[#allocation2 + $0x68] sm:$0xff]
  %v328 = vld [vmem:[#allocation2 + $0x78] sm:$0xff]
  %v329 = vld [vmem:[#allocation2 + $0x80] sm:$0xff]
  %v330 = vld [vmem:[#allocation2 + $0x90] sm:$0xff]
  %v331 = vld [vmem:[#allocation2 + $0x98] sm:$0xff]
  %v332 = vld [vmem:[#allocation2 + $0xa8] sm:$0xff]
  %v333 = vld [vmem:[#allocation2 + $0xb0] sm:$0xff]
  %v334 = vld [vmem:[#allocation2 + $0xc0] sm:$0xff]
  %v335 = vld [vmem:[#allocation2 + $0xc8] sm:$0xff]
  %v336 = vld [vmem:[#allocation2 + $0xd8] sm:$0xff]
  %v337 = vld [vmem:[#allocation2 + $0xe0] sm:$0xff]
  %v338 = vld [vmem:[#allocation2 + $0xf0] sm:$0xff]
  %v339 = vld [vmem:[#allocation2 + $0xf8] sm:$0xff]
  %v340 = vld [vmem:[#allocation2 + $0x108] sm:$0xff]
  %v341 = vld [vmem:[#allocation2 + $0x110] sm:$0xff]
  %v342 = vld [vmem:[#allocation2 + $0x120] sm:$0xff]
  %v343 = vld [vmem:[#allocation2 + $0x128] sm:$0xff]
  %v344 = vld [vmem:[#allocation2 + $0x138] sm:$0xff]
  %v345 = vld [vmem:[#allocation2 + $0x140] sm:$0xff]
  %v346 = vld [vmem:[#allocation2 + $0x150] sm:$0xff]
  %v347 = vld [vmem:[#allocation2 + $0x158] sm:$0xff]
  %v348 = vld [vmem:[#allocation2 + $0x168] sm:$0xff]
  %v349 = vld [vmem:[#allocation2 + $0x170] sm:$0xff]
  %v350 = vld [vmem:[#allocation2 + $0x1b0] sm:$0xff]
  %v351 = vld [vmem:[#allocation2 + $0x1b8] sm:$0xff]
  %v352 = vld [vmem:[#allocation2 + $0x1c8] sm:$0xff]
  %v353 = vld [vmem:[#allocation2 + $0x1d0] sm:$0xff]
  %v354 = vld [vmem:[#allocation2 + $0x1e0] sm:$0xff]
  %v355 = vld [vmem:[#allocation2 + $0x1e8] sm:$0xff]
  %v356 = vld [vmem:[#allocation2 + $0x1f8] sm:$0xff]
  %v357 = vld [vmem:[#allocation2 + $0x200] sm:$0xff]
  %v358 = vld [vmem:[#allocation2 + $0x210] sm:$0xff]
  %v359 = vld [vmem:[#allocation2 + $0x218] sm:$0xff]
  %v360 = vld [vmem:[#allocation2 + $0x228] sm:$0xff]
  %v361 = vld [vmem:[#allocation2 + $0x230] sm:$0xff]
  %v362 = vld [vmem:[#allocation2 + $0x240] sm:$0xff]
  %v363 = vld [vmem:[#allocation2 + $0x248] sm:$0xff]
  %v364 = vld [vmem:[#allocation2 + $0x258] sm:$0xff]
  %v365 = vld [vmem:[#allocation2 + $0x260] sm:$0xff]
  %v366 = vld [vmem:[#allocation2 + $0x270] sm:$0xff]
  %v367 = vld [vmem:[#allocation2 + $0x278] sm:$0xff]
  %v368 = vld [vmem:[#allocation2 + $0x288] sm:$0xff]
  %v369 = vld [vmem:[#allocation2 + $0x290] sm:$0xff]
  %v370 = vld [vmem:[#allocation2 + $0x2a0] sm:$0xff]
  %v371 = vld [vmem:[#allocation2 + $0x2a8] sm:$0xff]
  %v372 = vld [vmem:[#allocation2 + $0x2b8] sm:$0xff]
  %v373 = vld [vmem:[#allocation2 + $0x2c0] sm:$0xff]
  %v374 = vld [vmem:[#allocation2 + $0x2d0] sm:$0xff]
  %v375 = vld [vmem:[#allocation2 + $0x2d8] sm:$0xff]
  %v376 = vld [vmem:[#allocation2 + $0x2e8] sm:$0xff]
  %v377 = vld [vmem:[#allocation2 + $0x2f0] sm:$0xff]
  %v378 = vld [vmem:[#allocation2 + $0x300] sm:$0xff]
  %v379 = vld [vmem:[#allocation2 + $0x308] sm:$0xff]
  %v380 = vld [vmem:[#allocation2 + $0x318] sm:$0xff]
  %v381 = vld [vmem:[#allocation2 + $0x320] sm:$0xff]
  %v382 = vld [vmem:[#allocation2 + $0x1] sm:$0xff]
  %v383 = vld [vmem:[#allocation2 + $0x9] sm:$0xff]
  %v384 = vld [vmem:[#allocation2 + $0x19] sm:$0xff]
  %v385 = vld [vmem:[#allocation2 + $0x21] sm:$0xff]
  %v386 = vld [vmem:[#allocation2 + $0x31] sm:$0xff]
  %v387 = vld [vmem:[#allocation2 + $0x39] sm:$0xff]
  %v388 = vld [vmem:[#allocation2 + $0x49] sm:$0xff]
  %v389 = vld [vmem:[#allocation2 + $0x51] sm:$0xff]
  %v390 = vld [vmem:[#allocation2 + $0x61] sm:$0xff]
  %v391 = vld [vmem:[#allocation2 + $0x69] sm:$0xff]
  %v392 = vld [vmem:[#allocation2 + $0x79] sm:$0xff]
  %v393 = vld [vmem:[#allocation2 + $0x81] sm:$0xff]
  %v394 = vld [vmem:[#allocation2 + $0x91] sm:$0xff]
  %v395 = vld [vmem:[#allocation2 + $0x99] sm:$0xff]
  %v396 = vld [vmem:[#allocation2 + $0xa9] sm:$0xff]
  %v397 = vld [vmem:[#allocation2 + $0xb1] sm:$0xff]
  %v398 = vld [vmem:[#allocation2 + $0xc1] sm:$0xff]
  %v399 = vld [vmem:[#allocation2 + $0xc9] sm:$0xff]
  %v400 = vld [vmem:[#allocation2 + $0xd9] sm:$0xff]
  %v401 = vld [vmem:[#allocation2 + $0xe1] sm:$0xff]
  %v402 = vld [vmem:[#allocation2 + $0xf1] sm:$0xff]
  %v403 = vld [vmem:[#allocation2 + $0xf9] sm:$0xff]
  %v404 = vld [vmem:[#allocation2 + $0x109] sm:$0xff]
  %v405 = vld [vmem:[#allocation2 + $0x111] sm:$0xff]
  %v406 = vld [vmem:[#allocation2 + $0x121] sm:$0xff]
  %v407 = vld [vmem:[#allocation2 + $0x129] sm:$0xff]
  %v408 = vld [vmem:[#allocation2 + $0x139] sm:$0xff]
  %v409 = vld [vmem:[#allocation2 + $0x141] sm:$0xff]
  %v410 = vld [vmem:[#allocation2 + $0x151] sm:$0xff]
  %v411 = vld [vmem:[#allocation2 + $0x159] sm:$0xff]
  %v412 = vld [vmem:[#allocation2 + $0x169] sm:$0xff]
  %v413 = vld [vmem:[#allocation2 + $0x171] sm:$0xff]
  %v414 = vld [vmem:[#allocation2 + $0x1b1] sm:$0xff]
  %v415 = vld [vmem:[#allocation2 + $0x1b9] sm:$0xff]
  %v416 = vld [vmem:[#allocation2 + $0x1c9] sm:$0xff]
  %v417 = vld [vmem:[#allocation2 + $0x1d1] sm:$0xff]
  %v418 = vld [vmem:[#allocation2 + $0x1e1] sm:$0xff]
  %v419 = vld [vmem:[#allocation2 + $0x1e9] sm:$0xff]
  %v420 = vld [vmem:[#allocation2 + $0x1f9] sm:$0xff]
  %v421 = vld [vmem:[#allocation2 + $0x201] sm:$0xff]
  %v422 = vld [vmem:[#allocation2 + $0x211] sm:$0xff]
  %v423 = vld [vmem:[#allocation2 + $0x219] sm:$0xff]
  %v424 = vld [vmem:[#allocation2 + $0x229] sm:$0xff]
  %v425 = vld [vmem:[#allocation2 + $0x231] sm:$0xff]
  %v426 = vld [vmem:[#allocation2 + $0x241] sm:$0xff]
  %v427 = vld [vmem:[#allocation2 + $0x249] sm:$0xff]
  %v428 = vld [vmem:[#allocation2 + $0x259] sm:$0xff]
  %v429 = vld [vmem:[#allocation2 + $0x261] sm:$0xff]
  %v430 = vld [vmem:[#allocation2 + $0x271] sm:$0xff]
  %v431 = vld [vmem:[#allocation2 + $0x279] sm:$0xff]
  %v432 = vld [vmem:[#allocation2 + $0x289] sm:$0xff]
  %v433 = vld [vmem:[#allocation2 + $0x291] sm:$0xff]
  %v434 = vld [vmem:[#allocation2 + $0x2a1] sm:$0xff]
  %v435 = vld [vmem:[#allocation2 + $0x2a9] sm:$0xff]
  %v436 = vld [vmem:[#allocation2 + $0x2b9] sm:$0xff]
  %v437 = vld [vmem:[#allocation2 + $0x2c1] sm:$0xff]
  %v438 = vld [vmem:[#allocation2 + $0x2d1] sm:$0xff]
  %v439 = vld [vmem:[#allocation2 + $0x2d9] sm:$0xff]
  %v440 = vld [vmem:[#allocation2 + $0x2e9] sm:$0xff]
  %v441 = vld [vmem:[#allocation2 + $0x2f1] sm:$0xff]
  %v442 = vld [vmem:[#allocation2 + $0x301] sm:$0xff]
  %v443 = vld [vmem:[#allocation2 + $0x309] sm:$0xff]
  %v444 = vld [vmem:[#allocation2 + $0x319] sm:$0xff]
  %v445 = vld [vmem:[#allocation2 + $0x321] sm:$0xff]
  %v446 = vld [vmem:[#allocation2 + $0x2] sm:$0xff]
  %v447 = vld [vmem:[#allocation2 + $0xa] sm:$0xff]
  %v448 = vld [vmem:[#allocation2 + $0x1a] sm:$0xff]
  %v449 = vld [vmem:[#allocation2 + $0x22] sm:$0xff]
  %v450 = vld [vmem:[#allocation2 + $0x32] sm:$0xff]
  %v451 = vld [vmem:[#allocation2 + $0x3a] sm:$0xff]
  %v452 = vld [vmem:[#allocation2 + $0x4a] sm:$0xff]
  %v453 = vld [vmem:[#allocation2 + $0x52] sm:$0xff]
  %v454 = vld [vmem:[#allocation2 + $0x62] sm:$0xff]
  %v455 = vld [vmem:[#allocation2 + $0x6a] sm:$0xff]
  %v456 = vld [vmem:[#allocation2 + $0x7a] sm:$0xff]
  %v457 = vld [vmem:[#allocation2 + $0x82] sm:$0xff]
  %v458 = vld [vmem:[#allocation2 + $0x92] sm:$0xff]
  %v459 = vld [vmem:[#allocation2 + $0x9a] sm:$0xff]
  %v460 = vld [vmem:[#allocation2 + $0xaa] sm:$0xff]
  %v461 = vld [vmem:[#allocation2 + $0xb2] sm:$0xff]
  %v462 = vld [vmem:[#allocation2 + $0xc2] sm:$0xff]
  %v463 = vld [vmem:[#allocation2 + $0xca] sm:$0xff]
  %v464 = vld [vmem:[#allocation2 + $0xda] sm:$0xff]
  %v465 = vld [vmem:[#allocation2 + $0xe2] sm:$0xff]
  %v466 = vld [vmem:[#allocation2 + $0xf2] sm:$0xff]
  %v467 = vld [vmem:[#allocation2 + $0xfa] sm:$0xff]
  %v468 = vld [vmem:[#allocation2 + $0x10a] sm:$0xff]
  %v469 = vld [vmem:[#allocation2 + $0x112] sm:$0xff]
  %v470 = vld [vmem:[#allocation2 + $0x122] sm:$0xff]
  %v471 = vld [vmem:[#allocation2 + $0x12a] sm:$0xff]
  %v472 = vld [vmem:[#allocation2 + $0x13a] sm:$0xff]
  %v473 = vld [vmem:[#allocation2 + $0x142] sm:$0xff]
  %v474 = vld [vmem:[#allocation2 + $0x152] sm:$0xff]
  %v475 = vld [vmem:[#allocation2 + $0x15a] sm:$0xff]
  %v476 = vld [vmem:[#allocation2 + $0x16a] sm:$0xff]
  %v477 = vld [vmem:[#allocation2 + $0x172] sm:$0xff]
  %v478 = vld [vmem:[#allocation2 + $0x1b2] sm:$0xff]
  %v479 = vld [vmem:[#allocation2 + $0x1ba] sm:$0xff]
  %v480 = vld [vmem:[#allocation2 + $0x1ca] sm:$0xff]
  %v481 = vld [vmem:[#allocation2 + $0x1d2] sm:$0xff]
  %v482 = vld [vmem:[#allocation2 + $0x1e2] sm:$0xff]
  %v483 = vld [vmem:[#allocation2 + $0x1ea] sm:$0xff]
  %v484 = vld [vmem:[#allocation2 + $0x1fa] sm:$0xff]
  %v485 = vld [vmem:[#allocation2 + $0x202] sm:$0xff]
  %v486 = vld [vmem:[#allocation2 + $0x212] sm:$0xff]
  %v487 = vld [vmem:[#allocation2 + $0x21a] sm:$0xff]
  %v488 = vld [vmem:[#allocation2 + $0x22a] sm:$0xff]
  %v489 = vld [vmem:[#allocation2 + $0x232] sm:$0xff]
  %v490 = vld [vmem:[#allocation2 + $0x242] sm:$0xff]
  %v491 = vld [vmem:[#allocation2 + $0x24a] sm:$0xff]
  %v492 = vld [vmem:[#allocation2 + $0x25a] sm:$0xff]
  %v493 = vld [vmem:[#allocation2 + $0x262] sm:$0xff]
  %v494 = vld [vmem:[#allocation2 + $0x272] sm:$0xff]
  %v495 = vld [vmem:[#allocation2 + $0x27a] sm:$0xff]
  %v496 = vld [vmem:[#allocation2 + $0x28a] sm:$0xff]
  %v497 = vld [vmem:[#allocation2 + $0x292] sm:$0xff]
  %v498 = vld [vmem:[#allocation2 + $0x2a2] sm:$0xff]
  %v499 = vld [vmem:[#allocation2 + $0x2aa] sm:$0xff]
  %v500 = vld [vmem:[#allocation2 + $0x2ba] sm:$0xff]
  %v501 = vld [vmem:[#allocation2 + $0x2c2] sm:$0xff]
  %v502 = vld [vmem:[#allocation2 + $0x2d2] sm:$0xff]
  %v503 = vld [vmem:[#allocation2 + $0x2da] sm:$0xff]
  %v504 = vld [vmem:[#allocation2 + $0x2ea] sm:$0xff]
  %v505 = vld [vmem:[#allocation2 + $0x2f2] sm:$0xff]
  %v506 = vld [vmem:[#allocation2 + $0x302] sm:$0xff]
  %v507 = vld [vmem:[#allocation2 + $0x30a] sm:$0xff]
  %v508 = vld [vmem:[#allocation2 + $0x31a] sm:$0xff]
  %v509 = vld [vmem:[#allocation2 + $0x322] sm:$0xff]
  %v510 = vld [vmem:[%s81] sm:$0xff]
  %v511 = vld [vmem:[%s81 + $0x8] sm:$0xff]
  %v512 = vld [vmem:[%s81 + $0x18] sm:$0xff]
  %v513 = vld [vmem:[%s81 + $0x20] sm:$0xff]
  %v514 = vld [vmem:[%s81 + $0x30] sm:$0xff]
  %v515 = vld [vmem:[%s81 + $0x38] sm:$0xff]
  %v516 = vld [vmem:[%s81 + $0x48] sm:$0xff]
  %v517 = vld [vmem:[%s81 + $0x50] sm:$0xff]
  %v518 = vld [vmem:[%s81 + $0x60] sm:$0xff]
  %v519 = vld [vmem:[%s81 + $0x68] sm:$0xff]
  %v520 = vld [vmem:[%s81 + $0x78] sm:$0xff]
  %v521 = vld [vmem:[%s81 + $0x80] sm:$0xff]
  %v522 = vld [vmem:[%s81 + $0x90] sm:$0xff]
  %v523 = vld [vmem:[%s81 + $0x98] sm:$0xff]
  %v524 = vld [vmem:[%s81 + $0xa8] sm:$0xff]
  %v525 = vld [vmem:[%s81 + $0xb0] sm:$0xff]
  %v526 = vld [vmem:[%s81 + $0xc0] sm:$0xff]
  %v527 = vld [vmem:[%s81 + $0xc8] sm:$0xff]
  %v528 = vld [vmem:[%s81 + $0xd8] sm:$0xff]
  %v529 = vld [vmem:[%s81 + $0xe0] sm:$0xff]
  %v530 = vld [vmem:[%s81 + $0xf0] sm:$0xff]
  %v531 = vld [vmem:[%s81 + $0xf8] sm:$0xff]
  %v532 = vld [vmem:[%s81 + $0x108] sm:$0xff]
  %v533 = vld [vmem:[%s81 + $0x110] sm:$0xff]
  %v534 = vld [vmem:[%s81 + $0x120] sm:$0xff]
  %v535 = vld [vmem:[%s81 + $0x128] sm:$0xff]
  %v536 = vld [vmem:[%s81 + $0x138] sm:$0xff]
  %v537 = vld [vmem:[%s81 + $0x140] sm:$0xff]
  %v538 = vld [vmem:[%s81 + $0x150] sm:$0xff]
  %v539 = vld [vmem:[%s81 + $0x158] sm:$0xff]
  %v540 = vld [vmem:[%s81 + $0x168] sm:$0xff]
  %v541 = vld [vmem:[%s81 + $0x170] sm:$0xff]
  %v542 = vld [vmem:[%s81 + $0x1b0] sm:$0xff]
  %v543 = vld [vmem:[%s81 + $0x1b8] sm:$0xff]
  %v544 = vld [vmem:[%s81 + $0x1c8] sm:$0xff]
  %v545 = vld [vmem:[%s81 + $0x1d0] sm:$0xff]
  %v546 = vld [vmem:[%s81 + $0x1e0] sm:$0xff]
  %v547 = vld [vmem:[%s81 + $0x1e8] sm:$0xff]
  %v548 = vld [vmem:[%s81 + $0x1f8] sm:$0xff]
  %v549 = vld [vmem:[%s81 + $0x200] sm:$0xff]
  %v550 = vld [vmem:[%s81 + $0x210] sm:$0xff]
  %v551 = vld [vmem:[%s81 + $0x218] sm:$0xff]
  %v552 = vld [vmem:[%s81 + $0x228] sm:$0xff]
  %v553 = vld [vmem:[%s81 + $0x230] sm:$0xff]
  %v554 = vld [vmem:[%s81 + $0x240] sm:$0xff]
  %v555 = vld [vmem:[%s81 + $0x248] sm:$0xff]
  %v556 = vld [vmem:[%s81 + $0x258] sm:$0xff]
  %v557 = vld [vmem:[%s81 + $0x260] sm:$0xff]
  %v558 = vld [vmem:[%s81 + $0x270] sm:$0xff]
  %v559 = vld [vmem:[%s81 + $0x278] sm:$0xff]
  %v560 = vld [vmem:[%s81 + $0x288] sm:$0xff]
  %v561 = vld [vmem:[%s81 + $0x290] sm:$0xff]
  %v562 = vld [vmem:[%s81 + $0x2a0] sm:$0xff]
  %v563 = vld [vmem:[%s81 + $0x2a8] sm:$0xff]
  %v564 = vld [vmem:[%s81 + $0x2b8] sm:$0xff]
  %v565 = vld [vmem:[%s81 + $0x2c0] sm:$0xff]
  %v566 = vld [vmem:[%s81 + $0x2d0] sm:$0xff]
  %v567 = vld [vmem:[%s81 + $0x2d8] sm:$0xff]
  %v568 = vld [vmem:[%s81 + $0x2e8] sm:$0xff]
  %v569 = vld [vmem:[%s81 + $0x2f0] sm:$0xff]
  %v570 = vld [vmem:[%s81 + $0x300] sm:$0xff]
  %v571 = vld [vmem:[%s81 + $0x308] sm:$0xff]
  %v572 = vld [vmem:[%s81 + $0x318] sm:$0xff]
  %v573 = vld [vmem:[%s81 + $0x320] sm:$0xff]
  %v574 = vld [vmem:[%s81 + $0x1] sm:$0xff]
  %v575 = vld [vmem:[%s81 + $0x9] sm:$0xff]
  %v576 = vld [vmem:[%s81 + $0x19] sm:$0xff]
  %v577 = vld [vmem:[%s81 + $0x21] sm:$0xff]
  %v578 = vld [vmem:[%s81 + $0x31] sm:$0xff]
  %v579 = vld [vmem:[%s81 + $0x39] sm:$0xff]
  %v580 = vld [vmem:[%s81 + $0x49] sm:$0xff]
  %v581 = vld [vmem:[%s81 + $0x51] sm:$0xff]
  %v582 = vld [vmem:[%s81 + $0x61] sm:$0xff]
  %v583 = vld [vmem:[%s81 + $0x69] sm:$0xff]
  %v584 = vld [vmem:[%s81 + $0x79] sm:$0xff]
  %v585 = vld [vmem:[%s81 + $0x81] sm:$0xff]
  %v586 = vld [vmem:[%s81 + $0x91] sm:$0xff]
  %v587 = vld [vmem:[%s81 + $0x99] sm:$0xff]
  %v588 = vld [vmem:[%s81 + $0xa9] sm:$0xff]
  %v589 = vld [vmem:[%s81 + $0xb1] sm:$0xff]
  %v590 = vld [vmem:[%s81 + $0xc1] sm:$0xff]
  %v591 = vld [vmem:[%s81 + $0xc9] sm:$0xff]
  %v592 = vld [vmem:[%s81 + $0xd9] sm:$0xff]
  %v593 = vld [vmem:[%s81 + $0xe1] sm:$0xff]
  %v594 = vld [vmem:[%s81 + $0xf1] sm:$0xff]
  %v595 = vld [vmem:[%s81 + $0xf9] sm:$0xff]
  %v596 = vld [vmem:[%s81 + $0x109] sm:$0xff]
  %v597 = vld [vmem:[%s81 + $0x111] sm:$0xff]
  %v598 = vld [vmem:[%s81 + $0x121] sm:$0xff]
  %v599 = vld [vmem:[%s81 + $0x129] sm:$0xff]
  %v600 = vld [vmem:[%s81 + $0x139] sm:$0xff]
  %v601 = vld [vmem:[%s81 + $0x141] sm:$0xff]
  %v602 = vld [vmem:[%s81 + $0x151] sm:$0xff]
  %v603 = vld [vmem:[%s81 + $0x159] sm:$0xff]
  %v604 = vld [vmem:[%s81 + $0x169] sm:$0xff]
  %v605 = vld [vmem:[%s81 + $0x171] sm:$0xff]
  %v606 = vld [vmem:[%s81 + $0x1b1] sm:$0xff]
  %v607 = vld [vmem:[%s81 + $0x1b9] sm:$0xff]
  %v608 = vld [vmem:[%s81 + $0x1c9] sm:$0xff]
  %v609 = vld [vmem:[%s81 + $0x1d1] sm:$0xff]
  %v610 = vld [vmem:[%s81 + $0x1e1] sm:$0xff]
  %v611 = vld [vmem:[%s81 + $0x1e9] sm:$0xff]
  %v612 = vld [vmem:[%s81 + $0x1f9] sm:$0xff]
  %v613 = vld [vmem:[%s81 + $0x201] sm:$0xff]
  %v614 = vld [vmem:[%s81 + $0x211] sm:$0xff]
  %v615 = vld [vmem:[%s81 + $0x219] sm:$0xff]
  %v616 = vld [vmem:[%s81 + $0x229] sm:$0xff]
  %v617 = vld [vmem:[%s81 + $0x231] sm:$0xff]
  %v618 = vld [vmem:[%s81 + $0x241] sm:$0xff]
  %v619 = vld [vmem:[%s81 + $0x249] sm:$0xff]
  %v620 = vld [vmem:[%s81 + $0x259] sm:$0xff]
  %v621 = vld [vmem:[%s81 + $0x261] sm:$0xff]
  %v622 = vld [vmem:[%s81 + $0x271] sm:$0xff]
  %v623 = vld [vmem:[%s81 + $0x279] sm:$0xff]
  %v624 = vld [vmem:[%s81 + $0x289] sm:$0xff]
  %v625 = vld [vmem:[%s81 + $0x291] sm:$0xff]
  %v626 = vld [vmem:[%s81 + $0x2a1] sm:$0xff]
  %v627 = vld [vmem:[%s81 + $0x2a9] sm:$0xff]
  %v628 = vld [vmem:[%s81 + $0x2b9] sm:$0xff]
  %v629 = vld [vmem:[%s81 + $0x2c1] sm:$0xff]
  %v630 = vld [vmem:[%s81 + $0x2d1] sm:$0xff]
  %v631 = vld [vmem:[%s81 + $0x2d9] sm:$0xff]
  %v632 = vld [vmem:[%s81 + $0x2e9] sm:$0xff]
  %v633 = vld [vmem:[%s81 + $0x2f1] sm:$0xff]
  %v634 = vld [vmem:[%s81 + $0x301] sm:$0xff]
  %v635 = vld [vmem:[%s81 + $0x309] sm:$0xff]
  %v636 = vld [vmem:[%s81 + $0x319] sm:$0xff]
  %v637 = vld [vmem:[%s81 + $0x321] sm:$0xff]
  %v638 = vld [vmem:[%s81 + $0x2] sm:$0xff]
  %v639 = vld [vmem:[%s81 + $0xa] sm:$0xff]
  %v640 = vld [vmem:[%s81 + $0x1a] sm:$0xff]
  %v641 = vld [vmem:[%s81 + $0x22] sm:$0xff]
  %v642 = vld [vmem:[%s81 + $0x32] sm:$0xff]
  %v643 = vld [vmem:[%s81 + $0x3a] sm:$0xff]
  %v644 = vld [vmem:[%s81 + $0x4a] sm:$0xff]
  %v645 = vld [vmem:[%s81 + $0x52] sm:$0xff]
  %v646 = vld [vmem:[%s81 + $0x62] sm:$0xff]
  %v647 = vld [vmem:[%s81 + $0x6a] sm:$0xff]
  %v648 = vld [vmem:[%s81 + $0x7a] sm:$0xff]
  %v649 = vld [vmem:[%s81 + $0x82] sm:$0xff]
  %v650 = vld [vmem:[%s81 + $0x92] sm:$0xff]
  %v651 = vld [vmem:[%s81 + $0x9a] sm:$0xff]
  %v652 = vld [vmem:[%s81 + $0xaa] sm:$0xff]
  %v653 = vld [vmem:[%s81 + $0xb2] sm:$0xff]
  %v654 = vld [vmem:[%s81 + $0xc2] sm:$0xff]
  %v655 = vld [vmem:[%s81 + $0xca] sm:$0xff]
  %v656 = vld [vmem:[%s81 + $0xda] sm:$0xff]
  %v657 = vld [vmem:[%s81 + $0xe2] sm:$0xff]
  %v658 = vld [vmem:[%s81 + $0xf2] sm:$0xff]
  %v659 = vld [vmem:[%s81 + $0xfa] sm:$0xff]
  %v660 = vld [vmem:[%s81 + $0x10a] sm:$0xff]
  %v661 = vld [vmem:[%s81 + $0x112] sm:$0xff]
  %v662 = vld [vmem:[%s81 + $0x122] sm:$0xff]
  %v663 = vld [vmem:[%s81 + $0x12a] sm:$0xff]
  %v664 = vld [vmem:[%s81 + $0x13a] sm:$0xff]
  %v665 = vld [vmem:[%s81 + $0x142] sm:$0xff]
  %v666 = vld [vmem:[%s81 + $0x152] sm:$0xff]
  %v667 = vld [vmem:[%s81 + $0x15a] sm:$0xff]
  %v668 = vld [vmem:[%s81 + $0x16a] sm:$0xff]
  %v669 = vld [vmem:[%s81 + $0x172] sm:$0xff]
  %v670 = vld [vmem:[%s81 + $0x1b2] sm:$0xff]
  %v671 = vld [vmem:[%s81 + $0x1ba] sm:$0xff]
  %v672 = vld [vmem:[%s81 + $0x1ca] sm:$0xff]
  %v673 = vld [vmem:[%s81 + $0x1d2] sm:$0xff]
  %v674 = vld [vmem:[%s81 + $0x1e2] sm:$0xff]
  %v675 = vld [vmem:[%s81 + $0x1ea] sm:$0xff]
  %v676 = vld [vmem:[%s81 + $0x1fa] sm:$0xff]
  %v677 = vld [vmem:[%s81 + $0x202] sm:$0xff]
  %v678 = vld [vmem:[%s81 + $0x212] sm:$0xff]
  %v679 = vld [vmem:[%s81 + $0x21a] sm:$0xff]
  %v680 = vld [vmem:[%s81 + $0x22a] sm:$0xff]
  %v681 = vld [vmem:[%s81 + $0x232] sm:$0xff]
  %v682 = vld [vmem:[%s81 + $0x242] sm:$0xff]
  %v683 = vld [vmem:[%s81 + $0x24a] sm:$0xff]
  %v684 = vld [vmem:[%s81 + $0x25a] sm:$0xff]
  %v685 = vld [vmem:[%s81 + $0x262] sm:$0xff]
  %v686 = vld [vmem:[%s81 + $0x272] sm:$0xff]
  %v687 = vld [vmem:[%s81 + $0x27a] sm:$0xff]
  %v688 = vld [vmem:[%s81 + $0x28a] sm:$0xff]
  %v689 = vld [vmem:[%s81 + $0x292] sm:$0xff]
  %v690 = vld [vmem:[%s81 + $0x2a2] sm:$0xff]
  %v691 = vld [vmem:[%s81 + $0x2aa] sm:$0xff]
  %v692 = vld [vmem:[%s81 + $0x2ba] sm:$0xff]
  %v693 = vld [vmem:[%s81 + $0x2c2] sm:$0xff]
  %v694 = vld [vmem:[%s81 + $0x2d2] sm:$0xff]
  %v695 = vld [vmem:[%s81 + $0x2da] sm:$0xff]
  %v696 = vld [vmem:[%s81 + $0x2ea] sm:$0xff]
  %v697 = vld [vmem:[%s81 + $0x2f2] sm:$0xff]
  %v698 = vld [vmem:[%s81 + $0x302] sm:$0xff]
  %v699 = vld [vmem:[%s81 + $0x30a] sm:$0xff]
  %v700 = vld [vmem:[%s81 + $0x31a] sm:$0xff]
  %v701 = vld [vmem:[%s81 + $0x322] sm:$0xff]
  %v702 = vld [vmem:[%s146] sm:$0xff]
  %v703 = vld [vmem:[%s146 + $0x8] sm:$0xff]
  %v704 = vld [vmem:[%s146 + $0x18] sm:$0xff]
  %v705 = vld [vmem:[%s146 + $0x20] sm:$0xff]
  %v706 = vld [vmem:[%s146 + $0x30] sm:$0xff]
  %v707 = vld [vmem:[%s146 + $0x38] sm:$0xff]
  %v708 = vld [vmem:[%s146 + $0x48] sm:$0xff]
  %v709 = vld [vmem:[%s146 + $0x50] sm:$0xff]
  %v710 = vld [vmem:[%s146 + $0x60] sm:$0xff]
  %v711 = vld [vmem:[%s146 + $0x68] sm:$0xff]
  %v712 = vld [vmem:[%s146 + $0x78] sm:$0xff]
  %v713 = vld [vmem:[%s146 + $0x80] sm:$0xff]
  %v714 = vld [vmem:[%s146 + $0x90] sm:$0xff]
  %v715 = vld [vmem:[%s146 + $0x98] sm:$0xff]
  %v716 = vld [vmem:[%s146 + $0xa8] sm:$0xff]
  %v717 = vld [vmem:[%s146 + $0xb0] sm:$0xff]
  %v718 = vld [vmem:[%s146 + $0xc0] sm:$0xff]
  %v719 = vld [vmem:[%s146 + $0xc8] sm:$0xff]
  %v720 = vld [vmem:[%s146 + $0xd8] sm:$0xff]
  %v721 = vld [vmem:[%s146 + $0xe0] sm:$0xff]
  %v722 = vld [vmem:[%s146 + $0xf0] sm:$0xff]
  %v723 = vld [vmem:[%s146 + $0xf8] sm:$0xff]
  %v724 = vld [vmem:[%s146 + $0x108] sm:$0xff]
  %v725 = vld [vmem:[%s146 + $0x110] sm:$0xff]
  %v726 = vld [vmem:[%s146 + $0x120] sm:$0xff]
  %v727 = vld [vmem:[%s146 + $0x128] sm:$0xff]
  %v728 = vld [vmem:[%s146 + $0x138] sm:$0xff]
  %v729 = vld [vmem:[%s146 + $0x140] sm:$0xff]
  %v730 = vld [vmem:[%s146 + $0x150] sm:$0xff]
  %v731 = vld [vmem:[%s146 + $0x158] sm:$0xff]
  %v732 = vld [vmem:[%s146 + $0x168] sm:$0xff]
  %v733 = vld [vmem:[%s146 + $0x170] sm:$0xff]
  %v734 = vld [vmem:[%s146 + $0x1b0] sm:$0xff]
  %v735 = vld [vmem:[%s146 + $0x1b8] sm:$0xff]
  %v736 = vld [vmem:[%s146 + $0x1c8] sm:$0xff]
  %v737 = vld [vmem:[%s146 + $0x1d0] sm:$0xff]
  %v738 = vld [vmem:[%s146 + $0x1e0] sm:$0xff]
  %v739 = vld [vmem:[%s146 + $0x1e8] sm:$0xff]
  %v740 = vld [vmem:[%s146 + $0x1f8] sm:$0xff]
  %v741 = vld [vmem:[%s146 + $0x200] sm:$0xff]
  %v742 = vld [vmem:[%s146 + $0x210] sm:$0xff]
  %v743 = vld [vmem:[%s146 + $0x218] sm:$0xff]
  %v744 = vld [vmem:[%s146 + $0x228] sm:$0xff]
  %v745 = vld [vmem:[%s146 + $0x230] sm:$0xff]
  %v746 = vld [vmem:[%s146 + $0x240] sm:$0xff]
  %v747 = vld [vmem:[%s146 + $0x248] sm:$0xff]
  %v748 = vld [vmem:[%s146 + $0x258] sm:$0xff]
  %v749 = vld [vmem:[%s146 + $0x260] sm:$0xff]
  %v750 = vld [vmem:[%s146 + $0x270] sm:$0xff]
  %v751 = vld [vmem:[%s146 + $0x278] sm:$0xff]
  %v752 = vld [vmem:[%s146 + $0x288] sm:$0xff]
  %v753 = vld [vmem:[%s146 + $0x290] sm:$0xff]
  %v754 = vld [vmem:[%s146 + $0x2a0] sm:$0xff]
  %v755 = vld [vmem:[%s146 + $0x2a8] sm:$0xff]
  %v756 = vld [vmem:[%s146 + $0x2b8] sm:$0xff]
  %v757 = vld [vmem:[%s146 + $0x2c0] sm:$0xff]
  %v758 = vld [vmem:[%s146 + $0x2d0] sm:$0xff]
  %v759 = vld [vmem:[%s146 + $0x2d8] sm:$0xff]
  %v760 = vld [vmem:[%s146 + $0x2e8] sm:$0xff]
  %v761 = vld [vmem:[%s146 + $0x2f0] sm:$0xff]
  %v762 = vld [vmem:[%s146 + $0x300] sm:$0xff]
  %v763 = vld [vmem:[%s146 + $0x308] sm:$0xff]
  %v764 = vld [vmem:[%s146 + $0x318] sm:$0xff]
  %v765 = vld [vmem:[%s146 + $0x320] sm:$0xff]
  %v766 = vld [vmem:[%s146 + $0x1] sm:$0xff]
  %v767 = vld [vmem:[%s146 + $0x9] sm:$0xff]
  %v768 = vld [vmem:[%s146 + $0x19] sm:$0xff]
  %v769 = vld [vmem:[%s146 + $0x21] sm:$0xff]
  %v770 = vld [vmem:[%s146 + $0x31] sm:$0xff]
  %v771 = vld [vmem:[%s146 + $0x39] sm:$0xff]
  %v772 = vld [vmem:[%s146 + $0x49] sm:$0xff]
  %v773 = vld [vmem:[%s146 + $0x51] sm:$0xff]
  %v774 = vld [vmem:[%s146 + $0x61] sm:$0xff]
  %v775 = vld [vmem:[%s146 + $0x69] sm:$0xff]
  %v776 = vld [vmem:[%s146 + $0x79] sm:$0xff]
  %v777 = vld [vmem:[%s146 + $0x81] sm:$0xff]
  %v778 = vld [vmem:[%s146 + $0x91] sm:$0xff]
  %v779 = vld [vmem:[%s146 + $0x99] sm:$0xff]
  %v780 = vld [vmem:[%s146 + $0xa9] sm:$0xff]
  %v781 = vld [vmem:[%s146 + $0xb1] sm:$0xff]
  %v782 = vld [vmem:[%s146 + $0xc1] sm:$0xff]
  %v783 = vld [vmem:[%s146 + $0xc9] sm:$0xff]
  %v784 = vld [vmem:[%s146 + $0xd9] sm:$0xff]
  %v785 = vld [vmem:[%s146 + $0xe1] sm:$0xff]
  %v786 = vld [vmem:[%s146 + $0xf1] sm:$0xff]
  %v787 = vld [vmem:[%s146 + $0xf9] sm:$0xff]
  %v788 = vld [vmem:[%s146 + $0x109] sm:$0xff]
  %v789 = vld [vmem:[%s146 + $0x111] sm:$0xff]
  %v790 = vld [vmem:[%s146 + $0x121] sm:$0xff]
  %v791 = vld [vmem:[%s146 + $0x129] sm:$0xff]
  %v792 = vld [vmem:[%s146 + $0x139] sm:$0xff]
  %v793 = vld [vmem:[%s146 + $0x141] sm:$0xff]
  %v794 = vld [vmem:[%s146 + $0x151] sm:$0xff]
  %v795 = vld [vmem:[%s146 + $0x159] sm:$0xff]
  %v796 = vld [vmem:[%s146 + $0x169] sm:$0xff]
  %v797 = vld [vmem:[%s146 + $0x171] sm:$0xff]
  %v798 = vld [vmem:[%s146 + $0x1b1] sm:$0xff]
  %v799 = vld [vmem:[%s146 + $0x1b9] sm:$0xff]
  %v800 = vld [vmem:[%s146 + $0x1c9] sm:$0xff]
  %v801 = vld [vmem:[%s146 + $0x1d1] sm:$0xff]
  %v802 = vld [vmem:[%s146 + $0x1e1] sm:$0xff]
  %v803 = vld [vmem:[%s146 + $0x1e9] sm:$0xff]
  %v804 = vld [vmem:[%s146 + $0x1f9] sm:$0xff]
  %v805 = vld [vmem:[%s146 + $0x201] sm:$0xff]
  %v806 = vld [vmem:[%s146 + $0x211] sm:$0xff]
  %v807 = vld [vmem:[%s146 + $0x219] sm:$0xff]
  %v808 = vld [vmem:[%s146 + $0x229] sm:$0xff]
  %v809 = vld [vmem:[%s146 + $0x231] sm:$0xff]
  %v810 = vld [vmem:[%s146 + $0x241] sm:$0xff]
  %v811 = vld [vmem:[%s146 + $0x249] sm:$0xff]
  %v812 = vld [vmem:[%s146 + $0x259] sm:$0xff]
  %v813 = vld [vmem:[%s146 + $0x261] sm:$0xff]
  %v814 = vld [vmem:[%s146 + $0x271] sm:$0xff]
  %v815 = vld [vmem:[%s146 + $0x279] sm:$0xff]
  %v816 = vld [vmem:[%s146 + $0x289] sm:$0xff]
  %v817 = vld [vmem:[%s146 + $0x291] sm:$0xff]
  %v818 = vld [vmem:[%s146 + $0x2a1] sm:$0xff]
  %v819 = vld [vmem:[%s146 + $0x2a9] sm:$0xff]
  %v820 = vld [vmem:[%s146 + $0x2b9] sm:$0xff]
  %v821 = vld [vmem:[%s146 + $0x2c1] sm:$0xff]
  %v822 = vld [vmem:[%s146 + $0x2d1] sm:$0xff]
  %v823 = vld [vmem:[%s146 + $0x2d9] sm:$0xff]
  %v824 = vld [vmem:[%s146 + $0x2e9] sm:$0xff]
  %v825 = vld [vmem:[%s146 + $0x2f1] sm:$0xff]
  %v826 = vld [vmem:[%s146 + $0x301] sm:$0xff]
  %v827 = vld [vmem:[%s146 + $0x309] sm:$0xff]
  %v828 = vld [vmem:[%s146 + $0x319] sm:$0xff]
  %v829 = vld [vmem:[%s146 + $0x321] sm:$0xff]
  %v830 = vld [vmem:[%s146 + $0x2] sm:$0xff]
  %v831 = vld [vmem:[%s146 + $0xa] sm:$0xff]
  %v832 = vld [vmem:[%s146 + $0x1a] sm:$0xff]
  %v833 = vld [vmem:[%s146 + $0x22] sm:$0xff]
  %v834 = vld [vmem:[%s146 + $0x32] sm:$0xff]
  %v835 = vld [vmem:[%s146 + $0x3a] sm:$0xff]
  %v836 = vld [vmem:[%s146 + $0x4a] sm:$0xff]
  %v837 = vld [vmem:[%s146 + $0x52] sm:$0xff]
  %v838 = vld [vmem:[%s146 + $0x62] sm:$0xff]
  %v839 = vld [vmem:[%s146 + $0x6a] sm:$0xff]
  %v840 = vld [vmem:[%s146 + $0x7a] sm:$0xff]
  %v841 = vld [vmem:[%s146 + $0x82] sm:$0xff]
  %v842 = vld [vmem:[%s146 + $0x92] sm:$0xff]
  %v843 = vld [vmem:[%s146 + $0x9a] sm:$0xff]
  %v844 = vld [vmem:[%s146 + $0xaa] sm:$0xff]
  %v845 = vld [vmem:[%s146 + $0xb2] sm:$0xff]
  %v846 = vld [vmem:[%s146 + $0xc2] sm:$0xff]
  %v847 = vld [vmem:[%s146 + $0xca] sm:$0xff]
  %v848 = vld [vmem:[%s146 + $0xda] sm:$0xff]
  %v849 = vld [vmem:[%s146 + $0xe2] sm:$0xff]
  %v850 = vld [vmem:[%s146 + $0xf2] sm:$0xff]
  %v851 = vld [vmem:[%s146 + $0xfa] sm:$0xff]
  %v852 = vld [vmem:[%s146 + $0x10a] sm:$0xff]
  %v853 = vld [vmem:[%s146 + $0x112] sm:$0xff]
  %v854 = vld [vmem:[%s146 + $0x122] sm:$0xff]
  %v855 = vld [vmem:[%s146 + $0x12a] sm:$0xff]
  %v856 = vld [vmem:[%s146 + $0x13a] sm:$0xff]
  %v857 = vld [vmem:[%s146 + $0x142] sm:$0xff]
  %v858 = vld [vmem:[%s146 + $0x152] sm:$0xff]
  %v859 = vld [vmem:[%s146 + $0x15a] sm:$0xff]
  %v860 = vld [vmem:[%s146 + $0x16a] sm:$0xff]
  %v861 = vld [vmem:[%s146 + $0x172] sm:$0xff]
  %v862 = vld [vmem:[%s146 + $0x1b2] sm:$0xff]
  %v863 = vld [vmem:[%s146 + $0x1ba] sm:$0xff]
  %v864 = vld [vmem:[%s146 + $0x1ca] sm:$0xff]
  %v865 = vld [vmem:[%s146 + $0x1d2] sm:$0xff]
  %v866 = vld [vmem:[%s146 + $0x1e2] sm:$0xff]
  %v867 = vld [vmem:[%s146 + $0x1ea] sm:$0xff]
  %v868 = vld [vmem:[%s146 + $0x1fa] sm:$0xff]
  %v869 = vld [vmem:[%s146 + $0x202] sm:$0xff]
  %v870 = vld [vmem:[%s146 + $0x212] sm:$0xff]
  %v871 = vld [vmem:[%s146 + $0x21a] sm:$0xff]
  %v872 = vld [vmem:[%s146 + $0x22a] sm:$0xff]
  %v873 = vld [vmem:[%s146 + $0x232] sm:$0xff]
  %v874 = vld [vmem:[%s146 + $0x242] sm:$0xff]
  %v875 = vld [vmem:[%s146 + $0x24a] sm:$0xff]
  %v876 = vld [vmem:[%s146 + $0x25a] sm:$0xff]
  %v877 = vld [vmem:[%s146 + $0x262] sm:$0xff]
  %v878 = vld [vmem:[%s146 + $0x272] sm:$0xff]
  %v879 = vld [vmem:[%s146 + $0x27a] sm:$0xff]
  %v880 = vld [vmem:[%s146 + $0x28a] sm:$0xff]
  %v881 = vld [vmem:[%s146 + $0x292] sm:$0xff]
  %v882 = vld [vmem:[%s146 + $0x2a2] sm:$0xff]
  %v883 = vld [vmem:[%s146 + $0x2aa] sm:$0xff]
  %v884 = vld [vmem:[%s146 + $0x2ba] sm:$0xff]
  %v885 = vld [vmem:[%s146 + $0x2c2] sm:$0xff]
  %v886 = vld [vmem:[%s146 + $0x2d2] sm:$0xff]
  %v887 = vld [vmem:[%s146 + $0x2da] sm:$0xff]
  %v888 = vld [vmem:[%s146 + $0x2ea] sm:$0xff]
  %v889 = vld [vmem:[%s146 + $0x2f2] sm:$0xff]
  %v890 = vld [vmem:[%s146 + $0x302] sm:$0xff]
  %v891 = vld [vmem:[%s146 + $0x30a] sm:$0xff]
  %v892 = vld [vmem:[%s146 + $0x31a] sm:$0xff]
  %v893 = vld [vmem:[%s146 + $0x322] sm:$0xff]
  %v894 = vld [vmem:[%s1] sm:$0xff]
  %v895 = vld [vmem:[%s1 + $0x8] sm:$0xff]
  %v896 = vld [vmem:[%s1 + $0x10] sm:$0xff]
  %v897 = vld [vmem:[%s1 + $0x18] sm:$0xff]
  %v898 = vld [vmem:[%s1 + $0x20] sm:$0xff]
  %v899 = vld [vmem:[%s1 + $0x28] sm:$0xff]
  %v900 = vld [vmem:[%s1 + $0x30] sm:$0xff]
  %v901 = vld [vmem:[%s1 + $0x38] sm:$0xff]
  %v902 = vld [vmem:[%s1 + $0x40] sm:$0xff]
  %v903 = vld [vmem:[%s1 + $0x48] sm:$0xff]
  %v904 = vld [vmem:[%s1 + $0x50] sm:$0xff]
  %v905 = vld [vmem:[%s1 + $0x58] sm:$0xff]
  %v906 = vld [vmem:[%s1 + $0x60] sm:$0xff]
  %v907 = vld [vmem:[%s1 + $0x68] sm:$0xff]
  %v908 = vld [vmem:[%s1 + $0x70] sm:$0xff]
  %v909 = vld [vmem:[%s1 + $0x78] sm:$0xff]
  %v910 = vld [vmem:[%s1 + $0x80] sm:$0xff]
  %v911 = vld [vmem:[%s1 + $0x88] sm:$0xff]
  %v912 = vld [vmem:[%s1 + $0x90] sm:$0xff]
  %v913 = vld [vmem:[%s1 + $0x98] sm:$0xff]
  %v914 = vld [vmem:[%s1 + $0xa0] sm:$0xff]
  %v915 = vld [vmem:[%s1 + $0xa8] sm:$0xff]
  %v916 = vld [vmem:[%s1 + $0xb0] sm:$0xff]
  %v917 = vld [vmem:[%s1 + $0xb8] sm:$0xff]
  %v918 = vld [vmem:[%s1 + $0xc0] sm:$0xff]
  %v919 = vld [vmem:[%s1 + $0xc8] sm:$0xff]
  %v920 = vld [vmem:[%s1 + $0xd0] sm:$0xff]
  %v921 = vld [vmem:[%s1 + $0xd8] sm:$0xff]
  %v922 = vld [vmem:[%s1 + $0xe0] sm:$0xff]
  %v923 = vld [vmem:[%s1 + $0xe8] sm:$0xff]
  %v924 = vld [vmem:[%s1 + $0xf0] sm:$0xff]
  %v925 = vld [vmem:[%s1 + $0xf8] sm:$0xff]
  %v926 = vld [vmem:[%s1 + $0x100] sm:$0xff]
  %v927 = vld [vmem:[%s1 + $0x108] sm:$0xff]
  %v928 = vld [vmem:[%s1 + $0x110] sm:$0xff]
  %v929 = vld [vmem:[%s1 + $0x118] sm:$0xff]
  %v930 = vld [vmem:[%s1 + $0x120] sm:$0xff]
  %v931 = vld [vmem:[%s1 + $0x128] sm:$0xff]
  %v932 = vld [vmem:[%s1 + $0x130] sm:$0xff]
  %v933 = vld [vmem:[%s1 + $0x138] sm:$0xff]
  %v934 = vld [vmem:[%s1 + $0x140] sm:$0xff]
  %v935 = vld [vmem:[%s1 + $0x148] sm:$0xff]
  %v936 = vld [vmem:[%s1 + $0x150] sm:$0xff]
  %v937 = vld [vmem:[%s1 + $0x158] sm:$0xff]
  %v938 = vld [vmem:[%s1 + $0x160] sm:$0xff]
  %v939 = vld [vmem:[%s1 + $0x168] sm:$0xff]
  %v940 = vld [vmem:[%s1 + $0x170] sm:$0xff]
  %v941 = vld [vmem:[%s1 + $0x178] sm:$0xff]
  %v942 = vld [vmem:[%s1 + $0x180] sm:$0xff]
  %v943 = vld [vmem:[%s1 + $0x188] sm:$0xff]
  %v944 = vld [vmem:[%s1 + $0x190] sm:$0xff]
  %v945 = vld [vmem:[%s1 + $0x198] sm:$0xff]
  %v946 = vld [vmem:[%s1 + $0x1a0] sm:$0xff]
  %v947 = vld [vmem:[%s1 + $0x1a8] sm:$0xff]
  %v948 = vld [vmem:[%s1 + $0x1b0] sm:$0xff]
  %v949 = vld [vmem:[%s1 + $0x1b8] sm:$0xff]
  %v950 = vld [vmem:[%s1 + $0x1c0] sm:$0xff]
  %v951 = vld [vmem:[%s1 + $0x1c8] sm:$0xff]
  %v952 = vld [vmem:[%s1 + $0x1d0] sm:$0xff]
  %v953 = vld [vmem:[%s1 + $0x1d8] sm:$0xff]
  %v954 = vld [vmem:[%s1 + $0x1e0] sm:$0xff]
  %v955 = vld [vmem:[%s1 + $0x1e8] sm:$0xff]
  %v956 = vld [vmem:[%s1 + $0x1f0] sm:$0xff]
  %v957 = vld [vmem:[%s1 + $0x1f8] sm:$0xff]
  %v958 = vld [vmem:[%s1 + $0x200] sm:$0xff]
  %v959 = vld [vmem:[%s1 + $0x208] sm:$0xff]
  %v960 = vld [vmem:[%s1 + $0x210] sm:$0xff]
  %v961 = vld [vmem:[%s1 + $0x218] sm:$0xff]
  %v962 = vld [vmem:[%s1 + $0x220] sm:$0xff]
  %v963 = vld [vmem:[%s1 + $0x228] sm:$0xff]
  %v964 = vld [vmem:[%s1 + $0x230] sm:$0xff]
  %v965 = vld [vmem:[%s1 + $0x238] sm:$0xff]
  %v966 = vld [vmem:[%s1 + $0x240] sm:$0xff]
  %v967 = vld [vmem:[%s1 + $0x248] sm:$0xff]
  %v968 = vld [vmem:[%s1 + $0x250] sm:$0xff]
  %v969 = vld [vmem:[%s1 + $0x258] sm:$0xff]
  %v970 = vld [vmem:[%s1 + $0x260] sm:$0xff]
  %v971 = vld [vmem:[%s1 + $0x268] sm:$0xff]
  %v972 = vld [vmem:[%s1 + $0x270] sm:$0xff]
  %v973 = vld [vmem:[%s1 + $0x278] sm:$0xff]
  %v974 = vld [vmem:[%s1 + $0x280] sm:$0xff]
  %v975 = vld [vmem:[%s1 + $0x288] sm:$0xff]
  %v976 = vld [vmem:[%s1 + $0x290] sm:$0xff]
  %v977 = vld [vmem:[%s1 + $0x298] sm:$0xff]
  %v978 = vld [vmem:[%s1 + $0x2a0] sm:$0xff]
  %v979 = vld [vmem:[%s1 + $0x2a8] sm:$0xff]
  %v980 = vld [vmem:[%s1 + $0x2b0] sm:$0xff]
  %v981 = vld [vmem:[%s1 + $0x2b8] sm:$0xff]
  %v982 = vld [vmem:[%s1 + $0x2c0] sm:$0xff]
  %v983 = vld [vmem:[%s1 + $0x2c8] sm:$0xff]
  %v984 = vld [vmem:[%s1 + $0x2d0] sm:$0xff]
  %v985 = vld [vmem:[%s1 + $0x2d8] sm:$0xff]
  %v986 = vld [vmem:[%s1 + $0x2e0] sm:$0xff]
  %v987 = vld [vmem:[%s1 + $0x2e8] sm:$0xff]
  %v988 = vld [vmem:[%s1 + $0x2f0] sm:$0xff]
  %v989 = vld [vmem:[%s1 + $0x2f8] sm:$0xff]
  %v990 = vld [vmem:[%s1 + $0x300] sm:$0xff]
  %v991 = vld [vmem:[%s1 + $0x308] sm:$0xff]
  %v992 = vld [vmem:[%s1 + $0x310] sm:$0xff]
  %v993 = vld [vmem:[%s1 + $0x318] sm:$0xff]
  %v994 = vld [vmem:[%s1 + $0x320] sm:$0xff]
  %v995 = vld [vmem:[%s1 + $0x328] sm:$0xff]
  %v996 = vld [vmem:[%s1 + $0x330] sm:$0xff]
  %v997 = vld [vmem:[%s1 + $0x338] sm:$0xff]
  %v998 = vld [vmem:[%s1 + $0x340] sm:$0xff]
  %v999 = vld [vmem:[%s1 + $0x348] sm:$0xff]
  %v1000 = vld [vmem:[%s1 + $0x350] sm:$0xff]
  %v1001 = vld [vmem:[%s1 + $0x358] sm:$0xff]
  %v1002 = vld [vmem:[%s1 + $0x360] sm:$0xff]
  %v1003 = vld [vmem:[%s1 + $0x368] sm:$0xff]
  %v1004 = vld [vmem:[%s1 + $0x370] sm:$0xff]
  %v1005 = vld [vmem:[%s1 + $0x378] sm:$0xff]
  %v1006 = vld [vmem:[%s1 + $0x380] sm:$0xff]
  %v1007 = vld [vmem:[%s1 + $0x388] sm:$0xff]
  %v1008 = vld [vmem:[%s1 + $0x390] sm:$0xff]
  %v1009 = vld [vmem:[%s1 + $0x398] sm:$0xff]
  %v1010 = vld [vmem:[%s1 + $0x3a0] sm:$0xff]
  %v1011 = vld [vmem:[%s1 + $0x3a8] sm:$0xff]
  %v1012 = vld [vmem:[%s1 + $0x3b0] sm:$0xff]
  %v1013 = vld [vmem:[%s1 + $0x3b8] sm:$0xff]
  %v1014 = vld [vmem:[%s1 + $0x3c0] sm:$0xff]
  %v1015 = vld [vmem:[%s1 + $0x3c8] sm:$0xff]
  %v1016 = vld [vmem:[%s1 + $0x3d0] sm:$0xff]
  %v1017 = vld [vmem:[%s1 + $0x3d8] sm:$0xff]
  %v1018 = vld [vmem:[%s1 + $0x3e0] sm:$0xff]
  %v1019 = vld [vmem:[%s1 + $0x3e8] sm:$0xff]
  %v1020 = vld [vmem:[%s1 + $0x3f0] sm:$0xff]
  %v1021 = vld [vmem:[%s1 + $0x3f8] sm:$0xff]
  %v1022 = vld [vmem:[%s1 + $0x400] sm:$0xff]
  %v1023 = vld [vmem:[%s1 + $0x408] sm:$0xff]
  %v1024 = vld [vmem:[%s1 + $0x410] sm:$0xff]
  %v1025 = vld [vmem:[%s1 + $0x418] sm:$0xff]
  %v1026 = vld [vmem:[%s1 + $0x420] sm:$0xff]
  %v1027 = vld [vmem:[%s1 + $0x428] sm:$0xff]
  %v1028 = vld [vmem:[%s1 + $0x430] sm:$0xff]
  %v1029 = vld [vmem:[%s1 + $0x438] sm:$0xff]
  %v1030 = vld [vmem:[%s1 + $0x440] sm:$0xff]
  %v1031 = vld [vmem:[%s1 + $0x448] sm:$0xff]
  %v1032 = vld [vmem:[%s1 + $0x450] sm:$0xff]
  %v1033 = vld [vmem:[%s1 + $0x458] sm:$0xff]
  %v1034 = vld [vmem:[%s1 + $0x460] sm:$0xff]
  %v1035 = vld [vmem:[%s1 + $0x468] sm:$0xff]
  %v1036 = vld [vmem:[%s1 + $0x470] sm:$0xff]
  %v1037 = vld [vmem:[%s1 + $0x478] sm:$0xff]
  %v1038 = vlaneseq
  %v1039 = vshrl.u32 %v1038, 7
  %v1040 = vsub.s32 0, %v1039
  %v1041 = vrot.slane %v317, %v1040
  %1042 = vmatprep.subr.mxu0 0.0
  %1043 = vmatpush1.msra.mxu0 %v894
  %1044 = vmatprep.subr.mxu0 0.0
  %1045 = vmatpush1.msra.mxu0 %v895
  %1046 = vmatprep.subr.mxu0 0.0
  %1047 = vmatpush1.msra.mxu0 %v896
  %1048 = vmatprep.subr.mxu0 0.0
  %1049 = vmatpush1.msra.mxu0 %v897
  %1050 = vmatprep.subr.mxu0 0.0
  %1051 = vmatpush1.msra.mxu0 %v898
  %1052 = vmatprep.subr.mxu0 0.0
  %1053 = vmatpush1.msra.mxu0 %v899
  %1054 = vmatprep.subr.mxu0 0.0
  %1055 = vmatpush1.msra.mxu0 %v900
  %1056 = vmatprep.subr.mxu0 0.0
  %1057 = vmatpush1.msra.mxu0 %v901
  %1058 = vmatprep.subr.mxu0 0.0
  %1059 = vmatpush1.msra.mxu0 %v902
  %1060 = vmatprep.subr.mxu0 0.0
  %1061 = vmatpush1.msra.mxu0 %v903
  %1062 = vmatprep.subr.mxu0 0.0
  %1063 = vmatpush1.msra.mxu0 %v904
  %1064 = vmatprep.subr.mxu0 0.0
  %1065 = vmatpush1.msra.mxu0 %v905
  %1066 = vmatprep.subr.mxu0 0.0
  %1067 = vmatpush1.msra.mxu0 %v906
  %1068 = vmatprep.subr.mxu0 0.0
  %1069 = vmatpush1.msra.mxu0 %v907
  %1070 = vmatprep.subr.mxu0 0.0
  %1071 = vmatpush1.msra.mxu0 %v908
  %1072 = vmatprep.subr.mxu0 0.0
  %1073 = vmatpush1.msra.mxu0 %v909
  %1074 = vmatprep.subr.mxu0 0.0
  %1075 = vmatpush1.msra.mxu0 %v910
  %1076 = vmatprep.subr.mxu0 0.0
  %1077 = vmatpush1.msra.mxu0 %v911
  %1078 = vmatprep.subr.mxu0 0.0
  %1079 = vmatpush1.msra.mxu0 %v912
  %1080 = vmatprep.subr.mxu0 0.0
  %1081 = vmatpush1.msra.mxu0 %v913
  %1082 = vmatprep.subr.mxu0 0.0
  %1083 = vmatpush1.msra.mxu0 %v914
  %1084 = vmatprep.subr.mxu0 0.0
  %1085 = vmatpush1.msra.mxu0 %v915
  %1086 = vmatprep.subr.mxu0 0.0
  %1087 = vmatpush1.msra.mxu0 %v916
  %1088 = vmatprep.subr.mxu0 0.0
  %1089 = vmatpush1.msra.mxu0 %v917
  %1090 = vmatprep.subr.mxu0 0.0
  %1091 = vmatpush1.msra.mxu0 %v918
  %1092 = vmatprep.subr.mxu0 0.0
  %1093 = vmatpush1.msra.mxu0 %v919
  %1094 = vmatprep.subr.mxu0 0.0
  %1095 = vmatpush1.msra.mxu0 %v920
  %1096 = vmatprep.subr.mxu0 0.0
  %1097 = vmatpush1.msra.mxu0 %v921
  %1098 = vmatprep.subr.mxu0 0.0
  %1099 = vmatpush1.msra.mxu0 %v922
  %1100 = vmatprep.subr.mxu0 0.0
  %1101 = vmatpush1.msra.mxu0 %v923
  %1102 = vmatprep.subr.mxu0 0.0
  %1103 = vmatpush1.msra.mxu0 %v924
  %1104 = vmatprep.subr.mxu0 0.0
  %1105 = vmatpush1.msra.mxu0 %v925
  %1106 = vmatprep.mubr.f32.mxu0 %v382
  %1107 = vmatmul.mubr.f32.gmra.mrb[0].mxu0 %v318
  %v1108 = vpop.f32.mrb[0].mxu0
  %v1109 = vadd.f32 %v1041, %v1108
  %v1110 = vpop.f32.mrb[0].mxu0
  %1111 = vmatprep.mubr.f32.mxu0 %v383
  %1112 = vmatmul.mubr.f32.gmra.mrb[0].mxu0 %v319
  %v1113 = vpop.f32.mrb[0].mxu0
  %v1114 = vadd.f32 %v1041, %v1113
  %v1115 = vpop.f32.mrb[0].mxu0
  %1116 = vmatprep.mubr.f32.mxu0 %v384
  %1117 = vmatmul.mubr.f32.gmra.mrb[0].mxu0 %v320
  %v1118 = vpop.f32.mrb[0].mxu0
  %v1119 = vadd.f32 %v1041, %v1118
  %v1120 = vpop.f32.mrb[0].mxu0
  %1121 = vmatprep.mubr.f32.mxu0 %v385
  %1122 = vmatmul.mubr.f32.gmra.mrb[0].mxu0 %v321
  %v1123 = vpop.f32.mrb[0].mxu0
  %v1124 = vadd.f32 %v1041, %v1123
  %v1125 = vpop.f32.mrb[0].mxu0
  %1126 = vmatprep.mubr.f32.mxu0 %v386
  %1127 = vmatmul.mubr.f32.gmra.mrb[0].mxu0 %v322
  %v1128 = vpop.f32.mrb[0].mxu0
  %v1129 = vadd.f32 %v1041, %v1128
  %v1130 = vpop.f32.mrb[0].mxu0
  %1131 = vmatprep.mubr.f32.mxu0 %v387
  %1132 = vmatmul.mubr.f32.gmra.mrb[0].mxu0 %v323
  %v1133 = vpop.f32.mrb[0].mxu0
  %v1134 = vadd.f32 %v1041, %v1133
  %v1135 = vpop.f32.mrb[0].mxu0
  %1136 = vmatprep.mubr.f32.mxu0 %v388
  %1137 = vmatmul.mubr.f32.gmra.mrb[0].mxu0 %v324
  %v1138 = vpop.f32.mrb[0].mxu0
  %v1139 = vadd.f32 %v1041, %v1138
  %v1140 = vpop.f32.mrb[0].mxu0
  %1141 = vmatprep.mubr.f32.mxu0 %v389
  %1142 = vmatmul.mubr.f32.gmra.mrb[0].mxu0 %v325
  %v1143 = vpop.f32.mrb[0].mxu0
  %v1144 = vadd.f32 %v1041, %v1143
  %v1145 = vpop.f32.mrb[0].mxu0
  %1146 = vmatprep.mubr.f32.mxu0 %v390
  %1147 = vmatmul.mubr.f32.gmra.mrb[0].mxu0 %v326
  %v1148 = vpop.f32.mrb[0].mxu0
  %v1149 = vadd.f32 %v1041, %v1148
  %v1150 = vpop.f32.mrb[0].mxu0
  %1151 = vmatprep.mubr.f32.mxu0 %v391
  %1152 = vmatmul.mubr.f32.gmra.mrb[0].mxu0 %v327
  %v1153 = vpop.f32.mrb[0].mxu0
  %v1154 = vadd.f32 %v1041, %v1153
  %v1155 = vpop.f32.mrb[0].mxu0
  %1156 = vmatprep.mubr.f32.mxu0 %v392
  %1157 = vmatmul.mubr.f32.gmra.mrb[0].mxu0 %v328
  %v1158 = vpop.f32.mrb[0].mxu0
  %v1159 = vadd.f32 %v1041, %v1158
  %v1160 = vpop.f32.mrb[0].mxu0
  %1161 = vmatprep.mubr.f32.mxu0 %v393
  %1162 = vmatmul.mubr.f32.gmra.mrb[0].mxu0 %v329
  %v1163 = vpop.f32.mrb[0].mxu0
  %v1164 = vadd.f32 %v1041, %v1163
  %v1165 = vpop.f32.mrb[0].mxu0
  %1166 = vmatprep.mubr.f32.mxu0 %v394
  %1167 = vmatmul.mubr.f32.gmra.mrb[0].mxu0 %v330
  %v1168 = vpop.f32.mrb[0].mxu0
  %v1169 = vadd.f32 %v1041, %v1168
  %v1170 = vpop.f32.mrb[0].mxu0
  %1171 = vmatprep.mubr.f32.mxu0 %v395
  %1172 = vmatmul.mubr.f32.gmra.mrb[0].mxu0 %v331
  %v1173 = vpop.f32.mrb[0].mxu0
  %v1174 = vadd.f32 %v1041, %v1173
  %v1175 = vpop.f32.mrb[0].mxu0
  %1176 = vmatprep.mubr.f32.mxu0 %v396
  %1177 = vmatmul.mubr.f32.gmra.mrb[0].mxu0 %v332
  %v1178 = vpop.f32.mrb[0].mxu0
  %v1179 = vadd.f32 %v1041, %v1178
  %v1180 = vpop.f32.mrb[0].mxu0
  %1181 = vmatprep.mubr.f32.mxu0 %v397
  %1182 = vmatmul.mubr.f32.gmra.mrb[0].mxu0 %v333
  %v1183 = vpop.f32.mrb[0].mxu0
  %v1184 = vadd.f32 %v1041, %v1183
  %v1185 = vpop.f32.mrb[0].mxu0
  %1186 = vmatprep.mubr.f32.mxu0 %v398
  %1187 = vmatmul.mubr.f32.gmra.mrb[0].mxu0 %v334
  %v1188 = vpop.f32.mrb[0].mxu0
  %v1189 = vadd.f32 %v1041, %v1188
  %v1190 = vpop.f32.mrb[0].mxu0
  %1191 = vmatprep.mubr.f32.mxu0 %v399
  %1192 = vmatmul.mubr.f32.gmra.mrb[0].mxu0 %v335
  %v1193 = vpop.f32.mrb[0].mxu0
  %v1194 = vadd.f32 %v1041, %v1193
  %v1195 = vpop.f32.mrb[0].mxu0
  %1196 = vmatprep.mubr.f32.mxu0 %v400
  %1197 = vmatmul.mubr.f32.gmra.mrb[0].mxu0 %v336
  %v1198 = vpop.f32.mrb[0].mxu0
  %v1199 = vadd.f32 %v1041, %v1198
  %v1200 = vpop.f32.mrb[0].mxu0
  %1201 = vmatprep.mubr.f32.mxu0 %v401
  %1202 = vmatmul.mubr.f32.gmra.mrb[0].mxu0 %v337
  %v1203 = vpop.f32.mrb[0].mxu0
  %v1204 = vadd.f32 %v1041, %v1203
  %v1205 = vpop.f32.mrb[0].mxu0
  %1206 = vmatprep.mubr.f32.mxu0 %v402
  %1207 = vmatmul.mubr.f32.gmra.mrb[0].mxu0 %v338
  %v1208 = vpop.f32.mrb[0].mxu0
  %v1209 = vadd.f32 %v1041, %v1208
  %v1210 = vpop.f32.mrb[0].mxu0
  %1211 = vmatprep.mubr.f32.mxu0 %v403
  %1212 = vmatmul.mubr.f32.gmra.mrb[0].mxu0 %v339
  %v1213 = vpop.f32.mrb[0].mxu0
  %v1214 = vadd.f32 %v1041, %v1213
  %v1215 = vpop.f32.mrb[0].mxu0
  %1216 = vmatprep.mubr.f32.mxu0 %v404
  %1217 = vmatmul.mubr.f32.gmra.mrb[0].mxu0 %v340
  %v1218 = vpop.f32.mrb[0].mxu0
  %v1219 = vadd.f32 %v1041, %v1218
  %v1220 = vpop.f32.mrb[0].mxu0
  %1221 = vmatprep.mubr.f32.mxu0 %v405
  %1222 = vmatmul.mubr.f32.gmra.mrb[0].mxu0 %v341
  %v1223 = vpop.f32.mrb[0].mxu0
  %v1224 = vadd.f32 %v1041, %v1223
  %v1225 = vpop.f32.mrb[0].mxu0
  %1226 = vmatprep.mubr.f32.mxu0 %v406
  %1227 = vmatmul.mubr.f32.gmra.mrb[0].mxu0 %v342
  %v1228 = vpop.f32.mrb[0].mxu0
  %v1229 = vadd.f32 %v1041, %v1228
  %v1230 = vpop.f32.mrb[0].mxu0
  %1231 = vmatprep.mubr.f32.mxu0 %v407
  %1232 = vmatmul.mubr.f32.gmra.mrb[0].mxu0 %v343
  %v1233 = vpop.f32.mrb[0].mxu0
  %v1234 = vadd.f32 %v1041, %v1233
  %v1235 = vpop.f32.mrb[0].mxu0
  %1236 = vmatprep.mubr.f32.mxu0 %v408
  %1237 = vmatmul.mubr.f32.gmra.mrb[0].mxu0 %v344
  %v1238 = vpop.f32.mrb[0].mxu0
  %v1239 = vadd.f32 %v1041, %v1238
  %v1240 = vpop.f32.mrb[0].mxu0
  %1241 = vmatprep.mubr.f32.mxu0 %v409
  %1242 = vmatmul.mubr.f32.gmra.mrb[0].mxu0 %v345
  %v1243 = vpop.f32.mrb[0].mxu0
  %v1244 = vadd.f32 %v1041, %v1243
  %v1245 = vpop.f32.mrb[0].mxu0
  %1246 = vmatprep.mubr.f32.mxu0 %v410
  %1247 = vmatmul.mubr.f32.gmra.mrb[0].mxu0 %v346
  %v1248 = vpop.f32.mrb[0].mxu0
  %v1249 = vadd.f32 %v1041, %v1248
  %v1250 = vpop.f32.mrb[0].mxu0
  %1251 = vmatprep.mubr.f32.mxu0 %v411
  %1252 = vmatmul.mubr.f32.gmra.mrb[0].mxu0 %v347
  %v1253 = vpop.f32.mrb[0].mxu0
  %v1254 = vadd.f32 %v1041, %v1253
  %v1255 = vpop.f32.mrb[0].mxu0
  %1256 = vmatprep.mubr.f32.mxu0 %v412
  %1257 = vmatmul.mubr.f32.gmra.mrb[0].mxu0 %v348
  %v1258 = vpop.f32.mrb[0].mxu0
  %v1259 = vadd.f32 %v1041, %v1258
  %v1260 = vpop.f32.mrb[0].mxu0
  %1261 = vmatprep.mubr.f32.mxu0 %v413
  %1262 = vmatmul.mubr.f32.gmra.mrb[0].mxu0 %v349
  %v1263 = vpop.f32.mrb[0].mxu0
  %v1264 = vadd.f32 %v1041, %v1263
  %v1265 = vpop.f32.mrb[0].mxu0
  %1266 = vmatprep.mubr.f32.mxu0 %v414
  %1267 = vmatmul.mubr.f32.gmra.mrb[0].mxu0 %v350
  %v1268 = vpop.f32.mrb[0].mxu0
  %v1269 = vadd.f32 %v1041, %v1268
  %v1270 = vpop.f32.mrb[0].mxu0
  %1271 = vmatprep.mubr.f32.mxu0 %v415
  %1272 = vmatmul.mubr.f32.gmra.mrb[0].mxu0 %v351
  %v1273 = vpop.f32.mrb[0].mxu0
  %v1274 = vadd.f32 %v1041, %v1273
  %v1275 = vpop.f32.mrb[0].mxu0
  %1276 = vmatprep.mubr.f32.mxu0 %v416
  %1277 = vmatmul.mubr.f32.gmra.mrb[0].mxu0 %v352
  %v1278 = vpop.f32.mrb[0].mxu0
  %v1279 = vadd.f32 %v1041, %v1278
  %v1280 = vpop.f32.mrb[0].mxu0
  %1281 = vmatprep.mubr.f32.mxu0 %v417
  %1282 = vmatmul.mubr.f32.gmra.mrb[0].mxu0 %v353
  %v1283 = vpop.f32.mrb[0].mxu0
  %v1284 = vadd.f32 %v1041, %v1283
  %v1285 = vpop.f32.mrb[0].mxu0
  %1286 = vmatprep.mubr.f32.mxu0 %v418
  %1287 = vmatmul.mubr.f32.gmra.mrb[0].mxu0 %v354
  %v1288 = vpop.f32.mrb[0].mxu0
  %v1289 = vadd.f32 %v1041, %v1288
  %v1290 = vpop.f32.mrb[0].mxu0
  %1291 = vmatprep.mubr.f32.mxu0 %v419
  %1292 = vmatmul.mubr.f32.gmra.mrb[0].mxu0 %v355
  %v1293 = vpop.f32.mrb[0].mxu0
  %v1294 = vadd.f32 %v1041, %v1293
  %v1295 = vpop.f32.mrb[0].mxu0
  %1296 = vmatprep.mubr.f32.mxu0 %v420
  %1297 = vmatmul.mubr.f32.gmra.mrb[0].mxu0 %v356
  %v1298 = vpop.f32.mrb[0].mxu0
  %v1299 = vadd.f32 %v1041, %v1298
  %v1300 = vpop.f32.mrb[0].mxu0
  %1301 = vmatprep.mubr.f32.mxu0 %v421
  %1302 = vmatmul.mubr.f32.gmra.mrb[0].mxu0 %v357
  %v1303 = vpop.f32.mrb[0].mxu0
  %v1304 = vadd.f32 %v1041, %v1303
  %v1305 = vpop.f32.mrb[0].mxu0
  %1306 = vmatprep.mubr.f32.mxu0 %v422
  %1307 = vmatmul.mubr.f32.gmra.mrb[0].mxu0 %v358
  %v1308 = vpop.f32.mrb[0].mxu0
  %v1309 = vadd.f32 %v1041, %v1308
  %v1310 = vpop.f32.mrb[0].mxu0
  %1311 = vmatprep.mubr.f32.mxu0 %v423
  %1312 = vmatmul.mubr.f32.gmra.mrb[0].mxu0 %v359
  %v1313 = vpop.f32.mrb[0].mxu0
  %v1314 = vadd.f32 %v1041, %v1313
  %v1315 = vpop.f32.mrb[0].mxu0
  %1316 = vmatprep.mubr.f32.mxu0 %v424
  %1317 = vmatmul.mubr.f32.gmra.mrb[0].mxu0 %v360
  %v1318 = vpop.f32.mrb[0].mxu0
  %v1319 = vadd.f32 %v1041, %v1318
  %v1320 = vpop.f32.mrb[0].mxu0
  %1321 = vmatprep.mubr.f32.mxu0 %v425
  %1322 = vmatmul.mubr.f32.gmra.mrb[0].mxu0 %v361
  %v1323 = vpop.f32.mrb[0].mxu0
  %v1324 = vadd.f32 %v1041, %v1323
  %v1325 = vpop.f32.mrb[0].mxu0
  %1326 = vmatprep.mubr.f32.mxu0 %v426
  %1327 = vmatmul.mubr.f32.gmra.mrb[0].mxu0 %v362
  %v1328 = vpop.f32.mrb[0].mxu0
  %v1329 = vadd.f32 %v1041, %v1328
  %v1330 = vpop.f32.mrb[0].mxu0
  %1331 = vmatprep.mubr.f32.mxu0 %v427
  %1332 = vmatmul.mubr.f32.gmra.mrb[0].mxu0 %v363
  %v1333 = vpop.f32.mrb[0].mxu0
  %v1334 = vadd.f32 %v1041, %v1333
  %v1335 = vpop.f32.mrb[0].mxu0
  %1336 = vmatprep.mubr.f32.mxu0 %v428
  %1337 = vmatmul.mubr.f32.gmra.mrb[0].mxu0 %v364
  %v1338 = vpop.f32.mrb[0].mxu0
  %v1339 = vadd.f32 %v1041, %v1338
  %v1340 = vpop.f32.mrb[0].mxu0
  %1341 = vmatprep.mubr.f32.mxu0 %v429
  %1342 = vmatmul.mubr.f32.gmra.mrb[0].mxu0 %v365
  %v1343 = vpop.f32.mrb[0].mxu0
  %v1344 = vadd.f32 %v1041, %v1343
  %v1345 = vpop.f32.mrb[0].mxu0
  %1346 = vmatprep.mubr.f32.mxu0 %v430
  %1347 = vmatmul.mubr.f32.gmra.mrb[0].mxu0 %v366
  %v1348 = vpop.f32.mrb[0].mxu0
  %v1349 = vadd.f32 %v1041, %v1348
  %v1350 = vpop.f32.mrb[0].mxu0
  %1351 = vmatprep.mubr.f32.mxu0 %v431
  %1352 = vmatmul.mubr.f32.gmra.mrb[0].mxu0 %v367
  %v1353 = vpop.f32.mrb[0].mxu0
  %v1354 = vadd.f32 %v1041, %v1353
  %v1355 = vpop.f32.mrb[0].mxu0
  %1356 = vmatprep.mubr.f32.mxu0 %v432
  %1357 = vmatmul.mubr.f32.gmra.mrb[0].mxu0 %v368
  %v1358 = vpop.f32.mrb[0].mxu0
  %v1359 = vadd.f32 %v1041, %v1358
  %v1360 = vpop.f32.mrb[0].mxu0
  %1361 = vmatprep.mubr.f32.mxu0 %v433
  %1362 = vmatmul.mubr.f32.gmra.mrb[0].mxu0 %v369
  %v1363 = vpop.f32.mrb[0].mxu0
  %v1364 = vadd.f32 %v1041, %v1363
  %v1365 = vpop.f32.mrb[0].mxu0
  %1366 = vmatprep.mubr.f32.mxu0 %v434
  %1367 = vmatmul.mubr.f32.gmra.mrb[0].mxu0 %v370
  %v1368 = vpop.f32.mrb[0].mxu0
  %v1369 = vadd.f32 %v1041, %v1368
  %v1370 = vpop.f32.mrb[0].mxu0
  %1371 = vmatprep.mubr.f32.mxu0 %v435
  %1372 = vmatmul.mubr.f32.gmra.mrb[0].mxu0 %v371
  %v1373 = vpop.f32.mrb[0].mxu0
  %v1374 = vadd.f32 %v1041, %v1373
  %v1375 = vpop.f32.mrb[0].mxu0
  %1376 = vmatprep.mubr.f32.mxu0 %v436
  %1377 = vmatmul.mubr.f32.gmra.mrb[0].mxu0 %v372
  %v1378 = vpop.f32.mrb[0].mxu0
  %v1379 = vadd.f32 %v1041, %v1378
  %v1380 = vpop.f32.mrb[0].mxu0
  %1381 = vmatprep.mubr.f32.mxu0 %v437
  %1382 = vmatmul.mubr.f32.gmra.mrb[0].mxu0 %v373
  %v1383 = vpop.f32.mrb[0].mxu0
  %v1384 = vadd.f32 %v1041, %v1383
  %v1385 = vpop.f32.mrb[0].mxu0
  %1386 = vmatprep.mubr.f32.mxu0 %v438
  %1387 = vmatmul.mubr.f32.gmra.mrb[0].mxu0 %v374
  %v1388 = vpop.f32.mrb[0].mxu0
  %v1389 = vadd.f32 %v1041, %v1388
  %v1390 = vpop.f32.mrb[0].mxu0
  %1391 = vmatprep.mubr.f32.mxu0 %v439
  %1392 = vmatmul.mubr.f32.gmra.mrb[0].mxu0 %v375
  %v1393 = vpop.f32.mrb[0].mxu0
  %v1394 = vadd.f32 %v1041, %v1393
  %v1395 = vpop.f32.mrb[0].mxu0
  %1396 = vmatprep.mubr.f32.mxu0 %v440
  %1397 = vmatmul.mubr.f32.gmra.mrb[0].mxu0 %v376
  %v1398 = vpop.f32.mrb[0].mxu0
  %v1399 = vadd.f32 %v1041, %v1398
  %v1400 = vpop.f32.mrb[0].mxu0
  %1401 = vmatprep.mubr.f32.mxu0 %v441
  %1402 = vmatmul.mubr.f32.gmra.mrb[0].mxu0 %v377
  %v1403 = vpop.f32.mrb[0].mxu0
  %v1404 = vadd.f32 %v1041, %v1403
  %v1405 = vpop.f32.mrb[0].mxu0
  %1406 = vmatprep.mubr.f32.mxu0 %v442
  %1407 = vmatmul.mubr.f32.gmra.mrb[0].mxu0 %v378
  %v1408 = vpop.f32.mrb[0].mxu0
  %v1409 = vadd.f32 %v1041, %v1408
  %v1410 = vpop.f32.mrb[0].mxu0
  %1411 = vmatprep.mubr.f32.mxu0 %v443
  %1412 = vmatmul.mubr.f32.gmra.mrb[0].mxu0 %v379
  %v1413 = vpop.f32.mrb[0].mxu0
  %v1414 = vadd.f32 %v1041, %v1413
  %v1415 = vpop.f32.mrb[0].mxu0
  %1416 = vmatprep.mubr.f32.mxu0 %v444
  %1417 = vmatmul.mubr.f32.gmra.mrb[0].mxu0 %v380
  %v1418 = vpop.f32.mrb[0].mxu0
  %v1419 = vadd.f32 %v1041, %v1418
  %v1420 = vpop.f32.mrb[0].mxu0
  %1421 = vmatprep.mubr.f32.mxu0 %v445
  %1422 = vmatmul.mubr.f32.gmra.mrb[0].mxu0 %v381
  %v1423 = vpop.f32.mrb[0].mxu0
  %v1424 = vadd.f32 %v1041, %v1423
  %v1425 = vpop.f32.mrb[0].mxu0
  %1426 = vdwg.mxu0
  %1427 = vmatprep.subr.mxu0 0.0
  %1428 = vmatpush1.msra.mxu0 %v926
  %1429 = vmatprep.subr.mxu0 0.0
  %1430 = vmatpush1.msra.mxu0 %v927
  %1431 = vmatprep.subr.mxu0 0.0
  %1432 = vmatpush1.msra.mxu0 %v928
  %1433 = vmatprep.subr.mxu0 0.0
  %1434 = vmatpush1.msra.mxu0 %v929
  %1435 = vmatprep.subr.mxu0 0.0
  %1436 = vmatpush1.msra.mxu0 %v930
  %1437 = vmatprep.subr.mxu0 0.0
  %1438 = vmatpush1.msra.mxu0 %v931
  %1439 = vmatprep.subr.mxu0 0.0
  %1440 = vmatpush1.msra.mxu0 %v932
  %1441 = vmatprep.subr.mxu0 0.0
  %1442 = vmatpush1.msra.mxu0 %v933
  %1443 = vmatprep.subr.mxu0 0.0
  %1444 = vmatpush1.msra.mxu0 %v934
  %1445 = vmatprep.subr.mxu0 0.0
  %1446 = vmatpush1.msra.mxu0 %v935
  %1447 = vmatprep.subr.mxu0 0.0
  %1448 = vmatpush1.msra.mxu0 %v936
  %1449 = vmatprep.subr.mxu0 0.0
  %1450 = vmatpush1.msra.mxu0 %v937
  %1451 = vmatprep.subr.mxu0 0.0
  %1452 = vmatpush1.msra.mxu0 %v938
  %1453 = vmatprep.subr.mxu0 0.0
  %1454 = vmatpush1.msra.mxu0 %v939
  %1455 = vmatprep.subr.mxu0 0.0
  %1456 = vmatpush1.msra.mxu0 %v940
  %1457 = vmatprep.subr.mxu0 0.0
  %1458 = vmatpush1.msra.mxu0 %v941
  %1459 = vmatprep.subr.mxu0 0.0
  %1460 = vmatpush1.msra.mxu0 %v942
  %1461 = vmatprep.subr.mxu0 0.0
  %1462 = vmatpush1.msra.mxu0 %v943
  %1463 = vmatprep.subr.mxu0 0.0
  %1464 = vmatpush1.msra.mxu0 %v944
  %1465 = vmatprep.subr.mxu0 0.0
  %1466 = vmatpush1.msra.mxu0 %v945
  %1467 = vmatprep.subr.mxu0 0.0
  %1468 = vmatpush1.msra.mxu0 %v946
  %1469 = vmatprep.subr.mxu0 0.0
  %1470 = vmatpush1.msra.mxu0 %v947
  %1471 = vmatprep.subr.mxu0 0.0
  %1472 = vmatpush1.msra.mxu0 %v948
  %1473 = vmatprep.subr.mxu0 0.0
  %1474 = vmatpush1.msra.mxu0 %v949
  %1475 = vmatprep.subr.mxu0 0.0
  %1476 = vmatpush1.msra.mxu0 %v950
  %1477 = vmatprep.subr.mxu0 0.0
  %1478 = vmatpush1.msra.mxu0 %v951
  %1479 = vmatprep.subr.mxu0 0.0
  %1480 = vmatpush1.msra.mxu0 %v952
  %1481 = vmatprep.subr.mxu0 0.0
  %1482 = vmatpush1.msra.mxu0 %v953
  %1483 = vmatprep.subr.mxu0 0.0
  %1484 = vmatpush1.msra.mxu0 %v954
  %1485 = vmatprep.subr.mxu0 0.0
  %1486 = vmatpush1.msra.mxu0 %v955
  %1487 = vmatprep.subr.mxu0 0.0
  %1488 = vmatpush1.msra.mxu0 %v956
  %1489 = vmatprep.subr.mxu0 0.0
  %1490 = vmatpush1.msra.mxu0 %v957
  %1491 = vmatprep.mubr.f32.mxu0 %v510
  %1492 = vmatmul.mubr.f32.gmra.mrb[0].mxu0 %v446
  %v1493 = vpop.f32.mrb[0].mxu0
  %v1494 = vadd.f32 %v1109, %v1493
  %v1495 = vpop.f32.mrb[0].mxu0
  %1496 = vmatprep.mubr.f32.mxu0 %v511
  %1497 = vmatmul.mubr.f32.gmra.mrb[0].mxu0 %v447
  %v1498 = vpop.f32.mrb[0].mxu0
  %v1499 = vadd.f32 %v1114, %v1498
  %v1500 = vpop.f32.mrb[0].mxu0
  %1501 = vmatprep.mubr.f32.mxu0 %v512
  %1502 = vmatmul.mubr.f32.gmra.mrb[0].mxu0 %v448
  %v1503 = vpop.f32.mrb[0].mxu0
  %v1504 = vadd.f32 %v1119, %v1503
  %v1505 = vpop.f32.mrb[0].mxu0
  %1506 = vmatprep.mubr.f32.mxu0 %v513
  %1507 = vmatmul.mubr.f32.gmra.mrb[0].mxu0 %v449
  %v1508 = vpop.f32.mrb[0].mxu0
  %v1509 = vadd.f32 %v1124, %v1508
  %v1510 = vpop.f32.mrb[0].mxu0
  %1511 = vmatprep.mubr.f32.mxu0 %v514
  %1512 = vmatmul.mubr.f32.gmra.mrb[0].mxu0 %v450
  %v1513 = vpop.f32.mrb[0].mxu0
  %v1514 = vadd.f32 %v1129, %v1513
  %v1515 = vpop.f32.mrb[0].mxu0
  %1516 = vmatprep.mubr.f32.mxu0 %v515
  %1517 = vmatmul.mubr.f32.gmra.mrb[0].mxu0 %v451
  %v1518 = vpop.f32.mrb[0].mxu0
  %v1519 = vadd.f32 %v1134, %v1518
  %v1520 = vpop.f32.mrb[0].mxu0
  %1521 = vmatprep.mubr.f32.mxu0 %v516
  %1522 = vmatmul.mubr.f32.gmra.mrb[0].mxu0 %v452
  %v1523 = vpop.f32.mrb[0].mxu0
  %v1524 = vadd.f32 %v1139, %v1523
  %v1525 = vpop.f32.mrb[0].mxu0
  %1526 = vmatprep.mubr.f32.mxu0 %v517
  %1527 = vmatmul.mubr.f32.gmra.mrb[0].mxu0 %v453
  %v1528 = vpop.f32.mrb[0].mxu0
  %v1529 = vadd.f32 %v1144, %v1528
  %v1530 = vpop.f32.mrb[0].mxu0
  %1531 = vmatprep.mubr.f32.mxu0 %v518
  %1532 = vmatmul.mubr.f32.gmra.mrb[0].mxu0 %v454
  %v1533 = vpop.f32.mrb[0].mxu0
  %v1534 = vadd.f32 %v1149, %v1533
  %v1535 = vpop.f32.mrb[0].mxu0
  %1536 = vmatprep.mubr.f32.mxu0 %v519
  %1537 = vmatmul.mubr.f32.gmra.mrb[0].mxu0 %v455
  %v1538 = vpop.f32.mrb[0].mxu0
  %v1539 = vadd.f32 %v1154, %v1538
  %v1540 = vpop.f32.mrb[0].mxu0
  %1541 = vmatprep.mubr.f32.mxu0 %v520
  %1542 = vmatmul.mubr.f32.gmra.mrb[0].mxu0 %v456
  %v1543 = vpop.f32.mrb[0].mxu0
  %v1544 = vadd.f32 %v1159, %v1543
  %v1545 = vpop.f32.mrb[0].mxu0
  %1546 = vmatprep.mubr.f32.mxu0 %v521
  %1547 = vmatmul.mubr.f32.gmra.mrb[0].mxu0 %v457
  %v1548 = vpop.f32.mrb[0].mxu0
  %v1549 = vadd.f32 %v1164, %v1548
  %v1550 = vpop.f32.mrb[0].mxu0
  %1551 = vmatprep.mubr.f32.mxu0 %v522
  %1552 = vmatmul.mubr.f32.gmra.mrb[0].mxu0 %v458
  %v1553 = vpop.f32.mrb[0].mxu0
  %v1554 = vadd.f32 %v1169, %v1553
  %v1555 = vpop.f32.mrb[0].mxu0
  %1556 = vmatprep.mubr.f32.mxu0 %v523
  %1557 = vmatmul.mubr.f32.gmra.mrb[0].mxu0 %v459
  %v1558 = vpop.f32.mrb[0].mxu0
  %v1559 = vadd.f32 %v1174, %v1558
  %v1560 = vpop.f32.mrb[0].mxu0
  %1561 = vmatprep.mubr.f32.mxu0 %v524
  %1562 = vmatmul.mubr.f32.gmra.mrb[0].mxu0 %v460
  %v1563 = vpop.f32.mrb[0].mxu0
  %v1564 = vadd.f32 %v1179, %v1563
  %v1565 = vpop.f32.mrb[0].mxu0
  %1566 = vmatprep.mubr.f32.mxu0 %v525
  %1567 = vmatmul.mubr.f32.gmra.mrb[0].mxu0 %v461
  %v1568 = vpop.f32.mrb[0].mxu0
  %v1569 = vadd.f32 %v1184, %v1568
  %v1570 = vpop.f32.mrb[0].mxu0
  %1571 = vmatprep.mubr.f32.mxu0 %v526
  %1572 = vmatmul.mubr.f32.gmra.mrb[0].mxu0 %v462
  %v1573 = vpop.f32.mrb[0].mxu0
  %v1574 = vadd.f32 %v1189, %v1573
  %v1575 = vpop.f32.mrb[0].mxu0
  %1576 = vmatprep.mubr.f32.mxu0 %v527
  %1577 = vmatmul.mubr.f32.gmra.mrb[0].mxu0 %v463
  %v1578 = vpop.f32.mrb[0].mxu0
  %v1579 = vadd.f32 %v1194, %v1578
  %v1580 = vpop.f32.mrb[0].mxu0
  %1581 = vmatprep.mubr.f32.mxu0 %v528
  %1582 = vmatmul.mubr.f32.gmra.mrb[0].mxu0 %v464
  %v1583 = vpop.f32.mrb[0].mxu0
  %v1584 = vadd.f32 %v1199, %v1583
  %v1585 = vpop.f32.mrb[0].mxu0
  %1586 = vmatprep.mubr.f32.mxu0 %v529
  %1587 = vmatmul.mubr.f32.gmra.mrb[0].mxu0 %v465
  %v1588 = vpop.f32.mrb[0].mxu0
  %v1589 = vadd.f32 %v1204, %v1588
  %v1590 = vpop.f32.mrb[0].mxu0
  %1591 = vmatprep.mubr.f32.mxu0 %v530
  %1592 = vmatmul.mubr.f32.gmra.mrb[0].mxu0 %v466
  %v1593 = vpop.f32.mrb[0].mxu0
  %v1594 = vadd.f32 %v1209, %v1593
  %v1595 = vpop.f32.mrb[0].mxu0
  %1596 = vmatprep.mubr.f32.mxu0 %v531
  %1597 = vmatmul.mubr.f32.gmra.mrb[0].mxu0 %v467
  %v1598 = vpop.f32.mrb[0].mxu0
  %v1599 = vadd.f32 %v1214, %v1598
  %v1600 = vpop.f32.mrb[0].mxu0
  %1601 = vmatprep.mubr.f32.mxu0 %v532
  %1602 = vmatmul.mubr.f32.gmra.mrb[0].mxu0 %v468
  %v1603 = vpop.f32.mrb[0].mxu0
  %v1604 = vadd.f32 %v1219, %v1603
  %v1605 = vpop.f32.mrb[0].mxu0
  %1606 = vmatprep.mubr.f32.mxu0 %v533
  %1607 = vmatmul.mubr.f32.gmra.mrb[0].mxu0 %v469
  %v1608 = vpop.f32.mrb[0].mxu0
  %v1609 = vadd.f32 %v1224, %v1608
  %v1610 = vpop.f32.mrb[0].mxu0
  %1611 = vmatprep.mubr.f32.mxu0 %v534
  %1612 = vmatmul.mubr.f32.gmra.mrb[0].mxu0 %v470
  %v1613 = vpop.f32.mrb[0].mxu0
  %v1614 = vadd.f32 %v1229, %v1613
  %v1615 = vpop.f32.mrb[0].mxu0
  %1616 = vmatprep.mubr.f32.mxu0 %v535
  %1617 = vmatmul.mubr.f32.gmra.mrb[0].mxu0 %v471
  %v1618 = vpop.f32.mrb[0].mxu0
  %v1619 = vadd.f32 %v1234, %v1618
  %v1620 = vpop.f32.mrb[0].mxu0
  %1621 = vmatprep.mubr.f32.mxu0 %v536
  %1622 = vmatmul.mubr.f32.gmra.mrb[0].mxu0 %v472
  %v1623 = vpop.f32.mrb[0].mxu0
  %v1624 = vadd.f32 %v1239, %v1623
  %v1625 = vpop.f32.mrb[0].mxu0
  %1626 = vmatprep.mubr.f32.mxu0 %v537
  %1627 = vmatmul.mubr.f32.gmra.mrb[0].mxu0 %v473
  %v1628 = vpop.f32.mrb[0].mxu0
  %v1629 = vadd.f32 %v1244, %v1628
  %v1630 = vpop.f32.mrb[0].mxu0
  %1631 = vmatprep.mubr.f32.mxu0 %v538
  %1632 = vmatmul.mubr.f32.gmra.mrb[0].mxu0 %v474
  %v1633 = vpop.f32.mrb[0].mxu0
  %v1634 = vadd.f32 %v1249, %v1633
  %v1635 = vpop.f32.mrb[0].mxu0
  %1636 = vmatprep.mubr.f32.mxu0 %v539
  %1637 = vmatmul.mubr.f32.gmra.mrb[0].mxu0 %v475
  %v1638 = vpop.f32.mrb[0].mxu0
  %v1639 = vadd.f32 %v1254, %v1638
  %v1640 = vpop.f32.mrb[0].mxu0
  %1641 = vmatprep.mubr.f32.mxu0 %v540
  %1642 = vmatmul.mubr.f32.gmra.mrb[0].mxu0 %v476
  %v1643 = vpop.f32.mrb[0].mxu0
  %v1644 = vadd.f32 %v1259, %v1643
  %v1645 = vpop.f32.mrb[0].mxu0
  %1646 = vmatprep.mubr.f32.mxu0 %v541
  %1647 = vmatmul.mubr.f32.gmra.mrb[0].mxu0 %v477
  %v1648 = vpop.f32.mrb[0].mxu0
  %v1649 = vadd.f32 %v1264, %v1648
  %v1650 = vpop.f32.mrb[0].mxu0
  %1651 = vmatprep.mubr.f32.mxu0 %v542
  %1652 = vmatmul.mubr.f32.gmra.mrb[0].mxu0 %v478
  %v1653 = vpop.f32.mrb[0].mxu0
  %v1654 = vadd.f32 %v1269, %v1653
  %v1655 = vpop.f32.mrb[0].mxu0
  %1656 = vmatprep.mubr.f32.mxu0 %v543
  %1657 = vmatmul.mubr.f32.gmra.mrb[0].mxu0 %v479
  %v1658 = vpop.f32.mrb[0].mxu0
  %v1659 = vadd.f32 %v1274, %v1658
  %v1660 = vpop.f32.mrb[0].mxu0
  %1661 = vmatprep.mubr.f32.mxu0 %v544
  %1662 = vmatmul.mubr.f32.gmra.mrb[0].mxu0 %v480
  %v1663 = vpop.f32.mrb[0].mxu0
  %v1664 = vadd.f32 %v1279, %v1663
  %v1665 = vpop.f32.mrb[0].mxu0
  %1666 = vmatprep.mubr.f32.mxu0 %v545
  %1667 = vmatmul.mubr.f32.gmra.mrb[0].mxu0 %v481
  %v1668 = vpop.f32.mrb[0].mxu0
  %v1669 = vadd.f32 %v1284, %v1668
  %v1670 = vpop.f32.mrb[0].mxu0
  %1671 = vmatprep.mubr.f32.mxu0 %v546
  %1672 = vmatmul.mubr.f32.gmra.mrb[0].mxu0 %v482
  %v1673 = vpop.f32.mrb[0].mxu0
  %v1674 = vadd.f32 %v1289, %v1673
  %v1675 = vpop.f32.mrb[0].mxu0
  %1676 = vmatprep.mubr.f32.mxu0 %v547
  %1677 = vmatmul.mubr.f32.gmra.mrb[0].mxu0 %v483
  %v1678 = vpop.f32.mrb[0].mxu0
  %v1679 = vadd.f32 %v1294, %v1678
  %v1680 = vpop.f32.mrb[0].mxu0
  %1681 = vmatprep.mubr.f32.mxu0 %v548
  %1682 = vmatmul.mubr.f32.gmra.mrb[0].mxu0 %v484
  %v1683 = vpop.f32.mrb[0].mxu0
  %v1684 = vadd.f32 %v1299, %v1683
  %v1685 = vpop.f32.mrb[0].mxu0
  %1686 = vmatprep.mubr.f32.mxu0 %v549
  %1687 = vmatmul.mubr.f32.gmra.mrb[0].mxu0 %v485
  %v1688 = vpop.f32.mrb[0].mxu0
  %v1689 = vadd.f32 %v1304, %v1688
  %v1690 = vpop.f32.mrb[0].mxu0
  %1691 = vmatprep.mubr.f32.mxu0 %v550
  %1692 = vmatmul.mubr.f32.gmra.mrb[0].mxu0 %v486
  %v1693 = vpop.f32.mrb[0].mxu0
  %v1694 = vadd.f32 %v1309, %v1693
  %v1695 = vpop.f32.mrb[0].mxu0
  %1696 = vmatprep.mubr.f32.mxu0 %v551
  %1697 = vmatmul.mubr.f32.gmra.mrb[0].mxu0 %v487
  %v1698 = vpop.f32.mrb[0].mxu0
  %v1699 = vadd.f32 %v1314, %v1698
  %v1700 = vpop.f32.mrb[0].mxu0
  %1701 = vmatprep.mubr.f32.mxu0 %v552
  %1702 = vmatmul.mubr.f32.gmra.mrb[0].mxu0 %v488
  %v1703 = vpop.f32.mrb[0].mxu0
  %v1704 = vadd.f32 %v1319, %v1703
  %v1705 = vpop.f32.mrb[0].mxu0
  %1706 = vmatprep.mubr.f32.mxu0 %v553
  %1707 = vmatmul.mubr.f32.gmra.mrb[0].mxu0 %v489
  %v1708 = vpop.f32.mrb[0].mxu0
  %v1709 = vadd.f32 %v1324, %v1708
  %v1710 = vpop.f32.mrb[0].mxu0
  %1711 = vmatprep.mubr.f32.mxu0 %v554
  %1712 = vmatmul.mubr.f32.gmra.mrb[0].mxu0 %v490
  %v1713 = vpop.f32.mrb[0].mxu0
  %v1714 = vadd.f32 %v1329, %v1713
  %v1715 = vpop.f32.mrb[0].mxu0
  %1716 = vmatprep.mubr.f32.mxu0 %v555
  %1717 = vmatmul.mubr.f32.gmra.mrb[0].mxu0 %v491
  %v1718 = vpop.f32.mrb[0].mxu0
  %v1719 = vadd.f32 %v1334, %v1718
  %v1720 = vpop.f32.mrb[0].mxu0
  %1721 = vmatprep.mubr.f32.mxu0 %v556
  %1722 = vmatmul.mubr.f32.gmra.mrb[0].mxu0 %v492
  %v1723 = vpop.f32.mrb[0].mxu0
  %v1724 = vadd.f32 %v1339, %v1723
  %v1725 = vpop.f32.mrb[0].mxu0
  %1726 = vmatprep.mubr.f32.mxu0 %v557
  %1727 = vmatmul.mubr.f32.gmra.mrb[0].mxu0 %v493
  %v1728 = vpop.f32.mrb[0].mxu0
  %v1729 = vadd.f32 %v1344, %v1728
  %v1730 = vpop.f32.mrb[0].mxu0
  %1731 = vmatprep.mubr.f32.mxu0 %v558
  %1732 = vmatmul.mubr.f32.gmra.mrb[0].mxu0 %v494
  %v1733 = vpop.f32.mrb[0].mxu0
  %v1734 = vadd.f32 %v1349, %v1733
  %v1735 = vpop.f32.mrb[0].mxu0
  %1736 = vmatprep.mubr.f32.mxu0 %v559
  %1737 = vmatmul.mubr.f32.gmra.mrb[0].mxu0 %v495
  %v1738 = vpop.f32.mrb[0].mxu0
  %v1739 = vadd.f32 %v1354, %v1738
  %v1740 = vpop.f32.mrb[0].mxu0
  %1741 = vmatprep.mubr.f32.mxu0 %v560
  %1742 = vmatmul.mubr.f32.gmra.mrb[0].mxu0 %v496
  %v1743 = vpop.f32.mrb[0].mxu0
  %v1744 = vadd.f32 %v1359, %v1743
  %v1745 = vpop.f32.mrb[0].mxu0
  %1746 = vmatprep.mubr.f32.mxu0 %v561
  %1747 = vmatmul.mubr.f32.gmra.mrb[0].mxu0 %v497
  %v1748 = vpop.f32.mrb[0].mxu0
  %v1749 = vadd.f32 %v1364, %v1748
  %v1750 = vpop.f32.mrb[0].mxu0
  %1751 = vmatprep.mubr.f32.mxu0 %v562
  %1752 = vmatmul.mubr.f32.gmra.mrb[0].mxu0 %v498
  %v1753 = vpop.f32.mrb[0].mxu0
  %v1754 = vadd.f32 %v1369, %v1753
  %v1755 = vpop.f32.mrb[0].mxu0
  %1756 = vmatprep.mubr.f32.mxu0 %v563
  %1757 = vmatmul.mubr.f32.gmra.mrb[0].mxu0 %v499
  %v1758 = vpop.f32.mrb[0].mxu0
  %v1759 = vadd.f32 %v1374, %v1758
  %v1760 = vpop.f32.mrb[0].mxu0
  %1761 = vmatprep.mubr.f32.mxu0 %v564
  %1762 = vmatmul.mubr.f32.gmra.mrb[0].mxu0 %v500
  %v1763 = vpop.f32.mrb[0].mxu0
  %v1764 = vadd.f32 %v1379, %v1763
  %v1765 = vpop.f32.mrb[0].mxu0
  %1766 = vmatprep.mubr.f32.mxu0 %v565
  %1767 = vmatmul.mubr.f32.gmra.mrb[0].mxu0 %v501
  %v1768 = vpop.f32.mrb[0].mxu0
  %v1769 = vadd.f32 %v1384, %v1768
  %v1770 = vpop.f32.mrb[0].mxu0
  %1771 = vmatprep.mubr.f32.mxu0 %v566
  %1772 = vmatmul.mubr.f32.gmra.mrb[0].mxu0 %v502
  %v1773 = vpop.f32.mrb[0].mxu0
  %v1774 = vadd.f32 %v1389, %v1773
  %v1775 = vpop.f32.mrb[0].mxu0
  %1776 = vmatprep.mubr.f32.mxu0 %v567
  %1777 = vmatmul.mubr.f32.gmra.mrb[0].mxu0 %v503
  %v1778 = vpop.f32.mrb[0].mxu0
  %v1779 = vadd.f32 %v1394, %v1778
  %v1780 = vpop.f32.mrb[0].mxu0
  %1781 = vmatprep.mubr.f32.mxu0 %v568
  %1782 = vmatmul.mubr.f32.gmra.mrb[0].mxu0 %v504
  %v1783 = vpop.f32.mrb[0].mxu0
  %v1784 = vadd.f32 %v1399, %v1783
  %v1785 = vpop.f32.mrb[0].mxu0
  %1786 = vmatprep.mubr.f32.mxu0 %v569
  %1787 = vmatmul.mubr.f32.gmra.mrb[0].mxu0 %v505
  %v1788 = vpop.f32.mrb[0].mxu0
  %v1789 = vadd.f32 %v1404, %v1788
  %v1790 = vpop.f32.mrb[0].mxu0
  %1791 = vmatprep.mubr.f32.mxu0 %v570
  %1792 = vmatmul.mubr.f32.gmra.mrb[0].mxu0 %v506
  %v1793 = vpop.f32.mrb[0].mxu0
  %v1794 = vadd.f32 %v1409, %v1793
  %v1795 = vpop.f32.mrb[0].mxu0
  %1796 = vmatprep.mubr.f32.mxu0 %v571
  %1797 = vmatmul.mubr.f32.gmra.mrb[0].mxu0 %v507
  %v1798 = vpop.f32.mrb[0].mxu0
  %v1799 = vadd.f32 %v1414, %v1798
  %v1800 = vpop.f32.mrb[0].mxu0
  %1801 = vmatprep.mubr.f32.mxu0 %v572
  %1802 = vmatmul.mubr.f32.gmra.mrb[0].mxu0 %v508
  %v1803 = vpop.f32.mrb[0].mxu0
  %v1804 = vadd.f32 %v1419, %v1803
  %v1805 = vpop.f32.mrb[0].mxu0
  %1806 = vmatprep.mubr.f32.mxu0 %v573
  %1807 = vmatmul.mubr.f32.gmra.mrb[0].mxu0 %v509
  %v1808 = vpop.f32.mrb[0].mxu0
  %v1809 = vadd.f32 %v1424, %v1808
  %v1810 = vpop.f32.mrb[0].mxu0
  %1811 = vdwg.mxu0
  %1812 = vmatprep.subr.mxu0 0.0
  %1813 = vmatpush1.msra.mxu0 %v958
  %1814 = vmatprep.subr.mxu0 0.0
  %1815 = vmatpush1.msra.mxu0 %v959
  %1816 = vmatprep.subr.mxu0 0.0
  %1817 = vmatpush1.msra.mxu0 %v960
  %1818 = vmatprep.subr.mxu0 0.0
  %1819 = vmatpush1.msra.mxu0 %v961
  %1820 = vmatprep.subr.mxu0 0.0
  %1821 = vmatpush1.msra.mxu0 %v962
  %1822 = vmatprep.subr.mxu0 0.0
  %1823 = vmatpush1.msra.mxu0 %v963
  %1824 = vmatprep.subr.mxu0 0.0
  %1825 = vmatpush1.msra.mxu0 %v964
  %1826 = vmatprep.subr.mxu0 0.0
  %1827 = vmatpush1.msra.mxu0 %v965
  %1828 = vmatprep.subr.mxu0 0.0
  %1829 = vmatpush1.msra.mxu0 %v966
  %1830 = vmatprep.subr.mxu0 0.0
  %1831 = vmatpush1.msra.mxu0 %v967
  %1832 = vmatprep.subr.mxu0 0.0
  %1833 = vmatpush1.msra.mxu0 %v968
  %1834 = vmatprep.subr.mxu0 0.0
  %1835 = vmatpush1.msra.mxu0 %v969
  %1836 = vmatprep.subr.mxu0 0.0
  %1837 = vmatpush1.msra.mxu0 %v970
  %1838 = vmatprep.subr.mxu0 0.0
  %1839 = vmatpush1.msra.mxu0 %v971
  %1840 = vmatprep.subr.mxu0 0.0
  %1841 = vmatpush1.msra.mxu0 %v972
  %1842 = vmatprep.subr.mxu0 0.0
  %1843 = vmatpush1.msra.mxu0 %v973
  %1844 = vmatprep.subr.mxu0 0.0
  %1845 = vmatpush1.msra.mxu0 %v974
  %1846 = vmatprep.subr.mxu0 0.0
  %1847 = vmatpush1.msra.mxu0 %v975
  %1848 = vmatprep.subr.mxu0 0.0
  %1849 = vmatpush1.msra.mxu0 %v976
  %1850 = vmatprep.subr.mxu0 0.0
  %1851 = vmatpush1.msra.mxu0 %v977
  %1852 = vmatprep.subr.mxu0 0.0
  %1853 = vmatpush1.msra.mxu0 %v978
  %1854 = vmatprep.subr.mxu0 0.0
  %1855 = vmatpush1.msra.mxu0 %v979
  %1856 = vmatprep.subr.mxu0 0.0
  %1857 = vmatpush1.msra.mxu0 %v980
  %1858 = vmatprep.subr.mxu0 0.0
  %1859 = vmatpush1.msra.mxu0 %v981
  %1860 = vmatprep.subr.mxu0 0.0
  %1861 = vmatpush1.msra.mxu0 %v982
  %1862 = vmatprep.subr.mxu0 0.0
  %1863 = vmatpush1.msra.mxu0 %v983
  %1864 = vmatprep.subr.mxu0 0.0
  %1865 = vmatpush1.msra.mxu0 %v984
  %1866 = vmatprep.subr.mxu0 0.0
  %1867 = vmatpush1.msra.mxu0 %v985
  %1868 = vmatprep.subr.mxu0 0.0
  %1869 = vmatpush1.msra.mxu0 %v986
  %1870 = vmatprep.subr.mxu0 0.0
  %1871 = vmatpush1.msra.mxu0 %v987
  %1872 = vmatprep.subr.mxu0 0.0
  %1873 = vmatpush1.msra.mxu0 %v988
  %1874 = vmatprep.subr.mxu0 0.0
  %1875 = vmatpush1.msra.mxu0 %v989
  %1876 = vmatprep.mubr.f32.mxu0 %v638
  %1877 = vmatmul.mubr.f32.gmra.mrb[0].mxu0 %v574
  %v1878 = vpop.f32.mrb[0].mxu0
  %v1879 = vadd.f32 %v1494, %v1878
  %v1880 = vpop.f32.mrb[0].mxu0
  %1881 = vmatprep.mubr.f32.mxu0 %v639
  %1882 = vmatmul.mubr.f32.gmra.mrb[0].mxu0 %v575
  %v1883 = vpop.f32.mrb[0].mxu0
  %v1884 = vadd.f32 %v1499, %v1883
  %v1885 = vpop.f32.mrb[0].mxu0
  %1886 = vmatprep.mubr.f32.mxu0 %v640
  %1887 = vmatmul.mubr.f32.gmra.mrb[0].mxu0 %v576
  %v1888 = vpop.f32.mrb[0].mxu0
  %v1889 = vadd.f32 %v1504, %v1888
  %v1890 = vpop.f32.mrb[0].mxu0
  %1891 = vmatprep.mubr.f32.mxu0 %v641
  %1892 = vmatmul.mubr.f32.gmra.mrb[0].mxu0 %v577
  %v1893 = vpop.f32.mrb[0].mxu0
  %v1894 = vadd.f32 %v1509, %v1893
  %v1895 = vpop.f32.mrb[0].mxu0
  %1896 = vmatprep.mubr.f32.mxu0 %v642
  %1897 = vmatmul.mubr.f32.gmra.mrb[0].mxu0 %v578
  %v1898 = vpop.f32.mrb[0].mxu0
  %v1899 = vadd.f32 %v1514, %v1898
  %v1900 = vpop.f32.mrb[0].mxu0
  %1901 = vmatprep.mubr.f32.mxu0 %v643
  %1902 = vmatmul.mubr.f32.gmra.mrb[0].mxu0 %v579
  %v1903 = vpop.f32.mrb[0].mxu0
  %v1904 = vadd.f32 %v1519, %v1903
  %v1905 = vpop.f32.mrb[0].mxu0
  %1906 = vmatprep.mubr.f32.mxu0 %v644
  %1907 = vmatmul.mubr.f32.gmra.mrb[0].mxu0 %v580
  %v1908 = vpop.f32.mrb[0].mxu0
  %v1909 = vadd.f32 %v1524, %v1908
  %v1910 = vpop.f32.mrb[0].mxu0
  %1911 = vmatprep.mubr.f32.mxu0 %v645
  %1912 = vmatmul.mubr.f32.gmra.mrb[0].mxu0 %v581
  %v1913 = vpop.f32.mrb[0].mxu0
  %v1914 = vadd.f32 %v1529, %v1913
  %v1915 = vpop.f32.mrb[0].mxu0
  %1916 = vmatprep.mubr.f32.mxu0 %v646
  %1917 = vmatmul.mubr.f32.gmra.mrb[0].mxu0 %v582
  %v1918 = vpop.f32.mrb[0].mxu0
  %v1919 = vadd.f32 %v1534, %v1918
  %v1920 = vpop.f32.mrb[0].mxu0
  %1921 = vmatprep.mubr.f32.mxu0 %v647
  %1922 = vmatmul.mubr.f32.gmra.mrb[0].mxu0 %v583
  %v1923 = vpop.f32.mrb[0].mxu0
  %v1924 = vadd.f32 %v1539, %v1923
  %v1925 = vpop.f32.mrb[0].mxu0
  %1926 = vmatprep.mubr.f32.mxu0 %v648
  %1927 = vmatmul.mubr.f32.gmra.mrb[0].mxu0 %v584
  %v1928 = vpop.f32.mrb[0].mxu0
  %v1929 = vadd.f32 %v1544, %v1928
  %v1930 = vpop.f32.mrb[0].mxu0
  %1931 = vmatprep.mubr.f32.mxu0 %v649
  %1932 = vmatmul.mubr.f32.gmra.mrb[0].mxu0 %v585
  %v1933 = vpop.f32.mrb[0].mxu0
  %v1934 = vadd.f32 %v1549, %v1933
  %v1935 = vpop.f32.mrb[0].mxu0
  %1936 = vmatprep.mubr.f32.mxu0 %v650
  %1937 = vmatmul.mubr.f32.gmra.mrb[0].mxu0 %v586
  %v1938 = vpop.f32.mrb[0].mxu0
  %v1939 = vadd.f32 %v1554, %v1938
  %v1940 = vpop.f32.mrb[0].mxu0
  %1941 = vmatprep.mubr.f32.mxu0 %v651
  %1942 = vmatmul.mubr.f32.gmra.mrb[0].mxu0 %v587
  %v1943 = vpop.f32.mrb[0].mxu0
  %v1944 = vadd.f32 %v1559, %v1943
  %v1945 = vpop.f32.mrb[0].mxu0
  %1946 = vmatprep.mubr.f32.mxu0 %v652
  %1947 = vmatmul.mubr.f32.gmra.mrb[0].mxu0 %v588
  %v1948 = vpop.f32.mrb[0].mxu0
  %v1949 = vadd.f32 %v1564, %v1948
  %v1950 = vpop.f32.mrb[0].mxu0
  %1951 = vmatprep.mubr.f32.mxu0 %v653
  %1952 = vmatmul.mubr.f32.gmra.mrb[0].mxu0 %v589
  %v1953 = vpop.f32.mrb[0].mxu0
  %v1954 = vadd.f32 %v1569, %v1953
  %v1955 = vpop.f32.mrb[0].mxu0
  %1956 = vmatprep.mubr.f32.mxu0 %v654
  %1957 = vmatmul.mubr.f32.gmra.mrb[0].mxu0 %v590
  %v1958 = vpop.f32.mrb[0].mxu0
  %v1959 = vadd.f32 %v1574, %v1958
  %v1960 = vpop.f32.mrb[0].mxu0
  %1961 = vmatprep.mubr.f32.mxu0 %v655
  %1962 = vmatmul.mubr.f32.gmra.mrb[0].mxu0 %v591
  %v1963 = vpop.f32.mrb[0].mxu0
  %v1964 = vadd.f32 %v1579, %v1963
  %v1965 = vpop.f32.mrb[0].mxu0
  %1966 = vmatprep.mubr.f32.mxu0 %v656
  %1967 = vmatmul.mubr.f32.gmra.mrb[0].mxu0 %v592
  %v1968 = vpop.f32.mrb[0].mxu0
  %v1969 = vadd.f32 %v1584, %v1968
  %v1970 = vpop.f32.mrb[0].mxu0
  %1971 = vmatprep.mubr.f32.mxu0 %v657
  %1972 = vmatmul.mubr.f32.gmra.mrb[0].mxu0 %v593
  %v1973 = vpop.f32.mrb[0].mxu0
  %v1974 = vadd.f32 %v1589, %v1973
  %v1975 = vpop.f32.mrb[0].mxu0
  %1976 = vmatprep.mubr.f32.mxu0 %v658
  %1977 = vmatmul.mubr.f32.gmra.mrb[0].mxu0 %v594
  %v1978 = vpop.f32.mrb[0].mxu0
  %v1979 = vadd.f32 %v1594, %v1978
  %v1980 = vpop.f32.mrb[0].mxu0
  %1981 = vmatprep.mubr.f32.mxu0 %v659
  %1982 = vmatmul.mubr.f32.gmra.mrb[0].mxu0 %v595
  %v1983 = vpop.f32.mrb[0].mxu0
  %v1984 = vadd.f32 %v1599, %v1983
  %v1985 = vpop.f32.mrb[0].mxu0
  %1986 = vmatprep.mubr.f32.mxu0 %v660
  %1987 = vmatmul.mubr.f32.gmra.mrb[0].mxu0 %v596
  %v1988 = vpop.f32.mrb[0].mxu0
  %v1989 = vadd.f32 %v1604, %v1988
  %v1990 = vpop.f32.mrb[0].mxu0
  %1991 = vmatprep.mubr.f32.mxu0 %v661
  %1992 = vmatmul.mubr.f32.gmra.mrb[0].mxu0 %v597
  %v1993 = vpop.f32.mrb[0].mxu0
  %v1994 = vadd.f32 %v1609, %v1993
  %v1995 = vpop.f32.mrb[0].mxu0
  %1996 = vmatprep.mubr.f32.mxu0 %v662
  %1997 = vmatmul.mubr.f32.gmra.mrb[0].mxu0 %v598
  %v1998 = vpop.f32.mrb[0].mxu0
  %v1999 = vadd.f32 %v1614, %v1998
  %v2000 = vpop.f32.mrb[0].mxu0
  %2001 = vmatprep.mubr.f32.mxu0 %v663
  %2002 = vmatmul.mubr.f32.gmra.mrb[0].mxu0 %v599
  %v2003 = vpop.f32.mrb[0].mxu0
  %v2004 = vadd.f32 %v1619, %v2003
  %v2005 = vpop.f32.mrb[0].mxu0
  %2006 = vmatprep.mubr.f32.mxu0 %v664
  %2007 = vmatmul.mubr.f32.gmra.mrb[0].mxu0 %v600
  %v2008 = vpop.f32.mrb[0].mxu0
  %v2009 = vadd.f32 %v1624, %v2008
  %v2010 = vpop.f32.mrb[0].mxu0
  %2011 = vmatprep.mubr.f32.mxu0 %v665
  %2012 = vmatmul.mubr.f32.gmra.mrb[0].mxu0 %v601
  %v2013 = vpop.f32.mrb[0].mxu0
  %v2014 = vadd.f32 %v1629, %v2013
  %v2015 = vpop.f32.mrb[0].mxu0
  %2016 = vmatprep.mubr.f32.mxu0 %v666
  %2017 = vmatmul.mubr.f32.gmra.mrb[0].mxu0 %v602
  %v2018 = vpop.f32.mrb[0].mxu0
  %v2019 = vadd.f32 %v1634, %v2018
  %v2020 = vpop.f32.mrb[0].mxu0
  %2021 = vmatprep.mubr.f32.mxu0 %v667
  %2022 = vmatmul.mubr.f32.gmra.mrb[0].mxu0 %v603
  %v2023 = vpop.f32.mrb[0].mxu0
  %v2024 = vadd.f32 %v1639, %v2023
  %v2025 = vpop.f32.mrb[0].mxu0
  %2026 = vmatprep.mubr.f32.mxu0 %v668
  %2027 = vmatmul.mubr.f32.gmra.mrb[0].mxu0 %v604
  %v2028 = vpop.f32.mrb[0].mxu0
  %v2029 = vadd.f32 %v1644, %v2028
  %v2030 = vpop.f32.mrb[0].mxu0
  %2031 = vmatprep.mubr.f32.mxu0 %v669
  %2032 = vmatmul.mubr.f32.gmra.mrb[0].mxu0 %v605
  %v2033 = vpop.f32.mrb[0].mxu0
  %v2034 = vadd.f32 %v1649, %v2033
  %v2035 = vpop.f32.mrb[0].mxu0
  %2036 = vmatprep.mubr.f32.mxu0 %v670
  %2037 = vmatmul.mubr.f32.gmra.mrb[0].mxu0 %v606
  %v2038 = vpop.f32.mrb[0].mxu0
  %v2039 = vadd.f32 %v1654, %v2038
  %v2040 = vpop.f32.mrb[0].mxu0
  %2041 = vmatprep.mubr.f32.mxu0 %v671
  %2042 = vmatmul.mubr.f32.gmra.mrb[0].mxu0 %v607
  %v2043 = vpop.f32.mrb[0].mxu0
  %v2044 = vadd.f32 %v1659, %v2043
  %v2045 = vpop.f32.mrb[0].mxu0
  %2046 = vmatprep.mubr.f32.mxu0 %v672
  %2047 = vmatmul.mubr.f32.gmra.mrb[0].mxu0 %v608
  %v2048 = vpop.f32.mrb[0].mxu0
  %v2049 = vadd.f32 %v1664, %v2048
  %v2050 = vpop.f32.mrb[0].mxu0
  %2051 = vmatprep.mubr.f32.mxu0 %v673
  %2052 = vmatmul.mubr.f32.gmra.mrb[0].mxu0 %v609
  %v2053 = vpop.f32.mrb[0].mxu0
  %v2054 = vadd.f32 %v1669, %v2053
  %v2055 = vpop.f32.mrb[0].mxu0
  %2056 = vmatprep.mubr.f32.mxu0 %v674
  %2057 = vmatmul.mubr.f32.gmra.mrb[0].mxu0 %v610
  %v2058 = vpop.f32.mrb[0].mxu0
  %v2059 = vadd.f32 %v1674, %v2058
  %v2060 = vpop.f32.mrb[0].mxu0
  %2061 = vmatprep.mubr.f32.mxu0 %v675
  %2062 = vmatmul.mubr.f32.gmra.mrb[0].mxu0 %v611
  %v2063 = vpop.f32.mrb[0].mxu0
  %v2064 = vadd.f32 %v1679, %v2063
  %v2065 = vpop.f32.mrb[0].mxu0
  %2066 = vmatprep.mubr.f32.mxu0 %v676
  %2067 = vmatmul.mubr.f32.gmra.mrb[0].mxu0 %v612
  %v2068 = vpop.f32.mrb[0].mxu0
  %v2069 = vadd.f32 %v1684, %v2068
  %v2070 = vpop.f32.mrb[0].mxu0
  %2071 = vmatprep.mubr.f32.mxu0 %v677
  %2072 = vmatmul.mubr.f32.gmra.mrb[0].mxu0 %v613
  %v2073 = vpop.f32.mrb[0].mxu0
  %v2074 = vadd.f32 %v1689, %v2073
  %v2075 = vpop.f32.mrb[0].mxu0
  %2076 = vmatprep.mubr.f32.mxu0 %v678
  %2077 = vmatmul.mubr.f32.gmra.mrb[0].mxu0 %v614
  %v2078 = vpop.f32.mrb[0].mxu0
  %v2079 = vadd.f32 %v1694, %v2078
  %v2080 = vpop.f32.mrb[0].mxu0
  %2081 = vmatprep.mubr.f32.mxu0 %v679
  %2082 = vmatmul.mubr.f32.gmra.mrb[0].mxu0 %v615
  %v2083 = vpop.f32.mrb[0].mxu0
  %v2084 = vadd.f32 %v1699, %v2083
  %v2085 = vpop.f32.mrb[0].mxu0
  %2086 = vmatprep.mubr.f32.mxu0 %v680
  %2087 = vmatmul.mubr.f32.gmra.mrb[0].mxu0 %v616
  %v2088 = vpop.f32.mrb[0].mxu0
  %v2089 = vadd.f32 %v1704, %v2088
  %v2090 = vpop.f32.mrb[0].mxu0
  %2091 = vmatprep.mubr.f32.mxu0 %v681
  %2092 = vmatmul.mubr.f32.gmra.mrb[0].mxu0 %v617
  %v2093 = vpop.f32.mrb[0].mxu0
  %v2094 = vadd.f32 %v1709, %v2093
  %v2095 = vpop.f32.mrb[0].mxu0
  %2096 = vmatprep.mubr.f32.mxu0 %v682
  %2097 = vmatmul.mubr.f32.gmra.mrb[0].mxu0 %v618
  %v2098 = vpop.f32.mrb[0].mxu0
  %v2099 = vadd.f32 %v1714, %v2098
  %v2100 = vpop.f32.mrb[0].mxu0
  %2101 = vmatprep.mubr.f32.mxu0 %v683
  %2102 = vmatmul.mubr.f32.gmra.mrb[0].mxu0 %v619
  %v2103 = vpop.f32.mrb[0].mxu0
  %v2104 = vadd.f32 %v1719, %v2103
  %v2105 = vpop.f32.mrb[0].mxu0
  %2106 = vmatprep.mubr.f32.mxu0 %v684
  %2107 = vmatmul.mubr.f32.gmra.mrb[0].mxu0 %v620
  %v2108 = vpop.f32.mrb[0].mxu0
  %v2109 = vadd.f32 %v1724, %v2108
  %v2110 = vpop.f32.mrb[0].mxu0
  %2111 = vmatprep.mubr.f32.mxu0 %v685
  %2112 = vmatmul.mubr.f32.gmra.mrb[0].mxu0 %v621
  %v2113 = vpop.f32.mrb[0].mxu0
  %v2114 = vadd.f32 %v1729, %v2113
  %v2115 = vpop.f32.mrb[0].mxu0
  %2116 = vmatprep.mubr.f32.mxu0 %v686
  %2117 = vmatmul.mubr.f32.gmra.mrb[0].mxu0 %v622
  %v2118 = vpop.f32.mrb[0].mxu0
  %v2119 = vadd.f32 %v1734, %v2118
  %v2120 = vpop.f32.mrb[0].mxu0
  %2121 = vmatprep.mubr.f32.mxu0 %v687
  %2122 = vmatmul.mubr.f32.gmra.mrb[0].mxu0 %v623
  %v2123 = vpop.f32.mrb[0].mxu0
  %v2124 = vadd.f32 %v1739, %v2123
  %v2125 = vpop.f32.mrb[0].mxu0
  %2126 = vmatprep.mubr.f32.mxu0 %v688
  %2127 = vmatmul.mubr.f32.gmra.mrb[0].mxu0 %v624
  %v2128 = vpop.f32.mrb[0].mxu0
  %v2129 = vadd.f32 %v1744, %v2128
  %v2130 = vpop.f32.mrb[0].mxu0
  %2131 = vmatprep.mubr.f32.mxu0 %v689
  %2132 = vmatmul.mubr.f32.gmra.mrb[0].mxu0 %v625
  %v2133 = vpop.f32.mrb[0].mxu0
  %v2134 = vadd.f32 %v1749, %v2133
  %v2135 = vpop.f32.mrb[0].mxu0
  %2136 = vmatprep.mubr.f32.mxu0 %v690
  %2137 = vmatmul.mubr.f32.gmra.mrb[0].mxu0 %v626
  %v2138 = vpop.f32.mrb[0].mxu0
  %v2139 = vadd.f32 %v1754, %v2138
  %v2140 = vpop.f32.mrb[0].mxu0
  %2141 = vmatprep.mubr.f32.mxu0 %v691
  %2142 = vmatmul.mubr.f32.gmra.mrb[0].mxu0 %v627
  %v2143 = vpop.f32.mrb[0].mxu0
  %v2144 = vadd.f32 %v1759, %v2143
  %v2145 = vpop.f32.mrb[0].mxu0
  %2146 = vmatprep.mubr.f32.mxu0 %v692
  %2147 = vmatmul.mubr.f32.gmra.mrb[0].mxu0 %v628
  %v2148 = vpop.f32.mrb[0].mxu0
  %v2149 = vadd.f32 %v1764, %v2148
  %v2150 = vpop.f32.mrb[0].mxu0
  %2151 = vmatprep.mubr.f32.mxu0 %v693
  %2152 = vmatmul.mubr.f32.gmra.mrb[0].mxu0 %v629
  %v2153 = vpop.f32.mrb[0].mxu0
  %v2154 = vadd.f32 %v1769, %v2153
  %v2155 = vpop.f32.mrb[0].mxu0
  %2156 = vmatprep.mubr.f32.mxu0 %v694
  %2157 = vmatmul.mubr.f32.gmra.mrb[0].mxu0 %v630
  %v2158 = vpop.f32.mrb[0].mxu0
  %v2159 = vadd.f32 %v1774, %v2158
  %v2160 = vpop.f32.mrb[0].mxu0
  %2161 = vmatprep.mubr.f32.mxu0 %v695
  %2162 = vmatmul.mubr.f32.gmra.mrb[0].mxu0 %v631
  %v2163 = vpop.f32.mrb[0].mxu0
  %v2164 = vadd.f32 %v1779, %v2163
  %v2165 = vpop.f32.mrb[0].mxu0
  %2166 = vmatprep.mubr.f32.mxu0 %v696
  %2167 = vmatmul.mubr.f32.gmra.mrb[0].mxu0 %v632
  %v2168 = vpop.f32.mrb[0].mxu0
  %v2169 = vadd.f32 %v1784, %v2168
  %v2170 = vpop.f32.mrb[0].mxu0
  %2171 = vmatprep.mubr.f32.mxu0 %v697
  %2172 = vmatmul.mubr.f32.gmra.mrb[0].mxu0 %v633
  %v2173 = vpop.f32.mrb[0].mxu0
  %v2174 = vadd.f32 %v1789, %v2173
  %v2175 = vpop.f32.mrb[0].mxu0
  %2176 = vmatprep.mubr.f32.mxu0 %v698
  %2177 = vmatmul.mubr.f32.gmra.mrb[0].mxu0 %v634
  %v2178 = vpop.f32.mrb[0].mxu0
  %v2179 = vadd.f32 %v1794, %v2178
  %v2180 = vpop.f32.mrb[0].mxu0
  %2181 = vmatprep.mubr.f32.mxu0 %v699
  %2182 = vmatmul.mubr.f32.gmra.mrb[0].mxu0 %v635
  %v2183 = vpop.f32.mrb[0].mxu0
  %v2184 = vadd.f32 %v1799, %v2183
  %v2185 = vpop.f32.mrb[0].mxu0
  %2186 = vmatprep.mubr.f32.mxu0 %v700
  %2187 = vmatmul.mubr.f32.gmra.mrb[0].mxu0 %v636
  %v2188 = vpop.f32.mrb[0].mxu0
  %v2189 = vadd.f32 %v1804, %v2188
  %v2190 = vpop.f32.mrb[0].mxu0
  %2191 = vmatprep.mubr.f32.mxu0 %v701
  %2192 = vmatmul.mubr.f32.gmra.mrb[0].mxu0 %v637
  %v2193 = vpop.f32.mrb[0].mxu0
  %v2194 = vadd.f32 %v1809, %v2193
  %v2195 = vpop.f32.mrb[0].mxu0
  %2196 = vdwg.mxu0
  %2197 = vmatprep.subr.mxu0 0.0
  %2198 = vmatpush1.msra.mxu0 %v990
  %2199 = vmatprep.subr.mxu0 0.0
  %2200 = vmatpush1.msra.mxu0 %v991
  %2201 = vmatprep.subr.mxu0 0.0
  %2202 = vmatpush1.msra.mxu0 %v992
  %2203 = vmatprep.subr.mxu0 0.0
  %2204 = vmatpush1.msra.mxu0 %v993
  %2205 = vmatprep.subr.mxu0 0.0
  %2206 = vmatpush1.msra.mxu0 %v994
  %2207 = vmatprep.subr.mxu0 0.0
  %2208 = vmatpush1.msra.mxu0 %v995
  %2209 = vmatprep.subr.mxu0 0.0
  %2210 = vmatpush1.msra.mxu0 %v996
  %2211 = vmatprep.subr.mxu0 0.0
  %2212 = vmatpush1.msra.mxu0 %v997
  %2213 = vmatprep.subr.mxu0 0.0
  %2214 = vmatpush1.msra.mxu0 %v998
  %2215 = vmatprep.subr.mxu0 0.0
  %2216 = vmatpush1.msra.mxu0 %v999
  %2217 = vmatprep.subr.mxu0 0.0
  %2218 = vmatpush1.msra.mxu0 %v1000
  %2219 = vmatprep.subr.mxu0 0.0
  %2220 = vmatpush1.msra.mxu0 %v1001
  %2221 = vmatprep.subr.mxu0 0.0
  %2222 = vmatpush1.msra.mxu0 %v1002
  %2223 = vmatprep.subr.mxu0 0.0
  %2224 = vmatpush1.msra.mxu0 %v1003
  %2225 = vmatprep.subr.mxu0 0.0
  %2226 = vmatpush1.msra.mxu0 %v1004
  %2227 = vmatprep.subr.mxu0 0.0
  %2228 = vmatpush1.msra.mxu0 %v1005
  %2229 = vmatprep.subr.mxu0 0.0
  %2230 = vmatpush1.msra.mxu0 %v1006
  %2231 = vmatprep.subr.mxu0 0.0
  %2232 = vmatpush1.msra.mxu0 %v1007
  %2233 = vmatprep.subr.mxu0 0.0
  %2234 = vmatpush1.msra.mxu0 %v1008
  %2235 = vmatprep.subr.mxu0 0.0
  %2236 = vmatpush1.msra.mxu0 %v1009
  %2237 = vmatprep.subr.mxu0 0.0
  %2238 = vmatpush1.msra.mxu0 %v1010
  %2239 = vmatprep.subr.mxu0 0.0
  %2240 = vmatpush1.msra.mxu0 %v1011
  %2241 = vmatprep.subr.mxu0 0.0
  %2242 = vmatpush1.msra.mxu0 %v1012
  %2243 = vmatprep.subr.mxu0 0.0
  %2244 = vmatpush1.msra.mxu0 %v1013
  %2245 = vmatprep.subr.mxu0 0.0
  %2246 = vmatpush1.msra.mxu0 %v1014
  %2247 = vmatprep.subr.mxu0 0.0
  %2248 = vmatpush1.msra.mxu0 %v1015
  %2249 = vmatprep.subr.mxu0 0.0
  %2250 = vmatpush1.msra.mxu0 %v1016
  %2251 = vmatprep.subr.mxu0 0.0
  %2252 = vmatpush1.msra.mxu0 %v1017
  %2253 = vmatprep.subr.mxu0 0.0
  %2254 = vmatpush1.msra.mxu0 %v1018
  %2255 = vmatprep.subr.mxu0 0.0
  %2256 = vmatpush1.msra.mxu0 %v1019
  %2257 = vmatprep.subr.mxu0 0.0
  %2258 = vmatpush1.msra.mxu0 %v1020
  %2259 = vmatprep.subr.mxu0 0.0
  %2260 = vmatpush1.msra.mxu0 %v1021
  %2261 = vmatprep.mubr.f32.mxu0 %v766
  %2262 = vmatmul.mubr.f32.gmra.mrb[0].mxu0 %v702
  %v2263 = vpop.f32.mrb[0].mxu0
  %v2264 = vadd.f32 %v1879, %v2263
  %v2265 = vpop.f32.mrb[0].mxu0
  %2266 = vmatprep.mubr.f32.mxu0 %v767
  %2267 = vmatmul.mubr.f32.gmra.mrb[0].mxu0 %v703
  %v2268 = vpop.f32.mrb[0].mxu0
  %v2269 = vadd.f32 %v1884, %v2268
  %v2270 = vpop.f32.mrb[0].mxu0
  %2271 = vmatprep.mubr.f32.mxu0 %v768
  %2272 = vmatmul.mubr.f32.gmra.mrb[0].mxu0 %v704
  %v2273 = vpop.f32.mrb[0].mxu0
  %v2274 = vadd.f32 %v1889, %v2273
  %v2275 = vpop.f32.mrb[0].mxu0
  %2276 = vmatprep.mubr.f32.mxu0 %v769
  %2277 = vmatmul.mubr.f32.gmra.mrb[0].mxu0 %v705
  %v2278 = vpop.f32.mrb[0].mxu0
  %v2279 = vadd.f32 %v1894, %v2278
  %v2280 = vpop.f32.mrb[0].mxu0
  %2281 = vmatprep.mubr.f32.mxu0 %v770
  %2282 = vmatmul.mubr.f32.gmra.mrb[0].mxu0 %v706
  %v2283 = vpop.f32.mrb[0].mxu0
  %v2284 = vadd.f32 %v1899, %v2283
  %v2285 = vpop.f32.mrb[0].mxu0
  %2286 = vmatprep.mubr.f32.mxu0 %v771
  %2287 = vmatmul.mubr.f32.gmra.mrb[0].mxu0 %v707
  %v2288 = vpop.f32.mrb[0].mxu0
  %v2289 = vadd.f32 %v1904, %v2288
  %v2290 = vpop.f32.mrb[0].mxu0
  %2291 = vmatprep.mubr.f32.mxu0 %v772
  %2292 = vmatmul.mubr.f32.gmra.mrb[0].mxu0 %v708
  %v2293 = vpop.f32.mrb[0].mxu0
  %v2294 = vadd.f32 %v1909, %v2293
  %v2295 = vpop.f32.mrb[0].mxu0
  %2296 = vmatprep.mubr.f32.mxu0 %v773
  %2297 = vmatmul.mubr.f32.gmra.mrb[0].mxu0 %v709
  %v2298 = vpop.f32.mrb[0].mxu0
  %v2299 = vadd.f32 %v1914, %v2298
  %v2300 = vpop.f32.mrb[0].mxu0
  %2301 = vmatprep.mubr.f32.mxu0 %v774
  %2302 = vmatmul.mubr.f32.gmra.mrb[0].mxu0 %v710
  %v2303 = vpop.f32.mrb[0].mxu0
  %v2304 = vadd.f32 %v1919, %v2303
  %v2305 = vpop.f32.mrb[0].mxu0
  %2306 = vmatprep.mubr.f32.mxu0 %v775
  %2307 = vmatmul.mubr.f32.gmra.mrb[0].mxu0 %v711
  %v2308 = vpop.f32.mrb[0].mxu0
  %v2309 = vadd.f32 %v1924, %v2308
  %v2310 = vpop.f32.mrb[0].mxu0
  %2311 = vmatprep.mubr.f32.mxu0 %v776
  %2312 = vmatmul.mubr.f32.gmra.mrb[0].mxu0 %v712
  %v2313 = vpop.f32.mrb[0].mxu0
  %v2314 = vadd.f32 %v1929, %v2313
  %v2315 = vpop.f32.mrb[0].mxu0
  %2316 = vmatprep.mubr.f32.mxu0 %v777
  %2317 = vmatmul.mubr.f32.gmra.mrb[0].mxu0 %v713
  %v2318 = vpop.f32.mrb[0].mxu0
  %v2319 = vadd.f32 %v1934, %v2318
  %v2320 = vpop.f32.mrb[0].mxu0
  %2321 = vmatprep.mubr.f32.mxu0 %v778
  %2322 = vmatmul.mubr.f32.gmra.mrb[0].mxu0 %v714
  %v2323 = vpop.f32.mrb[0].mxu0
  %v2324 = vadd.f32 %v1939, %v2323
  %v2325 = vpop.f32.mrb[0].mxu0
  %2326 = vmatprep.mubr.f32.mxu0 %v779
  %2327 = vmatmul.mubr.f32.gmra.mrb[0].mxu0 %v715
  %v2328 = vpop.f32.mrb[0].mxu0
  %v2329 = vadd.f32 %v1944, %v2328
  %v2330 = vpop.f32.mrb[0].mxu0
  %2331 = vmatprep.mubr.f32.mxu0 %v780
  %2332 = vmatmul.mubr.f32.gmra.mrb[0].mxu0 %v716
  %v2333 = vpop.f32.mrb[0].mxu0
  %v2334 = vadd.f32 %v1949, %v2333
  %v2335 = vpop.f32.mrb[0].mxu0
  %2336 = vmatprep.mubr.f32.mxu0 %v781
  %2337 = vmatmul.mubr.f32.gmra.mrb[0].mxu0 %v717
  %v2338 = vpop.f32.mrb[0].mxu0
  %v2339 = vadd.f32 %v1954, %v2338
  %v2340 = vpop.f32.mrb[0].mxu0
  %2341 = vmatprep.mubr.f32.mxu0 %v782
  %2342 = vmatmul.mubr.f32.gmra.mrb[0].mxu0 %v718
  %v2343 = vpop.f32.mrb[0].mxu0
  %v2344 = vadd.f32 %v1959, %v2343
  %v2345 = vpop.f32.mrb[0].mxu0
  %2346 = vmatprep.mubr.f32.mxu0 %v783
  %2347 = vmatmul.mubr.f32.gmra.mrb[0].mxu0 %v719
  %v2348 = vpop.f32.mrb[0].mxu0
  %v2349 = vadd.f32 %v1964, %v2348
  %v2350 = vpop.f32.mrb[0].mxu0
  %2351 = vmatprep.mubr.f32.mxu0 %v784
  %2352 = vmatmul.mubr.f32.gmra.mrb[0].mxu0 %v720
  %v2353 = vpop.f32.mrb[0].mxu0
  %v2354 = vadd.f32 %v1969, %v2353
  %v2355 = vpop.f32.mrb[0].mxu0
  %2356 = vmatprep.mubr.f32.mxu0 %v785
  %2357 = vmatmul.mubr.f32.gmra.mrb[0].mxu0 %v721
  %v2358 = vpop.f32.mrb[0].mxu0
  %v2359 = vadd.f32 %v1974, %v2358
  %v2360 = vpop.f32.mrb[0].mxu0
  %2361 = vmatprep.mubr.f32.mxu0 %v786
  %2362 = vmatmul.mubr.f32.gmra.mrb[0].mxu0 %v722
  %v2363 = vpop.f32.mrb[0].mxu0
  %v2364 = vadd.f32 %v1979, %v2363
  %v2365 = vpop.f32.mrb[0].mxu0
  %2366 = vmatprep.mubr.f32.mxu0 %v787
  %2367 = vmatmul.mubr.f32.gmra.mrb[0].mxu0 %v723
  %v2368 = vpop.f32.mrb[0].mxu0
  %v2369 = vadd.f32 %v1984, %v2368
  %v2370 = vpop.f32.mrb[0].mxu0
  %2371 = vmatprep.mubr.f32.mxu0 %v788
  %2372 = vmatmul.mubr.f32.gmra.mrb[0].mxu0 %v724
  %v2373 = vpop.f32.mrb[0].mxu0
  %v2374 = vadd.f32 %v1989, %v2373
  %v2375 = vpop.f32.mrb[0].mxu0
  %2376 = vmatprep.mubr.f32.mxu0 %v789
  %2377 = vmatmul.mubr.f32.gmra.mrb[0].mxu0 %v725
  %v2378 = vpop.f32.mrb[0].mxu0
  %v2379 = vadd.f32 %v1994, %v2378
  %v2380 = vpop.f32.mrb[0].mxu0
  %2381 = vmatprep.mubr.f32.mxu0 %v790
  %2382 = vmatmul.mubr.f32.gmra.mrb[0].mxu0 %v726
  %v2383 = vpop.f32.mrb[0].mxu0
  %v2384 = vadd.f32 %v1999, %v2383
  %v2385 = vpop.f32.mrb[0].mxu0
  %2386 = vmatprep.mubr.f32.mxu0 %v791
  %2387 = vmatmul.mubr.f32.gmra.mrb[0].mxu0 %v727
  %v2388 = vpop.f32.mrb[0].mxu0
  %v2389 = vadd.f32 %v2004, %v2388
  %v2390 = vpop.f32.mrb[0].mxu0
  %2391 = vmatprep.mubr.f32.mxu0 %v792
  %2392 = vmatmul.mubr.f32.gmra.mrb[0].mxu0 %v728
  %v2393 = vpop.f32.mrb[0].mxu0
  %v2394 = vadd.f32 %v2009, %v2393
  %v2395 = vpop.f32.mrb[0].mxu0
  %2396 = vmatprep.mubr.f32.mxu0 %v793
  %2397 = vmatmul.mubr.f32.gmra.mrb[0].mxu0 %v729
  %v2398 = vpop.f32.mrb[0].mxu0
  %v2399 = vadd.f32 %v2014, %v2398
  %v2400 = vpop.f32.mrb[0].mxu0
  %2401 = vmatprep.mubr.f32.mxu0 %v794
  %2402 = vmatmul.mubr.f32.gmra.mrb[0].mxu0 %v730
  %v2403 = vpop.f32.mrb[0].mxu0
  %v2404 = vadd.f32 %v2019, %v2403
  %v2405 = vpop.f32.mrb[0].mxu0
  %2406 = vmatprep.mubr.f32.mxu0 %v795
  %2407 = vmatmul.mubr.f32.gmra.mrb[0].mxu0 %v731
  %v2408 = vpop.f32.mrb[0].mxu0
  %v2409 = vadd.f32 %v2024, %v2408
  %v2410 = vpop.f32.mrb[0].mxu0
  %2411 = vmatprep.mubr.f32.mxu0 %v796
  %2412 = vmatmul.mubr.f32.gmra.mrb[0].mxu0 %v732
  %v2413 = vpop.f32.mrb[0].mxu0
  %v2414 = vadd.f32 %v2029, %v2413
  %v2415 = vpop.f32.mrb[0].mxu0
  %2416 = vmatprep.mubr.f32.mxu0 %v797
  %2417 = vmatmul.mubr.f32.gmra.mrb[0].mxu0 %v733
  %v2418 = vpop.f32.mrb[0].mxu0
  %v2419 = vadd.f32 %v2034, %v2418
  %v2420 = vpop.f32.mrb[0].mxu0
  %2421 = vmatprep.mubr.f32.mxu0 %v798
  %2422 = vmatmul.mubr.f32.gmra.mrb[0].mxu0 %v734
  %v2423 = vpop.f32.mrb[0].mxu0
  %v2424 = vadd.f32 %v2039, %v2423
  %v2425 = vpop.f32.mrb[0].mxu0
  %2426 = vmatprep.mubr.f32.mxu0 %v799
  %2427 = vmatmul.mubr.f32.gmra.mrb[0].mxu0 %v735
  %v2428 = vpop.f32.mrb[0].mxu0
  %v2429 = vadd.f32 %v2044, %v2428
  %v2430 = vpop.f32.mrb[0].mxu0
  %2431 = vmatprep.mubr.f32.mxu0 %v800
  %2432 = vmatmul.mubr.f32.gmra.mrb[0].mxu0 %v736
  %v2433 = vpop.f32.mrb[0].mxu0
  %v2434 = vadd.f32 %v2049, %v2433
  %v2435 = vpop.f32.mrb[0].mxu0
  %2436 = vmatprep.mubr.f32.mxu0 %v801
  %2437 = vmatmul.mubr.f32.gmra.mrb[0].mxu0 %v737
  %v2438 = vpop.f32.mrb[0].mxu0
  %v2439 = vadd.f32 %v2054, %v2438
  %v2440 = vpop.f32.mrb[0].mxu0
  %2441 = vmatprep.mubr.f32.mxu0 %v802
  %2442 = vmatmul.mubr.f32.gmra.mrb[0].mxu0 %v738
  %v2443 = vpop.f32.mrb[0].mxu0
  %v2444 = vadd.f32 %v2059, %v2443
  %v2445 = vpop.f32.mrb[0].mxu0
  %2446 = vmatprep.mubr.f32.mxu0 %v803
  %2447 = vmatmul.mubr.f32.gmra.mrb[0].mxu0 %v739
  %v2448 = vpop.f32.mrb[0].mxu0
  %v2449 = vadd.f32 %v2064, %v2448
  %v2450 = vpop.f32.mrb[0].mxu0
  %2451 = vmatprep.mubr.f32.mxu0 %v804
  %2452 = vmatmul.mubr.f32.gmra.mrb[0].mxu0 %v740
  %v2453 = vpop.f32.mrb[0].mxu0
  %v2454 = vadd.f32 %v2069, %v2453
  %v2455 = vpop.f32.mrb[0].mxu0
  %2456 = vmatprep.mubr.f32.mxu0 %v805
  %2457 = vmatmul.mubr.f32.gmra.mrb[0].mxu0 %v741
  %v2458 = vpop.f32.mrb[0].mxu0
  %v2459 = vadd.f32 %v2074, %v2458
  %v2460 = vpop.f32.mrb[0].mxu0
  %2461 = vmatprep.mubr.f32.mxu0 %v806
  %2462 = vmatmul.mubr.f32.gmra.mrb[0].mxu0 %v742
  %v2463 = vpop.f32.mrb[0].mxu0
  %v2464 = vadd.f32 %v2079, %v2463
  %v2465 = vpop.f32.mrb[0].mxu0
  %2466 = vmatprep.mubr.f32.mxu0 %v807
  %2467 = vmatmul.mubr.f32.gmra.mrb[0].mxu0 %v743
  %v2468 = vpop.f32.mrb[0].mxu0
  %v2469 = vadd.f32 %v2084, %v2468
  %v2470 = vpop.f32.mrb[0].mxu0
  %2471 = vmatprep.mubr.f32.mxu0 %v808
  %2472 = vmatmul.mubr.f32.gmra.mrb[0].mxu0 %v744
  %v2473 = vpop.f32.mrb[0].mxu0
  %v2474 = vadd.f32 %v2089, %v2473
  %v2475 = vpop.f32.mrb[0].mxu0
  %2476 = vmatprep.mubr.f32.mxu0 %v809
  %2477 = vmatmul.mubr.f32.gmra.mrb[0].mxu0 %v745
  %v2478 = vpop.f32.mrb[0].mxu0
  %v2479 = vadd.f32 %v2094, %v2478
  %v2480 = vpop.f32.mrb[0].mxu0
  %2481 = vmatprep.mubr.f32.mxu0 %v810
  %2482 = vmatmul.mubr.f32.gmra.mrb[0].mxu0 %v746
  %v2483 = vpop.f32.mrb[0].mxu0
  %v2484 = vadd.f32 %v2099, %v2483
  %v2485 = vpop.f32.mrb[0].mxu0
  %2486 = vmatprep.mubr.f32.mxu0 %v811
  %2487 = vmatmul.mubr.f32.gmra.mrb[0].mxu0 %v747
  %v2488 = vpop.f32.mrb[0].mxu0
  %v2489 = vadd.f32 %v2104, %v2488
  %v2490 = vpop.f32.mrb[0].mxu0
  %2491 = vmatprep.mubr.f32.mxu0 %v812
  %2492 = vmatmul.mubr.f32.gmra.mrb[0].mxu0 %v748
  %v2493 = vpop.f32.mrb[0].mxu0
  %v2494 = vadd.f32 %v2109, %v2493
  %v2495 = vpop.f32.mrb[0].mxu0
  %2496 = vmatprep.mubr.f32.mxu0 %v813
  %2497 = vmatmul.mubr.f32.gmra.mrb[0].mxu0 %v749
  %v2498 = vpop.f32.mrb[0].mxu0
  %v2499 = vadd.f32 %v2114, %v2498
  %v2500 = vpop.f32.mrb[0].mxu0
  %2501 = vmatprep.mubr.f32.mxu0 %v814
  %2502 = vmatmul.mubr.f32.gmra.mrb[0].mxu0 %v750
  %v2503 = vpop.f32.mrb[0].mxu0
  %v2504 = vadd.f32 %v2119, %v2503
  %v2505 = vpop.f32.mrb[0].mxu0
  %2506 = vmatprep.mubr.f32.mxu0 %v815
  %2507 = vmatmul.mubr.f32.gmra.mrb[0].mxu0 %v751
  %v2508 = vpop.f32.mrb[0].mxu0
  %v2509 = vadd.f32 %v2124, %v2508
  %v2510 = vpop.f32.mrb[0].mxu0
  %2511 = vmatprep.mubr.f32.mxu0 %v816
  %2512 = vmatmul.mubr.f32.gmra.mrb[0].mxu0 %v752
  %v2513 = vpop.f32.mrb[0].mxu0
  %v2514 = vadd.f32 %v2129, %v2513
  %v2515 = vpop.f32.mrb[0].mxu0
  %2516 = vmatprep.mubr.f32.mxu0 %v817
  %2517 = vmatmul.mubr.f32.gmra.mrb[0].mxu0 %v753
  %v2518 = vpop.f32.mrb[0].mxu0
  %v2519 = vadd.f32 %v2134, %v2518
  %v2520 = vpop.f32.mrb[0].mxu0
  %2521 = vmatprep.mubr.f32.mxu0 %v818
  %2522 = vmatmul.mubr.f32.gmra.mrb[0].mxu0 %v754
  %v2523 = vpop.f32.mrb[0].mxu0
  %v2524 = vadd.f32 %v2139, %v2523
  %v2525 = vpop.f32.mrb[0].mxu0
  %2526 = vmatprep.mubr.f32.mxu0 %v819
  %2527 = vmatmul.mubr.f32.gmra.mrb[0].mxu0 %v755
  %v2528 = vpop.f32.mrb[0].mxu0
  %v2529 = vadd.f32 %v2144, %v2528
  %v2530 = vpop.f32.mrb[0].mxu0
  %2531 = vmatprep.mubr.f32.mxu0 %v820
  %2532 = vmatmul.mubr.f32.gmra.mrb[0].mxu0 %v756
  %v2533 = vpop.f32.mrb[0].mxu0
  %v2534 = vadd.f32 %v2149, %v2533
  %v2535 = vpop.f32.mrb[0].mxu0
  %2536 = vmatprep.mubr.f32.mxu0 %v821
  %2537 = vmatmul.mubr.f32.gmra.mrb[0].mxu0 %v757
  %v2538 = vpop.f32.mrb[0].mxu0
  %v2539 = vadd.f32 %v2154, %v2538
  %v2540 = vpop.f32.mrb[0].mxu0
  %2541 = vmatprep.mubr.f32.mxu0 %v822
  %2542 = vmatmul.mubr.f32.gmra.mrb[0].mxu0 %v758
  %v2543 = vpop.f32.mrb[0].mxu0
  %v2544 = vadd.f32 %v2159, %v2543
  %v2545 = vpop.f32.mrb[0].mxu0
  %2546 = vmatprep.mubr.f32.mxu0 %v823
  %2547 = vmatmul.mubr.f32.gmra.mrb[0].mxu0 %v759
  %v2548 = vpop.f32.mrb[0].mxu0
  %v2549 = vadd.f32 %v2164, %v2548
  %v2550 = vpop.f32.mrb[0].mxu0
  %2551 = vmatprep.mubr.f32.mxu0 %v824
  %2552 = vmatmul.mubr.f32.gmra.mrb[0].mxu0 %v760
  %v2553 = vpop.f32.mrb[0].mxu0
  %v2554 = vadd.f32 %v2169, %v2553
  %v2555 = vpop.f32.mrb[0].mxu0
  %2556 = vmatprep.mubr.f32.mxu0 %v825
  %2557 = vmatmul.mubr.f32.gmra.mrb[0].mxu0 %v761
  %v2558 = vpop.f32.mrb[0].mxu0
  %v2559 = vadd.f32 %v2174, %v2558
  %v2560 = vpop.f32.mrb[0].mxu0
  %2561 = vmatprep.mubr.f32.mxu0 %v826
  %2562 = vmatmul.mubr.f32.gmra.mrb[0].mxu0 %v762
  %v2563 = vpop.f32.mrb[0].mxu0
  %v2564 = vadd.f32 %v2179, %v2563
  %v2565 = vpop.f32.mrb[0].mxu0
  %2566 = vmatprep.mubr.f32.mxu0 %v827
  %2567 = vmatmul.mubr.f32.gmra.mrb[0].mxu0 %v763
  %v2568 = vpop.f32.mrb[0].mxu0
  %v2569 = vadd.f32 %v2184, %v2568
  %v2570 = vpop.f32.mrb[0].mxu0
  %2571 = vmatprep.mubr.f32.mxu0 %v828
  %2572 = vmatmul.mubr.f32.gmra.mrb[0].mxu0 %v764
  %v2573 = vpop.f32.mrb[0].mxu0
  %v2574 = vadd.f32 %v2189, %v2573
  %v2575 = vpop.f32.mrb[0].mxu0
  %2576 = vmatprep.mubr.f32.mxu0 %v829
  %2577 = vmatmul.mubr.f32.gmra.mrb[0].mxu0 %v765
  %v2578 = vpop.f32.mrb[0].mxu0
  %v2579 = vadd.f32 %v2194, %v2578
  %v2580 = vpop.f32.mrb[0].mxu0
  %2581 = vdwg.mxu0
  %2582 = vmatprep.subr.mxu0 0.0
  %2583 = vmatpush1.msra.mxu0 %v1022
  %2584 = vmatprep.subr.mxu0 0.0
  %2585 = vmatpush1.msra.mxu0 %v1023
  %2586 = vmatprep.subr.mxu0 0.0
  %2587 = vmatpush1.msra.mxu0 %v1024
  %2588 = vmatprep.subr.mxu0 0.0
  %2589 = vmatpush1.msra.mxu0 %v1025
  %2590 = vmatprep.subr.mxu0 0.0
  %2591 = vmatpush1.msra.mxu0 %v1026
  %2592 = vmatprep.subr.mxu0 0.0
  %2593 = vmatpush1.msra.mxu0 %v1027
  %2594 = vmatprep.subr.mxu0 0.0
  %2595 = vmatpush1.msra.mxu0 %v1028
  %2596 = vmatprep.subr.mxu0 0.0
  %2597 = vmatpush1.msra.mxu0 %v1029
  %2598 = vmatprep.subr.mxu0 0.0
  %2599 = vmatpush1.msra.mxu0 %v1030
  %2600 = vmatprep.subr.mxu0 0.0
  %2601 = vmatpush1.msra.mxu0 %v1031
  %2602 = vmatprep.subr.mxu0 0.0
  %2603 = vmatpush1.msra.mxu0 %v1032
  %2604 = vmatprep.subr.mxu0 0.0
  %2605 = vmatpush1.msra.mxu0 %v1033
  %2606 = vmatprep.subr.mxu0 0.0
  %2607 = vmatpush1.msra.mxu0 %v1034
  %2608 = vmatprep.subr.mxu0 0.0
  %2609 = vmatpush1.msra.mxu0 %v1035
  %2610 = vmatprep.subr.mxu0 0.0
  %2611 = vmatpush1.msra.mxu0 %v1036
  %2612 = vmatprep.subr.mxu0 0.0
  %2613 = vmatpush1.msra.mxu0 %v1037
  %2614 = vmatprep.subr.mxu0 0.0
  %2615 = vmatpush1.msra.mxu0 0.0
  %2616 = vmatprep.subr.mxu0 0.0
  %2617 = vmatpush1.msra.mxu0 0.0
  %2618 = vmatprep.subr.mxu0 0.0
  %2619 = vmatpush1.msra.mxu0 0.0
  %2620 = vmatprep.subr.mxu0 0.0
  %2621 = vmatpush1.msra.mxu0 0.0
  %2622 = vmatprep.subr.mxu0 0.0
  %2623 = vmatpush1.msra.mxu0 0.0
  %2624 = vmatprep.subr.mxu0 0.0
  %2625 = vmatpush1.msra.mxu0 0.0
  %2626 = vmatprep.subr.mxu0 0.0
  %2627 = vmatpush1.msra.mxu0 0.0
  %2628 = vmatprep.subr.mxu0 0.0
  %2629 = vmatpush1.msra.mxu0 0.0
  %2630 = vmatprep.subr.mxu0 0.0
  %2631 = vmatpush1.msra.mxu0 0.0
  %2632 = vmatprep.subr.mxu0 0.0
  %2633 = vmatpush1.msra.mxu0 0.0
  %2634 = vmatprep.subr.mxu0 0.0
  %2635 = vmatpush1.msra.mxu0 0.0
  %2636 = vmatprep.subr.mxu0 0.0
  %2637 = vmatpush1.msra.mxu0 0.0
  %2638 = vmatprep.subr.mxu0 0.0
  %2639 = vmatpush1.msra.mxu0 0.0
  %2640 = vmatprep.subr.mxu0 0.0
  %2641 = vmatpush1.msra.mxu0 0.0
  %2642 = vmatprep.subr.mxu0 0.0
  %2643 = vmatpush1.msra.mxu0 0.0
  %2644 = vmatprep.subr.mxu0 0.0
  %2645 = vmatpush1.msra.mxu0 0.0
  %2646 = vmatprep.mubr.f32.mxu0 0.0
  %2647 = vmatmul.mubr.f32.gmra.mrb[0].mxu0 %v830
  %v2648 = vpop.f32.mrb[0].mxu0
  %v2649 = vadd.f32 %v2264, %v2648
  %v2650 = vpop.f32.mrb[0].mxu0
  %2651 = vmatprep.mubr.f32.mxu0 0.0
  %2652 = vmatmul.mubr.f32.gmra.mrb[0].mxu0 %v831
  %v2653 = vpop.f32.mrb[0].mxu0
  %v2654 = vadd.f32 %v2269, %v2653
  %v2655 = vpop.f32.mrb[0].mxu0
  %2656 = vmatprep.mubr.f32.mxu0 0.0
  %2657 = vmatmul.mubr.f32.gmra.mrb[0].mxu0 %v832
  %v2658 = vpop.f32.mrb[0].mxu0
  %v2659 = vadd.f32 %v2274, %v2658
  %v2660 = vpop.f32.mrb[0].mxu0
  %2661 = vmatprep.mubr.f32.mxu0 0.0
  %2662 = vmatmul.mubr.f32.gmra.mrb[0].mxu0 %v833
  %v2663 = vpop.f32.mrb[0].mxu0
  %v2664 = vadd.f32 %v2279, %v2663
  %v2665 = vpop.f32.mrb[0].mxu0
  %2666 = vmatprep.mubr.f32.mxu0 0.0
  %2667 = vmatmul.mubr.f32.gmra.mrb[0].mxu0 %v834
  %v2668 = vpop.f32.mrb[0].mxu0
  %v2669 = vadd.f32 %v2284, %v2668
  %v2670 = vpop.f32.mrb[0].mxu0
  %2671 = vmatprep.mubr.f32.mxu0 0.0
  %2672 = vmatmul.mubr.f32.gmra.mrb[0].mxu0 %v835
  %v2673 = vpop.f32.mrb[0].mxu0
  %v2674 = vadd.f32 %v2289, %v2673
  %v2675 = vpop.f32.mrb[0].mxu0
  %2676 = vmatprep.mubr.f32.mxu0 0.0
  %2677 = vmatmul.mubr.f32.gmra.mrb[0].mxu0 %v836
  %v2678 = vpop.f32.mrb[0].mxu0
  %v2679 = vadd.f32 %v2294, %v2678
  %v2680 = vpop.f32.mrb[0].mxu0
  %2681 = vmatprep.mubr.f32.mxu0 0.0
  %2682 = vmatmul.mubr.f32.gmra.mrb[0].mxu0 %v837
  %v2683 = vpop.f32.mrb[0].mxu0
  %v2684 = vadd.f32 %v2299, %v2683
  %v2685 = vpop.f32.mrb[0].mxu0
  %2686 = vmatprep.mubr.f32.mxu0 0.0
  %2687 = vmatmul.mubr.f32.gmra.mrb[0].mxu0 %v838
  %v2688 = vpop.f32.mrb[0].mxu0
  %v2689 = vadd.f32 %v2304, %v2688
  %v2690 = vpop.f32.mrb[0].mxu0
  %2691 = vmatprep.mubr.f32.mxu0 0.0
  %2692 = vmatmul.mubr.f32.gmra.mrb[0].mxu0 %v839
  %v2693 = vpop.f32.mrb[0].mxu0
  %v2694 = vadd.f32 %v2309, %v2693
  %v2695 = vpop.f32.mrb[0].mxu0
  %2696 = vmatprep.mubr.f32.mxu0 0.0
  %2697 = vmatmul.mubr.f32.gmra.mrb[0].mxu0 %v840
  %v2698 = vpop.f32.mrb[0].mxu0
  %v2699 = vadd.f32 %v2314, %v2698
  %v2700 = vpop.f32.mrb[0].mxu0
  %2701 = vmatprep.mubr.f32.mxu0 0.0
  %2702 = vmatmul.mubr.f32.gmra.mrb[0].mxu0 %v841
  %v2703 = vpop.f32.mrb[0].mxu0
  %v2704 = vadd.f32 %v2319, %v2703
  %v2705 = vpop.f32.mrb[0].mxu0
  %2706 = vmatprep.mubr.f32.mxu0 0.0
  %2707 = vmatmul.mubr.f32.gmra.mrb[0].mxu0 %v842
  %v2708 = vpop.f32.mrb[0].mxu0
  %v2709 = vadd.f32 %v2324, %v2708
  %v2710 = vpop.f32.mrb[0].mxu0
  %2711 = vmatprep.mubr.f32.mxu0 0.0
  %2712 = vmatmul.mubr.f32.gmra.mrb[0].mxu0 %v843
  %v2713 = vpop.f32.mrb[0].mxu0
  %v2714 = vadd.f32 %v2329, %v2713
  %v2715 = vpop.f32.mrb[0].mxu0
  %2716 = vmatprep.mubr.f32.mxu0 0.0
  %2717 = vmatmul.mubr.f32.gmra.mrb[0].mxu0 %v844
  %v2718 = vpop.f32.mrb[0].mxu0
  %v2719 = vadd.f32 %v2334, %v2718
  %v2720 = vpop.f32.mrb[0].mxu0
  %2721 = vmatprep.mubr.f32.mxu0 0.0
  %2722 = vmatmul.mubr.f32.gmra.mrb[0].mxu0 %v845
  %v2723 = vpop.f32.mrb[0].mxu0
  %v2724 = vadd.f32 %v2339, %v2723
  %v2725 = vpop.f32.mrb[0].mxu0
  %2726 = vmatprep.mubr.f32.mxu0 0.0
  %2727 = vmatmul.mubr.f32.gmra.mrb[0].mxu0 %v846
  %v2728 = vpop.f32.mrb[0].mxu0
  %v2729 = vadd.f32 %v2344, %v2728
  %v2730 = vpop.f32.mrb[0].mxu0
  %2731 = vmatprep.mubr.f32.mxu0 0.0
  %2732 = vmatmul.mubr.f32.gmra.mrb[0].mxu0 %v847
  %v2733 = vpop.f32.mrb[0].mxu0
  %v2734 = vadd.f32 %v2349, %v2733
  %v2735 = vpop.f32.mrb[0].mxu0
  %2736 = vmatprep.mubr.f32.mxu0 0.0
  %2737 = vmatmul.mubr.f32.gmra.mrb[0].mxu0 %v848
  %v2738 = vpop.f32.mrb[0].mxu0
  %v2739 = vadd.f32 %v2354, %v2738
  %v2740 = vpop.f32.mrb[0].mxu0
  %2741 = vmatprep.mubr.f32.mxu0 0.0
  %2742 = vmatmul.mubr.f32.gmra.mrb[0].mxu0 %v849
  %v2743 = vpop.f32.mrb[0].mxu0
  %v2744 = vadd.f32 %v2359, %v2743
  %v2745 = vpop.f32.mrb[0].mxu0
  %2746 = vmatprep.mubr.f32.mxu0 0.0
  %2747 = vmatmul.mubr.f32.gmra.mrb[0].mxu0 %v850
  %v2748 = vpop.f32.mrb[0].mxu0
  %v2749 = vadd.f32 %v2364, %v2748
  %v2750 = vpop.f32.mrb[0].mxu0
  %2751 = vmatprep.mubr.f32.mxu0 0.0
  %2752 = vmatmul.mubr.f32.gmra.mrb[0].mxu0 %v851
  %v2753 = vpop.f32.mrb[0].mxu0
  %v2754 = vadd.f32 %v2369, %v2753
  %v2755 = vpop.f32.mrb[0].mxu0
  %2756 = vmatprep.mubr.f32.mxu0 0.0
  %2757 = vmatmul.mubr.f32.gmra.mrb[0].mxu0 %v852
  %v2758 = vpop.f32.mrb[0].mxu0
  %v2759 = vadd.f32 %v2374, %v2758
  %v2760 = vpop.f32.mrb[0].mxu0
  %2761 = vmatprep.mubr.f32.mxu0 0.0
  %2762 = vmatmul.mubr.f32.gmra.mrb[0].mxu0 %v853
  %v2763 = vpop.f32.mrb[0].mxu0
  %v2764 = vadd.f32 %v2379, %v2763
  %v2765 = vpop.f32.mrb[0].mxu0
  %2766 = vmatprep.mubr.f32.mxu0 0.0
  %2767 = vmatmul.mubr.f32.gmra.mrb[0].mxu0 %v854
  %v2768 = vpop.f32.mrb[0].mxu0
  %v2769 = vadd.f32 %v2384, %v2768
  %v2770 = vpop.f32.mrb[0].mxu0
  %2771 = vmatprep.mubr.f32.mxu0 0.0
  %2772 = vmatmul.mubr.f32.gmra.mrb[0].mxu0 %v855
  %v2773 = vpop.f32.mrb[0].mxu0
  %v2774 = vadd.f32 %v2389, %v2773
  %v2775 = vpop.f32.mrb[0].mxu0
  %2776 = vmatprep.mubr.f32.mxu0 0.0
  %2777 = vmatmul.mubr.f32.gmra.mrb[0].mxu0 %v856
  %v2778 = vpop.f32.mrb[0].mxu0
  %v2779 = vadd.f32 %v2394, %v2778
  %v2780 = vpop.f32.mrb[0].mxu0
  %2781 = vmatprep.mubr.f32.mxu0 0.0
  %2782 = vmatmul.mubr.f32.gmra.mrb[0].mxu0 %v857
  %v2783 = vpop.f32.mrb[0].mxu0
  %v2784 = vadd.f32 %v2399, %v2783
  %v2785 = vpop.f32.mrb[0].mxu0
  %2786 = vmatprep.mubr.f32.mxu0 0.0
  %2787 = vmatmul.mubr.f32.gmra.mrb[0].mxu0 %v858
  %v2788 = vpop.f32.mrb[0].mxu0
  %v2789 = vadd.f32 %v2404, %v2788
  %v2790 = vpop.f32.mrb[0].mxu0
  %2791 = vmatprep.mubr.f32.mxu0 0.0
  %2792 = vmatmul.mubr.f32.gmra.mrb[0].mxu0 %v859
  %v2793 = vpop.f32.mrb[0].mxu0
  %v2794 = vadd.f32 %v2409, %v2793
  %v2795 = vpop.f32.mrb[0].mxu0
  %2796 = vmatprep.mubr.f32.mxu0 0.0
  %2797 = vmatmul.mubr.f32.gmra.mrb[0].mxu0 %v860
  %v2798 = vpop.f32.mrb[0].mxu0
  %v2799 = vadd.f32 %v2414, %v2798
  %v2800 = vpop.f32.mrb[0].mxu0
  %2801 = vmatprep.mubr.f32.mxu0 0.0
  %2802 = vmatmul.mubr.f32.gmra.mrb[0].mxu0 %v861
  %v2803 = vpop.f32.mrb[0].mxu0
  %v2804 = vadd.f32 %v2419, %v2803
  %v2805 = vpop.f32.mrb[0].mxu0
  %2806 = vmatprep.mubr.f32.mxu0 0.0
  %2807 = vmatmul.mubr.f32.gmra.mrb[0].mxu0 %v862
  %v2808 = vpop.f32.mrb[0].mxu0
  %v2809 = vadd.f32 %v2424, %v2808
  %v2810 = vpop.f32.mrb[0].mxu0
  %2811 = vmatprep.mubr.f32.mxu0 0.0
  %2812 = vmatmul.mubr.f32.gmra.mrb[0].mxu0 %v863
  %v2813 = vpop.f32.mrb[0].mxu0
  %v2814 = vadd.f32 %v2429, %v2813
  %v2815 = vpop.f32.mrb[0].mxu0
  %2816 = vmatprep.mubr.f32.mxu0 0.0
  %2817 = vmatmul.mubr.f32.gmra.mrb[0].mxu0 %v864
  %v2818 = vpop.f32.mrb[0].mxu0
  %v2819 = vadd.f32 %v2434, %v2818
  %v2820 = vpop.f32.mrb[0].mxu0
  %2821 = vmatprep.mubr.f32.mxu0 0.0
  %2822 = vmatmul.mubr.f32.gmra.mrb[0].mxu0 %v865
  %v2823 = vpop.f32.mrb[0].mxu0
  %v2824 = vadd.f32 %v2439, %v2823
  %v2825 = vpop.f32.mrb[0].mxu0
  %2826 = vmatprep.mubr.f32.mxu0 0.0
  %2827 = vmatmul.mubr.f32.gmra.mrb[0].mxu0 %v866
  %v2828 = vpop.f32.mrb[0].mxu0
  %v2829 = vadd.f32 %v2444, %v2828
  %v2830 = vpop.f32.mrb[0].mxu0
  %2831 = vmatprep.mubr.f32.mxu0 0.0
  %2832 = vmatmul.mubr.f32.gmra.mrb[0].mxu0 %v867
  %v2833 = vpop.f32.mrb[0].mxu0
  %v2834 = vadd.f32 %v2449, %v2833
  %v2835 = vpop.f32.mrb[0].mxu0
  %2836 = vmatprep.mubr.f32.mxu0 0.0
  %2837 = vmatmul.mubr.f32.gmra.mrb[0].mxu0 %v868
  %v2838 = vpop.f32.mrb[0].mxu0
  %v2839 = vadd.f32 %v2454, %v2838
  %v2840 = vpop.f32.mrb[0].mxu0
  %2841 = vmatprep.mubr.f32.mxu0 0.0
  %2842 = vmatmul.mubr.f32.gmra.mrb[0].mxu0 %v869
  %v2843 = vpop.f32.mrb[0].mxu0
  %v2844 = vadd.f32 %v2459, %v2843
  %v2845 = vpop.f32.mrb[0].mxu0
  %2846 = vmatprep.mubr.f32.mxu0 0.0
  %2847 = vmatmul.mubr.f32.gmra.mrb[0].mxu0 %v870
  %v2848 = vpop.f32.mrb[0].mxu0
  %v2849 = vadd.f32 %v2464, %v2848
  %v2850 = vpop.f32.mrb[0].mxu0
  %2851 = vmatprep.mubr.f32.mxu0 0.0
  %2852 = vmatmul.mubr.f32.gmra.mrb[0].mxu0 %v871
  %v2853 = vpop.f32.mrb[0].mxu0
  %v2854 = vadd.f32 %v2469, %v2853
  %v2855 = vpop.f32.mrb[0].mxu0
  %2856 = vmatprep.mubr.f32.mxu0 0.0
  %2857 = vmatmul.mubr.f32.gmra.mrb[0].mxu0 %v872
  %v2858 = vpop.f32.mrb[0].mxu0
  %v2859 = vadd.f32 %v2474, %v2858
  %v2860 = vpop.f32.mrb[0].mxu0
  %2861 = vmatprep.mubr.f32.mxu0 0.0
  %2862 = vmatmul.mubr.f32.gmra.mrb[0].mxu0 %v873
  %v2863 = vpop.f32.mrb[0].mxu0
  %v2864 = vadd.f32 %v2479, %v2863
  %v2865 = vpop.f32.mrb[0].mxu0
  %2866 = vmatprep.mubr.f32.mxu0 0.0
  %2867 = vmatmul.mubr.f32.gmra.mrb[0].mxu0 %v874
  %v2868 = vpop.f32.mrb[0].mxu0
  %v2869 = vadd.f32 %v2484, %v2868
  %v2870 = vpop.f32.mrb[0].mxu0
  %2871 = vmatprep.mubr.f32.mxu0 0.0
  %2872 = vmatmul.mubr.f32.gmra.mrb[0].mxu0 %v875
  %v2873 = vpop.f32.mrb[0].mxu0
  %v2874 = vadd.f32 %v2489, %v2873
  %v2875 = vpop.f32.mrb[0].mxu0
  %2876 = vmatprep.mubr.f32.mxu0 0.0
  %2877 = vmatmul.mubr.f32.gmra.mrb[0].mxu0 %v876
  %v2878 = vpop.f32.mrb[0].mxu0
  %v2879 = vadd.f32 %v2494, %v2878
  %v2880 = vpop.f32.mrb[0].mxu0
  %2881 = vmatprep.mubr.f32.mxu0 0.0
  %2882 = vmatmul.mubr.f32.gmra.mrb[0].mxu0 %v877
  %v2883 = vpop.f32.mrb[0].mxu0
  %v2884 = vadd.f32 %v2499, %v2883
  %v2885 = vpop.f32.mrb[0].mxu0
  %2886 = vmatprep.mubr.f32.mxu0 0.0
  %2887 = vmatmul.mubr.f32.gmra.mrb[0].mxu0 %v878
  %v2888 = vpop.f32.mrb[0].mxu0
  %v2889 = vadd.f32 %v2504, %v2888
  %v2890 = vpop.f32.mrb[0].mxu0
  %2891 = vmatprep.mubr.f32.mxu0 0.0
  %2892 = vmatmul.mubr.f32.gmra.mrb[0].mxu0 %v879
  %v2893 = vpop.f32.mrb[0].mxu0
  %v2894 = vadd.f32 %v2509, %v2893
  %v2895 = vpop.f32.mrb[0].mxu0
  %2896 = vmatprep.mubr.f32.mxu0 0.0
  %2897 = vmatmul.mubr.f32.gmra.mrb[0].mxu0 %v880
  %v2898 = vpop.f32.mrb[0].mxu0
  %v2899 = vadd.f32 %v2514, %v2898
  %v2900 = vpop.f32.mrb[0].mxu0
  %2901 = vmatprep.mubr.f32.mxu0 0.0
  %2902 = vmatmul.mubr.f32.gmra.mrb[0].mxu0 %v881
  %v2903 = vpop.f32.mrb[0].mxu0
  %v2904 = vadd.f32 %v2519, %v2903
  %v2905 = vpop.f32.mrb[0].mxu0
  %2906 = vmatprep.mubr.f32.mxu0 0.0
  %2907 = vmatmul.mubr.f32.gmra.mrb[0].mxu0 %v882
  %v2908 = vpop.f32.mrb[0].mxu0
  %v2909 = vadd.f32 %v2524, %v2908
  %v2910 = vpop.f32.mrb[0].mxu0
  %2911 = vmatprep.mubr.f32.mxu0 0.0
  %2912 = vmatmul.mubr.f32.gmra.mrb[0].mxu0 %v883
  %v2913 = vpop.f32.mrb[0].mxu0
  %v2914 = vadd.f32 %v2529, %v2913
  %v2915 = vpop.f32.mrb[0].mxu0
  %2916 = vmatprep.mubr.f32.mxu0 0.0
  %2917 = vmatmul.mubr.f32.gmra.mrb[0].mxu0 %v884
  %v2918 = vpop.f32.mrb[0].mxu0
  %v2919 = vadd.f32 %v2534, %v2918
  %v2920 = vpop.f32.mrb[0].mxu0
  %2921 = vmatprep.mubr.f32.mxu0 0.0
  %2922 = vmatmul.mubr.f32.gmra.mrb[0].mxu0 %v885
  %v2923 = vpop.f32.mrb[0].mxu0
  %v2924 = vadd.f32 %v2539, %v2923
  %v2925 = vpop.f32.mrb[0].mxu0
  %2926 = vmatprep.mubr.f32.mxu0 0.0
  %2927 = vmatmul.mubr.f32.gmra.mrb[0].mxu0 %v886
  %v2928 = vpop.f32.mrb[0].mxu0
  %v2929 = vadd.f32 %v2544, %v2928
  %v2930 = vpop.f32.mrb[0].mxu0
  %2931 = vmatprep.mubr.f32.mxu0 0.0
  %2932 = vmatmul.mubr.f32.gmra.mrb[0].mxu0 %v887
  %v2933 = vpop.f32.mrb[0].mxu0
  %v2934 = vadd.f32 %v2549, %v2933
  %v2935 = vpop.f32.mrb[0].mxu0
  %2936 = vmatprep.mubr.f32.mxu0 0.0
  %2937 = vmatmul.mubr.f32.gmra.mrb[0].mxu0 %v888
  %v2938 = vpop.f32.mrb[0].mxu0
  %v2939 = vadd.f32 %v2554, %v2938
  %v2940 = vpop.f32.mrb[0].mxu0
  %2941 = vmatprep.mubr.f32.mxu0 0.0
  %2942 = vmatmul.mubr.f32.gmra.mrb[0].mxu0 %v889
  %v2943 = vpop.f32.mrb[0].mxu0
  %v2944 = vadd.f32 %v2559, %v2943
  %v2945 = vpop.f32.mrb[0].mxu0
  %2946 = vmatprep.mubr.f32.mxu0 0.0
  %2947 = vmatmul.mubr.f32.gmra.mrb[0].mxu0 %v890
  %v2948 = vpop.f32.mrb[0].mxu0
  %v2949 = vadd.f32 %v2564, %v2948
  %v2950 = vpop.f32.mrb[0].mxu0
  %2951 = vmatprep.mubr.f32.mxu0 0.0
  %2952 = vmatmul.mubr.f32.gmra.mrb[0].mxu0 %v891
  %v2953 = vpop.f32.mrb[0].mxu0
  %v2954 = vadd.f32 %v2569, %v2953
  %v2955 = vpop.f32.mrb[0].mxu0
  %2956 = vmatprep.mubr.f32.mxu0 0.0
  %2957 = vmatmul.mubr.f32.gmra.mrb[0].mxu0 %v892
  %v2958 = vpop.f32.mrb[0].mxu0
  %v2959 = vadd.f32 %v2574, %v2958
  %v2960 = vpop.f32.mrb[0].mxu0
  %2961 = vmatprep.mubr.f32.mxu0 0.0
  %2962 = vmatmul.mubr.f32.gmra.mrb[0].mxu0 %v893
  %v2963 = vpop.f32.mrb[0].mxu0
  %v2964 = vadd.f32 %v2579, %v2963
  %v2965 = vpop.f32.mrb[0].mxu0
  %2966 = vdwg.mxu0
  %v2967 = vld [vmem:[%s3 + $0x1] sm:$0x1]
  %v2968 = vld [vmem:[%s3 + $0x2] sm:$0x1]
  %v2969 = vadd.f32 %v2649, %v2654
  %v2970 = vadd.f32 %v2969, %v2659
  %v2971 = vadd.f32 %v2970, %v2664
  %v2972 = vadd.f32 %v2971, %v2669
  %v2973 = vadd.f32 %v2972, %v2674
  %v2974 = vadd.f32 %v2973, %v2679
  %v2975 = vadd.f32 %v2974, %v2684
  %v2976 = vadd.f32 %v2975, %v2689
  %v2977 = vadd.f32 %v2976, %v2694
  %v2978 = vadd.f32 %v2977, %v2699
  %v2979 = vadd.f32 %v2978, %v2704
  %v2980 = vadd.f32 %v2979, %v2709
  %v2981 = vadd.f32 %v2980, %v2714
  %v2982 = vadd.f32 %v2981, %v2719
  %v2983 = vadd.f32 %v2982, %v2724
  %v2984 = vadd.f32 %v2983, %v2729
  %v2985 = vadd.f32 %v2984, %v2734
  %v2986 = vadd.f32 %v2985, %v2739
  %v2987 = vadd.f32 %v2986, %v2744
  %v2988 = vadd.f32 %v2987, %v2749
  %v2989 = vadd.f32 %v2988, %v2754
  %v2990 = vadd.f32 %v2989, %v2759
  %v2991 = vadd.f32 %v2990, %v2764
  %v2992 = vadd.f32 %v2991, %v2769
  %v2993 = vadd.f32 %v2992, %v2774
  %v2994 = vadd.f32 %v2993, %v2779
  %v2995 = vadd.f32 %v2994, %v2784
  %v2996 = vadd.f32 %v2995, %v2789
  %v2997 = vadd.f32 %v2996, %v2794
  %v2998 = vadd.f32 %v2997, %v2799
  %v2999 = vadd.f32 %v2998, %v2804
  %v3000 = vadd.f32 %v2999, %v2809
  %v3001 = vadd.f32 %v3000, %v2814
  %v3002 = vadd.f32 %v3001, %v2819
  %v3003 = vadd.f32 %v3002, %v2824
  %v3004 = vadd.f32 %v3003, %v2829
  %v3005 = vadd.f32 %v3004, %v2834
  %v3006 = vadd.f32 %v3005, %v2839
  %v3007 = vadd.f32 %v3006, %v2844
  %v3008 = vadd.f32 %v3007, %v2849
  %v3009 = vadd.f32 %v3008, %v2854
  %v3010 = vadd.f32 %v3009, %v2859
  %v3011 = vadd.f32 %v3010, %v2864
  %v3012 = vadd.f32 %v3011, %v2869
  %v3013 = vadd.f32 %v3012, %v2874
  %v3014 = vadd.f32 %v3013, %v2879
  %v3015 = vadd.f32 %v3014, %v2884
  %v3016 = vadd.f32 %v3015, %v2889
  %v3017 = vadd.f32 %v3016, %v2894
  %v3018 = vadd.f32 %v3017, %v2899
  %v3019 = vadd.f32 %v3018, %v2904
  %v3020 = vadd.f32 %v3019, %v2909
  %v3021 = vadd.f32 %v3020, %v2914
  %v3022 = vadd.f32 %v3021, %v2919
  %v3023 = vadd.f32 %v3022, %v2924
  %v3024 = vadd.f32 %v3023, %v2929
  %v3025 = vadd.f32 %v3024, %v2934
  %v3026 = vadd.f32 %v3025, %v2939
  %v3027 = vadd.f32 %v3026, %v2944
  %v3028 = vadd.f32 %v3027, %v2949
  %v3029 = vadd.f32 %v3028, %v2954
  %v3030 = vadd.f32 %v3029, %v2959
  %v3031 = vadd.f32 %v3030, %v2964
  %v3032 = vrot.slane %v3031, 4
  %v3033 = vadd.f32 %v3031, %v3032
  %v3034 = vrot.slane %v3033, 2
  %v3035 = vadd.f32 %v3033, %v3034
  %v3036 = vrot.slane %v3035, 1
  %v3037 = vadd.f32 %v3035, %v3036
  %v3038 = vrcp.pop 512.0
  %v3039 = vmul.f32 %v3037, %v3038
  %v3040 = vsub.f32 %v2649, %v3039
  %v3041 = vsub.f32 %v2654, %v3039
  %v3042 = vsub.f32 %v2659, %v3039
  %v3043 = vsub.f32 %v2664, %v3039
  %v3044 = vsub.f32 %v2669, %v3039
  %v3045 = vsub.f32 %v2674, %v3039
  %v3046 = vsub.f32 %v2679, %v3039
  %v3047 = vsub.f32 %v2684, %v3039
  %v3048 = vsub.f32 %v2689, %v3039
  %v3049 = vsub.f32 %v2694, %v3039
  %v3050 = vsub.f32 %v2699, %v3039
  %v3051 = vsub.f32 %v2704, %v3039
  %v3052 = vsub.f32 %v2709, %v3039
  %v3053 = vsub.f32 %v2714, %v3039
  %v3054 = vsub.f32 %v2719, %v3039
  %v3055 = vsub.f32 %v2724, %v3039
  %v3056 = vsub.f32 %v2729, %v3039
  %v3057 = vsub.f32 %v2734, %v3039
  %v3058 = vsub.f32 %v2739, %v3039
  %v3059 = vsub.f32 %v2744, %v3039
  %v3060 = vsub.f32 %v2749, %v3039
  %v3061 = vsub.f32 %v2754, %v3039
  %v3062 = vsub.f32 %v2759, %v3039
  %v3063 = vsub.f32 %v2764, %v3039
  %v3064 = vsub.f32 %v2769, %v3039
  %v3065 = vsub.f32 %v2774, %v3039
  %v3066 = vsub.f32 %v2779, %v3039
  %v3067 = vsub.f32 %v2784, %v3039
  %v3068 = vsub.f32 %v2789, %v3039
  %v3069 = vsub.f32 %v2794, %v3039
  %v3070 = vsub.f32 %v2799, %v3039
  %v3071 = vsub.f32 %v2804, %v3039
  %v3072 = vsub.f32 %v2809, %v3039
  %v3073 = vsub.f32 %v2814, %v3039
  %v3074 = vsub.f32 %v2819, %v3039
  %v3075 = vsub.f32 %v2824, %v3039
  %v3076 = vsub.f32 %v2829, %v3039
  %v3077 = vsub.f32 %v2834, %v3039
  %v3078 = vsub.f32 %v2839, %v3039
  %v3079 = vsub.f32 %v2844, %v3039
  %v3080 = vsub.f32 %v2849, %v3039
  %v3081 = vsub.f32 %v2854, %v3039
  %v3082 = vsub.f32 %v2859, %v3039
  %v3083 = vsub.f32 %v2864, %v3039
  %v3084 = vsub.f32 %v2869, %v3039
  %v3085 = vsub.f32 %v2874, %v3039
  %v3086 = vsub.f32 %v2879, %v3039
  %v3087 = vsub.f32 %v2884, %v3039
  %v3088 = vsub.f32 %v2889, %v3039
  %v3089 = vsub.f32 %v2894, %v3039
  %v3090 = vsub.f32 %v2899, %v3039
  %v3091 = vsub.f32 %v2904, %v3039
  %v3092 = vsub.f32 %v2909, %v3039
  %v3093 = vsub.f32 %v2914, %v3039
  %v3094 = vsub.f32 %v2919, %v3039
  %v3095 = vsub.f32 %v2924, %v3039
  %v3096 = vsub.f32 %v2929, %v3039
  %v3097 = vsub.f32 %v2934, %v3039
  %v3098 = vsub.f32 %v2939, %v3039
  %v3099 = vsub.f32 %v2944, %v3039
  %v3100 = vsub.f32 %v2949, %v3039
  %v3101 = vsub.f32 %v2954, %v3039
  %v3102 = vsub.f32 %v2959, %v3039
  %v3103 = vsub.f32 %v2964, %v3039
  %v3104 = vmul.f32 %v3040, %v3040
  %v3105 = vmul.f32 %v3041, %v3041
  %v3106 = vmul.f32 %v3042, %v3042
  %v3107 = vmul.f32 %v3043, %v3043
  %v3108 = vmul.f32 %v3044, %v3044
  %v3109 = vmul.f32 %v3045, %v3045
  %v3110 = vmul.f32 %v3046, %v3046
  %v3111 = vmul.f32 %v3047, %v3047
  %v3112 = vmul.f32 %v3048, %v3048
  %v3113 = vmul.f32 %v3049, %v3049
  %v3114 = vmul.f32 %v3050, %v3050
  %v3115 = vmul.f32 %v3051, %v3051
  %v3116 = vmul.f32 %v3052, %v3052
  %v3117 = vmul.f32 %v3053, %v3053
  %v3118 = vmul.f32 %v3054, %v3054
  %v3119 = vmul.f32 %v3055, %v3055
  %v3120 = vmul.f32 %v3056, %v3056
  %v3121 = vmul.f32 %v3057, %v3057
  %v3122 = vmul.f32 %v3058, %v3058
  %v3123 = vmul.f32 %v3059, %v3059
  %v3124 = vmul.f32 %v3060, %v3060
  %v3125 = vmul.f32 %v3061, %v3061
  %v3126 = vmul.f32 %v3062, %v3062
  %v3127 = vmul.f32 %v3063, %v3063
  %v3128 = vmul.f32 %v3064, %v3064
  %v3129 = vmul.f32 %v3065, %v3065
  %v3130 = vmul.f32 %v3066, %v3066
  %v3131 = vmul.f32 %v3067, %v3067
  %v3132 = vmul.f32 %v3068, %v3068
  %v3133 = vmul.f32 %v3069, %v3069
  %v3134 = vmul.f32 %v3070, %v3070
  %v3135 = vmul.f32 %v3071, %v3071
  %v3136 = vmul.f32 %v3072, %v3072
  %v3137 = vmul.f32 %v3073, %v3073
  %v3138 = vmul.f32 %v3074, %v3074
  %v3139 = vmul.f32 %v3075, %v3075
  %v3140 = vmul.f32 %v3076, %v3076
  %v3141 = vmul.f32 %v3077, %v3077
  %v3142 = vmul.f32 %v3078, %v3078
  %v3143 = vmul.f32 %v3079, %v3079
  %v3144 = vmul.f32 %v3080, %v3080
  %v3145 = vmul.f32 %v3081, %v3081
  %v3146 = vmul.f32 %v3082, %v3082
  %v3147 = vmul.f32 %v3083, %v3083
  %v3148 = vmul.f32 %v3084, %v3084
  %v3149 = vmul.f32 %v3085, %v3085
  %v3150 = vmul.f32 %v3086, %v3086
  %v3151 = vmul.f32 %v3087, %v3087
  %v3152 = vmul.f32 %v3088, %v3088
  %v3153 = vmul.f32 %v3089, %v3089
  %v3154 = vmul.f32 %v3090, %v3090
  %v3155 = vmul.f32 %v3091, %v3091
  %v3156 = vmul.f32 %v3092, %v3092
  %v3157 = vmul.f32 %v3093, %v3093
  %v3158 = vmul.f32 %v3094, %v3094
  %v3159 = vmul.f32 %v3095, %v3095
  %v3160 = vmul.f32 %v3096, %v3096
  %v3161 = vmul.f32 %v3097, %v3097
  %v3162 = vmul.f32 %v3098, %v3098
  %v3163 = vmul.f32 %v3099, %v3099
  %v3164 = vmul.f32 %v3100, %v3100
  %v3165 = vmul.f32 %v3101, %v3101
  %v3166 = vmul.f32 %v3102, %v3102
  %v3167 = vmul.f32 %v3103, %v3103
  %v3168 = vadd.f32 %v3104, %v3105
  %v3169 = vadd.f32 %v3168, %v3106
  %v3170 = vadd.f32 %v3169, %v3107
  %v3171 = vadd.f32 %v3170, %v3108
  %v3172 = vadd.f32 %v3171, %v3109
  %v3173 = vadd.f32 %v3172, %v3110
  %v3174 = vadd.f32 %v3173, %v3111
  %v3175 = vadd.f32 %v3174, %v3112
  %v3176 = vadd.f32 %v3175, %v3113
  %v3177 = vadd.f32 %v3176, %v3114
  %v3178 = vadd.f32 %v3177, %v3115
  %v3179 = vadd.f32 %v3178, %v3116
  %v3180 = vadd.f32 %v3179, %v3117
  %v3181 = vadd.f32 %v3180, %v3118
  %v3182 = vadd.f32 %v3181, %v3119
  %v3183 = vadd.f32 %v3182, %v3120
  %v3184 = vadd.f32 %v3183, %v3121
  %v3185 = vadd.f32 %v3184, %v3122
  %v3186 = vadd.f32 %v3185, %v3123
  %v3187 = vadd.f32 %v3186, %v3124
  %v3188 = vadd.f32 %v3187, %v3125
  %v3189 = vadd.f32 %v3188, %v3126
  %v3190 = vadd.f32 %v3189, %v3127
  %v3191 = vadd.f32 %v3190, %v3128
  %v3192 = vadd.f32 %v3191, %v3129
  %v3193 = vadd.f32 %v3192, %v3130
  %v3194 = vadd.f32 %v3193, %v3131
  %v3195 = vadd.f32 %v3194, %v3132
  %v3196 = vadd.f32 %v3195, %v3133
  %v3197 = vadd.f32 %v3196, %v3134
  %v3198 = vadd.f32 %v3197, %v3135
  %v3199 = vadd.f32 %v3198, %v3136
  %v3200 = vadd.f32 %v3199, %v3137
  %v3201 = vadd.f32 %v3200, %v3138
  %v3202 = vadd.f32 %v3201, %v3139
  %v3203 = vadd.f32 %v3202, %v3140
  %v3204 = vadd.f32 %v3203, %v3141
  %v3205 = vadd.f32 %v3204, %v3142
  %v3206 = vadd.f32 %v3205, %v3143
  %v3207 = vadd.f32 %v3206, %v3144
  %v3208 = vadd.f32 %v3207, %v3145
  %v3209 = vadd.f32 %v3208, %v3146
  %v3210 = vadd.f32 %v3209, %v3147
  %v3211 = vadd.f32 %v3210, %v3148
  %v3212 = vadd.f32 %v3211, %v3149
  %v3213 = vadd.f32 %v3212, %v3150
  %v3214 = vadd.f32 %v3213, %v3151
  %v3215 = vadd.f32 %v3214, %v3152
  %v3216 = vadd.f32 %v3215, %v3153
  %v3217 = vadd.f32 %v3216, %v3154
  %v3218 = vadd.f32 %v3217, %v3155
  %v3219 = vadd.f32 %v3218, %v3156
  %v3220 = vadd.f32 %v3219, %v3157
  %v3221 = vadd.f32 %v3220, %v3158
  %v3222 = vadd.f32 %v3221, %v3159
  %v3223 = vadd.f32 %v3222, %v3160
  %v3224 = vadd.f32 %v3223, %v3161
  %v3225 = vadd.f32 %v3224, %v3162
  %v3226 = vadd.f32 %v3225, %v3163
  %v3227 = vadd.f32 %v3226, %v3164
  %v3228 = vadd.f32 %v3227, %v3165
  %v3229 = vadd.f32 %v3228, %v3166
  %v3230 = vadd.f32 %v3229, %v3167
  %v3231 = vrot.slane %v3230, 4
  %v3232 = vadd.f32 %v3230, %v3231
  %v3233 = vrot.slane %v3232, 2
  %v3234 = vadd.f32 %v3232, %v3233
  %v3235 = vrot.slane %v3234, 1
  %v3236 = vadd.f32 %v3234, %v3235
  %v3237 = vmul.f32 %v3236, %v3038
  %v3238 = vadd.f32 %v3237, 1e-05
  %v3239 = vrsqrt.pop %v3238
  %v3240 = vmul.f32 %v2967, %v3239
  %v3241 = vlaneseq
  %v3242 = vshrl.u32 %v3241, 7
  %v3243 = vsub.s32 0, %v3242
  %v3244 = vrot.slane %v3240, %v3243
  %v3245 = vmul.f32 %v3040, %v3244
  %v3246 = vmul.f32 %v3041, %v3244
  %v3247 = vmul.f32 %v3042, %v3244
  %v3248 = vmul.f32 %v3043, %v3244
  %v3249 = vmul.f32 %v3044, %v3244
  %v3250 = vmul.f32 %v3045, %v3244
  %v3251 = vmul.f32 %v3046, %v3244
  %v3252 = vmul.f32 %v3047, %v3244
  %v3253 = vmul.f32 %v3048, %v3244
  %v3254 = vmul.f32 %v3049, %v3244
  %v3255 = vmul.f32 %v3050, %v3244
  %v3256 = vmul.f32 %v3051, %v3244
  %v3257 = vmul.f32 %v3052, %v3244
  %v3258 = vmul.f32 %v3053, %v3244
  %v3259 = vmul.f32 %v3054, %v3244
  %v3260 = vmul.f32 %v3055, %v3244
  %v3261 = vmul.f32 %v3056, %v3244
  %v3262 = vmul.f32 %v3057, %v3244
  %v3263 = vmul.f32 %v3058, %v3244
  %v3264 = vmul.f32 %v3059, %v3244
  %v3265 = vmul.f32 %v3060, %v3244
  %v3266 = vmul.f32 %v3061, %v3244
  %v3267 = vmul.f32 %v3062, %v3244
  %v3268 = vmul.f32 %v3063, %v3244
  %v3269 = vmul.f32 %v3064, %v3244
  %v3270 = vmul.f32 %v3065, %v3244
  %v3271 = vmul.f32 %v3066, %v3244
  %v3272 = vmul.f32 %v3067, %v3244
  %v3273 = vmul.f32 %v3068, %v3244
  %v3274 = vmul.f32 %v3069, %v3244
  %v3275 = vmul.f32 %v3070, %v3244
  %v3276 = vmul.f32 %v3071, %v3244
  %v3277 = vmul.f32 %v3072, %v3244
  %v3278 = vmul.f32 %v3073, %v3244
  %v3279 = vmul.f32 %v3074, %v3244
  %v3280 = vmul.f32 %v3075, %v3244
  %v3281 = vmul.f32 %v3076, %v3244
  %v3282 = vmul.f32 %v3077, %v3244
  %v3283 = vmul.f32 %v3078, %v3244
  %v3284 = vmul.f32 %v3079, %v3244
  %v3285 = vmul.f32 %v3080, %v3244
  %v3286 = vmul.f32 %v3081, %v3244
  %v3287 = vmul.f32 %v3082, %v3244
  %v3288 = vmul.f32 %v3083, %v3244
  %v3289 = vmul.f32 %v3084, %v3244
  %v3290 = vmul.f32 %v3085, %v3244
  %v3291 = vmul.f32 %v3086, %v3244
  %v3292 = vmul.f32 %v3087, %v3244
  %v3293 = vmul.f32 %v3088, %v3244
  %v3294 = vmul.f32 %v3089, %v3244
  %v3295 = vmul.f32 %v3090, %v3244
  %v3296 = vmul.f32 %v3091, %v3244
  %v3297 = vmul.f32 %v3092, %v3244
  %v3298 = vmul.f32 %v3093, %v3244
  %v3299 = vmul.f32 %v3094, %v3244
  %v3300 = vmul.f32 %v3095, %v3244
  %v3301 = vmul.f32 %v3096, %v3244
  %v3302 = vmul.f32 %v3097, %v3244
  %v3303 = vmul.f32 %v3098, %v3244
  %v3304 = vmul.f32 %v3099, %v3244
  %v3305 = vmul.f32 %v3100, %v3244
  %v3306 = vmul.f32 %v3101, %v3244
  %v3307 = vmul.f32 %v3102, %v3244
  %v3308 = vmul.f32 %v3103, %v3244
  %v3309 = vlaneseq
  %v3310 = vshrl.u32 %v3309, 7
  %v3311 = vsub.s32 0, %v3310
  %v3312 = vrot.slane %v2968, %v3311
  %v3313 = vadd.f32 %v3245, %v3312
  %v3314 = vadd.f32 %v3246, %v3312
  %v3315 = vadd.f32 %v3247, %v3312
  %v3316 = vadd.f32 %v3248, %v3312
  %v3317 = vadd.f32 %v3249, %v3312
  %v3318 = vadd.f32 %v3250, %v3312
  %v3319 = vadd.f32 %v3251, %v3312
  %v3320 = vadd.f32 %v3252, %v3312
  %v3321 = vadd.f32 %v3253, %v3312
  %v3322 = vadd.f32 %v3254, %v3312
  %v3323 = vadd.f32 %v3255, %v3312
  %v3324 = vadd.f32 %v3256, %v3312
  %v3325 = vadd.f32 %v3257, %v3312
  %v3326 = vadd.f32 %v3258, %v3312
  %v3327 = vadd.f32 %v3259, %v3312
  %v3328 = vadd.f32 %v3260, %v3312
  %v3329 = vadd.f32 %v3261, %v3312
  %v3330 = vadd.f32 %v3262, %v3312
  %v3331 = vadd.f32 %v3263, %v3312
  %v3332 = vadd.f32 %v3264, %v3312
  %v3333 = vadd.f32 %v3265, %v3312
  %v3334 = vadd.f32 %v3266, %v3312
  %v3335 = vadd.f32 %v3267, %v3312
  %v3336 = vadd.f32 %v3268, %v3312
  %v3337 = vadd.f32 %v3269, %v3312
  %v3338 = vadd.f32 %v3270, %v3312
  %v3339 = vadd.f32 %v3271, %v3312
  %v3340 = vadd.f32 %v3272, %v3312
  %v3341 = vadd.f32 %v3273, %v3312
  %v3342 = vadd.f32 %v3274, %v3312
  %v3343 = vadd.f32 %v3275, %v3312
  %v3344 = vadd.f32 %v3276, %v3312
  %v3345 = vadd.f32 %v3277, %v3312
  %v3346 = vadd.f32 %v3278, %v3312
  %v3347 = vadd.f32 %v3279, %v3312
  %v3348 = vadd.f32 %v3280, %v3312
  %v3349 = vadd.f32 %v3281, %v3312
  %v3350 = vadd.f32 %v3282, %v3312
  %v3351 = vadd.f32 %v3283, %v3312
  %v3352 = vadd.f32 %v3284, %v3312
  %v3353 = vadd.f32 %v3285, %v3312
  %v3354 = vadd.f32 %v3286, %v3312
  %v3355 = vadd.f32 %v3287, %v3312
  %v3356 = vadd.f32 %v3288, %v3312
  %v3357 = vadd.f32 %v3289, %v3312
  %v3358 = vadd.f32 %v3290, %v3312
  %v3359 = vadd.f32 %v3291, %v3312
  %v3360 = vadd.f32 %v3292, %v3312
  %v3361 = vadd.f32 %v3293, %v3312
  %v3362 = vadd.f32 %v3294, %v3312
  %v3363 = vadd.f32 %v3295, %v3312
  %v3364 = vadd.f32 %v3296, %v3312
  %v3365 = vadd.f32 %v3297, %v3312
  %v3366 = vadd.f32 %v3298, %v3312
  %v3367 = vadd.f32 %v3299, %v3312
  %v3368 = vadd.f32 %v3300, %v3312
  %v3369 = vadd.f32 %v3301, %v3312
  %v3370 = vadd.f32 %v3302, %v3312
  %v3371 = vadd.f32 %v3303, %v3312
  %v3372 = vadd.f32 %v3304, %v3312
  %v3373 = vadd.f32 %v3305, %v3312
  %v3374 = vadd.f32 %v3306, %v3312
  %v3375 = vadd.f32 %v3307, %v3312
  %v3376 = vadd.f32 %v3308, %v3312
  %v3377 = vmax.f32 %v3313, 0.0
  %v3378 = vmax.f32 %v3314, 0.0
  %v3379 = vmax.f32 %v3315, 0.0
  %v3380 = vmax.f32 %v3316, 0.0
  %v3381 = vmax.f32 %v3317, 0.0
  %v3382 = vmax.f32 %v3318, 0.0
  %v3383 = vmax.f32 %v3319, 0.0
  %v3384 = vmax.f32 %v3320, 0.0
  %v3385 = vmax.f32 %v3321, 0.0
  %v3386 = vmax.f32 %v3322, 0.0
  %v3387 = vmax.f32 %v3323, 0.0
  %v3388 = vmax.f32 %v3324, 0.0
  %v3389 = vmax.f32 %v3325, 0.0
  %v3390 = vmax.f32 %v3326, 0.0
  %v3391 = vmax.f32 %v3327, 0.0
  %v3392 = vmax.f32 %v3328, 0.0
  %v3393 = vmax.f32 %v3329, 0.0
  %v3394 = vmax.f32 %v3330, 0.0
  %v3395 = vmax.f32 %v3331, 0.0
  %v3396 = vmax.f32 %v3332, 0.0
  %v3397 = vmax.f32 %v3333, 0.0
  %v3398 = vmax.f32 %v3334, 0.0
  %v3399 = vmax.f32 %v3335, 0.0
  %v3400 = vmax.f32 %v3336, 0.0
  %v3401 = vmax.f32 %v3337, 0.0
  %v3402 = vmax.f32 %v3338, 0.0
  %v3403 = vmax.f32 %v3339, 0.0
  %v3404 = vmax.f32 %v3340, 0.0
  %v3405 = vmax.f32 %v3341, 0.0
  %v3406 = vmax.f32 %v3342, 0.0
  %v3407 = vmax.f32 %v3343, 0.0
  %v3408 = vmax.f32 %v3344, 0.0
  %v3409 = vmax.f32 %v3345, 0.0
  %v3410 = vmax.f32 %v3346, 0.0
  %v3411 = vmax.f32 %v3347, 0.0
  %v3412 = vmax.f32 %v3348, 0.0
  %v3413 = vmax.f32 %v3349, 0.0
  %v3414 = vmax.f32 %v3350, 0.0
  %v3415 = vmax.f32 %v3351, 0.0
  %v3416 = vmax.f32 %v3352, 0.0
  %v3417 = vmax.f32 %v3353, 0.0
  %v3418 = vmax.f32 %v3354, 0.0
  %v3419 = vmax.f32 %v3355, 0.0
  %v3420 = vmax.f32 %v3356, 0.0
  %v3421 = vmax.f32 %v3357, 0.0
  %v3422 = vmax.f32 %v3358, 0.0
  %v3423 = vmax.f32 %v3359, 0.0
  %v3424 = vmax.f32 %v3360, 0.0
  %v3425 = vmax.f32 %v3361, 0.0
  %v3426 = vmax.f32 %v3362, 0.0
  %v3427 = vmax.f32 %v3363, 0.0
  %v3428 = vmax.f32 %v3364, 0.0
  %v3429 = vmax.f32 %v3365, 0.0
  %v3430 = vmax.f32 %v3366, 0.0
  %v3431 = vmax.f32 %v3367, 0.0
  %v3432 = vmax.f32 %v3368, 0.0
  %v3433 = vmax.f32 %v3369, 0.0
  %v3434 = vmax.f32 %v3370, 0.0
  %v3435 = vmax.f32 %v3371, 0.0
  %v3436 = vmax.f32 %v3372, 0.0
  %v3437 = vmax.f32 %v3373, 0.0
  %v3438 = vmax.f32 %v3374, 0.0
  %v3439 = vmax.f32 %v3375, 0.0
  %v3440 = vmax.f32 %v3376, 0.0
  %3441 = vst [vmem:[%s81 + $0x1] sm:$0xff] %v3377
  %3442 = vst [vmem:[%s81 + $0x9] sm:$0xff] %v3378
  %3443 = vst [vmem:[%s81 + $0x19] sm:$0xff] %v3379
  %3444 = vst [vmem:[%s81 + $0x21] sm:$0xff] %v3380
  %3445 = vst [vmem:[%s81 + $0x31] sm:$0xff] %v3381
  %3446 = vst [vmem:[%s81 + $0x39] sm:$0xff] %v3382
  %3447 = vst [vmem:[%s81 + $0x49] sm:$0xff] %v3383
  %3448 = vst [vmem:[%s81 + $0x51] sm:$0xff] %v3384
  %3449 = vst [vmem:[%s81 + $0x61] sm:$0xff] %v3385
  %3450 = vst [vmem:[%s81 + $0x69] sm:$0xff] %v3386
  %3451 = vst [vmem:[%s81 + $0x79] sm:$0xff] %v3387
  %3452 = vst [vmem:[%s81 + $0x81] sm:$0xff] %v3388
  %3453 = vst [vmem:[%s81 + $0x91] sm:$0xff] %v3389
  %3454 = vst [vmem:[%s81 + $0x99] sm:$0xff] %v3390
  %3455 = vst [vmem:[%s81 + $0xa9] sm:$0xff] %v3391
  %3456 = vst [vmem:[%s81 + $0xb1] sm:$0xff] %v3392
  %3457 = vst [vmem:[%s81 + $0xc1] sm:$0xff] %v3393
  %3458 = vst [vmem:[%s81 + $0xc9] sm:$0xff] %v3394
  %3459 = vst [vmem:[%s81 + $0xd9] sm:$0xff] %v3395
  %3460 = vst [vmem:[%s81 + $0xe1] sm:$0xff] %v3396
  %3461 = vst [vmem:[%s81 + $0xf1] sm:$0xff] %v3397
  %3462 = vst [vmem:[%s81 + $0xf9] sm:$0xff] %v3398
  %3463 = vst [vmem:[%s81 + $0x109] sm:$0xff] %v3399
  %3464 = vst [vmem:[%s81 + $0x111] sm:$0xff] %v3400
  %3465 = vst [vmem:[%s81 + $0x121] sm:$0xff] %v3401
  %3466 = vst [vmem:[%s81 + $0x129] sm:$0xff] %v3402
  %3467 = vst [vmem:[%s81 + $0x139] sm:$0xff] %v3403
  %3468 = vst [vmem:[%s81 + $0x141] sm:$0xff] %v3404
  %3469 = vst [vmem:[%s81 + $0x151] sm:$0xff] %v3405
  %3470 = vst [vmem:[%s81 + $0x159] sm:$0xff] %v3406
  %3471 = vst [vmem:[%s81 + $0x169] sm:$0xff] %v3407
  %3472 = vst [vmem:[%s81 + $0x171] sm:$0xff] %v3408
  %3473 = vst [vmem:[%s81 + $0x1b1] sm:$0xff] %v3409
  %3474 = vst [vmem:[%s81 + $0x1b9] sm:$0xff] %v3410
  %3475 = vst [vmem:[%s81 + $0x1c9] sm:$0xff] %v3411
  %3476 = vst [vmem:[%s81 + $0x1d1] sm:$0xff] %v3412
  %3477 = vst [vmem:[%s81 + $0x1e1] sm:$0xff] %v3413
  %3478 = vst [vmem:[%s81 + $0x1e9] sm:$0xff] %v3414
  %3479 = vst [vmem:[%s81 + $0x1f9] sm:$0xff] %v3415
  %3480 = vst [vmem:[%s81 + $0x201] sm:$0xff] %v3416
  %3481 = vst [vmem:[%s81 + $0x211] sm:$0xff] %v3417
  %3482 = vst [vmem:[%s81 + $0x219] sm:$0xff] %v3418
  %3483 = vst [vmem:[%s81 + $0x229] sm:$0xff] %v3419
  %3484 = vst [vmem:[%s81 + $0x231] sm:$0xff] %v3420
  %3485 = vst [vmem:[%s81 + $0x241] sm:$0xff] %v3421
  %3486 = vst [vmem:[%s81 + $0x249] sm:$0xff] %v3422
  %3487 = vst [vmem:[%s81 + $0x259] sm:$0xff] %v3423
  %3488 = vst [vmem:[%s81 + $0x261] sm:$0xff] %v3424
  %3489 = vst [vmem:[%s81 + $0x271] sm:$0xff] %v3425
  %3490 = vst [vmem:[%s81 + $0x279] sm:$0xff] %v3426
  %3491 = vst [vmem:[%s81 + $0x289] sm:$0xff] %v3427
  %3492 = vst [vmem:[%s81 + $0x291] sm:$0xff] %v3428
  %3493 = vst [vmem:[%s81 + $0x2a1] sm:$0xff] %v3429
  %3494 = vst [vmem:[%s81 + $0x2a9] sm:$0xff] %v3430
  %3495 = vst [vmem:[%s81 + $0x2b9] sm:$0xff] %v3431
  %3496 = vst [vmem:[%s81 + $0x2c1] sm:$0xff] %v3432
  %3497 = vst [vmem:[%s81 + $0x2d1] sm:$0xff] %v3433
  %3498 = vst [vmem:[%s81 + $0x2d9] sm:$0xff] %v3434
  %3499 = vst [vmem:[%s81 + $0x2e9] sm:$0xff] %v3435
  %3500 = vst [vmem:[%s81 + $0x2f1] sm:$0xff] %v3436
  %3501 = vst [vmem:[%s81 + $0x301] sm:$0xff] %v3437
  %3502 = vst [vmem:[%s81 + $0x309] sm:$0xff] %v3438
  %3503 = vst [vmem:[%s81 + $0x319] sm:$0xff] %v3439
  %3504 = vst [vmem:[%s81 + $0x321] sm:$0xff] %v3440
  %v3505 = vld [vmem:[%s146] sm:$0xff]
  %v3506 = vld [vmem:[%s146 + $0x8] sm:$0xff]
  %v3507 = vld [vmem:[%s146 + $0x10] sm:$0x3]
  %v3508 = vld [vmem:[%s146 + $0x1b0] sm:$0xff]
  %v3509 = vld [vmem:[%s146 + $0x1b8] sm:$0xff]
  %v3510 = vld [vmem:[%s146 + $0x1c0] sm:$0x3]
  %3511 = vst [vmem:[#allocation2] sm:$0xff] %v3505
  %3512 = vst [vmem:[#allocation2 + $0x8] sm:$0xff] %v3506
  %3513 = vst [vmem:[#allocation2 + $0x10] sm:$0x3] %v3507
  %3514 = vst [vmem:[#allocation2 + $0x1b0] sm:$0xff] %v3508
  %3515 = vst [vmem:[#allocation2 + $0x1b8] sm:$0xff] %v3509
  %3516 = vst [vmem:[#allocation2 + $0x1c0] sm:$0x3] %v3510
  %v3517 = vld [vmem:[%s159] sm:$0xff]
  %v3518 = vld [vmem:[%s159 + $0x8] sm:$0xff]
  %v3519 = vld [vmem:[%s159 + $0x10] sm:$0x3]
  %v3520 = vld [vmem:[%s159 + $0x1b0] sm:$0xff]
  %v3521 = vld [vmem:[%s159 + $0x1b8] sm:$0xff]
  %v3522 = vld [vmem:[%s159 + $0x1c0] sm:$0x3]
  %3523 = vst [vmem:[%s166] sm:$0xff] %v3517
  %3524 = vst [vmem:[%s166 + $0x8] sm:$0xff] %v3518
  %3525 = vst [vmem:[%s166 + $0x10] sm:$0x3] %v3519
  %3526 = vst [vmem:[%s166 + $0x1b0] sm:$0xff] %v3520
  %3527 = vst [vmem:[%s166 + $0x1b8] sm:$0xff] %v3521
  %3528 = vst [vmem:[%s166 + $0x1c0] sm:$0x3] %v3522
  %v3529 = vld [vmem:[#allocation2 + $0x2] sm:$0x1]
  %v3530 = vld [vmem:[#allocation2 + $0x1a] sm:$0x1]
  %v3531 = vld [vmem:[#allocation2 + $0x32] sm:$0x1]
  %v3532 = vld [vmem:[#allocation2 + $0x4a] sm:$0x1]
  %v3533 = vld [vmem:[#allocation2 + $0x62] sm:$0x1]
  %v3534 = vld [vmem:[#allocation2 + $0x7a] sm:$0x1]
  %v3535 = vld [vmem:[#allocation2 + $0x92] sm:$0x1]
  %v3536 = vld [vmem:[#allocation2 + $0xaa] sm:$0x1]
  %v3537 = vld [vmem:[#allocation2 + $0xc2] sm:$0x1]
  %v3538 = vld [vmem:[#allocation2 + $0xda] sm:$0x1]
  %v3539 = vld [vmem:[#allocation2 + $0xf2] sm:$0x1]
  %v3540 = vld [vmem:[#allocation2 + $0x10a] sm:$0x1]
  %v3541 = vld [vmem:[#allocation2 + $0x122] sm:$0x1]
  %v3542 = vld [vmem:[#allocation2 + $0x13a] sm:$0x1]
  %v3543 = vld [vmem:[#allocation2 + $0x152] sm:$0x1]
  %v3544 = vld [vmem:[#allocation2 + $0x16a] sm:$0x1]
  %v3545 = vld [vmem:[#allocation2 + $0x182] sm:$0x1]
  %v3546 = vld [vmem:[#allocation2 + $0x19a] sm:$0x1]
  %v3547 = vld [vmem:[#allocation2 + $0x1b2] sm:$0x1]
  %v3548 = vld [vmem:[#allocation2 + $0x1ca] sm:$0x1]
  %v3549 = vld [vmem:[#allocation2 + $0x1e2] sm:$0x1]
  %v3550 = vld [vmem:[#allocation2 + $0x1fa] sm:$0x1]
  %v3551 = vld [vmem:[#allocation2 + $0x212] sm:$0x1]
  %v3552 = vld [vmem:[#allocation2 + $0x22a] sm:$0x1]
  %v3553 = vld [vmem:[#allocation2 + $0x242] sm:$0x1]
  %v3554 = vld [vmem:[#allocation2 + $0x25a] sm:$0x1]
  %v3555 = vld [vmem:[#allocation2 + $0x272] sm:$0x1]
  %v3556 = vld [vmem:[#allocation2 + $0x28a] sm:$0x1]
  %v3557 = vld [vmem:[#allocation2 + $0x2a2] sm:$0x1]
  %v3558 = vld [vmem:[#allocation2 + $0x2ba] sm:$0x1]
  %v3559 = vld [vmem:[#allocation2 + $0x2d2] sm:$0x1]
  %v3560 = vld [vmem:[#allocation2 + $0x2ea] sm:$0x1]
  %v3561 = vld [vmem:[#allocation2 + $0x302] sm:$0x1]
  %v3562 = vld [vmem:[#allocation2 + $0x31a] sm:$0x1]
  %v3563 = vld [vmem:[#allocation2 + $0x332] sm:$0x1]
  %v3564 = vld [vmem:[#allocation2 + $0x34a] sm:$0x1]
  %3565 = vst [vmem:[#allocation2] sm:$0x1] %v3529
  %3566 = vst [vmem:[#allocation2 + $0x18] sm:$0x1] %v3530
  %3567 = vst [vmem:[#allocation2 + $0x30] sm:$0x1] %v3531
  %3568 = vst [vmem:[#allocation2 + $0x48] sm:$0x1] %v3532
  %3569 = vst [vmem:[#allocation2 + $0x60] sm:$0x1] %v3533
  %3570 = vst [vmem:[#allocation2 + $0x78] sm:$0x1] %v3534
  %3571 = vst [vmem:[#allocation2 + $0x90] sm:$0x1] %v3535
  %3572 = vst [vmem:[#allocation2 + $0xa8] sm:$0x1] %v3536
  %3573 = vst [vmem:[#allocation2 + $0xc0] sm:$0x1] %v3537
  %3574 = vst [vmem:[#allocation2 + $0xd8] sm:$0x1] %v3538
  %3575 = vst [vmem:[#allocation2 + $0xf0] sm:$0x1] %v3539
  %3576 = vst [vmem:[#allocation2 + $0x108] sm:$0x1] %v3540
  %3577 = vst [vmem:[#allocation2 + $0x120] sm:$0x1] %v3541
  %3578 = vst [vmem:[#allocation2 + $0x138] sm:$0x1] %v3542
  %3579 = vst [vmem:[#allocation2 + $0x150] sm:$0x1] %v3543
  %3580 = vst [vmem:[#allocation2 + $0x168] sm:$0x1] %v3544
  %3581 = vst [vmem:[#allocation2 + $0x180] sm:$0x1] %v3545
  %3582 = vst [vmem:[#allocation2 + $0x198] sm:$0x1] %v3546
  %3583 = vst [vmem:[#allocation2 + $0x1b0] sm:$0x1] %v3547
  %3584 = vst [vmem:[#allocation2 + $0x1c8] sm:$0x1] %v3548
  %3585 = vst [vmem:[#allocation2 + $0x1e0] sm:$0x1] %v3549
  %3586 = vst [vmem:[#allocation2 + $0x1f8] sm:$0x1] %v3550
  %3587 = vst [vmem:[#allocation2 + $0x210] sm:$0x1] %v3551
  %3588 = vst [vmem:[#allocation2 + $0x228] sm:$0x1] %v3552
  %3589 = vst [vmem:[#allocation2 + $0x240] sm:$0x1] %v3553
  %3590 = vst [vmem:[#allocation2 + $0x258] sm:$0x1] %v3554
  %3591 = vst [vmem:[#allocation2 + $0x270] sm:$0x1] %v3555
  %3592 = vst [vmem:[#allocation2 + $0x288] sm:$0x1] %v3556
  %3593 = vst [vmem:[#allocation2 + $0x2a0] sm:$0x1] %v3557
  %3594 = vst [vmem:[#allocation2 + $0x2b8] sm:$0x1] %v3558
  %3595 = vst [vmem:[#allocation2 + $0x2d0] sm:$0x1] %v3559
  %3596 = vst [vmem:[#allocation2 + $0x2e8] sm:$0x1] %v3560
  %3597 = vst [vmem:[#allocation2 + $0x300] sm:$0x1] %v3561
  %3598 = vst [vmem:[#allocation2 + $0x318] sm:$0x1] %v3562
  %3599 = vst [vmem:[#allocation2 + $0x330] sm:$0x1] %v3563
  %3600 = vst [vmem:[#allocation2 + $0x348] sm:$0x1] %v3564
  %v3601 = vld [vmem:[#allocation2 + $0xf] sm:$0x1]
  %v3602 = vld [vmem:[#allocation2 + $0x27] sm:$0x1]
  %v3603 = vld [vmem:[#allocation2 + $0x3f] sm:$0x1]
  %v3604 = vld [vmem:[#allocation2 + $0x57] sm:$0x1]
  %v3605 = vld [vmem:[#allocation2 + $0x6f] sm:$0x1]
  %v3606 = vld [vmem:[#allocation2 + $0x87] sm:$0x1]
  %v3607 = vld [vmem:[#allocation2 + $0x9f] sm:$0x1]
  %v3608 = vld [vmem:[#allocation2 + $0xb7] sm:$0x1]
  %v3609 = vld [vmem:[#allocation2 + $0xcf] sm:$0x1]
  %v3610 = vld [vmem:[#allocation2 + $0xe7] sm:$0x1]
  %v3611 = vld [vmem:[#allocation2 + $0xff] sm:$0x1]
  %v3612 = vld [vmem:[#allocation2 + $0x117] sm:$0x1]
  %v3613 = vld [vmem:[#allocation2 + $0x12f] sm:$0x1]
  %v3614 = vld [vmem:[#allocation2 + $0x147] sm:$0x1]
  %v3615 = vld [vmem:[#allocation2 + $0x15f] sm:$0x1]
  %v3616 = vld [vmem:[#allocation2 + $0x177] sm:$0x1]
  %v3617 = vld [vmem:[#allocation2 + $0x18f] sm:$0x1]
  %v3618 = vld [vmem:[#allocation2 + $0x1a7] sm:$0x1]
  %v3619 = vld [vmem:[#allocation2 + $0x1bf] sm:$0x1]
  %v3620 = vld [vmem:[#allocation2 + $0x1d7] sm:$0x1]
  %v3621 = vld [vmem:[#allocation2 + $0x1ef] sm:$0x1]
  %v3622 = vld [vmem:[#allocation2 + $0x207] sm:$0x1]
  %v3623 = vld [vmem:[#allocation2 + $0x21f] sm:$0x1]
  %v3624 = vld [vmem:[#allocation2 + $0x237] sm:$0x1]
  %v3625 = vld [vmem:[#allocation2 + $0x24f] sm:$0x1]
  %v3626 = vld [vmem:[#allocation2 + $0x267] sm:$0x1]
  %v3627 = vld [vmem:[#allocation2 + $0x27f] sm:$0x1]
  %v3628 = vld [vmem:[#allocation2 + $0x297] sm:$0x1]
  %v3629 = vld [vmem:[#allocation2 + $0x2af] sm:$0x1]
  %v3630 = vld [vmem:[#allocation2 + $0x2c7] sm:$0x1]
  %v3631 = vld [vmem:[#allocation2 + $0x2df] sm:$0x1]
  %v3632 = vld [vmem:[#allocation2 + $0x2f7] sm:$0x1]
  %v3633 = vld [vmem:[#allocation2 + $0x30f] sm:$0x1]
  %v3634 = vld [vmem:[#allocation2 + $0x327] sm:$0x1]
  %v3635 = vld [vmem:[#allocation2 + $0x33f] sm:$0x1]
  %v3636 = vld [vmem:[#allocation2 + $0x357] sm:$0x1]
  %3637 = vst [vmem:[#allocation2 + $0x11] sm:$0x1] %v3601
  %3638 = vst [vmem:[#allocation2 + $0x29] sm:$0x1] %v3602
  %3639 = vst [vmem:[#allocation2 + $0x41] sm:$0x1] %v3603
  %3640 = vst [vmem:[#allocation2 + $0x59] sm:$0x1] %v3604
  %3641 = vst [vmem:[#allocation2 + $0x71] sm:$0x1] %v3605
  %3642 = vst [vmem:[#allocation2 + $0x89] sm:$0x1] %v3606
  %3643 = vst [vmem:[#allocation2 + $0xa1] sm:$0x1] %v3607
  %3644 = vst [vmem:[#allocation2 + $0xb9] sm:$0x1] %v3608
  %3645 = vst [vmem:[#allocation2 + $0xd1] sm:$0x1] %v3609
  %3646 = vst [vmem:[#allocation2 + $0xe9] sm:$0x1] %v3610
  %3647 = vst [vmem:[#allocation2 + $0x101] sm:$0x1] %v3611
  %3648 = vst [vmem:[#allocation2 + $0x119] sm:$0x1] %v3612
  %3649 = vst [vmem:[#allocation2 + $0x131] sm:$0x1] %v3613
  %3650 = vst [vmem:[#allocation2 + $0x149] sm:$0x1] %v3614
  %3651 = vst [vmem:[#allocation2 + $0x161] sm:$0x1] %v3615
  %3652 = vst [vmem:[#allocation2 + $0x179] sm:$0x1] %v3616
  %3653 = vst [vmem:[#allocation2 + $0x191] sm:$0x1] %v3617
  %3654 = vst [vmem:[#allocation2 + $0x1a9] sm:$0x1] %v3618
  %3655 = vst [vmem:[#allocation2 + $0x1c1] sm:$0x1] %v3619
  %3656 = vst [vmem:[#allocation2 + $0x1d9] sm:$0x1] %v3620
  %3657 = vst [vmem:[#allocation2 + $0x1f1] sm:$0x1] %v3621
  %3658 = vst [vmem:[#allocation2 + $0x209] sm:$0x1] %v3622
  %3659 = vst [vmem:[#allocation2 + $0x221] sm:$0x1] %v3623
  %3660 = vst [vmem:[#allocation2 + $0x239] sm:$0x1] %v3624
  %3661 = vst [vmem:[#allocation2 + $0x251] sm:$0x1] %v3625
  %3662 = vst [vmem:[#allocation2 + $0x269] sm:$0x1] %v3626
  %3663 = vst [vmem:[#allocation2 + $0x281] sm:$0x1] %v3627
  %3664 = vst [vmem:[#allocation2 + $0x299] sm:$0x1] %v3628
  %3665 = vst [vmem:[#allocation2 + $0x2b1] sm:$0x1] %v3629
  %3666 = vst [vmem:[#allocation2 + $0x2c9] sm:$0x1] %v3630
  %3667 = vst [vmem:[#allocation2 + $0x2e1] sm:$0x1] %v3631
  %3668 = vst [vmem:[#allocation2 + $0x2f9] sm:$0x1] %v3632
  %3669 = vst [vmem:[#allocation2 + $0x311] sm:$0x1] %v3633
  %3670 = vst [vmem:[#allocation2 + $0x329] sm:$0x1] %v3634
  %3671 = vst [vmem:[#allocation2 + $0x341] sm:$0x1] %v3635
  %3672 = vst [vmem:[#allocation2 + $0x359] sm:$0x1] %v3636
  %v3673 = vld [vmem:[%s3 + $0x3] sm:$0x1]
  %v3674 = vld [vmem:[#allocation2] sm:$0xff]
  %v3675 = vld [vmem:[#allocation2 + $0x8] sm:$0xff]
  %v3676 = vld [vmem:[#allocation2 + $0x18] sm:$0xff]
  %v3677 = vld [vmem:[#allocation2 + $0x20] sm:$0xff]
  %v3678 = vld [vmem:[#allocation2 + $0x30] sm:$0xff]
  %v3679 = vld [vmem:[#allocation2 + $0x38] sm:$0xff]
  %v3680 = vld [vmem:[#allocation2 + $0x48] sm:$0xff]
  %v3681 = vld [vmem:[#allocation2 + $0x50] sm:$0xff]
  %v3682 = vld [vmem:[#allocation2 + $0x60] sm:$0xff]
  %v3683 = vld [vmem:[#allocation2 + $0x68] sm:$0xff]
  %v3684 = vld [vmem:[#allocation2 + $0x78] sm:$0xff]
  %v3685 = vld [vmem:[#allocation2 + $0x80] sm:$0xff]
  %v3686 = vld [vmem:[#allocation2 + $0x90] sm:$0xff]
  %v3687 = vld [vmem:[#allocation2 + $0x98] sm:$0xff]
  %v3688 = vld [vmem:[#allocation2 + $0xa8] sm:$0xff]
  %v3689 = vld [vmem:[#allocation2 + $0xb0] sm:$0xff]
  %v3690 = vld [vmem:[#allocation2 + $0xc0] sm:$0xff]
  %v3691 = vld [vmem:[#allocation2 + $0xc8] sm:$0xff]
  %v3692 = vld [vmem:[#allocation2 + $0xd8] sm:$0xff]
  %v3693 = vld [vmem:[#allocation2 + $0xe0] sm:$0xff]
  %v3694 = vld [vmem:[#allocation2 + $0xf0] sm:$0xff]
  %v3695 = vld [vmem:[#allocation2 + $0xf8] sm:$0xff]
  %v3696 = vld [vmem:[#allocation2 + $0x108] sm:$0xff]
  %v3697 = vld [vmem:[#allocation2 + $0x110] sm:$0xff]
  %v3698 = vld [vmem:[#allocation2 + $0x120] sm:$0xff]
  %v3699 = vld [vmem:[#allocation2 + $0x128] sm:$0xff]
  %v3700 = vld [vmem:[#allocation2 + $0x138] sm:$0xff]
  %v3701 = vld [vmem:[#allocation2 + $0x140] sm:$0xff]
  %v3702 = vld [vmem:[#allocation2 + $0x150] sm:$0xff]
  %v3703 = vld [vmem:[#allocation2 + $0x158] sm:$0xff]
  %v3704 = vld [vmem:[#allocation2 + $0x168] sm:$0xff]
  %v3705 = vld [vmem:[#allocation2 + $0x170] sm:$0xff]
  %v3706 = vld [vmem:[#allocation2 + $0x1b0] sm:$0xff]
  %v3707 = vld [vmem:[#allocation2 + $0x1b8] sm:$0xff]
  %v3708 = vld [vmem:[#allocation2 + $0x1c8] sm:$0xff]
  %v3709 = vld [vmem:[#allocation2 + $0x1d0] sm:$0xff]
  %v3710 = vld [vmem:[#allocation2 + $0x1e0] sm:$0xff]
  %v3711 = vld [vmem:[#allocation2 + $0x1e8] sm:$0xff]
  %v3712 = vld [vmem:[#allocation2 + $0x1f8] sm:$0xff]
  %v3713 = vld [vmem:[#allocation2 + $0x200] sm:$0xff]
  %v3714 = vld [vmem:[#allocation2 + $0x210] sm:$0xff]
  %v3715 = vld [vmem:[#allocation2 + $0x218] sm:$0xff]
  %v3716 = vld [vmem:[#allocation2 + $0x228] sm:$0xff]
  %v3717 = vld [vmem:[#allocation2 + $0x230] sm:$0xff]
  %v3718 = vld [vmem:[#allocation2 + $0x240] sm:$0xff]
  %v3719 = vld [vmem:[#allocation2 + $0x248] sm:$0xff]
  %v3720 = vld [vmem:[#allocation2 + $0x258] sm:$0xff]
  %v3721 = vld [vmem:[#allocation2 + $0x260] sm:$0xff]
  %v3722 = vld [vmem:[#allocation2 + $0x270] sm:$0xff]
  %v3723 = vld [vmem:[#allocation2 + $0x278] sm:$0xff]
  %v3724 = vld [vmem:[#allocation2 + $0x288] sm:$0xff]
  %v3725 = vld [vmem:[#allocation2 + $0x290] sm:$0xff]
  %v3726 = vld [vmem:[#allocation2 + $0x2a0] sm:$0xff]
  %v3727 = vld [vmem:[#allocation2 + $0x2a8] sm:$0xff]
  %v3728 = vld [vmem:[#allocation2 + $0x2b8] sm:$0xff]
  %v3729 = vld [vmem:[#allocation2 + $0x2c0] sm:$0xff]
  %v3730 = vld [vmem:[#allocation2 + $0x2d0] sm:$0xff]
  %v3731 = vld [vmem:[#allocation2 + $0x2d8] sm:$0xff]
  %v3732 = vld [vmem:[#allocation2 + $0x2e8] sm:$0xff]
  %v3733 = vld [vmem:[#allocation2 + $0x2f0] sm:$0xff]
  %v3734 = vld [vmem:[#allocation2 + $0x300] sm:$0xff]
  %v3735 = vld [vmem:[#allocation2 + $0x308] sm:$0xff]
  %v3736 = vld [vmem:[#allocation2 + $0x318] sm:$0xff]
  %v3737 = vld [vmem:[#allocation2 + $0x320] sm:$0xff]
  %v3738 = vld [vmem:[#allocation2 + $0x1] sm:$0xff]
  %v3739 = vld [vmem:[#allocation2 + $0x9] sm:$0xff]
  %v3740 = vld [vmem:[#allocation2 + $0x19] sm:$0xff]
  %v3741 = vld [vmem:[#allocation2 + $0x21] sm:$0xff]
  %v3742 = vld [vmem:[#allocation2 + $0x31] sm:$0xff]
  %v3743 = vld [vmem:[#allocation2 + $0x39] sm:$0xff]
  %v3744 = vld [vmem:[#allocation2 + $0x49] sm:$0xff]
  %v3745 = vld [vmem:[#allocation2 + $0x51] sm:$0xff]
  %v3746 = vld [vmem:[#allocation2 + $0x61] sm:$0xff]
  %v3747 = vld [vmem:[#allocation2 + $0x69] sm:$0xff]
  %v3748 = vld [vmem:[#allocation2 + $0x79] sm:$0xff]
  %v3749 = vld [vmem:[#allocation2 + $0x81] sm:$0xff]
  %v3750 = vld [vmem:[#allocation2 + $0x91] sm:$0xff]
  %v3751 = vld [vmem:[#allocation2 + $0x99] sm:$0xff]
  %v3752 = vld [vmem:[#allocation2 + $0xa9] sm:$0xff]
  %v3753 = vld [vmem:[#allocation2 + $0xb1] sm:$0xff]
  %v3754 = vld [vmem:[#allocation2 + $0xc1] sm:$0xff]
  %v3755 = vld [vmem:[#allocation2 + $0xc9] sm:$0xff]
  %v3756 = vld [vmem:[#allocation2 + $0xd9] sm:$0xff]
  %v3757 = vld [vmem:[#allocation2 + $0xe1] sm:$0xff]
  %v3758 = vld [vmem:[#allocation2 + $0xf1] sm:$0xff]
  %v3759 = vld [vmem:[#allocation2 + $0xf9] sm:$0xff]
  %v3760 = vld [vmem:[#allocation2 + $0x109] sm:$0xff]
  %v3761 = vld [vmem:[#allocation2 + $0x111] sm:$0xff]
  %v3762 = vld [vmem:[#allocation2 + $0x121] sm:$0xff]
  %v3763 = vld [vmem:[#allocation2 + $0x129] sm:$0xff]
  %v3764 = vld [vmem:[#allocation2 + $0x139] sm:$0xff]
  %v3765 = vld [vmem:[#allocation2 + $0x141] sm:$0xff]
  %v3766 = vld [vmem:[#allocation2 + $0x151] sm:$0xff]
  %v3767 = vld [vmem:[#allocation2 + $0x159] sm:$0xff]
  %v3768 = vld [vmem:[#allocation2 + $0x169] sm:$0xff]
  %v3769 = vld [vmem:[#allocation2 + $0x171] sm:$0xff]
  %v3770 = vld [vmem:[#allocation2 + $0x1b1] sm:$0xff]
  %v3771 = vld [vmem:[#allocation2 + $0x1b9] sm:$0xff]
  %v3772 = vld [vmem:[#allocation2 + $0x1c9] sm:$0xff]
  %v3773 = vld [vmem:[#allocation2 + $0x1d1] sm:$0xff]
  %v3774 = vld [vmem:[#allocation2 + $0x1e1] sm:$0xff]
  %v3775 = vld [vmem:[#allocation2 + $0x1e9] sm:$0xff]
  %v3776 = vld [vmem:[#allocation2 + $0x1f9] sm:$0xff]
  %v3777 = vld [vmem:[#allocation2 + $0x201] sm:$0xff]
  %v3778 = vld [vmem:[#allocation2 + $0x211] sm:$0xff]
  %v3779 = vld [vmem:[#allocation2 + $0x219] sm:$0xff]
  %v3780 = vld [vmem:[#allocation2 + $0x229] sm:$0xff]
  %v3781 = vld [vmem:[#allocation2 + $0x231] sm:$0xff]
  %v3782 = vld [vmem:[#allocation2 + $0x241] sm:$0xff]
  %v3783 = vld [vmem:[#allocation2 + $0x249] sm:$0xff]
  %v3784 = vld [vmem:[#allocation2 + $0x259] sm:$0xff]
  %v3785 = vld [vmem:[#allocation2 + $0x261] sm:$0xff]
  %v3786 = vld [vmem:[#allocation2 + $0x271] sm:$0xff]
  %v3787 = vld [vmem:[#allocation2 + $0x279] sm:$0xff]
  %v3788 = vld [vmem:[#allocation2 + $0x289] sm:$0xff]
  %v3789 = vld [vmem:[#allocation2 + $0x291] sm:$0xff]
  %v3790 = vld [vmem:[#allocation2 + $0x2a1] sm:$0xff]
  %v3791 = vld [vmem:[#allocation2 + $0x2a9] sm:$0xff]
  %v3792 = vld [vmem:[#allocation2 + $0x2b9] sm:$0xff]
  %v3793 = vld [vmem:[#allocation2 + $0x2c1] sm:$0xff]
  %v3794 = vld [vmem:[#allocation2 + $0x2d1] sm:$0xff]
  %v3795 = vld [vmem:[#allocation2 + $0x2d9] sm:$0xff]
  %v3796 = vld [vmem:[#allocation2 + $0x2e9] sm:$0xff]
  %v3797 = vld [vmem:[#allocation2 + $0x2f1] sm:$0xff]
  %v3798 = vld [vmem:[#allocation2 + $0x301] sm:$0xff]
  %v3799 = vld [vmem:[#allocation2 + $0x309] sm:$0xff]
  %v3800 = vld [vmem:[#allocation2 + $0x319] sm:$0xff]
  %v3801 = vld [vmem:[#allocation2 + $0x321] sm:$0xff]
  %v3802 = vld [vmem:[#allocation2 + $0x2] sm:$0xff]
  %v3803 = vld [vmem:[#allocation2 + $0xa] sm:$0xff]
  %v3804 = vld [vmem:[#allocation2 + $0x1a] sm:$0xff]
  %v3805 = vld [vmem:[#allocation2 + $0x22] sm:$0xff]
  %v3806 = vld [vmem:[#allocation2 + $0x32] sm:$0xff]
  %v3807 = vld [vmem:[#allocation2 + $0x3a] sm:$0xff]
  %v3808 = vld [vmem:[#allocation2 + $0x4a] sm:$0xff]
  %v3809 = vld [vmem:[#allocation2 + $0x52] sm:$0xff]
  %v3810 = vld [vmem:[#allocation2 + $0x62] sm:$0xff]
  %v3811 = vld [vmem:[#allocation2 + $0x6a] sm:$0xff]
  %v3812 = vld [vmem:[#allocation2 + $0x7a] sm:$0xff]
  %v3813 = vld [vmem:[#allocation2 + $0x82] sm:$0xff]
  %v3814 = vld [vmem:[#allocation2 + $0x92] sm:$0xff]
  %v3815 = vld [vmem:[#allocation2 + $0x9a] sm:$0xff]
  %v3816 = vld [vmem:[#allocation2 + $0xaa] sm:$0xff]
  %v3817 = vld [vmem:[#allocation2 + $0xb2] sm:$0xff]
  %v3818 = vld [vmem:[#allocation2 + $0xc2] sm:$0xff]
  %v3819 = vld [vmem:[#allocation2 + $0xca] sm:$0xff]
  %v3820 = vld [vmem:[#allocation2 + $0xda] sm:$0xff]
  %v3821 = vld [vmem:[#allocation2 + $0xe2] sm:$0xff]
  %v3822 = vld [vmem:[#allocation2 + $0xf2] sm:$0xff]
  %v3823 = vld [vmem:[#allocation2 + $0xfa] sm:$0xff]
  %v3824 = vld [vmem:[#allocation2 + $0x10a] sm:$0xff]
  %v3825 = vld [vmem:[#allocation2 + $0x112] sm:$0xff]
  %v3826 = vld [vmem:[#allocation2 + $0x122] sm:$0xff]
  %v3827 = vld [vmem:[#allocation2 + $0x12a] sm:$0xff]
  %v3828 = vld [vmem:[#allocation2 + $0x13a] sm:$0xff]
  %v3829 = vld [vmem:[#allocation2 + $0x142] sm:$0xff]
  %v3830 = vld [vmem:[#allocation2 + $0x152] sm:$0xff]
  %v3831 = vld [vmem:[#allocation2 + $0x15a] sm:$0xff]
  %v3832 = vld [vmem:[#allocation2 + $0x16a] sm:$0xff]
  %v3833 = vld [vmem:[#allocation2 + $0x172] sm:$0xff]
  %v3834 = vld [vmem:[#allocation2 + $0x1b2] sm:$0xff]
  %v3835 = vld [vmem:[#allocation2 + $0x1ba] sm:$0xff]
  %v3836 = vld [vmem:[#allocation2 + $0x1ca] sm:$0xff]
  %v3837 = vld [vmem:[#allocation2 + $0x1d2] sm:$0xff]
  %v3838 = vld [vmem:[#allocation2 + $0x1e2] sm:$0xff]
  %v3839 = vld [vmem:[#allocation2 + $0x1ea] sm:$0xff]
  %v3840 = vld [vmem:[#allocation2 + $0x1fa] sm:$0xff]
  %v3841 = vld [vmem:[#allocation2 + $0x202] sm:$0xff]
  %v3842 = vld [vmem:[#allocation2 + $0x212] sm:$0xff]
  %v3843 = vld [vmem:[#allocation2 + $0x21a] sm:$0xff]
  %v3844 = vld [vmem:[#allocation2 + $0x22a] sm:$0xff]
  %v3845 = vld [vmem:[#allocation2 + $0x232] sm:$0xff]
  %v3846 = vld [vmem:[#allocation2 + $0x242] sm:$0xff]
  %v3847 = vld [vmem:[#allocation2 + $0x24a] sm:$0xff]
  %v3848 = vld [vmem:[#allocation2 + $0x25a] sm:$0xff]
  %v3849 = vld [vmem:[#allocation2 + $0x262] sm:$0xff]
  %v3850 = vld [vmem:[#allocation2 + $0x272] sm:$0xff]
  %v3851 = vld [vmem:[#allocation2 + $0x27a] sm:$0xff]
  %v3852 = vld [vmem:[#allocation2 + $0x28a] sm:$0xff]
  %v3853 = vld [vmem:[#allocation2 + $0x292] sm:$0xff]
  %v3854 = vld [vmem:[#allocation2 + $0x2a2] sm:$0xff]
  %v3855 = vld [vmem:[#allocation2 + $0x2aa] sm:$0xff]
  %v3856 = vld [vmem:[#allocation2 + $0x2ba] sm:$0xff]
  %v3857 = vld [vmem:[#allocation2 + $0x2c2] sm:$0xff]
  %v3858 = vld [vmem:[#allocation2 + $0x2d2] sm:$0xff]
  %v3859 = vld [vmem:[#allocation2 + $0x2da] sm:$0xff]
  %v3860 = vld [vmem:[#allocation2 + $0x2ea] sm:$0xff]
  %v3861 = vld [vmem:[#allocation2 + $0x2f2] sm:$0xff]
  %v3862 = vld [vmem:[#allocation2 + $0x302] sm:$0xff]
  %v3863 = vld [vmem:[#allocation2 + $0x30a] sm:$0xff]
  %v3864 = vld [vmem:[#allocation2 + $0x31a] sm:$0xff]
  %v3865 = vld [vmem:[#allocation2 + $0x322] sm:$0xff]
  %v3866 = vld [vmem:[%s81] sm:$0xff]
  %v3867 = vld [vmem:[%s81 + $0x8] sm:$0xff]
  %v3868 = vld [vmem:[%s81 + $0x18] sm:$0xff]
  %v3869 = vld [vmem:[%s81 + $0x20] sm:$0xff]
  %v3870 = vld [vmem:[%s81 + $0x30] sm:$0xff]
  %v3871 = vld [vmem:[%s81 + $0x38] sm:$0xff]
  %v3872 = vld [vmem:[%s81 + $0x48] sm:$0xff]
  %v3873 = vld [vmem:[%s81 + $0x50] sm:$0xff]
  %v3874 = vld [vmem:[%s81 + $0x60] sm:$0xff]
  %v3875 = vld [vmem:[%s81 + $0x68] sm:$0xff]
  %v3876 = vld [vmem:[%s81 + $0x78] sm:$0xff]
  %v3877 = vld [vmem:[%s81 + $0x80] sm:$0xff]
  %v3878 = vld [vmem:[%s81 + $0x90] sm:$0xff]
  %v3879 = vld [vmem:[%s81 + $0x98] sm:$0xff]
  %v3880 = vld [vmem:[%s81 + $0xa8] sm:$0xff]
  %v3881 = vld [vmem:[%s81 + $0xb0] sm:$0xff]
  %v3882 = vld [vmem:[%s81 + $0xc0] sm:$0xff]
  %v3883 = vld [vmem:[%s81 + $0xc8] sm:$0xff]
  %v3884 = vld [vmem:[%s81 + $0xd8] sm:$0xff]
  %v3885 = vld [vmem:[%s81 + $0xe0] sm:$0xff]
  %v3886 = vld [vmem:[%s81 + $0xf0] sm:$0xff]
  %v3887 = vld [vmem:[%s81 + $0xf8] sm:$0xff]
  %v3888 = vld [vmem:[%s81 + $0x108] sm:$0xff]
  %v3889 = vld [vmem:[%s81 + $0x110] sm:$0xff]
  %v3890 = vld [vmem:[%s81 + $0x120] sm:$0xff]
  %v3891 = vld [vmem:[%s81 + $0x128] sm:$0xff]
  %v3892 = vld [vmem:[%s81 + $0x138] sm:$0xff]
  %v3893 = vld [vmem:[%s81 + $0x140] sm:$0xff]
  %v3894 = vld [vmem:[%s81 + $0x150] sm:$0xff]
  %v3895 = vld [vmem:[%s81 + $0x158] sm:$0xff]
  %v3896 = vld [vmem:[%s81 + $0x168] sm:$0xff]
  %v3897 = vld [vmem:[%s81 + $0x170] sm:$0xff]
  %v3898 = vld [vmem:[%s81 + $0x1b0] sm:$0xff]
  %v3899 = vld [vmem:[%s81 + $0x1b8] sm:$0xff]
  %v3900 = vld [vmem:[%s81 + $0x1c8] sm:$0xff]
  %v3901 = vld [vmem:[%s81 + $0x1d0] sm:$0xff]
  %v3902 = vld [vmem:[%s81 + $0x1e0] sm:$0xff]
  %v3903 = vld [vmem:[%s81 + $0x1e8] sm:$0xff]
  %v3904 = vld [vmem:[%s81 + $0x1f8] sm:$0xff]
  %v3905 = vld [vmem:[%s81 + $0x200] sm:$0xff]
  %v3906 = vld [vmem:[%s81 + $0x210] sm:$0xff]
  %v3907 = vld [vmem:[%s81 + $0x218] sm:$0xff]
  %v3908 = vld [vmem:[%s81 + $0x228] sm:$0xff]
  %v3909 = vld [vmem:[%s81 + $0x230] sm:$0xff]
  %v3910 = vld [vmem:[%s81 + $0x240] sm:$0xff]
  %v3911 = vld [vmem:[%s81 + $0x248] sm:$0xff]
  %v3912 = vld [vmem:[%s81 + $0x258] sm:$0xff]
  %v3913 = vld [vmem:[%s81 + $0x260] sm:$0xff]
  %v3914 = vld [vmem:[%s81 + $0x270] sm:$0xff]
  %v3915 = vld [vmem:[%s81 + $0x278] sm:$0xff]
  %v3916 = vld [vmem:[%s81 + $0x288] sm:$0xff]
  %v3917 = vld [vmem:[%s81 + $0x290] sm:$0xff]
  %v3918 = vld [vmem:[%s81 + $0x2a0] sm:$0xff]
  %v3919 = vld [vmem:[%s81 + $0x2a8] sm:$0xff]
  %v3920 = vld [vmem:[%s81 + $0x2b8] sm:$0xff]
  %v3921 = vld [vmem:[%s81 + $0x2c0] sm:$0xff]
  %v3922 = vld [vmem:[%s81 + $0x2d0] sm:$0xff]
  %v3923 = vld [vmem:[%s81 + $0x2d8] sm:$0xff]
  %v3924 = vld [vmem:[%s81 + $0x2e8] sm:$0xff]
  %v3925 = vld [vmem:[%s81 + $0x2f0] sm:$0xff]
  %v3926 = vld [vmem:[%s81 + $0x300] sm:$0xff]
  %v3927 = vld [vmem:[%s81 + $0x308] sm:$0xff]
  %v3928 = vld [vmem:[%s81 + $0x318] sm:$0xff]
  %v3929 = vld [vmem:[%s81 + $0x320] sm:$0xff]
  %v3930 = vld [vmem:[%s81 + $0x1] sm:$0xff]
  %v3931 = vld [vmem:[%s81 + $0x9] sm:$0xff]
  %v3932 = vld [vmem:[%s81 + $0x19] sm:$0xff]
  %v3933 = vld [vmem:[%s81 + $0x21] sm:$0xff]
  %v3934 = vld [vmem:[%s81 + $0x31] sm:$0xff]
  %v3935 = vld [vmem:[%s81 + $0x39] sm:$0xff]
  %v3936 = vld [vmem:[%s81 + $0x49] sm:$0xff]
  %v3937 = vld [vmem:[%s81 + $0x51] sm:$0xff]
  %v3938 = vld [vmem:[%s81 + $0x61] sm:$0xff]
  %v3939 = vld [vmem:[%s81 + $0x69] sm:$0xff]
  %v3940 = vld [vmem:[%s81 + $0x79] sm:$0xff]
  %v3941 = vld [vmem:[%s81 + $0x81] sm:$0xff]
  %v3942 = vld [vmem:[%s81 + $0x91] sm:$0xff]
  %v3943 = vld [vmem:[%s81 + $0x99] sm:$0xff]
  %v3944 = vld [vmem:[%s81 + $0xa9] sm:$0xff]
  %v3945 = vld [vmem:[%s81 + $0xb1] sm:$0xff]
  %v3946 = vld [vmem:[%s81 + $0xc1] sm:$0xff]
  %v3947 = vld [vmem:[%s81 + $0xc9] sm:$0xff]
  %v3948 = vld [vmem:[%s81 + $0xd9] sm:$0xff]
  %v3949 = vld [vmem:[%s81 + $0xe1] sm:$0xff]
  %v3950 = vld [vmem:[%s81 + $0xf1] sm:$0xff]
  %v3951 = vld [vmem:[%s81 + $0xf9] sm:$0xff]
  %v3952 = vld [vmem:[%s81 + $0x109] sm:$0xff]
  %v3953 = vld [vmem:[%s81 + $0x111] sm:$0xff]
  %v3954 = vld [vmem:[%s81 + $0x121] sm:$0xff]
  %v3955 = vld [vmem:[%s81 + $0x129] sm:$0xff]
  %v3956 = vld [vmem:[%s81 + $0x139] sm:$0xff]
  %v3957 = vld [vmem:[%s81 + $0x141] sm:$0xff]
  %v3958 = vld [vmem:[%s81 + $0x151] sm:$0xff]
  %v3959 = vld [vmem:[%s81 + $0x159] sm:$0xff]
  %v3960 = vld [vmem:[%s81 + $0x169] sm:$0xff]
  %v3961 = vld [vmem:[%s81 + $0x171] sm:$0xff]
  %v3962 = vld [vmem:[%s81 + $0x1b1] sm:$0xff]
  %v3963 = vld [vmem:[%s81 + $0x1b9] sm:$0xff]
  %v3964 = vld [vmem:[%s81 + $0x1c9] sm:$0xff]
  %v3965 = vld [vmem:[%s81 + $0x1d1] sm:$0xff]
  %v3966 = vld [vmem:[%s81 + $0x1e1] sm:$0xff]
  %v3967 = vld [vmem:[%s81 + $0x1e9] sm:$0xff]
  %v3968 = vld [vmem:[%s81 + $0x1f9] sm:$0xff]
  %v3969 = vld [vmem:[%s81 + $0x201] sm:$0xff]
  %v3970 = vld [vmem:[%s81 + $0x211] sm:$0xff]
  %v3971 = vld [vmem:[%s81 + $0x219] sm:$0xff]
  %v3972 = vld [vmem:[%s81 + $0x229] sm:$0xff]
  %v3973 = vld [vmem:[%s81 + $0x231] sm:$0xff]
  %v3974 = vld [vmem:[%s81 + $0x241] sm:$0xff]
  %v3975 = vld [vmem:[%s81 + $0x249] sm:$0xff]
  %v3976 = vld [vmem:[%s81 + $0x259] sm:$0xff]
  %v3977 = vld [vmem:[%s81 + $0x261] sm:$0xff]
  %v3978 = vld [vmem:[%s81 + $0x271] sm:$0xff]
  %v3979 = vld [vmem:[%s81 + $0x279] sm:$0xff]
  %v3980 = vld [vmem:[%s81 + $0x289] sm:$0xff]
  %v3981 = vld [vmem:[%s81 + $0x291] sm:$0xff]
  %v3982 = vld [vmem:[%s81 + $0x2a1] sm:$0xff]
  %v3983 = vld [vmem:[%s81 + $0x2a9] sm:$0xff]
  %v3984 = vld [vmem:[%s81 + $0x2b9] sm:$0xff]
  %v3985 = vld [vmem:[%s81 + $0x2c1] sm:$0xff]
  %v3986 = vld [vmem:[%s81 + $0x2d1] sm:$0xff]
  %v3987 = vld [vmem:[%s81 + $0x2d9] sm:$0xff]
  %v3988 = vld [vmem:[%s81 + $0x2e9] sm:$0xff]
  %v3989 = vld [vmem:[%s81 + $0x2f1] sm:$0xff]
  %v3990 = vld [vmem:[%s81 + $0x301] sm:$0xff]
  %v3991 = vld [vmem:[%s81 + $0x309] sm:$0xff]
  %v3992 = vld [vmem:[%s81 + $0x319] sm:$0xff]
  %v3993 = vld [vmem:[%s81 + $0x321] sm:$0xff]
  %v3994 = vld [vmem:[%s81 + $0x2] sm:$0xff]
  %v3995 = vld [vmem:[%s81 + $0xa] sm:$0xff]
  %v3996 = vld [vmem:[%s81 + $0x1a] sm:$0xff]
  %v3997 = vld [vmem:[%s81 + $0x22] sm:$0xff]
  %v3998 = vld [vmem:[%s81 + $0x32] sm:$0xff]
  %v3999 = vld [vmem:[%s81 + $0x3a] sm:$0xff]
  %v4000 = vld [vmem:[%s81 + $0x4a] sm:$0xff]
  %v4001 = vld [vmem:[%s81 + $0x52] sm:$0xff]
  %v4002 = vld [vmem:[%s81 + $0x62] sm:$0xff]
  %v4003 = vld [vmem:[%s81 + $0x6a] sm:$0xff]
  %v4004 = vld [vmem:[%s81 + $0x7a] sm:$0xff]
  %v4005 = vld [vmem:[%s81 + $0x82] sm:$0xff]
  %v4006 = vld [vmem:[%s81 + $0x92] sm:$0xff]
  %v4007 = vld [vmem:[%s81 + $0x9a] sm:$0xff]
  %v4008 = vld [vmem:[%s81 + $0xaa] sm:$0xff]
  %v4009 = vld [vmem:[%s81 + $0xb2] sm:$0xff]
  %v4010 = vld [vmem:[%s81 + $0xc2] sm:$0xff]
  %v4011 = vld [vmem:[%s81 + $0xca] sm:$0xff]
  %v4012 = vld [vmem:[%s81 + $0xda] sm:$0xff]
  %v4013 = vld [vmem:[%s81 + $0xe2] sm:$0xff]
  %v4014 = vld [vmem:[%s81 + $0xf2] sm:$0xff]
  %v4015 = vld [vmem:[%s81 + $0xfa] sm:$0xff]
  %v4016 = vld [vmem:[%s81 + $0x10a] sm:$0xff]
  %v4017 = vld [vmem:[%s81 + $0x112] sm:$0xff]
  %v4018 = vld [vmem:[%s81 + $0x122] sm:$0xff]
  %v4019 = vld [vmem:[%s81 + $0x12a] sm:$0xff]
  %v4020 = vld [vmem:[%s81 + $0x13a] sm:$0xff]
  %v4021 = vld [vmem:[%s81 + $0x142] sm:$0xff]
  %v4022 = vld [vmem:[%s81 + $0x152] sm:$0xff]
  %v4023 = vld [vmem:[%s81 + $0x15a] sm:$0xff]
  %v4024 = vld [vmem:[%s81 + $0x16a] sm:$0xff]
  %v4025 = vld [vmem:[%s81 + $0x172] sm:$0xff]
  %v4026 = vld [vmem:[%s81 + $0x1b2] sm:$0xff]
  %v4027 = vld [vmem:[%s81 + $0x1ba] sm:$0xff]
  %v4028 = vld [vmem:[%s81 + $0x1ca] sm:$0xff]
  %v4029 = vld [vmem:[%s81 + $0x1d2] sm:$0xff]
  %v4030 = vld [vmem:[%s81 + $0x1e2] sm:$0xff]
  %v4031 = vld [vmem:[%s81 + $0x1ea] sm:$0xff]
  %v4032 = vld [vmem:[%s81 + $0x1fa] sm:$0xff]
  %v4033 = vld [vmem:[%s81 + $0x202] sm:$0xff]
  %v4034 = vld [vmem:[%s81 + $0x212] sm:$0xff]
  %v4035 = vld [vmem:[%s81 + $0x21a] sm:$0xff]
  %v4036 = vld [vmem:[%s81 + $0x22a] sm:$0xff]
  %v4037 = vld [vmem:[%s81 + $0x232] sm:$0xff]
  %v4038 = vld [vmem:[%s81 + $0x242] sm:$0xff]
  %v4039 = vld [vmem:[%s81 + $0x24a] sm:$0xff]
  %v4040 = vld [vmem:[%s81 + $0x25a] sm:$0xff]
  %v4041 = vld [vmem:[%s81 + $0x262] sm:$0xff]
  %v4042 = vld [vmem:[%s81 + $0x272] sm:$0xff]
  %v4043 = vld [vmem:[%s81 + $0x27a] sm:$0xff]
  %v4044 = vld [vmem:[%s81 + $0x28a] sm:$0xff]
  %v4045 = vld [vmem:[%s81 + $0x292] sm:$0xff]
  %v4046 = vld [vmem:[%s81 + $0x2a2] sm:$0xff]
  %v4047 = vld [vmem:[%s81 + $0x2aa] sm:$0xff]
  %v4048 = vld [vmem:[%s81 + $0x2ba] sm:$0xff]
  %v4049 = vld [vmem:[%s81 + $0x2c2] sm:$0xff]
  %v4050 = vld [vmem:[%s81 + $0x2d2] sm:$0xff]
  %v4051 = vld [vmem:[%s81 + $0x2da] sm:$0xff]
  %v4052 = vld [vmem:[%s81 + $0x2ea] sm:$0xff]
  %v4053 = vld [vmem:[%s81 + $0x2f2] sm:$0xff]
  %v4054 = vld [vmem:[%s81 + $0x302] sm:$0xff]
  %v4055 = vld [vmem:[%s81 + $0x30a] sm:$0xff]
  %v4056 = vld [vmem:[%s81 + $0x31a] sm:$0xff]
  %v4057 = vld [vmem:[%s81 + $0x322] sm:$0xff]
  %v4058 = vld [vmem:[%s146] sm:$0xff]
  %v4059 = vld [vmem:[%s146 + $0x8] sm:$0xff]
  %v4060 = vld [vmem:[%s146 + $0x18] sm:$0xff]
  %v4061 = vld [vmem:[%s146 + $0x20] sm:$0xff]
  %v4062 = vld [vmem:[%s146 + $0x30] sm:$0xff]
  %v4063 = vld [vmem:[%s146 + $0x38] sm:$0xff]
  %v4064 = vld [vmem:[%s146 + $0x48] sm:$0xff]
  %v4065 = vld [vmem:[%s146 + $0x50] sm:$0xff]
  %v4066 = vld [vmem:[%s146 + $0x60] sm:$0xff]
  %v4067 = vld [vmem:[%s146 + $0x68] sm:$0xff]
  %v4068 = vld [vmem:[%s146 + $0x78] sm:$0xff]
  %v4069 = vld [vmem:[%s146 + $0x80] sm:$0xff]
  %v4070 = vld [vmem:[%s146 + $0x90] sm:$0xff]
  %v4071 = vld [vmem:[%s146 + $0x98] sm:$0xff]
  %v4072 = vld [vmem:[%s146 + $0xa8] sm:$0xff]
  %v4073 = vld [vmem:[%s146 + $0xb0] sm:$0xff]
  %v4074 = vld [vmem:[%s146 + $0xc0] sm:$0xff]
  %v4075 = vld [vmem:[%s146 + $0xc8] sm:$0xff]
  %v4076 = vld [vmem:[%s146 + $0xd8] sm:$0xff]
  %v4077 = vld [vmem:[%s146 + $0xe0] sm:$0xff]
  %v4078 = vld [vmem:[%s146 + $0xf0] sm:$0xff]
  %v4079 = vld [vmem:[%s146 + $0xf8] sm:$0xff]
  %v4080 = vld [vmem:[%s146 + $0x108] sm:$0xff]
  %v4081 = vld [vmem:[%s146 + $0x110] sm:$0xff]
  %v4082 = vld [vmem:[%s146 + $0x120] sm:$0xff]
  %v4083 = vld [vmem:[%s146 + $0x128] sm:$0xff]
  %v4084 = vld [vmem:[%s146 + $0x138] sm:$0xff]
  %v4085 = vld [vmem:[%s146 + $0x140] sm:$0xff]
  %v4086 = vld [vmem:[%s146 + $0x150] sm:$0xff]
  %v4087 = vld [vmem:[%s146 + $0x158] sm:$0xff]
  %v4088 = vld [vmem:[%s146 + $0x168] sm:$0xff]
  %v4089 = vld [vmem:[%s146 + $0x170] sm:$0xff]
  %v4090 = vld [vmem:[%s146 + $0x1b0] sm:$0xff]
  %v4091 = vld [vmem:[%s146 + $0x1b8] sm:$0xff]
  %v4092 = vld [vmem:[%s146 + $0x1c8] sm:$0xff]
  %v4093 = vld [vmem:[%s146 + $0x1d0] sm:$0xff]
  %v4094 = vld [vmem:[%s146 + $0x1e0] sm:$0xff]
  %v4095 = vld [vmem:[%s146 + $0x1e8] sm:$0xff]
  %v4096 = vld [vmem:[%s146 + $0x1f8] sm:$0xff]
  %v4097 = vld [vmem:[%s146 + $0x200] sm:$0xff]
  %v4098 = vld [vmem:[%s146 + $0x210] sm:$0xff]
  %v4099 = vld [vmem:[%s146 + $0x218] sm:$0xff]
  %v4100 = vld [vmem:[%s146 + $0x228] sm:$0xff]
  %v4101 = vld [vmem:[%s146 + $0x230] sm:$0xff]
  %v4102 = vld [vmem:[%s146 + $0x240] sm:$0xff]
  %v4103 = vld [vmem:[%s146 + $0x248] sm:$0xff]
  %v4104 = vld [vmem:[%s146 + $0x258] sm:$0xff]
  %v4105 = vld [vmem:[%s146 + $0x260] sm:$0xff]
  %v4106 = vld [vmem:[%s146 + $0x270] sm:$0xff]
  %v4107 = vld [vmem:[%s146 + $0x278] sm:$0xff]
  %v4108 = vld [vmem:[%s146 + $0x288] sm:$0xff]
  %v4109 = vld [vmem:[%s146 + $0x290] sm:$0xff]
  %v4110 = vld [vmem:[%s146 + $0x2a0] sm:$0xff]
  %v4111 = vld [vmem:[%s146 + $0x2a8] sm:$0xff]
  %v4112 = vld [vmem:[%s146 + $0x2b8] sm:$0xff]
  %v4113 = vld [vmem:[%s146 + $0x2c0] sm:$0xff]
  %v4114 = vld [vmem:[%s146 + $0x2d0] sm:$0xff]
  %v4115 = vld [vmem:[%s146 + $0x2d8] sm:$0xff]
  %v4116 = vld [vmem:[%s146 + $0x2e8] sm:$0xff]
  %v4117 = vld [vmem:[%s146 + $0x2f0] sm:$0xff]
  %v4118 = vld [vmem:[%s146 + $0x300] sm:$0xff]
  %v4119 = vld [vmem:[%s146 + $0x308] sm:$0xff]
  %v4120 = vld [vmem:[%s146 + $0x318] sm:$0xff]
  %v4121 = vld [vmem:[%s146 + $0x320] sm:$0xff]
  %v4122 = vld [vmem:[%s146 + $0x1] sm:$0xff]
  %v4123 = vld [vmem:[%s146 + $0x9] sm:$0xff]
  %v4124 = vld [vmem:[%s146 + $0x19] sm:$0xff]
  %v4125 = vld [vmem:[%s146 + $0x21] sm:$0xff]
  %v4126 = vld [vmem:[%s146 + $0x31] sm:$0xff]
  %v4127 = vld [vmem:[%s146 + $0x39] sm:$0xff]
  %v4128 = vld [vmem:[%s146 + $0x49] sm:$0xff]
  %v4129 = vld [vmem:[%s146 + $0x51] sm:$0xff]
  %v4130 = vld [vmem:[%s146 + $0x61] sm:$0xff]
  %v4131 = vld [vmem:[%s146 + $0x69] sm:$0xff]
  %v4132 = vld [vmem:[%s146 + $0x79] sm:$0xff]
  %v4133 = vld [vmem:[%s146 + $0x81] sm:$0xff]
  %v4134 = vld [vmem:[%s146 + $0x91] sm:$0xff]
  %v4135 = vld [vmem:[%s146 + $0x99] sm:$0xff]
  %v4136 = vld [vmem:[%s146 + $0xa9] sm:$0xff]
  %v4137 = vld [vmem:[%s146 + $0xb1] sm:$0xff]
  %v4138 = vld [vmem:[%s146 + $0xc1] sm:$0xff]
  %v4139 = vld [vmem:[%s146 + $0xc9] sm:$0xff]
  %v4140 = vld [vmem:[%s146 + $0xd9] sm:$0xff]
  %v4141 = vld [vmem:[%s146 + $0xe1] sm:$0xff]
  %v4142 = vld [vmem:[%s146 + $0xf1] sm:$0xff]
  %v4143 = vld [vmem:[%s146 + $0xf9] sm:$0xff]
  %v4144 = vld [vmem:[%s146 + $0x109] sm:$0xff]
  %v4145 = vld [vmem:[%s146 + $0x111] sm:$0xff]
  %v4146 = vld [vmem:[%s146 + $0x121] sm:$0xff]
  %v4147 = vld [vmem:[%s146 + $0x129] sm:$0xff]
  %v4148 = vld [vmem:[%s146 + $0x139] sm:$0xff]
  %v4149 = vld [vmem:[%s146 + $0x141] sm:$0xff]
  %v4150 = vld [vmem:[%s146 + $0x151] sm:$0xff]
  %v4151 = vld [vmem:[%s146 + $0x159] sm:$0xff]
  %v4152 = vld [vmem:[%s146 + $0x169] sm:$0xff]
  %v4153 = vld [vmem:[%s146 + $0x171] sm:$0xff]
  %v4154 = vld [vmem:[%s146 + $0x1b1] sm:$0xff]
  %v4155 = vld [vmem:[%s146 + $0x1b9] sm:$0xff]
  %v4156 = vld [vmem:[%s146 + $0x1c9] sm:$0xff]
  %v4157 = vld [vmem:[%s146 + $0x1d1] sm:$0xff]
  %v4158 = vld [vmem:[%s146 + $0x1e1] sm:$0xff]
  %v4159 = vld [vmem:[%s146 + $0x1e9] sm:$0xff]
  %v4160 = vld [vmem:[%s146 + $0x1f9] sm:$0xff]
  %v4161 = vld [vmem:[%s146 + $0x201] sm:$0xff]
  %v4162 = vld [vmem:[%s146 + $0x211] sm:$0xff]
  %v4163 = vld [vmem:[%s146 + $0x219] sm:$0xff]
  %v4164 = vld [vmem:[%s146 + $0x229] sm:$0xff]
  %v4165 = vld [vmem:[%s146 + $0x231] sm:$0xff]
  %v4166 = vld [vmem:[%s146 + $0x241] sm:$0xff]
  %v4167 = vld [vmem:[%s146 + $0x249] sm:$0xff]
  %v4168 = vld [vmem:[%s146 + $0x259] sm:$0xff]
  %v4169 = vld [vmem:[%s146 + $0x261] sm:$0xff]
  %v4170 = vld [vmem:[%s146 + $0x271] sm:$0xff]
  %v4171 = vld [vmem:[%s146 + $0x279] sm:$0xff]
  %v4172 = vld [vmem:[%s146 + $0x289] sm:$0xff]
  %v4173 = vld [vmem:[%s146 + $0x291] sm:$0xff]
  %v4174 = vld [vmem:[%s146 + $0x2a1] sm:$0xff]
  %v4175 = vld [vmem:[%s146 + $0x2a9] sm:$0xff]
  %v4176 = vld [vmem:[%s146 + $0x2b9] sm:$0xff]
  %v4177 = vld [vmem:[%s146 + $0x2c1] sm:$0xff]
  %v4178 = vld [vmem:[%s146 + $0x2d1] sm:$0xff]
  %v4179 = vld [vmem:[%s146 + $0x2d9] sm:$0xff]
  %v4180 = vld [vmem:[%s146 + $0x2e9] sm:$0xff]
  %v4181 = vld [vmem:[%s146 + $0x2f1] sm:$0xff]
  %v4182 = vld [vmem:[%s146 + $0x301] sm:$0xff]
  %v4183 = vld [vmem:[%s146 + $0x309] sm:$0xff]
  %v4184 = vld [vmem:[%s146 + $0x319] sm:$0xff]
  %v4185 = vld [vmem:[%s146 + $0x321] sm:$0xff]
  %v4186 = vld [vmem:[%s146 + $0x2] sm:$0xff]
  %v4187 = vld [vmem:[%s146 + $0xa] sm:$0xff]
  %v4188 = vld [vmem:[%s146 + $0x1a] sm:$0xff]
  %v4189 = vld [vmem:[%s146 + $0x22] sm:$0xff]
  %v4190 = vld [vmem:[%s146 + $0x32] sm:$0xff]
  %v4191 = vld [vmem:[%s146 + $0x3a] sm:$0xff]
  %v4192 = vld [vmem:[%s146 + $0x4a] sm:$0xff]
  %v4193 = vld [vmem:[%s146 + $0x52] sm:$0xff]
  %v4194 = vld [vmem:[%s146 + $0x62] sm:$0xff]
  %v4195 = vld [vmem:[%s146 + $0x6a] sm:$0xff]
  %v4196 = vld [vmem:[%s146 + $0x7a] sm:$0xff]
  %v4197 = vld [vmem:[%s146 + $0x82] sm:$0xff]
  %v4198 = vld [vmem:[%s146 + $0x92] sm:$0xff]
  %v4199 = vld [vmem:[%s146 + $0x9a] sm:$0xff]
  %v4200 = vld [vmem:[%s146 + $0xaa] sm:$0xff]
  %v4201 = vld [vmem:[%s146 + $0xb2] sm:$0xff]
  %v4202 = vld [vmem:[%s146 + $0xc2] sm:$0xff]
  %v4203 = vld [vmem:[%s146 + $0xca] sm:$0xff]
  %v4204 = vld [vmem:[%s146 + $0xda] sm:$0xff]
  %v4205 = vld [vmem:[%s146 + $0xe2] sm:$0xff]
  %v4206 = vld [vmem:[%s146 + $0xf2] sm:$0xff]
  %v4207 = vld [vmem:[%s146 + $0xfa] sm:$0xff]
  %v4208 = vld [vmem:[%s146 + $0x10a] sm:$0xff]
  %v4209 = vld [vmem:[%s146 + $0x112] sm:$0xff]
  %v4210 = vld [vmem:[%s146 + $0x122] sm:$0xff]
  %v4211 = vld [vmem:[%s146 + $0x12a] sm:$0xff]
  %v4212 = vld [vmem:[%s146 + $0x13a] sm:$0xff]
  %v4213 = vld [vmem:[%s146 + $0x142] sm:$0xff]
  %v4214 = vld [vmem:[%s146 + $0x152] sm:$0xff]
  %v4215 = vld [vmem:[%s146 + $0x15a] sm:$0xff]
  %v4216 = vld [vmem:[%s146 + $0x16a] sm:$0xff]
  %v4217 = vld [vmem:[%s146 + $0x172] sm:$0xff]
  %v4218 = vld [vmem:[%s146 + $0x1b2] sm:$0xff]
  %v4219 = vld [vmem:[%s146 + $0x1ba] sm:$0xff]
  %v4220 = vld [vmem:[%s146 + $0x1ca] sm:$0xff]
  %v4221 = vld [vmem:[%s146 + $0x1d2] sm:$0xff]
  %v4222 = vld [vmem:[%s146 + $0x1e2] sm:$0xff]
  %v4223 = vld [vmem:[%s146 + $0x1ea] sm:$0xff]
  %v4224 = vld [vmem:[%s146 + $0x1fa] sm:$0xff]
  %v4225 = vld [vmem:[%s146 + $0x202] sm:$0xff]
  %v4226 = vld [vmem:[%s146 + $0x212] sm:$0xff]
  %v4227 = vld [vmem:[%s146 + $0x21a] sm:$0xff]
  %v4228 = vld [vmem:[%s146 + $0x22a] sm:$0xff]
  %v4229 = vld [vmem:[%s146 + $0x232] sm:$0xff]
  %v4230 = vld [vmem:[%s146 + $0x242] sm:$0xff]
  %v4231 = vld [vmem:[%s146 + $0x24a] sm:$0xff]
  %v4232 = vld [vmem:[%s146 + $0x25a] sm:$0xff]
  %v4233 = vld [vmem:[%s146 + $0x262] sm:$0xff]
  %v4234 = vld [vmem:[%s146 + $0x272] sm:$0xff]
  %v4235 = vld [vmem:[%s146 + $0x27a] sm:$0xff]
  %v4236 = vld [vmem:[%s146 + $0x28a] sm:$0xff]
  %v4237 = vld [vmem:[%s146 + $0x292] sm:$0xff]
  %v4238 = vld [vmem:[%s146 + $0x2a2] sm:$0xff]
  %v4239 = vld [vmem:[%s146 + $0x2aa] sm:$0xff]
  %v4240 = vld [vmem:[%s146 + $0x2ba] sm:$0xff]
  %v4241 = vld [vmem:[%s146 + $0x2c2] sm:$0xff]
  %v4242 = vld [vmem:[%s146 + $0x2d2] sm:$0xff]
  %v4243 = vld [vmem:[%s146 + $0x2da] sm:$0xff]
  %v4244 = vld [vmem:[%s146 + $0x2ea] sm:$0xff]
  %v4245 = vld [vmem:[%s146 + $0x2f2] sm:$0xff]
  %v4246 = vld [vmem:[%s146 + $0x302] sm:$0xff]
  %v4247 = vld [vmem:[%s146 + $0x30a] sm:$0xff]
  %v4248 = vld [vmem:[%s146 + $0x31a] sm:$0xff]
  %v4249 = vld [vmem:[%s146 + $0x322] sm:$0xff]
  %v4250 = vld [vmem:[%s2] sm:$0xff]
  %v4251 = vld [vmem:[%s2 + $0x8] sm:$0xff]
  %v4252 = vld [vmem:[%s2 + $0x10] sm:$0xff]
  %v4253 = vld [vmem:[%s2 + $0x18] sm:$0xff]
  %v4254 = vld [vmem:[%s2 + $0x20] sm:$0xff]
  %v4255 = vld [vmem:[%s2 + $0x28] sm:$0xff]
  %v4256 = vld [vmem:[%s2 + $0x30] sm:$0xff]
  %v4257 = vld [vmem:[%s2 + $0x38] sm:$0xff]
  %v4258 = vld [vmem:[%s2 + $0x40] sm:$0xff]
  %v4259 = vld [vmem:[%s2 + $0x48] sm:$0xff]
  %v4260 = vld [vmem:[%s2 + $0x50] sm:$0xff]
  %v4261 = vld [vmem:[%s2 + $0x58] sm:$0xff]
  %v4262 = vld [vmem:[%s2 + $0x60] sm:$0xff]
  %v4263 = vld [vmem:[%s2 + $0x68] sm:$0xff]
  %v4264 = vld [vmem:[%s2 + $0x70] sm:$0xff]
  %v4265 = vld [vmem:[%s2 + $0x78] sm:$0xff]
  %v4266 = vld [vmem:[%s2 + $0x80] sm:$0xff]
  %v4267 = vld [vmem:[%s2 + $0x88] sm:$0xff]
  %v4268 = vld [vmem:[%s2 + $0x90] sm:$0xff]
  %v4269 = vld [vmem:[%s2 + $0x98] sm:$0xff]
  %v4270 = vld [vmem:[%s2 + $0xa0] sm:$0xff]
  %v4271 = vld [vmem:[%s2 + $0xa8] sm:$0xff]
  %v4272 = vld [vmem:[%s2 + $0xb0] sm:$0xff]
  %v4273 = vld [vmem:[%s2 + $0xb8] sm:$0xff]
  %v4274 = vld [vmem:[%s2 + $0xc0] sm:$0xff]
  %v4275 = vld [vmem:[%s2 + $0xc8] sm:$0xff]
  %v4276 = vld [vmem:[%s2 + $0xd0] sm:$0xff]
  %v4277 = vld [vmem:[%s2 + $0xd8] sm:$0xff]
  %v4278 = vld [vmem:[%s2 + $0xe0] sm:$0xff]
  %v4279 = vld [vmem:[%s2 + $0xe8] sm:$0xff]
  %v4280 = vld [vmem:[%s2 + $0xf0] sm:$0xff]
  %v4281 = vld [vmem:[%s2 + $0xf8] sm:$0xff]
  %v4282 = vld [vmem:[%s2 + $0x100] sm:$0xff]
  %v4283 = vld [vmem:[%s2 + $0x108] sm:$0xff]
  %v4284 = vld [vmem:[%s2 + $0x110] sm:$0xff]
  %v4285 = vld [vmem:[%s2 + $0x118] sm:$0xff]
  %v4286 = vld [vmem:[%s2 + $0x120] sm:$0xff]
  %v4287 = vld [vmem:[%s2 + $0x128] sm:$0xff]
  %v4288 = vld [vmem:[%s2 + $0x130] sm:$0xff]
  %v4289 = vld [vmem:[%s2 + $0x138] sm:$0xff]
  %v4290 = vld [vmem:[%s2 + $0x140] sm:$0xff]
  %v4291 = vld [vmem:[%s2 + $0x148] sm:$0xff]
  %v4292 = vld [vmem:[%s2 + $0x150] sm:$0xff]
  %v4293 = vld [vmem:[%s2 + $0x158] sm:$0xff]
  %v4294 = vld [vmem:[%s2 + $0x160] sm:$0xff]
  %v4295 = vld [vmem:[%s2 + $0x168] sm:$0xff]
  %v4296 = vld [vmem:[%s2 + $0x170] sm:$0xff]
  %v4297 = vld [vmem:[%s2 + $0x178] sm:$0xff]
  %v4298 = vld [vmem:[%s2 + $0x180] sm:$0xff]
  %v4299 = vld [vmem:[%s2 + $0x188] sm:$0xff]
  %v4300 = vld [vmem:[%s2 + $0x190] sm:$0xff]
  %v4301 = vld [vmem:[%s2 + $0x198] sm:$0xff]
  %v4302 = vld [vmem:[%s2 + $0x1a0] sm:$0xff]
  %v4303 = vld [vmem:[%s2 + $0x1a8] sm:$0xff]
  %v4304 = vld [vmem:[%s2 + $0x1b0] sm:$0xff]
  %v4305 = vld [vmem:[%s2 + $0x1b8] sm:$0xff]
  %v4306 = vld [vmem:[%s2 + $0x1c0] sm:$0xff]
  %v4307 = vld [vmem:[%s2 + $0x1c8] sm:$0xff]
  %v4308 = vld [vmem:[%s2 + $0x1d0] sm:$0xff]
  %v4309 = vld [vmem:[%s2 + $0x1d8] sm:$0xff]
  %v4310 = vld [vmem:[%s2 + $0x1e0] sm:$0xff]
  %v4311 = vld [vmem:[%s2 + $0x1e8] sm:$0xff]
  %v4312 = vld [vmem:[%s2 + $0x1f0] sm:$0xff]
  %v4313 = vld [vmem:[%s2 + $0x1f8] sm:$0xff]
  %v4314 = vld [vmem:[%s2 + $0x200] sm:$0xff]
  %v4315 = vld [vmem:[%s2 + $0x208] sm:$0xff]
  %v4316 = vld [vmem:[%s2 + $0x210] sm:$0xff]
  %v4317 = vld [vmem:[%s2 + $0x218] sm:$0xff]
  %v4318 = vld [vmem:[%s2 + $0x220] sm:$0xff]
  %v4319 = vld [vmem:[%s2 + $0x228] sm:$0xff]
  %v4320 = vld [vmem:[%s2 + $0x230] sm:$0xff]
  %v4321 = vld [vmem:[%s2 + $0x238] sm:$0xff]
  %v4322 = vld [vmem:[%s2 + $0x240] sm:$0xff]
  %v4323 = vld [vmem:[%s2 + $0x248] sm:$0xff]
  %v4324 = vld [vmem:[%s2 + $0x250] sm:$0xff]
  %v4325 = vld [vmem:[%s2 + $0x258] sm:$0xff]
  %v4326 = vld [vmem:[%s2 + $0x260] sm:$0xff]
  %v4327 = vld [vmem:[%s2 + $0x268] sm:$0xff]
  %v4328 = vld [vmem:[%s2 + $0x270] sm:$0xff]
  %v4329 = vld [vmem:[%s2 + $0x278] sm:$0xff]
  %v4330 = vld [vmem:[%s2 + $0x280] sm:$0xff]
  %v4331 = vld [vmem:[%s2 + $0x288] sm:$0xff]
  %v4332 = vld [vmem:[%s2 + $0x290] sm:$0xff]
  %v4333 = vld [vmem:[%s2 + $0x298] sm:$0xff]
  %v4334 = vld [vmem:[%s2 + $0x2a0] sm:$0xff]
  %v4335 = vld [vmem:[%s2 + $0x2a8] sm:$0xff]
  %v4336 = vld [vmem:[%s2 + $0x2b0] sm:$0xff]
  %v4337 = vld [vmem:[%s2 + $0x2b8] sm:$0xff]
  %v4338 = vld [vmem:[%s2 + $0x2c0] sm:$0xff]
  %v4339 = vld [vmem:[%s2 + $0x2c8] sm:$0xff]
  %v4340 = vld [vmem:[%s2 + $0x2d0] sm:$0xff]
  %v4341 = vld [vmem:[%s2 + $0x2d8] sm:$0xff]
  %v4342 = vld [vmem:[%s2 + $0x2e0] sm:$0xff]
  %v4343 = vld [vmem:[%s2 + $0x2e8] sm:$0xff]
  %v4344 = vld [vmem:[%s2 + $0x2f0] sm:$0xff]
  %v4345 = vld [vmem:[%s2 + $0x2f8] sm:$0xff]
  %v4346 = vld [vmem:[%s2 + $0x300] sm:$0xff]
  %v4347 = vld [vmem:[%s2 + $0x308] sm:$0xff]
  %v4348 = vld [vmem:[%s2 + $0x310] sm:$0xff]
  %v4349 = vld [vmem:[%s2 + $0x318] sm:$0xff]
  %v4350 = vld [vmem:[%s2 + $0x320] sm:$0xff]
  %v4351 = vld [vmem:[%s2 + $0x328] sm:$0xff]
  %v4352 = vld [vmem:[%s2 + $0x330] sm:$0xff]
  %v4353 = vld [vmem:[%s2 + $0x338] sm:$0xff]
  %v4354 = vld [vmem:[%s2 + $0x340] sm:$0xff]
  %v4355 = vld [vmem:[%s2 + $0x348] sm:$0xff]
  %v4356 = vld [vmem:[%s2 + $0x350] sm:$0xff]
  %v4357 = vld [vmem:[%s2 + $0x358] sm:$0xff]
  %v4358 = vld [vmem:[%s2 + $0x360] sm:$0xff]
  %v4359 = vld [vmem:[%s2 + $0x368] sm:$0xff]
  %v4360 = vld [vmem:[%s2 + $0x370] sm:$0xff]
  %v4361 = vld [vmem:[%s2 + $0x378] sm:$0xff]
  %v4362 = vld [vmem:[%s2 + $0x380] sm:$0xff]
  %v4363 = vld [vmem:[%s2 + $0x388] sm:$0xff]
  %v4364 = vld [vmem:[%s2 + $0x390] sm:$0xff]
  %v4365 = vld [vmem:[%s2 + $0x398] sm:$0xff]
  %v4366 = vld [vmem:[%s2 + $0x3a0] sm:$0xff]
  %v4367 = vld [vmem:[%s2 + $0x3a8] sm:$0xff]
  %v4368 = vld [vmem:[%s2 + $0x3b0] sm:$0xff]
  %v4369 = vld [vmem:[%s2 + $0x3b8] sm:$0xff]
  %v4370 = vld [vmem:[%s2 + $0x3c0] sm:$0xff]
  %v4371 = vld [vmem:[%s2 + $0x3c8] sm:$0xff]
  %v4372 = vld [vmem:[%s2 + $0x3d0] sm:$0xff]
  %v4373 = vld [vmem:[%s2 + $0x3d8] sm:$0xff]
  %v4374 = vld [vmem:[%s2 + $0x3e0] sm:$0xff]
  %v4375 = vld [vmem:[%s2 + $0x3e8] sm:$0xff]
  %v4376 = vld [vmem:[%s2 + $0x3f0] sm:$0xff]
  %v4377 = vld [vmem:[%s2 + $0x3f8] sm:$0xff]
  %v4378 = vld [vmem:[%s2 + $0x400] sm:$0xff]
  %v4379 = vld [vmem:[%s2 + $0x408] sm:$0xff]
  %v4380 = vld [vmem:[%s2 + $0x410] sm:$0xff]
  %v4381 = vld [vmem:[%s2 + $0x418] sm:$0xff]
  %v4382 = vld [vmem:[%s2 + $0x420] sm:$0xff]
  %v4383 = vld [vmem:[%s2 + $0x428] sm:$0xff]
  %v4384 = vld [vmem:[%s2 + $0x430] sm:$0xff]
  %v4385 = vld [vmem:[%s2 + $0x438] sm:$0xff]
  %v4386 = vld [vmem:[%s2 + $0x440] sm:$0xff]
  %v4387 = vld [vmem:[%s2 + $0x448] sm:$0xff]
  %v4388 = vld [vmem:[%s2 + $0x450] sm:$0xff]
  %v4389 = vld [vmem:[%s2 + $0x458] sm:$0xff]
  %v4390 = vld [vmem:[%s2 + $0x460] sm:$0xff]
  %v4391 = vld [vmem:[%s2 + $0x468] sm:$0xff]
  %v4392 = vld [vmem:[%s2 + $0x470] sm:$0xff]
  %v4393 = vld [vmem:[%s2 + $0x478] sm:$0xff]
  %v4394 = vlaneseq
  %v4395 = vshrl.u32 %v4394, 7
  %v4396 = vsub.s32 0, %v4395
  %v4397 = vrot.slane %v3673, %v4396
  %4398 = vmatprep.subr.mxu0 0.0
  %4399 = vmatpush1.msra.mxu0 %v4250
  %4400 = vmatprep.subr.mxu0 0.0
  %4401 = vmatpush1.msra.mxu0 %v4251
  %4402 = vmatprep.subr.mxu0 0.0
  %4403 = vmatpush1.msra.mxu0 %v4252
  %4404 = vmatprep.subr.mxu0 0.0
  %4405 = vmatpush1.msra.mxu0 %v4253
  %4406 = vmatprep.subr.mxu0 0.0
  %4407 = vmatpush1.msra.mxu0 %v4254
  %4408 = vmatprep.subr.mxu0 0.0
  %4409 = vmatpush1.msra.mxu0 %v4255
  %4410 = vmatprep.subr.mxu0 0.0
  %4411 = vmatpush1.msra.mxu0 %v4256
  %4412 = vmatprep.subr.mxu0 0.0
  %4413 = vmatpush1.msra.mxu0 %v4257
  %4414 = vmatprep.subr.mxu0 0.0
  %4415 = vmatpush1.msra.mxu0 %v4258
  %4416 = vmatprep.subr.mxu0 0.0
  %4417 = vmatpush1.msra.mxu0 %v4259
  %4418 = vmatprep.subr.mxu0 0.0
  %4419 = vmatpush1.msra.mxu0 %v4260
  %4420 = vmatprep.subr.mxu0 0.0
  %4421 = vmatpush1.msra.mxu0 %v4261
  %4422 = vmatprep.subr.mxu0 0.0
  %4423 = vmatpush1.msra.mxu0 %v4262
  %4424 = vmatprep.subr.mxu0 0.0
  %4425 = vmatpush1.msra.mxu0 %v4263
  %4426 = vmatprep.subr.mxu0 0.0
  %4427 = vmatpush1.msra.mxu0 %v4264
  %4428 = vmatprep.subr.mxu0 0.0
  %4429 = vmatpush1.msra.mxu0 %v4265
  %4430 = vmatprep.subr.mxu0 0.0
  %4431 = vmatpush1.msra.mxu0 %v4266
  %4432 = vmatprep.subr.mxu0 0.0
  %4433 = vmatpush1.msra.mxu0 %v4267
  %4434 = vmatprep.subr.mxu0 0.0
  %4435 = vmatpush1.msra.mxu0 %v4268
  %4436 = vmatprep.subr.mxu0 0.0
  %4437 = vmatpush1.msra.mxu0 %v4269
  %4438 = vmatprep.subr.mxu0 0.0
  %4439 = vmatpush1.msra.mxu0 %v4270
  %4440 = vmatprep.subr.mxu0 0.0
  %4441 = vmatpush1.msra.mxu0 %v4271
  %4442 = vmatprep.subr.mxu0 0.0
  %4443 = vmatpush1.msra.mxu0 %v4272
  %4444 = vmatprep.subr.mxu0 0.0
  %4445 = vmatpush1.msra.mxu0 %v4273
  %4446 = vmatprep.subr.mxu0 0.0
  %4447 = vmatpush1.msra.mxu0 %v4274
  %4448 = vmatprep.subr.mxu0 0.0
  %4449 = vmatpush1.msra.mxu0 %v4275
  %4450 = vmatprep.subr.mxu0 0.0
  %4451 = vmatpush1.msra.mxu0 %v4276
  %4452 = vmatprep.subr.mxu0 0.0
  %4453 = vmatpush1.msra.mxu0 %v4277
  %4454 = vmatprep.subr.mxu0 0.0
  %4455 = vmatpush1.msra.mxu0 %v4278
  %4456 = vmatprep.subr.mxu0 0.0
  %4457 = vmatpush1.msra.mxu0 %v4279
  %4458 = vmatprep.subr.mxu0 0.0
  %4459 = vmatpush1.msra.mxu0 %v4280
  %4460 = vmatprep.subr.mxu0 0.0
  %4461 = vmatpush1.msra.mxu0 %v4281
  %4462 = vmatprep.mubr.f32.mxu0 %v3738
  %4463 = vmatmul.mubr.f32.gmra.mrb[0].mxu0 %v3674
  %v4464 = vpop.f32.mrb[0].mxu0
  %v4465 = vadd.f32 %v4397, %v4464
  %v4466 = vpop.f32.mrb[0].mxu0
  %4467 = vmatprep.mubr.f32.mxu0 %v3739
  %4468 = vmatmul.mubr.f32.gmra.mrb[0].mxu0 %v3675
  %v4469 = vpop.f32.mrb[0].mxu0
  %v4470 = vadd.f32 %v4397, %v4469
  %v4471 = vpop.f32.mrb[0].mxu0
  %4472 = vmatprep.mubr.f32.mxu0 %v3740
  %4473 = vmatmul.mubr.f32.gmra.mrb[0].mxu0 %v3676
  %v4474 = vpop.f32.mrb[0].mxu0
  %v4475 = vadd.f32 %v4397, %v4474
  %v4476 = vpop.f32.mrb[0].mxu0
  %4477 = vmatprep.mubr.f32.mxu0 %v3741
  %4478 = vmatmul.mubr.f32.gmra.mrb[0].mxu0 %v3677
  %v4479 = vpop.f32.mrb[0].mxu0
  %v4480 = vadd.f32 %v4397, %v4479
  %v4481 = vpop.f32.mrb[0].mxu0
  %4482 = vmatprep.mubr.f32.mxu0 %v3742
  %4483 = vmatmul.mubr.f32.gmra.mrb[0].mxu0 %v3678
  %v4484 = vpop.f32.mrb[0].mxu0
  %v4485 = vadd.f32 %v4397, %v4484
  %v4486 = vpop.f32.mrb[0].mxu0
  %4487 = vmatprep.mubr.f32.mxu0 %v3743
  %4488 = vmatmul.mubr.f32.gmra.mrb[0].mxu0 %v3679
  %v4489 = vpop.f32.mrb[0].mxu0
  %v4490 = vadd.f32 %v4397, %v4489
  %v4491 = vpop.f32.mrb[0].mxu0
  %4492 = vmatprep.mubr.f32.mxu0 %v3744
  %4493 = vmatmul.mubr.f32.gmra.mrb[0].mxu0 %v3680
  %v4494 = vpop.f32.mrb[0].mxu0
  %v4495 = vadd.f32 %v4397, %v4494
  %v4496 = vpop.f32.mrb[0].mxu0
  %4497 = vmatprep.mubr.f32.mxu0 %v3745
  %4498 = vmatmul.mubr.f32.gmra.mrb[0].mxu0 %v3681
  %v4499 = vpop.f32.mrb[0].mxu0
  %v4500 = vadd.f32 %v4397, %v4499
  %v4501 = vpop.f32.mrb[0].mxu0
  %4502 = vmatprep.mubr.f32.mxu0 %v3746
  %4503 = vmatmul.mubr.f32.gmra.mrb[0].mxu0 %v3682
  %v4504 = vpop.f32.mrb[0].mxu0
  %v4505 = vadd.f32 %v4397, %v4504
  %v4506 = vpop.f32.mrb[0].mxu0
  %4507 = vmatprep.mubr.f32.mxu0 %v3747
  %4508 = vmatmul.mubr.f32.gmra.mrb[0].mxu0 %v3683
  %v4509 = vpop.f32.mrb[0].mxu0
  %v4510 = vadd.f32 %v4397, %v4509
  %v4511 = vpop.f32.mrb[0].mxu0
  %4512 = vmatprep.mubr.f32.mxu0 %v3748
  %4513 = vmatmul.mubr.f32.gmra.mrb[0].mxu0 %v3684
  %v4514 = vpop.f32.mrb[0].mxu0
  %v4515 = vadd.f32 %v4397, %v4514
  %v4516 = vpop.f32.mrb[0].mxu0
  %4517 = vmatprep.mubr.f32.mxu0 %v3749
  %4518 = vmatmul.mubr.f32.gmra.mrb[0].mxu0 %v3685
  %v4519 = vpop.f32.mrb[0].mxu0
  %v4520 = vadd.f32 %v4397, %v4519
  %v4521 = vpop.f32.mrb[0].mxu0
  %4522 = vmatprep.mubr.f32.mxu0 %v3750
  %4523 = vmatmul.mubr.f32.gmra.mrb[0].mxu0 %v3686
  %v4524 = vpop.f32.mrb[0].mxu0
  %v4525 = vadd.f32 %v4397, %v4524
  %v4526 = vpop.f32.mrb[0].mxu0
  %4527 = vmatprep.mubr.f32.mxu0 %v3751
  %4528 = vmatmul.mubr.f32.gmra.mrb[0].mxu0 %v3687
  %v4529 = vpop.f32.mrb[0].mxu0
  %v4530 = vadd.f32 %v4397, %v4529
  %v4531 = vpop.f32.mrb[0].mxu0
  %4532 = vmatprep.mubr.f32.mxu0 %v3752
  %4533 = vmatmul.mubr.f32.gmra.mrb[0].mxu0 %v3688
  %v4534 = vpop.f32.mrb[0].mxu0
  %v4535 = vadd.f32 %v4397, %v4534
  %v4536 = vpop.f32.mrb[0].mxu0
  %4537 = vmatprep.mubr.f32.mxu0 %v3753
  %4538 = vmatmul.mubr.f32.gmra.mrb[0].mxu0 %v3689
  %v4539 = vpop.f32.mrb[0].mxu0
  %v4540 = vadd.f32 %v4397, %v4539
  %v4541 = vpop.f32.mrb[0].mxu0
  %4542 = vmatprep.mubr.f32.mxu0 %v3754
  %4543 = vmatmul.mubr.f32.gmra.mrb[0].mxu0 %v3690
  %v4544 = vpop.f32.mrb[0].mxu0
  %v4545 = vadd.f32 %v4397, %v4544
  %v4546 = vpop.f32.mrb[0].mxu0
  %4547 = vmatprep.mubr.f32.mxu0 %v3755
  %4548 = vmatmul.mubr.f32.gmra.mrb[0].mxu0 %v3691
  %v4549 = vpop.f32.mrb[0].mxu0
  %v4550 = vadd.f32 %v4397, %v4549
  %v4551 = vpop.f32.mrb[0].mxu0
  %4552 = vmatprep.mubr.f32.mxu0 %v3756
  %4553 = vmatmul.mubr.f32.gmra.mrb[0].mxu0 %v3692
  %v4554 = vpop.f32.mrb[0].mxu0
  %v4555 = vadd.f32 %v4397, %v4554
  %v4556 = vpop.f32.mrb[0].mxu0
  %4557 = vmatprep.mubr.f32.mxu0 %v3757
  %4558 = vmatmul.mubr.f32.gmra.mrb[0].mxu0 %v3693
  %v4559 = vpop.f32.mrb[0].mxu0
  %v4560 = vadd.f32 %v4397, %v4559
  %v4561 = vpop.f32.mrb[0].mxu0
  %4562 = vmatprep.mubr.f32.mxu0 %v3758
  %4563 = vmatmul.mubr.f32.gmra.mrb[0].mxu0 %v3694
  %v4564 = vpop.f32.mrb[0].mxu0
  %v4565 = vadd.f32 %v4397, %v4564
  %v4566 = vpop.f32.mrb[0].mxu0
  %4567 = vmatprep.mubr.f32.mxu0 %v3759
  %4568 = vmatmul.mubr.f32.gmra.mrb[0].mxu0 %v3695
  %v4569 = vpop.f32.mrb[0].mxu0
  %v4570 = vadd.f32 %v4397, %v4569
  %v4571 = vpop.f32.mrb[0].mxu0
  %4572 = vmatprep.mubr.f32.mxu0 %v3760
  %4573 = vmatmul.mubr.f32.gmra.mrb[0].mxu0 %v3696
  %v4574 = vpop.f32.mrb[0].mxu0
  %v4575 = vadd.f32 %v4397, %v4574
  %v4576 = vpop.f32.mrb[0].mxu0
  %4577 = vmatprep.mubr.f32.mxu0 %v3761
  %4578 = vmatmul.mubr.f32.gmra.mrb[0].mxu0 %v3697
  %v4579 = vpop.f32.mrb[0].mxu0
  %v4580 = vadd.f32 %v4397, %v4579
  %v4581 = vpop.f32.mrb[0].mxu0
  %4582 = vmatprep.mubr.f32.mxu0 %v3762
  %4583 = vmatmul.mubr.f32.gmra.mrb[0].mxu0 %v3698
  %v4584 = vpop.f32.mrb[0].mxu0
  %v4585 = vadd.f32 %v4397, %v4584
  %v4586 = vpop.f32.mrb[0].mxu0
  %4587 = vmatprep.mubr.f32.mxu0 %v3763
  %4588 = vmatmul.mubr.f32.gmra.mrb[0].mxu0 %v3699
  %v4589 = vpop.f32.mrb[0].mxu0
  %v4590 = vadd.f32 %v4397, %v4589
  %v4591 = vpop.f32.mrb[0].mxu0
  %4592 = vmatprep.mubr.f32.mxu0 %v3764
  %4593 = vmatmul.mubr.f32.gmra.mrb[0].mxu0 %v3700
  %v4594 = vpop.f32.mrb[0].mxu0
  %v4595 = vadd.f32 %v4397, %v4594
  %v4596 = vpop.f32.mrb[0].mxu0
  %4597 = vmatprep.mubr.f32.mxu0 %v3765
  %4598 = vmatmul.mubr.f32.gmra.mrb[0].mxu0 %v3701
  %v4599 = vpop.f32.mrb[0].mxu0
  %v4600 = vadd.f32 %v4397, %v4599
  %v4601 = vpop.f32.mrb[0].mxu0
  %4602 = vmatprep.mubr.f32.mxu0 %v3766
  %4603 = vmatmul.mubr.f32.gmra.mrb[0].mxu0 %v3702
  %v4604 = vpop.f32.mrb[0].mxu0
  %v4605 = vadd.f32 %v4397, %v4604
  %v4606 = vpop.f32.mrb[0].mxu0
  %4607 = vmatprep.mubr.f32.mxu0 %v3767
  %4608 = vmatmul.mubr.f32.gmra.mrb[0].mxu0 %v3703
  %v4609 = vpop.f32.mrb[0].mxu0
  %v4610 = vadd.f32 %v4397, %v4609
  %v4611 = vpop.f32.mrb[0].mxu0
  %4612 = vmatprep.mubr.f32.mxu0 %v3768
  %4613 = vmatmul.mubr.f32.gmra.mrb[0].mxu0 %v3704
  %v4614 = vpop.f32.mrb[0].mxu0
  %v4615 = vadd.f32 %v4397, %v4614
  %v4616 = vpop.f32.mrb[0].mxu0
  %4617 = vmatprep.mubr.f32.mxu0 %v3769
  %4618 = vmatmul.mubr.f32.gmra.mrb[0].mxu0 %v3705
  %v4619 = vpop.f32.mrb[0].mxu0
  %v4620 = vadd.f32 %v4397, %v4619
  %v4621 = vpop.f32.mrb[0].mxu0
  %4622 = vmatprep.mubr.f32.mxu0 %v3770
  %4623 = vmatmul.mubr.f32.gmra.mrb[0].mxu0 %v3706
  %v4624 = vpop.f32.mrb[0].mxu0
  %v4625 = vadd.f32 %v4397, %v4624
  %v4626 = vpop.f32.mrb[0].mxu0
  %4627 = vmatprep.mubr.f32.mxu0 %v3771
  %4628 = vmatmul.mubr.f32.gmra.mrb[0].mxu0 %v3707
  %v4629 = vpop.f32.mrb[0].mxu0
  %v4630 = vadd.f32 %v4397, %v4629
  %v4631 = vpop.f32.mrb[0].mxu0
  %4632 = vmatprep.mubr.f32.mxu0 %v3772
  %4633 = vmatmul.mubr.f32.gmra.mrb[0].mxu0 %v3708
  %v4634 = vpop.f32.mrb[0].mxu0
  %v4635 = vadd.f32 %v4397, %v4634
  %v4636 = vpop.f32.mrb[0].mxu0
  %4637 = vmatprep.mubr.f32.mxu0 %v3773
  %4638 = vmatmul.mubr.f32.gmra.mrb[0].mxu0 %v3709
  %v4639 = vpop.f32.mrb[0].mxu0
  %v4640 = vadd.f32 %v4397, %v4639
  %v4641 = vpop.f32.mrb[0].mxu0
  %4642 = vmatprep.mubr.f32.mxu0 %v3774
  %4643 = vmatmul.mubr.f32.gmra.mrb[0].mxu0 %v3710
  %v4644 = vpop.f32.mrb[0].mxu0
  %v4645 = vadd.f32 %v4397, %v4644
  %v4646 = vpop.f32.mrb[0].mxu0
  %4647 = vmatprep.mubr.f32.mxu0 %v3775
  %4648 = vmatmul.mubr.f32.gmra.mrb[0].mxu0 %v3711
  %v4649 = vpop.f32.mrb[0].mxu0
  %v4650 = vadd.f32 %v4397, %v4649
  %v4651 = vpop.f32.mrb[0].mxu0
  %4652 = vmatprep.mubr.f32.mxu0 %v3776
  %4653 = vmatmul.mubr.f32.gmra.mrb[0].mxu0 %v3712
  %v4654 = vpop.f32.mrb[0].mxu0
  %v4655 = vadd.f32 %v4397, %v4654
  %v4656 = vpop.f32.mrb[0].mxu0
  %4657 = vmatprep.mubr.f32.mxu0 %v3777
  %4658 = vmatmul.mubr.f32.gmra.mrb[0].mxu0 %v3713
  %v4659 = vpop.f32.mrb[0].mxu0
  %v4660 = vadd.f32 %v4397, %v4659
  %v4661 = vpop.f32.mrb[0].mxu0
  %4662 = vmatprep.mubr.f32.mxu0 %v3778
  %4663 = vmatmul.mubr.f32.gmra.mrb[0].mxu0 %v3714
  %v4664 = vpop.f32.mrb[0].mxu0
  %v4665 = vadd.f32 %v4397, %v4664
  %v4666 = vpop.f32.mrb[0].mxu0
  %4667 = vmatprep.mubr.f32.mxu0 %v3779
  %4668 = vmatmul.mubr.f32.gmra.mrb[0].mxu0 %v3715
  %v4669 = vpop.f32.mrb[0].mxu0
  %v4670 = vadd.f32 %v4397, %v4669
  %v4671 = vpop.f32.mrb[0].mxu0
  %4672 = vmatprep.mubr.f32.mxu0 %v3780
  %4673 = vmatmul.mubr.f32.gmra.mrb[0].mxu0 %v3716
  %v4674 = vpop.f32.mrb[0].mxu0
  %v4675 = vadd.f32 %v4397, %v4674
  %v4676 = vpop.f32.mrb[0].mxu0
  %4677 = vmatprep.mubr.f32.mxu0 %v3781
  %4678 = vmatmul.mubr.f32.gmra.mrb[0].mxu0 %v3717
  %v4679 = vpop.f32.mrb[0].mxu0
  %v4680 = vadd.f32 %v4397, %v4679
  %v4681 = vpop.f32.mrb[0].mxu0
  %4682 = vmatprep.mubr.f32.mxu0 %v3782
  %4683 = vmatmul.mubr.f32.gmra.mrb[0].mxu0 %v3718
  %v4684 = vpop.f32.mrb[0].mxu0
  %v4685 = vadd.f32 %v4397, %v4684
  %v4686 = vpop.f32.mrb[0].mxu0
  %4687 = vmatprep.mubr.f32.mxu0 %v3783
  %4688 = vmatmul.mubr.f32.gmra.mrb[0].mxu0 %v3719
  %v4689 = vpop.f32.mrb[0].mxu0
  %v4690 = vadd.f32 %v4397, %v4689
  %v4691 = vpop.f32.mrb[0].mxu0
  %4692 = vmatprep.mubr.f32.mxu0 %v3784
  %4693 = vmatmul.mubr.f32.gmra.mrb[0].mxu0 %v3720
  %v4694 = vpop.f32.mrb[0].mxu0
  %v4695 = vadd.f32 %v4397, %v4694
  %v4696 = vpop.f32.mrb[0].mxu0
  %4697 = vmatprep.mubr.f32.mxu0 %v3785
  %4698 = vmatmul.mubr.f32.gmra.mrb[0].mxu0 %v3721
  %v4699 = vpop.f32.mrb[0].mxu0
  %v4700 = vadd.f32 %v4397, %v4699
  %v4701 = vpop.f32.mrb[0].mxu0
  %4702 = vmatprep.mubr.f32.mxu0 %v3786
  %4703 = vmatmul.mubr.f32.gmra.mrb[0].mxu0 %v3722
  %v4704 = vpop.f32.mrb[0].mxu0
  %v4705 = vadd.f32 %v4397, %v4704
  %v4706 = vpop.f32.mrb[0].mxu0
  %4707 = vmatprep.mubr.f32.mxu0 %v3787
  %4708 = vmatmul.mubr.f32.gmra.mrb[0].mxu0 %v3723
  %v4709 = vpop.f32.mrb[0].mxu0
  %v4710 = vadd.f32 %v4397, %v4709
  %v4711 = vpop.f32.mrb[0].mxu0
  %4712 = vmatprep.mubr.f32.mxu0 %v3788
  %4713 = vmatmul.mubr.f32.gmra.mrb[0].mxu0 %v3724
  %v4714 = vpop.f32.mrb[0].mxu0
  %v4715 = vadd.f32 %v4397, %v4714
  %v4716 = vpop.f32.mrb[0].mxu0
  %4717 = vmatprep.mubr.f32.mxu0 %v3789
  %4718 = vmatmul.mubr.f32.gmra.mrb[0].mxu0 %v3725
  %v4719 = vpop.f32.mrb[0].mxu0
  %v4720 = vadd.f32 %v4397, %v4719
  %v4721 = vpop.f32.mrb[0].mxu0
  %4722 = vmatprep.mubr.f32.mxu0 %v3790
  %4723 = vmatmul.mubr.f32.gmra.mrb[0].mxu0 %v3726
  %v4724 = vpop.f32.mrb[0].mxu0
  %v4725 = vadd.f32 %v4397, %v4724
  %v4726 = vpop.f32.mrb[0].mxu0
  %4727 = vmatprep.mubr.f32.mxu0 %v3791
  %4728 = vmatmul.mubr.f32.gmra.mrb[0].mxu0 %v3727
  %v4729 = vpop.f32.mrb[0].mxu0
  %v4730 = vadd.f32 %v4397, %v4729
  %v4731 = vpop.f32.mrb[0].mxu0
  %4732 = vmatprep.mubr.f32.mxu0 %v3792
  %4733 = vmatmul.mubr.f32.gmra.mrb[0].mxu0 %v3728
  %v4734 = vpop.f32.mrb[0].mxu0
  %v4735 = vadd.f32 %v4397, %v4734
  %v4736 = vpop.f32.mrb[0].mxu0
  %4737 = vmatprep.mubr.f32.mxu0 %v3793
  %4738 = vmatmul.mubr.f32.gmra.mrb[0].mxu0 %v3729
  %v4739 = vpop.f32.mrb[0].mxu0
  %v4740 = vadd.f32 %v4397, %v4739
  %v4741 = vpop.f32.mrb[0].mxu0
  %4742 = vmatprep.mubr.f32.mxu0 %v3794
  %4743 = vmatmul.mubr.f32.gmra.mrb[0].mxu0 %v3730
  %v4744 = vpop.f32.mrb[0].mxu0
  %v4745 = vadd.f32 %v4397, %v4744
  %v4746 = vpop.f32.mrb[0].mxu0
  %4747 = vmatprep.mubr.f32.mxu0 %v3795
  %4748 = vmatmul.mubr.f32.gmra.mrb[0].mxu0 %v3731
  %v4749 = vpop.f32.mrb[0].mxu0
  %v4750 = vadd.f32 %v4397, %v4749
  %v4751 = vpop.f32.mrb[0].mxu0
  %4752 = vmatprep.mubr.f32.mxu0 %v3796
  %4753 = vmatmul.mubr.f32.gmra.mrb[0].mxu0 %v3732
  %v4754 = vpop.f32.mrb[0].mxu0
  %v4755 = vadd.f32 %v4397, %v4754
  %v4756 = vpop.f32.mrb[0].mxu0
  %4757 = vmatprep.mubr.f32.mxu0 %v3797
  %4758 = vmatmul.mubr.f32.gmra.mrb[0].mxu0 %v3733
  %v4759 = vpop.f32.mrb[0].mxu0
  %v4760 = vadd.f32 %v4397, %v4759
  %v4761 = vpop.f32.mrb[0].mxu0
  %4762 = vmatprep.mubr.f32.mxu0 %v3798
  %4763 = vmatmul.mubr.f32.gmra.mrb[0].mxu0 %v3734
  %v4764 = vpop.f32.mrb[0].mxu0
  %v4765 = vadd.f32 %v4397, %v4764
  %v4766 = vpop.f32.mrb[0].mxu0
  %4767 = vmatprep.mubr.f32.mxu0 %v3799
  %4768 = vmatmul.mubr.f32.gmra.mrb[0].mxu0 %v3735
  %v4769 = vpop.f32.mrb[0].mxu0
  %v4770 = vadd.f32 %v4397, %v4769
  %v4771 = vpop.f32.mrb[0].mxu0
  %4772 = vmatprep.mubr.f32.mxu0 %v3800
  %4773 = vmatmul.mubr.f32.gmra.mrb[0].mxu0 %v3736
  %v4774 = vpop.f32.mrb[0].mxu0
  %v4775 = vadd.f32 %v4397, %v4774
  %v4776 = vpop.f32.mrb[0].mxu0
  %4777 = vmatprep.mubr.f32.mxu0 %v3801
  %4778 = vmatmul.mubr.f32.gmra.mrb[0].mxu0 %v3737
  %v4779 = vpop.f32.mrb[0].mxu0
  %v4780 = vadd.f32 %v4397, %v4779
  %v4781 = vpop.f32.mrb[0].mxu0
  %4782 = vdwg.mxu0
  %4783 = vmatprep.subr.mxu0 0.0
  %4784 = vmatpush1.msra.mxu0 %v4282
  %4785 = vmatprep.subr.mxu0 0.0
  %4786 = vmatpush1.msra.mxu0 %v4283
  %4787 = vmatprep.subr.mxu0 0.0
  %4788 = vmatpush1.msra.mxu0 %v4284
  %4789 = vmatprep.subr.mxu0 0.0
  %4790 = vmatpush1.msra.mxu0 %v4285
  %4791 = vmatprep.subr.mxu0 0.0
  %4792 = vmatpush1.msra.mxu0 %v4286
  %4793 = vmatprep.subr.mxu0 0.0
  %4794 = vmatpush1.msra.mxu0 %v4287
  %4795 = vmatprep.subr.mxu0 0.0
  %4796 = vmatpush1.msra.mxu0 %v4288
  %4797 = vmatprep.subr.mxu0 0.0
  %4798 = vmatpush1.msra.mxu0 %v4289
  %4799 = vmatprep.subr.mxu0 0.0
  %4800 = vmatpush1.msra.mxu0 %v4290
  %4801 = vmatprep.subr.mxu0 0.0
  %4802 = vmatpush1.msra.mxu0 %v4291
  %4803 = vmatprep.subr.mxu0 0.0
  %4804 = vmatpush1.msra.mxu0 %v4292
  %4805 = vmatprep.subr.mxu0 0.0
  %4806 = vmatpush1.msra.mxu0 %v4293
  %4807 = vmatprep.subr.mxu0 0.0
  %4808 = vmatpush1.msra.mxu0 %v4294
  %4809 = vmatprep.subr.mxu0 0.0
  %4810 = vmatpush1.msra.mxu0 %v4295
  %4811 = vmatprep.subr.mxu0 0.0
  %4812 = vmatpush1.msra.mxu0 %v4296
  %4813 = vmatprep.subr.mxu0 0.0
  %4814 = vmatpush1.msra.mxu0 %v4297
  %4815 = vmatprep.subr.mxu0 0.0
  %4816 = vmatpush1.msra.mxu0 %v4298
  %4817 = vmatprep.subr.mxu0 0.0
  %4818 = vmatpush1.msra.mxu0 %v4299
  %4819 = vmatprep.subr.mxu0 0.0
  %4820 = vmatpush1.msra.mxu0 %v4300
  %4821 = vmatprep.subr.mxu0 0.0
  %4822 = vmatpush1.msra.mxu0 %v4301
  %4823 = vmatprep.subr.mxu0 0.0
  %4824 = vmatpush1.msra.mxu0 %v4302
  %4825 = vmatprep.subr.mxu0 0.0
  %4826 = vmatpush1.msra.mxu0 %v4303
  %4827 = vmatprep.subr.mxu0 0.0
  %4828 = vmatpush1.msra.mxu0 %v4304
  %4829 = vmatprep.subr.mxu0 0.0
  %4830 = vmatpush1.msra.mxu0 %v4305
  %4831 = vmatprep.subr.mxu0 0.0
  %4832 = vmatpush1.msra.mxu0 %v4306
  %4833 = vmatprep.subr.mxu0 0.0
  %4834 = vmatpush1.msra.mxu0 %v4307
  %4835 = vmatprep.subr.mxu0 0.0
  %4836 = vmatpush1.msra.mxu0 %v4308
  %4837 = vmatprep.subr.mxu0 0.0
  %4838 = vmatpush1.msra.mxu0 %v4309
  %4839 = vmatprep.subr.mxu0 0.0
  %4840 = vmatpush1.msra.mxu0 %v4310
  %4841 = vmatprep.subr.mxu0 0.0
  %4842 = vmatpush1.msra.mxu0 %v4311
  %4843 = vmatprep.subr.mxu0 0.0
  %4844 = vmatpush1.msra.mxu0 %v4312
  %4845 = vmatprep.subr.mxu0 0.0
  %4846 = vmatpush1.msra.mxu0 %v4313
  %4847 = vmatprep.mubr.f32.mxu0 %v3866
  %4848 = vmatmul.mubr.f32.gmra.mrb[0].mxu0 %v3802
  %v4849 = vpop.f32.mrb[0].mxu0
  %v4850 = vadd.f32 %v4465, %v4849
  %v4851 = vpop.f32.mrb[0].mxu0
  %4852 = vmatprep.mubr.f32.mxu0 %v3867
  %4853 = vmatmul.mubr.f32.gmra.mrb[0].mxu0 %v3803
  %v4854 = vpop.f32.mrb[0].mxu0
  %v4855 = vadd.f32 %v4470, %v4854
  %v4856 = vpop.f32.mrb[0].mxu0
  %4857 = vmatprep.mubr.f32.mxu0 %v3868
  %4858 = vmatmul.mubr.f32.gmra.mrb[0].mxu0 %v3804
  %v4859 = vpop.f32.mrb[0].mxu0
  %v4860 = vadd.f32 %v4475, %v4859
  %v4861 = vpop.f32.mrb[0].mxu0
  %4862 = vmatprep.mubr.f32.mxu0 %v3869
  %4863 = vmatmul.mubr.f32.gmra.mrb[0].mxu0 %v3805
  %v4864 = vpop.f32.mrb[0].mxu0
  %v4865 = vadd.f32 %v4480, %v4864
  %v4866 = vpop.f32.mrb[0].mxu0
  %4867 = vmatprep.mubr.f32.mxu0 %v3870
  %4868 = vmatmul.mubr.f32.gmra.mrb[0].mxu0 %v3806
  %v4869 = vpop.f32.mrb[0].mxu0
  %v4870 = vadd.f32 %v4485, %v4869
  %v4871 = vpop.f32.mrb[0].mxu0
  %4872 = vmatprep.mubr.f32.mxu0 %v3871
  %4873 = vmatmul.mubr.f32.gmra.mrb[0].mxu0 %v3807
  %v4874 = vpop.f32.mrb[0].mxu0
  %v4875 = vadd.f32 %v4490, %v4874
  %v4876 = vpop.f32.mrb[0].mxu0
  %4877 = vmatprep.mubr.f32.mxu0 %v3872
  %4878 = vmatmul.mubr.f32.gmra.mrb[0].mxu0 %v3808
  %v4879 = vpop.f32.mrb[0].mxu0
  %v4880 = vadd.f32 %v4495, %v4879
  %v4881 = vpop.f32.mrb[0].mxu0
  %4882 = vmatprep.mubr.f32.mxu0 %v3873
  %4883 = vmatmul.mubr.f32.gmra.mrb[0].mxu0 %v3809
  %v4884 = vpop.f32.mrb[0].mxu0
  %v4885 = vadd.f32 %v4500, %v4884
  %v4886 = vpop.f32.mrb[0].mxu0
  %4887 = vmatprep.mubr.f32.mxu0 %v3874
  %4888 = vmatmul.mubr.f32.gmra.mrb[0].mxu0 %v3810
  %v4889 = vpop.f32.mrb[0].mxu0
  %v4890 = vadd.f32 %v4505, %v4889
  %v4891 = vpop.f32.mrb[0].mxu0
  %4892 = vmatprep.mubr.f32.mxu0 %v3875
  %4893 = vmatmul.mubr.f32.gmra.mrb[0].mxu0 %v3811
  %v4894 = vpop.f32.mrb[0].mxu0
  %v4895 = vadd.f32 %v4510, %v4894
  %v4896 = vpop.f32.mrb[0].mxu0
  %4897 = vmatprep.mubr.f32.mxu0 %v3876
  %4898 = vmatmul.mubr.f32.gmra.mrb[0].mxu0 %v3812
  %v4899 = vpop.f32.mrb[0].mxu0
  %v4900 = vadd.f32 %v4515, %v4899
  %v4901 = vpop.f32.mrb[0].mxu0
  %4902 = vmatprep.mubr.f32.mxu0 %v3877
  %4903 = vmatmul.mubr.f32.gmra.mrb[0].mxu0 %v3813
  %v4904 = vpop.f32.mrb[0].mxu0
  %v4905 = vadd.f32 %v4520, %v4904
  %v4906 = vpop.f32.mrb[0].mxu0
  %4907 = vmatprep.mubr.f32.mxu0 %v3878
  %4908 = vmatmul.mubr.f32.gmra.mrb[0].mxu0 %v3814
  %v4909 = vpop.f32.mrb[0].mxu0
  %v4910 = vadd.f32 %v4525, %v4909
  %v4911 = vpop.f32.mrb[0].mxu0
  %4912 = vmatprep.mubr.f32.mxu0 %v3879
  %4913 = vmatmul.mubr.f32.gmra.mrb[0].mxu0 %v3815
  %v4914 = vpop.f32.mrb[0].mxu0
  %v4915 = vadd.f32 %v4530, %v4914
  %v4916 = vpop.f32.mrb[0].mxu0
  %4917 = vmatprep.mubr.f32.mxu0 %v3880
  %4918 = vmatmul.mubr.f32.gmra.mrb[0].mxu0 %v3816
  %v4919 = vpop.f32.mrb[0].mxu0
  %v4920 = vadd.f32 %v4535, %v4919
  %v4921 = vpop.f32.mrb[0].mxu0
  %4922 = vmatprep.mubr.f32.mxu0 %v3881
  %4923 = vmatmul.mubr.f32.gmra.mrb[0].mxu0 %v3817
  %v4924 = vpop.f32.mrb[0].mxu0
  %v4925 = vadd.f32 %v4540, %v4924
  %v4926 = vpop.f32.mrb[0].mxu0
  %4927 = vmatprep.mubr.f32.mxu0 %v3882
  %4928 = vmatmul.mubr.f32.gmra.mrb[0].mxu0 %v3818
  %v4929 = vpop.f32.mrb[0].mxu0
  %v4930 = vadd.f32 %v4545, %v4929
  %v4931 = vpop.f32.mrb[0].mxu0
  %4932 = vmatprep.mubr.f32.mxu0 %v3883
  %4933 = vmatmul.mubr.f32.gmra.mrb[0].mxu0 %v3819
  %v4934 = vpop.f32.mrb[0].mxu0
  %v4935 = vadd.f32 %v4550, %v4934
  %v4936 = vpop.f32.mrb[0].mxu0
  %4937 = vmatprep.mubr.f32.mxu0 %v3884
  %4938 = vmatmul.mubr.f32.gmra.mrb[0].mxu0 %v3820
  %v4939 = vpop.f32.mrb[0].mxu0
  %v4940 = vadd.f32 %v4555, %v4939
  %v4941 = vpop.f32.mrb[0].mxu0
  %4942 = vmatprep.mubr.f32.mxu0 %v3885
  %4943 = vmatmul.mubr.f32.gmra.mrb[0].mxu0 %v3821
  %v4944 = vpop.f32.mrb[0].mxu0
  %v4945 = vadd.f32 %v4560, %v4944
  %v4946 = vpop.f32.mrb[0].mxu0
  %4947 = vmatprep.mubr.f32.mxu0 %v3886
  %4948 = vmatmul.mubr.f32.gmra.mrb[0].mxu0 %v3822
  %v4949 = vpop.f32.mrb[0].mxu0
  %v4950 = vadd.f32 %v4565, %v4949
  %v4951 = vpop.f32.mrb[0].mxu0
  %4952 = vmatprep.mubr.f32.mxu0 %v3887
  %4953 = vmatmul.mubr.f32.gmra.mrb[0].mxu0 %v3823
  %v4954 = vpop.f32.mrb[0].mxu0
  %v4955 = vadd.f32 %v4570, %v4954
  %v4956 = vpop.f32.mrb[0].mxu0
  %4957 = vmatprep.mubr.f32.mxu0 %v3888
  %4958 = vmatmul.mubr.f32.gmra.mrb[0].mxu0 %v3824
  %v4959 = vpop.f32.mrb[0].mxu0
  %v4960 = vadd.f32 %v4575, %v4959
  %v4961 = vpop.f32.mrb[0].mxu0
  %4962 = vmatprep.mubr.f32.mxu0 %v3889
  %4963 = vmatmul.mubr.f32.gmra.mrb[0].mxu0 %v3825
  %v4964 = vpop.f32.mrb[0].mxu0
  %v4965 = vadd.f32 %v4580, %v4964
  %v4966 = vpop.f32.mrb[0].mxu0
  %4967 = vmatprep.mubr.f32.mxu0 %v3890
  %4968 = vmatmul.mubr.f32.gmra.mrb[0].mxu0 %v3826
  %v4969 = vpop.f32.mrb[0].mxu0
  %v4970 = vadd.f32 %v4585, %v4969
  %v4971 = vpop.f32.mrb[0].mxu0
  %4972 = vmatprep.mubr.f32.mxu0 %v3891
  %4973 = vmatmul.mubr.f32.gmra.mrb[0].mxu0 %v3827
  %v4974 = vpop.f32.mrb[0].mxu0
  %v4975 = vadd.f32 %v4590, %v4974
  %v4976 = vpop.f32.mrb[0].mxu0
  %4977 = vmatprep.mubr.f32.mxu0 %v3892
  %4978 = vmatmul.mubr.f32.gmra.mrb[0].mxu0 %v3828
  %v4979 = vpop.f32.mrb[0].mxu0
  %v4980 = vadd.f32 %v4595, %v4979
  %v4981 = vpop.f32.mrb[0].mxu0
  %4982 = vmatprep.mubr.f32.mxu0 %v3893
  %4983 = vmatmul.mubr.f32.gmra.mrb[0].mxu0 %v3829
  %v4984 = vpop.f32.mrb[0].mxu0
  %v4985 = vadd.f32 %v4600, %v4984
  %v4986 = vpop.f32.mrb[0].mxu0
  %4987 = vmatprep.mubr.f32.mxu0 %v3894
  %4988 = vmatmul.mubr.f32.gmra.mrb[0].mxu0 %v3830
  %v4989 = vpop.f32.mrb[0].mxu0
  %v4990 = vadd.f32 %v4605, %v4989
  %v4991 = vpop.f32.mrb[0].mxu0
  %4992 = vmatprep.mubr.f32.mxu0 %v3895
  %4993 = vmatmul.mubr.f32.gmra.mrb[0].mxu0 %v3831
  %v4994 = vpop.f32.mrb[0].mxu0
  %v4995 = vadd.f32 %v4610, %v4994
  %v4996 = vpop.f32.mrb[0].mxu0
  %4997 = vmatprep.mubr.f32.mxu0 %v3896
  %4998 = vmatmul.mubr.f32.gmra.mrb[0].mxu0 %v3832
  %v4999 = vpop.f32.mrb[0].mxu0
  %v5000 = vadd.f32 %v4615, %v4999
  %v5001 = vpop.f32.mrb[0].mxu0
  %5002 = vmatprep.mubr.f32.mxu0 %v3897
  %5003 = vmatmul.mubr.f32.gmra.mrb[0].mxu0 %v3833
  %v5004 = vpop.f32.mrb[0].mxu0
  %v5005 = vadd.f32 %v4620, %v5004
  %v5006 = vpop.f32.mrb[0].mxu0
  %5007 = vmatprep.mubr.f32.mxu0 %v3898
  %5008 = vmatmul.mubr.f32.gmra.mrb[0].mxu0 %v3834
  %v5009 = vpop.f32.mrb[0].mxu0
  %v5010 = vadd.f32 %v4625, %v5009
  %v5011 = vpop.f32.mrb[0].mxu0
  %5012 = vmatprep.mubr.f32.mxu0 %v3899
  %5013 = vmatmul.mubr.f32.gmra.mrb[0].mxu0 %v3835
  %v5014 = vpop.f32.mrb[0].mxu0
  %v5015 = vadd.f32 %v4630, %v5014
  %v5016 = vpop.f32.mrb[0].mxu0
  %5017 = vmatprep.mubr.f32.mxu0 %v3900
  %5018 = vmatmul.mubr.f32.gmra.mrb[0].mxu0 %v3836
  %v5019 = vpop.f32.mrb[0].mxu0
  %v5020 = vadd.f32 %v4635, %v5019
  %v5021 = vpop.f32.mrb[0].mxu0
  %5022 = vmatprep.mubr.f32.mxu0 %v3901
  %5023 = vmatmul.mubr.f32.gmra.mrb[0].mxu0 %v3837
  %v5024 = vpop.f32.mrb[0].mxu0
  %v5025 = vadd.f32 %v4640, %v5024
  %v5026 = vpop.f32.mrb[0].mxu0
  %5027 = vmatprep.mubr.f32.mxu0 %v3902
  %5028 = vmatmul.mubr.f32.gmra.mrb[0].mxu0 %v3838
  %v5029 = vpop.f32.mrb[0].mxu0
  %v5030 = vadd.f32 %v4645, %v5029
  %v5031 = vpop.f32.mrb[0].mxu0
  %5032 = vmatprep.mubr.f32.mxu0 %v3903
  %5033 = vmatmul.mubr.f32.gmra.mrb[0].mxu0 %v3839
  %v5034 = vpop.f32.mrb[0].mxu0
  %v5035 = vadd.f32 %v4650, %v5034
  %v5036 = vpop.f32.mrb[0].mxu0
  %5037 = vmatprep.mubr.f32.mxu0 %v3904
  %5038 = vmatmul.mubr.f32.gmra.mrb[0].mxu0 %v3840
  %v5039 = vpop.f32.mrb[0].mxu0
  %v5040 = vadd.f32 %v4655, %v5039
  %v5041 = vpop.f32.mrb[0].mxu0
  %5042 = vmatprep.mubr.f32.mxu0 %v3905
  %5043 = vmatmul.mubr.f32.gmra.mrb[0].mxu0 %v3841
  %v5044 = vpop.f32.mrb[0].mxu0
  %v5045 = vadd.f32 %v4660, %v5044
  %v5046 = vpop.f32.mrb[0].mxu0
  %5047 = vmatprep.mubr.f32.mxu0 %v3906
  %5048 = vmatmul.mubr.f32.gmra.mrb[0].mxu0 %v3842
  %v5049 = vpop.f32.mrb[0].mxu0
  %v5050 = vadd.f32 %v4665, %v5049
  %v5051 = vpop.f32.mrb[0].mxu0
  %5052 = vmatprep.mubr.f32.mxu0 %v3907
  %5053 = vmatmul.mubr.f32.gmra.mrb[0].mxu0 %v3843
  %v5054 = vpop.f32.mrb[0].mxu0
  %v5055 = vadd.f32 %v4670, %v5054
  %v5056 = vpop.f32.mrb[0].mxu0
  %5057 = vmatprep.mubr.f32.mxu0 %v3908
  %5058 = vmatmul.mubr.f32.gmra.mrb[0].mxu0 %v3844
  %v5059 = vpop.f32.mrb[0].mxu0
  %v5060 = vadd.f32 %v4675, %v5059
  %v5061 = vpop.f32.mrb[0].mxu0
  %5062 = vmatprep.mubr.f32.mxu0 %v3909
  %5063 = vmatmul.mubr.f32.gmra.mrb[0].mxu0 %v3845
  %v5064 = vpop.f32.mrb[0].mxu0
  %v5065 = vadd.f32 %v4680, %v5064
  %v5066 = vpop.f32.mrb[0].mxu0
  %5067 = vmatprep.mubr.f32.mxu0 %v3910
  %5068 = vmatmul.mubr.f32.gmra.mrb[0].mxu0 %v3846
  %v5069 = vpop.f32.mrb[0].mxu0
  %v5070 = vadd.f32 %v4685, %v5069
  %v5071 = vpop.f32.mrb[0].mxu0
  %5072 = vmatprep.mubr.f32.mxu0 %v3911
  %5073 = vmatmul.mubr.f32.gmra.mrb[0].mxu0 %v3847
  %v5074 = vpop.f32.mrb[0].mxu0
  %v5075 = vadd.f32 %v4690, %v5074
  %v5076 = vpop.f32.mrb[0].mxu0
  %5077 = vmatprep.mubr.f32.mxu0 %v3912
  %5078 = vmatmul.mubr.f32.gmra.mrb[0].mxu0 %v3848
  %v5079 = vpop.f32.mrb[0].mxu0
  %v5080 = vadd.f32 %v4695, %v5079
  %v5081 = vpop.f32.mrb[0].mxu0
  %5082 = vmatprep.mubr.f32.mxu0 %v3913
  %5083 = vmatmul.mubr.f32.gmra.mrb[0].mxu0 %v3849
  %v5084 = vpop.f32.mrb[0].mxu0
  %v5085 = vadd.f32 %v4700, %v5084
  %v5086 = vpop.f32.mrb[0].mxu0
  %5087 = vmatprep.mubr.f32.mxu0 %v3914
  %5088 = vmatmul.mubr.f32.gmra.mrb[0].mxu0 %v3850
  %v5089 = vpop.f32.mrb[0].mxu0
  %v5090 = vadd.f32 %v4705, %v5089
  %v5091 = vpop.f32.mrb[0].mxu0
  %5092 = vmatprep.mubr.f32.mxu0 %v3915
  %5093 = vmatmul.mubr.f32.gmra.mrb[0].mxu0 %v3851
  %v5094 = vpop.f32.mrb[0].mxu0
  %v5095 = vadd.f32 %v4710, %v5094
  %v5096 = vpop.f32.mrb[0].mxu0
  %5097 = vmatprep.mubr.f32.mxu0 %v3916
  %5098 = vmatmul.mubr.f32.gmra.mrb[0].mxu0 %v3852
  %v5099 = vpop.f32.mrb[0].mxu0
  %v5100 = vadd.f32 %v4715, %v5099
  %v5101 = vpop.f32.mrb[0].mxu0
  %5102 = vmatprep.mubr.f32.mxu0 %v3917
  %5103 = vmatmul.mubr.f32.gmra.mrb[0].mxu0 %v3853
  %v5104 = vpop.f32.mrb[0].mxu0
  %v5105 = vadd.f32 %v4720, %v5104
  %v5106 = vpop.f32.mrb[0].mxu0
  %5107 = vmatprep.mubr.f32.mxu0 %v3918
  %5108 = vmatmul.mubr.f32.gmra.mrb[0].mxu0 %v3854
  %v5109 = vpop.f32.mrb[0].mxu0
  %v5110 = vadd.f32 %v4725, %v5109
  %v5111 = vpop.f32.mrb[0].mxu0
  %5112 = vmatprep.mubr.f32.mxu0 %v3919
  %5113 = vmatmul.mubr.f32.gmra.mrb[0].mxu0 %v3855
  %v5114 = vpop.f32.mrb[0].mxu0
  %v5115 = vadd.f32 %v4730, %v5114
  %v5116 = vpop.f32.mrb[0].mxu0
  %5117 = vmatprep.mubr.f32.mxu0 %v3920
  %5118 = vmatmul.mubr.f32.gmra.mrb[0].mxu0 %v3856
  %v5119 = vpop.f32.mrb[0].mxu0
  %v5120 = vadd.f32 %v4735, %v5119
  %v5121 = vpop.f32.mrb[0].mxu0
  %5122 = vmatprep.mubr.f32.mxu0 %v3921
  %5123 = vmatmul.mubr.f32.gmra.mrb[0].mxu0 %v3857
  %v5124 = vpop.f32.mrb[0].mxu0
  %v5125 = vadd.f32 %v4740, %v5124
  %v5126 = vpop.f32.mrb[0].mxu0
  %5127 = vmatprep.mubr.f32.mxu0 %v3922
  %5128 = vmatmul.mubr.f32.gmra.mrb[0].mxu0 %v3858
  %v5129 = vpop.f32.mrb[0].mxu0
  %v5130 = vadd.f32 %v4745, %v5129
  %v5131 = vpop.f32.mrb[0].mxu0
  %5132 = vmatprep.mubr.f32.mxu0 %v3923
  %5133 = vmatmul.mubr.f32.gmra.mrb[0].mxu0 %v3859
  %v5134 = vpop.f32.mrb[0].mxu0
  %v5135 = vadd.f32 %v4750, %v5134
  %v5136 = vpop.f32.mrb[0].mxu0
  %5137 = vmatprep.mubr.f32.mxu0 %v3924
  %5138 = vmatmul.mubr.f32.gmra.mrb[0].mxu0 %v3860
  %v5139 = vpop.f32.mrb[0].mxu0
  %v5140 = vadd.f32 %v4755, %v5139
  %v5141 = vpop.f32.mrb[0].mxu0
  %5142 = vmatprep.mubr.f32.mxu0 %v3925
  %5143 = vmatmul.mubr.f32.gmra.mrb[0].mxu0 %v3861
  %v5144 = vpop.f32.mrb[0].mxu0
  %v5145 = vadd.f32 %v4760, %v5144
  %v5146 = vpop.f32.mrb[0].mxu0
  %5147 = vmatprep.mubr.f32.mxu0 %v3926
  %5148 = vmatmul.mubr.f32.gmra.mrb[0].mxu0 %v3862
  %v5149 = vpop.f32.mrb[0].mxu0
  %v5150 = vadd.f32 %v4765, %v5149
  %v5151 = vpop.f32.mrb[0].mxu0
  %5152 = vmatprep.mubr.f32.mxu0 %v3927
  %5153 = vmatmul.mubr.f32.gmra.mrb[0].mxu0 %v3863
  %v5154 = vpop.f32.mrb[0].mxu0
  %v5155 = vadd.f32 %v4770, %v5154
  %v5156 = vpop.f32.mrb[0].mxu0
  %5157 = vmatprep.mubr.f32.mxu0 %v3928
  %5158 = vmatmul.mubr.f32.gmra.mrb[0].mxu0 %v3864
  %v5159 = vpop.f32.mrb[0].mxu0
  %v5160 = vadd.f32 %v4775, %v5159
  %v5161 = vpop.f32.mrb[0].mxu0
  %5162 = vmatprep.mubr.f32.mxu0 %v3929
  %5163 = vmatmul.mubr.f32.gmra.mrb[0].mxu0 %v3865
  %v5164 = vpop.f32.mrb[0].mxu0
  %v5165 = vadd.f32 %v4780, %v5164
  %v5166 = vpop.f32.mrb[0].mxu0
  %5167 = vdwg.mxu0
  %5168 = vmatprep.subr.mxu0 0.0
  %5169 = vmatpush1.msra.mxu0 %v4314
  %5170 = vmatprep.subr.mxu0 0.0
  %5171 = vmatpush1.msra.mxu0 %v4315
  %5172 = vmatprep.subr.mxu0 0.0
  %5173 = vmatpush1.msra.mxu0 %v4316
  %5174 = vmatprep.subr.mxu0 0.0
  %5175 = vmatpush1.msra.mxu0 %v4317
  %5176 = vmatprep.subr.mxu0 0.0
  %5177 = vmatpush1.msra.mxu0 %v4318
  %5178 = vmatprep.subr.mxu0 0.0
  %5179 = vmatpush1.msra.mxu0 %v4319
  %5180 = vmatprep.subr.mxu0 0.0
  %5181 = vmatpush1.msra.mxu0 %v4320
  %5182 = vmatprep.subr.mxu0 0.0
  %5183 = vmatpush1.msra.mxu0 %v4321
  %5184 = vmatprep.subr.mxu0 0.0
  %5185 = vmatpush1.msra.mxu0 %v4322
  %5186 = vmatprep.subr.mxu0 0.0
  %5187 = vmatpush1.msra.mxu0 %v4323
  %5188 = vmatprep.subr.mxu0 0.0
  %5189 = vmatpush1.msra.mxu0 %v4324
  %5190 = vmatprep.subr.mxu0 0.0
  %5191 = vmatpush1.msra.mxu0 %v4325
  %5192 = vmatprep.subr.mxu0 0.0
  %5193 = vmatpush1.msra.mxu0 %v4326
  %5194 = vmatprep.subr.mxu0 0.0
  %5195 = vmatpush1.msra.mxu0 %v4327
  %5196 = vmatprep.subr.mxu0 0.0
  %5197 = vmatpush1.msra.mxu0 %v4328
  %5198 = vmatprep.subr.mxu0 0.0
  %5199 = vmatpush1.msra.mxu0 %v4329
  %5200 = vmatprep.subr.mxu0 0.0
  %5201 = vmatpush1.msra.mxu0 %v4330
  %5202 = vmatprep.subr.mxu0 0.0
  %5203 = vmatpush1.msra.mxu0 %v4331
  %5204 = vmatprep.subr.mxu0 0.0
  %5205 = vmatpush1.msra.mxu0 %v4332
  %5206 = vmatprep.subr.mxu0 0.0
  %5207 = vmatpush1.msra.mxu0 %v4333
  %5208 = vmatprep.subr.mxu0 0.0
  %5209 = vmatpush1.msra.mxu0 %v4334
  %5210 = vmatprep.subr.mxu0 0.0
  %5211 = vmatpush1.msra.mxu0 %v4335
  %5212 = vmatprep.subr.mxu0 0.0
  %5213 = vmatpush1.msra.mxu0 %v4336
  %5214 = vmatprep.subr.mxu0 0.0
  %5215 = vmatpush1.msra.mxu0 %v4337
  %5216 = vmatprep.subr.mxu0 0.0
  %5217 = vmatpush1.msra.mxu0 %v4338
  %5218 = vmatprep.subr.mxu0 0.0
  %5219 = vmatpush1.msra.mxu0 %v4339
  %5220 = vmatprep.subr.mxu0 0.0
  %5221 = vmatpush1.msra.mxu0 %v4340
  %5222 = vmatprep.subr.mxu0 0.0
  %5223 = vmatpush1.msra.mxu0 %v4341
  %5224 = vmatprep.subr.mxu0 0.0
  %5225 = vmatpush1.msra.mxu0 %v4342
  %5226 = vmatprep.subr.mxu0 0.0
  %5227 = vmatpush1.msra.mxu0 %v4343
  %5228 = vmatprep.subr.mxu0 0.0
  %5229 = vmatpush1.msra.mxu0 %v4344
  %5230 = vmatprep.subr.mxu0 0.0
  %5231 = vmatpush1.msra.mxu0 %v4345
  %5232 = vmatprep.mubr.f32.mxu0 %v3994
  %5233 = vmatmul.mubr.f32.gmra.mrb[0].mxu0 %v3930
  %v5234 = vpop.f32.mrb[0].mxu0
  %v5235 = vadd.f32 %v4850, %v5234
  %v5236 = vpop.f32.mrb[0].mxu0
  %5237 = vmatprep.mubr.f32.mxu0 %v3995
  %5238 = vmatmul.mubr.f32.gmra.mrb[0].mxu0 %v3931
  %v5239 = vpop.f32.mrb[0].mxu0
  %v5240 = vadd.f32 %v4855, %v5239
  %v5241 = vpop.f32.mrb[0].mxu0
  %5242 = vmatprep.mubr.f32.mxu0 %v3996
  %5243 = vmatmul.mubr.f32.gmra.mrb[0].mxu0 %v3932
  %v5244 = vpop.f32.mrb[0].mxu0
  %v5245 = vadd.f32 %v4860, %v5244
  %v5246 = vpop.f32.mrb[0].mxu0
  %5247 = vmatprep.mubr.f32.mxu0 %v3997
  %5248 = vmatmul.mubr.f32.gmra.mrb[0].mxu0 %v3933
  %v5249 = vpop.f32.mrb[0].mxu0
  %v5250 = vadd.f32 %v4865, %v5249
  %v5251 = vpop.f32.mrb[0].mxu0
  %5252 = vmatprep.mubr.f32.mxu0 %v3998
  %5253 = vmatmul.mubr.f32.gmra.mrb[0].mxu0 %v3934
  %v5254 = vpop.f32.mrb[0].mxu0
  %v5255 = vadd.f32 %v4870, %v5254
  %v5256 = vpop.f32.mrb[0].mxu0
  %5257 = vmatprep.mubr.f32.mxu0 %v3999
  %5258 = vmatmul.mubr.f32.gmra.mrb[0].mxu0 %v3935
  %v5259 = vpop.f32.mrb[0].mxu0
  %v5260 = vadd.f32 %v4875, %v5259
  %v5261 = vpop.f32.mrb[0].mxu0
  %5262 = vmatprep.mubr.f32.mxu0 %v4000
  %5263 = vmatmul.mubr.f32.gmra.mrb[0].mxu0 %v3936
  %v5264 = vpop.f32.mrb[0].mxu0
  %v5265 = vadd.f32 %v4880, %v5264
  %v5266 = vpop.f32.mrb[0].mxu0
  %5267 = vmatprep.mubr.f32.mxu0 %v4001
  %5268 = vmatmul.mubr.f32.gmra.mrb[0].mxu0 %v3937
  %v5269 = vpop.f32.mrb[0].mxu0
  %v5270 = vadd.f32 %v4885, %v5269
  %v5271 = vpop.f32.mrb[0].mxu0
  %5272 = vmatprep.mubr.f32.mxu0 %v4002
  %5273 = vmatmul.mubr.f32.gmra.mrb[0].mxu0 %v3938
  %v5274 = vpop.f32.mrb[0].mxu0
  %v5275 = vadd.f32 %v4890, %v5274
  %v5276 = vpop.f32.mrb[0].mxu0
  %5277 = vmatprep.mubr.f32.mxu0 %v4003
  %5278 = vmatmul.mubr.f32.gmra.mrb[0].mxu0 %v3939
  %v5279 = vpop.f32.mrb[0].mxu0
  %v5280 = vadd.f32 %v4895, %v5279
  %v5281 = vpop.f32.mrb[0].mxu0
  %5282 = vmatprep.mubr.f32.mxu0 %v4004
  %5283 = vmatmul.mubr.f32.gmra.mrb[0].mxu0 %v3940
  %v5284 = vpop.f32.mrb[0].mxu0
  %v5285 = vadd.f32 %v4900, %v5284
  %v5286 = vpop.f32.mrb[0].mxu0
  %5287 = vmatprep.mubr.f32.mxu0 %v4005
  %5288 = vmatmul.mubr.f32.gmra.mrb[0].mxu0 %v3941
  %v5289 = vpop.f32.mrb[0].mxu0
  %v5290 = vadd.f32 %v4905, %v5289
  %v5291 = vpop.f32.mrb[0].mxu0
  %5292 = vmatprep.mubr.f32.mxu0 %v4006
  %5293 = vmatmul.mubr.f32.gmra.mrb[0].mxu0 %v3942
  %v5294 = vpop.f32.mrb[0].mxu0
  %v5295 = vadd.f32 %v4910, %v5294
  %v5296 = vpop.f32.mrb[0].mxu0
  %5297 = vmatprep.mubr.f32.mxu0 %v4007
  %5298 = vmatmul.mubr.f32.gmra.mrb[0].mxu0 %v3943
  %v5299 = vpop.f32.mrb[0].mxu0
  %v5300 = vadd.f32 %v4915, %v5299
  %v5301 = vpop.f32.mrb[0].mxu0
  %5302 = vmatprep.mubr.f32.mxu0 %v4008
  %5303 = vmatmul.mubr.f32.gmra.mrb[0].mxu0 %v3944
  %v5304 = vpop.f32.mrb[0].mxu0
  %v5305 = vadd.f32 %v4920, %v5304
  %v5306 = vpop.f32.mrb[0].mxu0
  %5307 = vmatprep.mubr.f32.mxu0 %v4009
  %5308 = vmatmul.mubr.f32.gmra.mrb[0].mxu0 %v3945
  %v5309 = vpop.f32.mrb[0].mxu0
  %v5310 = vadd.f32 %v4925, %v5309
  %v5311 = vpop.f32.mrb[0].mxu0
  %5312 = vmatprep.mubr.f32.mxu0 %v4010
  %5313 = vmatmul.mubr.f32.gmra.mrb[0].mxu0 %v3946
  %v5314 = vpop.f32.mrb[0].mxu0
  %v5315 = vadd.f32 %v4930, %v5314
  %v5316 = vpop.f32.mrb[0].mxu0
  %5317 = vmatprep.mubr.f32.mxu0 %v4011
  %5318 = vmatmul.mubr.f32.gmra.mrb[0].mxu0 %v3947
  %v5319 = vpop.f32.mrb[0].mxu0
  %v5320 = vadd.f32 %v4935, %v5319
  %v5321 = vpop.f32.mrb[0].mxu0
  %5322 = vmatprep.mubr.f32.mxu0 %v4012
  %5323 = vmatmul.mubr.f32.gmra.mrb[0].mxu0 %v3948
  %v5324 = vpop.f32.mrb[0].mxu0
  %v5325 = vadd.f32 %v4940, %v5324
  %v5326 = vpop.f32.mrb[0].mxu0
  %5327 = vmatprep.mubr.f32.mxu0 %v4013
  %5328 = vmatmul.mubr.f32.gmra.mrb[0].mxu0 %v3949
  %v5329 = vpop.f32.mrb[0].mxu0
  %v5330 = vadd.f32 %v4945, %v5329
  %v5331 = vpop.f32.mrb[0].mxu0
  %5332 = vmatprep.mubr.f32.mxu0 %v4014
  %5333 = vmatmul.mubr.f32.gmra.mrb[0].mxu0 %v3950
  %v5334 = vpop.f32.mrb[0].mxu0
  %v5335 = vadd.f32 %v4950, %v5334
  %v5336 = vpop.f32.mrb[0].mxu0
  %5337 = vmatprep.mubr.f32.mxu0 %v4015
  %5338 = vmatmul.mubr.f32.gmra.mrb[0].mxu0 %v3951
  %v5339 = vpop.f32.mrb[0].mxu0
  %v5340 = vadd.f32 %v4955, %v5339
  %v5341 = vpop.f32.mrb[0].mxu0
  %5342 = vmatprep.mubr.f32.mxu0 %v4016
  %5343 = vmatmul.mubr.f32.gmra.mrb[0].mxu0 %v3952
  %v5344 = vpop.f32.mrb[0].mxu0
  %v5345 = vadd.f32 %v4960, %v5344
  %v5346 = vpop.f32.mrb[0].mxu0
  %5347 = vmatprep.mubr.f32.mxu0 %v4017
  %5348 = vmatmul.mubr.f32.gmra.mrb[0].mxu0 %v3953
  %v5349 = vpop.f32.mrb[0].mxu0
  %v5350 = vadd.f32 %v4965, %v5349
  %v5351 = vpop.f32.mrb[0].mxu0
  %5352 = vmatprep.mubr.f32.mxu0 %v4018
  %5353 = vmatmul.mubr.f32.gmra.mrb[0].mxu0 %v3954
  %v5354 = vpop.f32.mrb[0].mxu0
  %v5355 = vadd.f32 %v4970, %v5354
  %v5356 = vpop.f32.mrb[0].mxu0
  %5357 = vmatprep.mubr.f32.mxu0 %v4019
  %5358 = vmatmul.mubr.f32.gmra.mrb[0].mxu0 %v3955
  %v5359 = vpop.f32.mrb[0].mxu0
  %v5360 = vadd.f32 %v4975, %v5359
  %v5361 = vpop.f32.mrb[0].mxu0
  %5362 = vmatprep.mubr.f32.mxu0 %v4020
  %5363 = vmatmul.mubr.f32.gmra.mrb[0].mxu0 %v3956
  %v5364 = vpop.f32.mrb[0].mxu0
  %v5365 = vadd.f32 %v4980, %v5364
  %v5366 = vpop.f32.mrb[0].mxu0
  %5367 = vmatprep.mubr.f32.mxu0 %v4021
  %5368 = vmatmul.mubr.f32.gmra.mrb[0].mxu0 %v3957
  %v5369 = vpop.f32.mrb[0].mxu0
  %v5370 = vadd.f32 %v4985, %v5369
  %v5371 = vpop.f32.mrb[0].mxu0
  %5372 = vmatprep.mubr.f32.mxu0 %v4022
  %5373 = vmatmul.mubr.f32.gmra.mrb[0].mxu0 %v3958
  %v5374 = vpop.f32.mrb[0].mxu0
  %v5375 = vadd.f32 %v4990, %v5374
  %v5376 = vpop.f32.mrb[0].mxu0
  %5377 = vmatprep.mubr.f32.mxu0 %v4023
  %5378 = vmatmul.mubr.f32.gmra.mrb[0].mxu0 %v3959
  %v5379 = vpop.f32.mrb[0].mxu0
  %v5380 = vadd.f32 %v4995, %v5379
  %v5381 = vpop.f32.mrb[0].mxu0
  %5382 = vmatprep.mubr.f32.mxu0 %v4024
  %5383 = vmatmul.mubr.f32.gmra.mrb[0].mxu0 %v3960
  %v5384 = vpop.f32.mrb[0].mxu0
  %v5385 = vadd.f32 %v5000, %v5384
  %v5386 = vpop.f32.mrb[0].mxu0
  %5387 = vmatprep.mubr.f32.mxu0 %v4025
  %5388 = vmatmul.mubr.f32.gmra.mrb[0].mxu0 %v3961
  %v5389 = vpop.f32.mrb[0].mxu0
  %v5390 = vadd.f32 %v5005, %v5389
  %v5391 = vpop.f32.mrb[0].mxu0
  %5392 = vmatprep.mubr.f32.mxu0 %v4026
  %5393 = vmatmul.mubr.f32.gmra.mrb[0].mxu0 %v3962
  %v5394 = vpop.f32.mrb[0].mxu0
  %v5395 = vadd.f32 %v5010, %v5394
  %v5396 = vpop.f32.mrb[0].mxu0
  %5397 = vmatprep.mubr.f32.mxu0 %v4027
  %5398 = vmatmul.mubr.f32.gmra.mrb[0].mxu0 %v3963
  %v5399 = vpop.f32.mrb[0].mxu0
  %v5400 = vadd.f32 %v5015, %v5399
  %v5401 = vpop.f32.mrb[0].mxu0
  %5402 = vmatprep.mubr.f32.mxu0 %v4028
  %5403 = vmatmul.mubr.f32.gmra.mrb[0].mxu0 %v3964
  %v5404 = vpop.f32.mrb[0].mxu0
  %v5405 = vadd.f32 %v5020, %v5404
  %v5406 = vpop.f32.mrb[0].mxu0
  %5407 = vmatprep.mubr.f32.mxu0 %v4029
  %5408 = vmatmul.mubr.f32.gmra.mrb[0].mxu0 %v3965
  %v5409 = vpop.f32.mrb[0].mxu0
  %v5410 = vadd.f32 %v5025, %v5409
  %v5411 = vpop.f32.mrb[0].mxu0
  %5412 = vmatprep.mubr.f32.mxu0 %v4030
  %5413 = vmatmul.mubr.f32.gmra.mrb[0].mxu0 %v3966
  %v5414 = vpop.f32.mrb[0].mxu0
  %v5415 = vadd.f32 %v5030, %v5414
  %v5416 = vpop.f32.mrb[0].mxu0
  %5417 = vmatprep.mubr.f32.mxu0 %v4031
  %5418 = vmatmul.mubr.f32.gmra.mrb[0].mxu0 %v3967
  %v5419 = vpop.f32.mrb[0].mxu0
  %v5420 = vadd.f32 %v5035, %v5419
  %v5421 = vpop.f32.mrb[0].mxu0
  %5422 = vmatprep.mubr.f32.mxu0 %v4032
  %5423 = vmatmul.mubr.f32.gmra.mrb[0].mxu0 %v3968
  %v5424 = vpop.f32.mrb[0].mxu0
  %v5425 = vadd.f32 %v5040, %v5424
  %v5426 = vpop.f32.mrb[0].mxu0
  %5427 = vmatprep.mubr.f32.mxu0 %v4033
  %5428 = vmatmul.mubr.f32.gmra.mrb[0].mxu0 %v3969
  %v5429 = vpop.f32.mrb[0].mxu0
  %v5430 = vadd.f32 %v5045, %v5429
  %v5431 = vpop.f32.mrb[0].mxu0
  %5432 = vmatprep.mubr.f32.mxu0 %v4034
  %5433 = vmatmul.mubr.f32.gmra.mrb[0].mxu0 %v3970
  %v5434 = vpop.f32.mrb[0].mxu0
  %v5435 = vadd.f32 %v5050, %v5434
  %v5436 = vpop.f32.mrb[0].mxu0
  %5437 = vmatprep.mubr.f32.mxu0 %v4035
  %5438 = vmatmul.mubr.f32.gmra.mrb[0].mxu0 %v3971
  %v5439 = vpop.f32.mrb[0].mxu0
  %v5440 = vadd.f32 %v5055, %v5439
  %v5441 = vpop.f32.mrb[0].mxu0
  %5442 = vmatprep.mubr.f32.mxu0 %v4036
  %5443 = vmatmul.mubr.f32.gmra.mrb[0].mxu0 %v3972
  %v5444 = vpop.f32.mrb[0].mxu0
  %v5445 = vadd.f32 %v5060, %v5444
  %v5446 = vpop.f32.mrb[0].mxu0
  %5447 = vmatprep.mubr.f32.mxu0 %v4037
  %5448 = vmatmul.mubr.f32.gmra.mrb[0].mxu0 %v3973
  %v5449 = vpop.f32.mrb[0].mxu0
  %v5450 = vadd.f32 %v5065, %v5449
  %v5451 = vpop.f32.mrb[0].mxu0
  %5452 = vmatprep.mubr.f32.mxu0 %v4038
  %5453 = vmatmul.mubr.f32.gmra.mrb[0].mxu0 %v3974
  %v5454 = vpop.f32.mrb[0].mxu0
  %v5455 = vadd.f32 %v5070, %v5454
  %v5456 = vpop.f32.mrb[0].mxu0
  %5457 = vmatprep.mubr.f32.mxu0 %v4039
  %5458 = vmatmul.mubr.f32.gmra.mrb[0].mxu0 %v3975
  %v5459 = vpop.f32.mrb[0].mxu0
  %v5460 = vadd.f32 %v5075, %v5459
  %v5461 = vpop.f32.mrb[0].mxu0
  %5462 = vmatprep.mubr.f32.mxu0 %v4040
  %5463 = vmatmul.mubr.f32.gmra.mrb[0].mxu0 %v3976
  %v5464 = vpop.f32.mrb[0].mxu0
  %v5465 = vadd.f32 %v5080, %v5464
  %v5466 = vpop.f32.mrb[0].mxu0
  %5467 = vmatprep.mubr.f32.mxu0 %v4041
  %5468 = vmatmul.mubr.f32.gmra.mrb[0].mxu0 %v3977
  %v5469 = vpop.f32.mrb[0].mxu0
  %v5470 = vadd.f32 %v5085, %v5469
  %v5471 = vpop.f32.mrb[0].mxu0
  %5472 = vmatprep.mubr.f32.mxu0 %v4042
  %5473 = vmatmul.mubr.f32.gmra.mrb[0].mxu0 %v3978
  %v5474 = vpop.f32.mrb[0].mxu0
  %v5475 = vadd.f32 %v5090, %v5474
  %v5476 = vpop.f32.mrb[0].mxu0
  %5477 = vmatprep.mubr.f32.mxu0 %v4043
  %5478 = vmatmul.mubr.f32.gmra.mrb[0].mxu0 %v3979
  %v5479 = vpop.f32.mrb[0].mxu0
  %v5480 = vadd.f32 %v5095, %v5479
  %v5481 = vpop.f32.mrb[0].mxu0
  %5482 = vmatprep.mubr.f32.mxu0 %v4044
  %5483 = vmatmul.mubr.f32.gmra.mrb[0].mxu0 %v3980
  %v5484 = vpop.f32.mrb[0].mxu0
  %v5485 = vadd.f32 %v5100, %v5484
  %v5486 = vpop.f32.mrb[0].mxu0
  %5487 = vmatprep.mubr.f32.mxu0 %v4045
  %5488 = vmatmul.mubr.f32.gmra.mrb[0].mxu0 %v3981
  %v5489 = vpop.f32.mrb[0].mxu0
  %v5490 = vadd.f32 %v5105, %v5489
  %v5491 = vpop.f32.mrb[0].mxu0
  %5492 = vmatprep.mubr.f32.mxu0 %v4046
  %5493 = vmatmul.mubr.f32.gmra.mrb[0].mxu0 %v3982
  %v5494 = vpop.f32.mrb[0].mxu0
  %v5495 = vadd.f32 %v5110, %v5494
  %v5496 = vpop.f32.mrb[0].mxu0
  %5497 = vmatprep.mubr.f32.mxu0 %v4047
  %5498 = vmatmul.mubr.f32.gmra.mrb[0].mxu0 %v3983
  %v5499 = vpop.f32.mrb[0].mxu0
  %v5500 = vadd.f32 %v5115, %v5499
  %v5501 = vpop.f32.mrb[0].mxu0
  %5502 = vmatprep.mubr.f32.mxu0 %v4048
  %5503 = vmatmul.mubr.f32.gmra.mrb[0].mxu0 %v3984
  %v5504 = vpop.f32.mrb[0].mxu0
  %v5505 = vadd.f32 %v5120, %v5504
  %v5506 = vpop.f32.mrb[0].mxu0
  %5507 = vmatprep.mubr.f32.mxu0 %v4049
  %5508 = vmatmul.mubr.f32.gmra.mrb[0].mxu0 %v3985
  %v5509 = vpop.f32.mrb[0].mxu0
  %v5510 = vadd.f32 %v5125, %v5509
  %v5511 = vpop.f32.mrb[0].mxu0
  %5512 = vmatprep.mubr.f32.mxu0 %v4050
  %5513 = vmatmul.mubr.f32.gmra.mrb[0].mxu0 %v3986
  %v5514 = vpop.f32.mrb[0].mxu0
  %v5515 = vadd.f32 %v5130, %v5514
  %v5516 = vpop.f32.mrb[0].mxu0
  %5517 = vmatprep.mubr.f32.mxu0 %v4051
  %5518 = vmatmul.mubr.f32.gmra.mrb[0].mxu0 %v3987
  %v5519 = vpop.f32.mrb[0].mxu0
  %v5520 = vadd.f32 %v5135, %v5519
  %v5521 = vpop.f32.mrb[0].mxu0
  %5522 = vmatprep.mubr.f32.mxu0 %v4052
  %5523 = vmatmul.mubr.f32.gmra.mrb[0].mxu0 %v3988
  %v5524 = vpop.f32.mrb[0].mxu0
  %v5525 = vadd.f32 %v5140, %v5524
  %v5526 = vpop.f32.mrb[0].mxu0
  %5527 = vmatprep.mubr.f32.mxu0 %v4053
  %5528 = vmatmul.mubr.f32.gmra.mrb[0].mxu0 %v3989
  %v5529 = vpop.f32.mrb[0].mxu0
  %v5530 = vadd.f32 %v5145, %v5529
  %v5531 = vpop.f32.mrb[0].mxu0
  %5532 = vmatprep.mubr.f32.mxu0 %v4054
  %5533 = vmatmul.mubr.f32.gmra.mrb[0].mxu0 %v3990
  %v5534 = vpop.f32.mrb[0].mxu0
  %v5535 = vadd.f32 %v5150, %v5534
  %v5536 = vpop.f32.mrb[0].mxu0
  %5537 = vmatprep.mubr.f32.mxu0 %v4055
  %5538 = vmatmul.mubr.f32.gmra.mrb[0].mxu0 %v3991
  %v5539 = vpop.f32.mrb[0].mxu0
  %v5540 = vadd.f32 %v5155, %v5539
  %v5541 = vpop.f32.mrb[0].mxu0
  %5542 = vmatprep.mubr.f32.mxu0 %v4056
  %5543 = vmatmul.mubr.f32.gmra.mrb[0].mxu0 %v3992
  %v5544 = vpop.f32.mrb[0].mxu0
  %v5545 = vadd.f32 %v5160, %v5544
  %v5546 = vpop.f32.mrb[0].mxu0
  %5547 = vmatprep.mubr.f32.mxu0 %v4057
  %5548 = vmatmul.mubr.f32.gmra.mrb[0].mxu0 %v3993
  %v5549 = vpop.f32.mrb[0].mxu0
  %v5550 = vadd.f32 %v5165, %v5549
  %v5551 = vpop.f32.mrb[0].mxu0
  %5552 = vdwg.mxu0
  %5553 = vmatprep.subr.mxu0 0.0
  %5554 = vmatpush1.msra.mxu0 %v4346
  %5555 = vmatprep.subr.mxu0 0.0
  %5556 = vmatpush1.msra.mxu0 %v4347
  %5557 = vmatprep.subr.mxu0 0.0
  %5558 = vmatpush1.msra.mxu0 %v4348
  %5559 = vmatprep.subr.mxu0 0.0
  %5560 = vmatpush1.msra.mxu0 %v4349
  %5561 = vmatprep.subr.mxu0 0.0
  %5562 = vmatpush1.msra.mxu0 %v4350
  %5563 = vmatprep.subr.mxu0 0.0
  %5564 = vmatpush1.msra.mxu0 %v4351
  %5565 = vmatprep.subr.mxu0 0.0
  %5566 = vmatpush1.msra.mxu0 %v4352
  %5567 = vmatprep.subr.mxu0 0.0
  %5568 = vmatpush1.msra.mxu0 %v4353
  %5569 = vmatprep.subr.mxu0 0.0
  %5570 = vmatpush1.msra.mxu0 %v4354
  %5571 = vmatprep.subr.mxu0 0.0
  %5572 = vmatpush1.msra.mxu0 %v4355
  %5573 = vmatprep.subr.mxu0 0.0
  %5574 = vmatpush1.msra.mxu0 %v4356
  %5575 = vmatprep.subr.mxu0 0.0
  %5576 = vmatpush1.msra.mxu0 %v4357
  %5577 = vmatprep.subr.mxu0 0.0
  %5578 = vmatpush1.msra.mxu0 %v4358
  %5579 = vmatprep.subr.mxu0 0.0
  %5580 = vmatpush1.msra.mxu0 %v4359
  %5581 = vmatprep.subr.mxu0 0.0
  %5582 = vmatpush1.msra.mxu0 %v4360
  %5583 = vmatprep.subr.mxu0 0.0
  %5584 = vmatpush1.msra.mxu0 %v4361
  %5585 = vmatprep.subr.mxu0 0.0
  %5586 = vmatpush1.msra.mxu0 %v4362
  %5587 = vmatprep.subr.mxu0 0.0
  %5588 = vmatpush1.msra.mxu0 %v4363
  %5589 = vmatprep.subr.mxu0 0.0
  %5590 = vmatpush1.msra.mxu0 %v4364
  %5591 = vmatprep.subr.mxu0 0.0
  %5592 = vmatpush1.msra.mxu0 %v4365
  %5593 = vmatprep.subr.mxu0 0.0
  %5594 = vmatpush1.msra.mxu0 %v4366
  %5595 = vmatprep.subr.mxu0 0.0
  %5596 = vmatpush1.msra.mxu0 %v4367
  %5597 = vmatprep.subr.mxu0 0.0
  %5598 = vmatpush1.msra.mxu0 %v4368
  %5599 = vmatprep.subr.mxu0 0.0
  %5600 = vmatpush1.msra.mxu0 %v4369
  %5601 = vmatprep.subr.mxu0 0.0
  %5602 = vmatpush1.msra.mxu0 %v4370
  %5603 = vmatprep.subr.mxu0 0.0
  %5604 = vmatpush1.msra.mxu0 %v4371
  %5605 = vmatprep.subr.mxu0 0.0
  %5606 = vmatpush1.msra.mxu0 %v4372
  %5607 = vmatprep.subr.mxu0 0.0
  %5608 = vmatpush1.msra.mxu0 %v4373
  %5609 = vmatprep.subr.mxu0 0.0
  %5610 = vmatpush1.msra.mxu0 %v4374
  %5611 = vmatprep.subr.mxu0 0.0
  %5612 = vmatpush1.msra.mxu0 %v4375
  %5613 = vmatprep.subr.mxu0 0.0
  %5614 = vmatpush1.msra.mxu0 %v4376
  %5615 = vmatprep.subr.mxu0 0.0
  %5616 = vmatpush1.msra.mxu0 %v4377
  %5617 = vmatprep.mubr.f32.mxu0 %v4122
  %5618 = vmatmul.mubr.f32.gmra.mrb[0].mxu0 %v4058
  %v5619 = vpop.f32.mrb[0].mxu0
  %v5620 = vadd.f32 %v5235, %v5619
  %v5621 = vpop.f32.mrb[0].mxu0
  %5622 = vmatprep.mubr.f32.mxu0 %v4123
  %5623 = vmatmul.mubr.f32.gmra.mrb[0].mxu0 %v4059
  %v5624 = vpop.f32.mrb[0].mxu0
  %v5625 = vadd.f32 %v5240, %v5624
  %v5626 = vpop.f32.mrb[0].mxu0
  %5627 = vmatprep.mubr.f32.mxu0 %v4124
  %5628 = vmatmul.mubr.f32.gmra.mrb[0].mxu0 %v4060
  %v5629 = vpop.f32.mrb[0].mxu0
  %v5630 = vadd.f32 %v5245, %v5629
  %v5631 = vpop.f32.mrb[0].mxu0
  %5632 = vmatprep.mubr.f32.mxu0 %v4125
  %5633 = vmatmul.mubr.f32.gmra.mrb[0].mxu0 %v4061
  %v5634 = vpop.f32.mrb[0].mxu0
  %v5635 = vadd.f32 %v5250, %v5634
  %v5636 = vpop.f32.mrb[0].mxu0
  %5637 = vmatprep.mubr.f32.mxu0 %v4126
  %5638 = vmatmul.mubr.f32.gmra.mrb[0].mxu0 %v4062
  %v5639 = vpop.f32.mrb[0].mxu0
  %v5640 = vadd.f32 %v5255, %v5639
  %v5641 = vpop.f32.mrb[0].mxu0
  %5642 = vmatprep.mubr.f32.mxu0 %v4127
  %5643 = vmatmul.mubr.f32.gmra.mrb[0].mxu0 %v4063
  %v5644 = vpop.f32.mrb[0].mxu0
  %v5645 = vadd.f32 %v5260, %v5644
  %v5646 = vpop.f32.mrb[0].mxu0
  %5647 = vmatprep.mubr.f32.mxu0 %v4128
  %5648 = vmatmul.mubr.f32.gmra.mrb[0].mxu0 %v4064
  %v5649 = vpop.f32.mrb[0].mxu0
  %v5650 = vadd.f32 %v5265, %v5649
  %v5651 = vpop.f32.mrb[0].mxu0
  %5652 = vmatprep.mubr.f32.mxu0 %v4129
  %5653 = vmatmul.mubr.f32.gmra.mrb[0].mxu0 %v4065
  %v5654 = vpop.f32.mrb[0].mxu0
  %v5655 = vadd.f32 %v5270, %v5654
  %v5656 = vpop.f32.mrb[0].mxu0
  %5657 = vmatprep.mubr.f32.mxu0 %v4130
  %5658 = vmatmul.mubr.f32.gmra.mrb[0].mxu0 %v4066
  %v5659 = vpop.f32.mrb[0].mxu0
  %v5660 = vadd.f32 %v5275, %v5659
  %v5661 = vpop.f32.mrb[0].mxu0
  %5662 = vmatprep.mubr.f32.mxu0 %v4131
  %5663 = vmatmul.mubr.f32.gmra.mrb[0].mxu0 %v4067
  %v5664 = vpop.f32.mrb[0].mxu0
  %v5665 = vadd.f32 %v5280, %v5664
  %v5666 = vpop.f32.mrb[0].mxu0
  %5667 = vmatprep.mubr.f32.mxu0 %v4132
  %5668 = vmatmul.mubr.f32.gmra.mrb[0].mxu0 %v4068
  %v5669 = vpop.f32.mrb[0].mxu0
  %v5670 = vadd.f32 %v5285, %v5669
  %v5671 = vpop.f32.mrb[0].mxu0
  %5672 = vmatprep.mubr.f32.mxu0 %v4133
  %5673 = vmatmul.mubr.f32.gmra.mrb[0].mxu0 %v4069
  %v5674 = vpop.f32.mrb[0].mxu0
  %v5675 = vadd.f32 %v5290, %v5674
  %v5676 = vpop.f32.mrb[0].mxu0
  %5677 = vmatprep.mubr.f32.mxu0 %v4134
  %5678 = vmatmul.mubr.f32.gmra.mrb[0].mxu0 %v4070
  %v5679 = vpop.f32.mrb[0].mxu0
  %v5680 = vadd.f32 %v5295, %v5679
  %v5681 = vpop.f32.mrb[0].mxu0
  %5682 = vmatprep.mubr.f32.mxu0 %v4135
  %5683 = vmatmul.mubr.f32.gmra.mrb[0].mxu0 %v4071
  %v5684 = vpop.f32.mrb[0].mxu0
  %v5685 = vadd.f32 %v5300, %v5684
  %v5686 = vpop.f32.mrb[0].mxu0
  %5687 = vmatprep.mubr.f32.mxu0 %v4136
  %5688 = vmatmul.mubr.f32.gmra.mrb[0].mxu0 %v4072
  %v5689 = vpop.f32.mrb[0].mxu0
  %v5690 = vadd.f32 %v5305, %v5689
  %v5691 = vpop.f32.mrb[0].mxu0
  %5692 = vmatprep.mubr.f32.mxu0 %v4137
  %5693 = vmatmul.mubr.f32.gmra.mrb[0].mxu0 %v4073
  %v5694 = vpop.f32.mrb[0].mxu0
  %v5695 = vadd.f32 %v5310, %v5694
  %v5696 = vpop.f32.mrb[0].mxu0
  %5697 = vmatprep.mubr.f32.mxu0 %v4138
  %5698 = vmatmul.mubr.f32.gmra.mrb[0].mxu0 %v4074
  %v5699 = vpop.f32.mrb[0].mxu0
  %v5700 = vadd.f32 %v5315, %v5699
  %v5701 = vpop.f32.mrb[0].mxu0
  %5702 = vmatprep.mubr.f32.mxu0 %v4139
  %5703 = vmatmul.mubr.f32.gmra.mrb[0].mxu0 %v4075
  %v5704 = vpop.f32.mrb[0].mxu0
  %v5705 = vadd.f32 %v5320, %v5704
  %v5706 = vpop.f32.mrb[0].mxu0
  %5707 = vmatprep.mubr.f32.mxu0 %v4140
  %5708 = vmatmul.mubr.f32.gmra.mrb[0].mxu0 %v4076
  %v5709 = vpop.f32.mrb[0].mxu0
  %v5710 = vadd.f32 %v5325, %v5709
  %v5711 = vpop.f32.mrb[0].mxu0
  %5712 = vmatprep.mubr.f32.mxu0 %v4141
  %5713 = vmatmul.mubr.f32.gmra.mrb[0].mxu0 %v4077
  %v5714 = vpop.f32.mrb[0].mxu0
  %v5715 = vadd.f32 %v5330, %v5714
  %v5716 = vpop.f32.mrb[0].mxu0
  %5717 = vmatprep.mubr.f32.mxu0 %v4142
  %5718 = vmatmul.mubr.f32.gmra.mrb[0].mxu0 %v4078
  %v5719 = vpop.f32.mrb[0].mxu0
  %v5720 = vadd.f32 %v5335, %v5719
  %v5721 = vpop.f32.mrb[0].mxu0
  %5722 = vmatprep.mubr.f32.mxu0 %v4143
  %5723 = vmatmul.mubr.f32.gmra.mrb[0].mxu0 %v4079
  %v5724 = vpop.f32.mrb[0].mxu0
  %v5725 = vadd.f32 %v5340, %v5724
  %v5726 = vpop.f32.mrb[0].mxu0
  %5727 = vmatprep.mubr.f32.mxu0 %v4144
  %5728 = vmatmul.mubr.f32.gmra.mrb[0].mxu0 %v4080
  %v5729 = vpop.f32.mrb[0].mxu0
  %v5730 = vadd.f32 %v5345, %v5729
  %v5731 = vpop.f32.mrb[0].mxu0
  %5732 = vmatprep.mubr.f32.mxu0 %v4145
  %5733 = vmatmul.mubr.f32.gmra.mrb[0].mxu0 %v4081
  %v5734 = vpop.f32.mrb[0].mxu0
  %v5735 = vadd.f32 %v5350, %v5734
  %v5736 = vpop.f32.mrb[0].mxu0
  %5737 = vmatprep.mubr.f32.mxu0 %v4146
  %5738 = vmatmul.mubr.f32.gmra.mrb[0].mxu0 %v4082
  %v5739 = vpop.f32.mrb[0].mxu0
  %v5740 = vadd.f32 %v5355, %v5739
  %v5741 = vpop.f32.mrb[0].mxu0
  %5742 = vmatprep.mubr.f32.mxu0 %v4147
  %5743 = vmatmul.mubr.f32.gmra.mrb[0].mxu0 %v4083
  %v5744 = vpop.f32.mrb[0].mxu0
  %v5745 = vadd.f32 %v5360, %v5744
  %v5746 = vpop.f32.mrb[0].mxu0
  %5747 = vmatprep.mubr.f32.mxu0 %v4148
  %5748 = vmatmul.mubr.f32.gmra.mrb[0].mxu0 %v4084
  %v5749 = vpop.f32.mrb[0].mxu0
  %v5750 = vadd.f32 %v5365, %v5749
  %v5751 = vpop.f32.mrb[0].mxu0
  %5752 = vmatprep.mubr.f32.mxu0 %v4149
  %5753 = vmatmul.mubr.f32.gmra.mrb[0].mxu0 %v4085
  %v5754 = vpop.f32.mrb[0].mxu0
  %v5755 = vadd.f32 %v5370, %v5754
  %v5756 = vpop.f32.mrb[0].mxu0
  %5757 = vmatprep.mubr.f32.mxu0 %v4150
  %5758 = vmatmul.mubr.f32.gmra.mrb[0].mxu0 %v4086
  %v5759 = vpop.f32.mrb[0].mxu0
  %v5760 = vadd.f32 %v5375, %v5759
  %v5761 = vpop.f32.mrb[0].mxu0
  %5762 = vmatprep.mubr.f32.mxu0 %v4151
  %5763 = vmatmul.mubr.f32.gmra.mrb[0].mxu0 %v4087
  %v5764 = vpop.f32.mrb[0].mxu0
  %v5765 = vadd.f32 %v5380, %v5764
  %v5766 = vpop.f32.mrb[0].mxu0
  %5767 = vmatprep.mubr.f32.mxu0 %v4152
  %5768 = vmatmul.mubr.f32.gmra.mrb[0].mxu0 %v4088
  %v5769 = vpop.f32.mrb[0].mxu0
  %v5770 = vadd.f32 %v5385, %v5769
  %v5771 = vpop.f32.mrb[0].mxu0
  %5772 = vmatprep.mubr.f32.mxu0 %v4153
  %5773 = vmatmul.mubr.f32.gmra.mrb[0].mxu0 %v4089
  %v5774 = vpop.f32.mrb[0].mxu0
  %v5775 = vadd.f32 %v5390, %v5774
  %v5776 = vpop.f32.mrb[0].mxu0
  %5777 = vmatprep.mubr.f32.mxu0 %v4154
  %5778 = vmatmul.mubr.f32.gmra.mrb[0].mxu0 %v4090
  %v5779 = vpop.f32.mrb[0].mxu0
  %v5780 = vadd.f32 %v5395, %v5779
  %v5781 = vpop.f32.mrb[0].mxu0
  %5782 = vmatprep.mubr.f32.mxu0 %v4155
  %5783 = vmatmul.mubr.f32.gmra.mrb[0].mxu0 %v4091
  %v5784 = vpop.f32.mrb[0].mxu0
  %v5785 = vadd.f32 %v5400, %v5784
  %v5786 = vpop.f32.mrb[0].mxu0
  %5787 = vmatprep.mubr.f32.mxu0 %v4156
  %5788 = vmatmul.mubr.f32.gmra.mrb[0].mxu0 %v4092
  %v5789 = vpop.f32.mrb[0].mxu0
  %v5790 = vadd.f32 %v5405, %v5789
  %v5791 = vpop.f32.mrb[0].mxu0
  %5792 = vmatprep.mubr.f32.mxu0 %v4157
  %5793 = vmatmul.mubr.f32.gmra.mrb[0].mxu0 %v4093
  %v5794 = vpop.f32.mrb[0].mxu0
  %v5795 = vadd.f32 %v5410, %v5794
  %v5796 = vpop.f32.mrb[0].mxu0
  %5797 = vmatprep.mubr.f32.mxu0 %v4158
  %5798 = vmatmul.mubr.f32.gmra.mrb[0].mxu0 %v4094
  %v5799 = vpop.f32.mrb[0].mxu0
  %v5800 = vadd.f32 %v5415, %v5799
  %v5801 = vpop.f32.mrb[0].mxu0
  %5802 = vmatprep.mubr.f32.mxu0 %v4159
  %5803 = vmatmul.mubr.f32.gmra.mrb[0].mxu0 %v4095
  %v5804 = vpop.f32.mrb[0].mxu0
  %v5805 = vadd.f32 %v5420, %v5804
  %v5806 = vpop.f32.mrb[0].mxu0
  %5807 = vmatprep.mubr.f32.mxu0 %v4160
  %5808 = vmatmul.mubr.f32.gmra.mrb[0].mxu0 %v4096
  %v5809 = vpop.f32.mrb[0].mxu0
  %v5810 = vadd.f32 %v5425, %v5809
  %v5811 = vpop.f32.mrb[0].mxu0
  %5812 = vmatprep.mubr.f32.mxu0 %v4161
  %5813 = vmatmul.mubr.f32.gmra.mrb[0].mxu0 %v4097
  %v5814 = vpop.f32.mrb[0].mxu0
  %v5815 = vadd.f32 %v5430, %v5814
  %v5816 = vpop.f32.mrb[0].mxu0
  %5817 = vmatprep.mubr.f32.mxu0 %v4162
  %5818 = vmatmul.mubr.f32.gmra.mrb[0].mxu0 %v4098
  %v5819 = vpop.f32.mrb[0].mxu0
  %v5820 = vadd.f32 %v5435, %v5819
  %v5821 = vpop.f32.mrb[0].mxu0
  %5822 = vmatprep.mubr.f32.mxu0 %v4163
  %5823 = vmatmul.mubr.f32.gmra.mrb[0].mxu0 %v4099
  %v5824 = vpop.f32.mrb[0].mxu0
  %v5825 = vadd.f32 %v5440, %v5824
  %v5826 = vpop.f32.mrb[0].mxu0
  %5827 = vmatprep.mubr.f32.mxu0 %v4164
  %5828 = vmatmul.mubr.f32.gmra.mrb[0].mxu0 %v4100
  %v5829 = vpop.f32.mrb[0].mxu0
  %v5830 = vadd.f32 %v5445, %v5829
  %v5831 = vpop.f32.mrb[0].mxu0
  %5832 = vmatprep.mubr.f32.mxu0 %v4165
  %5833 = vmatmul.mubr.f32.gmra.mrb[0].mxu0 %v4101
  %v5834 = vpop.f32.mrb[0].mxu0
  %v5835 = vadd.f32 %v5450, %v5834
  %v5836 = vpop.f32.mrb[0].mxu0
  %5837 = vmatprep.mubr.f32.mxu0 %v4166
  %5838 = vmatmul.mubr.f32.gmra.mrb[0].mxu0 %v4102
  %v5839 = vpop.f32.mrb[0].mxu0
  %v5840 = vadd.f32 %v5455, %v5839
  %v5841 = vpop.f32.mrb[0].mxu0
  %5842 = vmatprep.mubr.f32.mxu0 %v4167
  %5843 = vmatmul.mubr.f32.gmra.mrb[0].mxu0 %v4103
  %v5844 = vpop.f32.mrb[0].mxu0
  %v5845 = vadd.f32 %v5460, %v5844
  %v5846 = vpop.f32.mrb[0].mxu0
  %5847 = vmatprep.mubr.f32.mxu0 %v4168
  %5848 = vmatmul.mubr.f32.gmra.mrb[0].mxu0 %v4104
  %v5849 = vpop.f32.mrb[0].mxu0
  %v5850 = vadd.f32 %v5465, %v5849
  %v5851 = vpop.f32.mrb[0].mxu0
  %5852 = vmatprep.mubr.f32.mxu0 %v4169
  %5853 = vmatmul.mubr.f32.gmra.mrb[0].mxu0 %v4105
  %v5854 = vpop.f32.mrb[0].mxu0
  %v5855 = vadd.f32 %v5470, %v5854
  %v5856 = vpop.f32.mrb[0].mxu0
  %5857 = vmatprep.mubr.f32.mxu0 %v4170
  %5858 = vmatmul.mubr.f32.gmra.mrb[0].mxu0 %v4106
  %v5859 = vpop.f32.mrb[0].mxu0
  %v5860 = vadd.f32 %v5475, %v5859
  %v5861 = vpop.f32.mrb[0].mxu0
  %5862 = vmatprep.mubr.f32.mxu0 %v4171
  %5863 = vmatmul.mubr.f32.gmra.mrb[0].mxu0 %v4107
  %v5864 = vpop.f32.mrb[0].mxu0
  %v5865 = vadd.f32 %v5480, %v5864
  %v5866 = vpop.f32.mrb[0].mxu0
  %5867 = vmatprep.mubr.f32.mxu0 %v4172
  %5868 = vmatmul.mubr.f32.gmra.mrb[0].mxu0 %v4108
  %v5869 = vpop.f32.mrb[0].mxu0
  %v5870 = vadd.f32 %v5485, %v5869
  %v5871 = vpop.f32.mrb[0].mxu0
  %5872 = vmatprep.mubr.f32.mxu0 %v4173
  %5873 = vmatmul.mubr.f32.gmra.mrb[0].mxu0 %v4109
  %v5874 = vpop.f32.mrb[0].mxu0
  %v5875 = vadd.f32 %v5490, %v5874
  %v5876 = vpop.f32.mrb[0].mxu0
  %5877 = vmatprep.mubr.f32.mxu0 %v4174
  %5878 = vmatmul.mubr.f32.gmra.mrb[0].mxu0 %v4110
  %v5879 = vpop.f32.mrb[0].mxu0
  %v5880 = vadd.f32 %v5495, %v5879
  %v5881 = vpop.f32.mrb[0].mxu0
  %5882 = vmatprep.mubr.f32.mxu0 %v4175
  %5883 = vmatmul.mubr.f32.gmra.mrb[0].mxu0 %v4111
  %v5884 = vpop.f32.mrb[0].mxu0
  %v5885 = vadd.f32 %v5500, %v5884
  %v5886 = vpop.f32.mrb[0].mxu0
  %5887 = vmatprep.mubr.f32.mxu0 %v4176
  %5888 = vmatmul.mubr.f32.gmra.mrb[0].mxu0 %v4112
  %v5889 = vpop.f32.mrb[0].mxu0
  %v5890 = vadd.f32 %v5505, %v5889
  %v5891 = vpop.f32.mrb[0].mxu0
  %5892 = vmatprep.mubr.f32.mxu0 %v4177
  %5893 = vmatmul.mubr.f32.gmra.mrb[0].mxu0 %v4113
  %v5894 = vpop.f32.mrb[0].mxu0
  %v5895 = vadd.f32 %v5510, %v5894
  %v5896 = vpop.f32.mrb[0].mxu0
  %5897 = vmatprep.mubr.f32.mxu0 %v4178
  %5898 = vmatmul.mubr.f32.gmra.mrb[0].mxu0 %v4114
  %v5899 = vpop.f32.mrb[0].mxu0
  %v5900 = vadd.f32 %v5515, %v5899
  %v5901 = vpop.f32.mrb[0].mxu0
  %5902 = vmatprep.mubr.f32.mxu0 %v4179
  %5903 = vmatmul.mubr.f32.gmra.mrb[0].mxu0 %v4115
  %v5904 = vpop.f32.mrb[0].mxu0
  %v5905 = vadd.f32 %v5520, %v5904
  %v5906 = vpop.f32.mrb[0].mxu0
  %5907 = vmatprep.mubr.f32.mxu0 %v4180
  %5908 = vmatmul.mubr.f32.gmra.mrb[0].mxu0 %v4116
  %v5909 = vpop.f32.mrb[0].mxu0
  %v5910 = vadd.f32 %v5525, %v5909
  %v5911 = vpop.f32.mrb[0].mxu0
  %5912 = vmatprep.mubr.f32.mxu0 %v4181
  %5913 = vmatmul.mubr.f32.gmra.mrb[0].mxu0 %v4117
  %v5914 = vpop.f32.mrb[0].mxu0
  %v5915 = vadd.f32 %v5530, %v5914
  %v5916 = vpop.f32.mrb[0].mxu0
  %5917 = vmatprep.mubr.f32.mxu0 %v4182
  %5918 = vmatmul.mubr.f32.gmra.mrb[0].mxu0 %v4118
  %v5919 = vpop.f32.mrb[0].mxu0
  %v5920 = vadd.f32 %v5535, %v5919
  %v5921 = vpop.f32.mrb[0].mxu0
  %5922 = vmatprep.mubr.f32.mxu0 %v4183
  %5923 = vmatmul.mubr.f32.gmra.mrb[0].mxu0 %v4119
  %v5924 = vpop.f32.mrb[0].mxu0
  %v5925 = vadd.f32 %v5540, %v5924
  %v5926 = vpop.f32.mrb[0].mxu0
  %5927 = vmatprep.mubr.f32.mxu0 %v4184
  %5928 = vmatmul.mubr.f32.gmra.mrb[0].mxu0 %v4120
  %v5929 = vpop.f32.mrb[0].mxu0
  %v5930 = vadd.f32 %v5545, %v5929
  %v5931 = vpop.f32.mrb[0].mxu0
  %5932 = vmatprep.mubr.f32.mxu0 %v4185
  %5933 = vmatmul.mubr.f32.gmra.mrb[0].mxu0 %v4121
  %v5934 = vpop.f32.mrb[0].mxu0
  %v5935 = vadd.f32 %v5550, %v5934
  %v5936 = vpop.f32.mrb[0].mxu0
  %5937 = vdwg.mxu0
  %5938 = vmatprep.subr.mxu0 0.0
  %5939 = vmatpush1.msra.mxu0 %v4378
  %5940 = vmatprep.subr.mxu0 0.0
  %5941 = vmatpush1.msra.mxu0 %v4379
  %5942 = vmatprep.subr.mxu0 0.0
  %5943 = vmatpush1.msra.mxu0 %v4380
  %5944 = vmatprep.subr.mxu0 0.0
  %5945 = vmatpush1.msra.mxu0 %v4381
  %5946 = vmatprep.subr.mxu0 0.0
  %5947 = vmatpush1.msra.mxu0 %v4382
  %5948 = vmatprep.subr.mxu0 0.0
  %5949 = vmatpush1.msra.mxu0 %v4383
  %5950 = vmatprep.subr.mxu0 0.0
  %5951 = vmatpush1.msra.mxu0 %v4384
  %5952 = vmatprep.subr.mxu0 0.0
  %5953 = vmatpush1.msra.mxu0 %v4385
  %5954 = vmatprep.subr.mxu0 0.0
  %5955 = vmatpush1.msra.mxu0 %v4386
  %5956 = vmatprep.subr.mxu0 0.0
  %5957 = vmatpush1.msra.mxu0 %v4387
  %5958 = vmatprep.subr.mxu0 0.0
  %5959 = vmatpush1.msra.mxu0 %v4388
  %5960 = vmatprep.subr.mxu0 0.0
  %5961 = vmatpush1.msra.mxu0 %v4389
  %5962 = vmatprep.subr.mxu0 0.0
  %5963 = vmatpush1.msra.mxu0 %v4390
  %5964 = vmatprep.subr.mxu0 0.0
  %5965 = vmatpush1.msra.mxu0 %v4391
  %5966 = vmatprep.subr.mxu0 0.0
  %5967 = vmatpush1.msra.mxu0 %v4392
  %5968 = vmatprep.subr.mxu0 0.0
  %5969 = vmatpush1.msra.mxu0 %v4393
  %5970 = vmatprep.subr.mxu0 0.0
  %5971 = vmatpush1.msra.mxu0 0.0
  %5972 = vmatprep.subr.mxu0 0.0
  %5973 = vmatpush1.msra.mxu0 0.0
  %5974 = vmatprep.subr.mxu0 0.0
  %5975 = vmatpush1.msra.mxu0 0.0
  %5976 = vmatprep.subr.mxu0 0.0
  %5977 = vmatpush1.msra.mxu0 0.0
  %5978 = vmatprep.subr.mxu0 0.0
  %5979 = vmatpush1.msra.mxu0 0.0
  %5980 = vmatprep.subr.mxu0 0.0
  %5981 = vmatpush1.msra.mxu0 0.0
  %5982 = vmatprep.subr.mxu0 0.0
  %5983 = vmatpush1.msra.mxu0 0.0
  %5984 = vmatprep.subr.mxu0 0.0
  %5985 = vmatpush1.msra.mxu0 0.0
  %5986 = vmatprep.subr.mxu0 0.0
  %5987 = vmatpush1.msra.mxu0 0.0
  %5988 = vmatprep.subr.mxu0 0.0
  %5989 = vmatpush1.msra.mxu0 0.0
  %5990 = vmatprep.subr.mxu0 0.0
  %5991 = vmatpush1.msra.mxu0 0.0
  %5992 = vmatprep.subr.mxu0 0.0
  %5993 = vmatpush1.msra.mxu0 0.0
  %5994 = vmatprep.subr.mxu0 0.0
  %5995 = vmatpush1.msra.mxu0 0.0
  %5996 = vmatprep.subr.mxu0 0.0
  %5997 = vmatpush1.msra.mxu0 0.0
  %5998 = vmatprep.subr.mxu0 0.0
  %5999 = vmatpush1.msra.mxu0 0.0
  %6000 = vmatprep.subr.mxu0 0.0
  %6001 = vmatpush1.msra.mxu0 0.0
  %6002 = vmatprep.mubr.f32.mxu0 0.0
  %6003 = vmatmul.mubr.f32.gmra.mrb[0].mxu0 %v4186
  %v6004 = vpop.f32.mrb[0].mxu0
  %v6005 = vadd.f32 %v5620, %v6004
  %v6006 = vpop.f32.mrb[0].mxu0
  %6007 = vmatprep.mubr.f32.mxu0 0.0
  %6008 = vmatmul.mubr.f32.gmra.mrb[0].mxu0 %v4187
  %v6009 = vpop.f32.mrb[0].mxu0
  %v6010 = vadd.f32 %v5625, %v6009
  %v6011 = vpop.f32.mrb[0].mxu0
  %6012 = vmatprep.mubr.f32.mxu0 0.0
  %6013 = vmatmul.mubr.f32.gmra.mrb[0].mxu0 %v4188
  %v6014 = vpop.f32.mrb[0].mxu0
  %v6015 = vadd.f32 %v5630, %v6014
  %v6016 = vpop.f32.mrb[0].mxu0
  %6017 = vmatprep.mubr.f32.mxu0 0.0
  %6018 = vmatmul.mubr.f32.gmra.mrb[0].mxu0 %v4189
  %v6019 = vpop.f32.mrb[0].mxu0
  %v6020 = vadd.f32 %v5635, %v6019
  %v6021 = vpop.f32.mrb[0].mxu0
  %6022 = vmatprep.mubr.f32.mxu0 0.0
  %6023 = vmatmul.mubr.f32.gmra.mrb[0].mxu0 %v4190
  %v6024 = vpop.f32.mrb[0].mxu0
  %v6025 = vadd.f32 %v5640, %v6024
  %v6026 = vpop.f32.mrb[0].mxu0
  %6027 = vmatprep.mubr.f32.mxu0 0.0
  %6028 = vmatmul.mubr.f32.gmra.mrb[0].mxu0 %v4191
  %v6029 = vpop.f32.mrb[0].mxu0
  %v6030 = vadd.f32 %v5645, %v6029
  %v6031 = vpop.f32.mrb[0].mxu0
  %6032 = vmatprep.mubr.f32.mxu0 0.0
  %6033 = vmatmul.mubr.f32.gmra.mrb[0].mxu0 %v4192
  %v6034 = vpop.f32.mrb[0].mxu0
  %v6035 = vadd.f32 %v5650, %v6034
  %v6036 = vpop.f32.mrb[0].mxu0
  %6037 = vmatprep.mubr.f32.mxu0 0.0
  %6038 = vmatmul.mubr.f32.gmra.mrb[0].mxu0 %v4193
  %v6039 = vpop.f32.mrb[0].mxu0
  %v6040 = vadd.f32 %v5655, %v6039
  %v6041 = vpop.f32.mrb[0].mxu0
  %6042 = vmatprep.mubr.f32.mxu0 0.0
  %6043 = vmatmul.mubr.f32.gmra.mrb[0].mxu0 %v4194
  %v6044 = vpop.f32.mrb[0].mxu0
  %v6045 = vadd.f32 %v5660, %v6044
  %v6046 = vpop.f32.mrb[0].mxu0
  %6047 = vmatprep.mubr.f32.mxu0 0.0
  %6048 = vmatmul.mubr.f32.gmra.mrb[0].mxu0 %v4195
  %v6049 = vpop.f32.mrb[0].mxu0
  %v6050 = vadd.f32 %v5665, %v6049
  %v6051 = vpop.f32.mrb[0].mxu0
  %6052 = vmatprep.mubr.f32.mxu0 0.0
  %6053 = vmatmul.mubr.f32.gmra.mrb[0].mxu0 %v4196
  %v6054 = vpop.f32.mrb[0].mxu0
  %v6055 = vadd.f32 %v5670, %v6054
  %v6056 = vpop.f32.mrb[0].mxu0
  %6057 = vmatprep.mubr.f32.mxu0 0.0
  %6058 = vmatmul.mubr.f32.gmra.mrb[0].mxu0 %v4197
  %v6059 = vpop.f32.mrb[0].mxu0
  %v6060 = vadd.f32 %v5675, %v6059
  %v6061 = vpop.f32.mrb[0].mxu0
  %6062 = vmatprep.mubr.f32.mxu0 0.0
  %6063 = vmatmul.mubr.f32.gmra.mrb[0].mxu0 %v4198
  %v6064 = vpop.f32.mrb[0].mxu0
  %v6065 = vadd.f32 %v5680, %v6064
  %v6066 = vpop.f32.mrb[0].mxu0
  %6067 = vmatprep.mubr.f32.mxu0 0.0
  %6068 = vmatmul.mubr.f32.gmra.mrb[0].mxu0 %v4199
  %v6069 = vpop.f32.mrb[0].mxu0
  %v6070 = vadd.f32 %v5685, %v6069
  %v6071 = vpop.f32.mrb[0].mxu0
  %6072 = vmatprep.mubr.f32.mxu0 0.0
  %6073 = vmatmul.mubr.f32.gmra.mrb[0].mxu0 %v4200
  %v6074 = vpop.f32.mrb[0].mxu0
  %v6075 = vadd.f32 %v5690, %v6074
  %v6076 = vpop.f32.mrb[0].mxu0
  %6077 = vmatprep.mubr.f32.mxu0 0.0
  %6078 = vmatmul.mubr.f32.gmra.mrb[0].mxu0 %v4201
  %v6079 = vpop.f32.mrb[0].mxu0
  %v6080 = vadd.f32 %v5695, %v6079
  %v6081 = vpop.f32.mrb[0].mxu0
  %6082 = vmatprep.mubr.f32.mxu0 0.0
  %6083 = vmatmul.mubr.f32.gmra.mrb[0].mxu0 %v4202
  %v6084 = vpop.f32.mrb[0].mxu0
  %v6085 = vadd.f32 %v5700, %v6084
  %v6086 = vpop.f32.mrb[0].mxu0
  %6087 = vmatprep.mubr.f32.mxu0 0.0
  %6088 = vmatmul.mubr.f32.gmra.mrb[0].mxu0 %v4203
  %v6089 = vpop.f32.mrb[0].mxu0
  %v6090 = vadd.f32 %v5705, %v6089
  %v6091 = vpop.f32.mrb[0].mxu0
  %6092 = vmatprep.mubr.f32.mxu0 0.0
  %6093 = vmatmul.mubr.f32.gmra.mrb[0].mxu0 %v4204
  %v6094 = vpop.f32.mrb[0].mxu0
  %v6095 = vadd.f32 %v5710, %v6094
  %v6096 = vpop.f32.mrb[0].mxu0
  %6097 = vmatprep.mubr.f32.mxu0 0.0
  %6098 = vmatmul.mubr.f32.gmra.mrb[0].mxu0 %v4205
  %v6099 = vpop.f32.mrb[0].mxu0
  %v6100 = vadd.f32 %v5715, %v6099
  %v6101 = vpop.f32.mrb[0].mxu0
  %6102 = vmatprep.mubr.f32.mxu0 0.0
  %6103 = vmatmul.mubr.f32.gmra.mrb[0].mxu0 %v4206
  %v6104 = vpop.f32.mrb[0].mxu0
  %v6105 = vadd.f32 %v5720, %v6104
  %v6106 = vpop.f32.mrb[0].mxu0
  %6107 = vmatprep.mubr.f32.mxu0 0.0
  %6108 = vmatmul.mubr.f32.gmra.mrb[0].mxu0 %v4207
  %v6109 = vpop.f32.mrb[0].mxu0
  %v6110 = vadd.f32 %v5725, %v6109
  %v6111 = vpop.f32.mrb[0].mxu0
  %6112 = vmatprep.mubr.f32.mxu0 0.0
  %6113 = vmatmul.mubr.f32.gmra.mrb[0].mxu0 %v4208
  %v6114 = vpop.f32.mrb[0].mxu0
  %v6115 = vadd.f32 %v5730, %v6114
  %v6116 = vpop.f32.mrb[0].mxu0
  %6117 = vmatprep.mubr.f32.mxu0 0.0
  %6118 = vmatmul.mubr.f32.gmra.mrb[0].mxu0 %v4209
  %v6119 = vpop.f32.mrb[0].mxu0
  %v6120 = vadd.f32 %v5735, %v6119
  %v6121 = vpop.f32.mrb[0].mxu0
  %6122 = vmatprep.mubr.f32.mxu0 0.0
  %6123 = vmatmul.mubr.f32.gmra.mrb[0].mxu0 %v4210
  %v6124 = vpop.f32.mrb[0].mxu0
  %v6125 = vadd.f32 %v5740, %v6124
  %v6126 = vpop.f32.mrb[0].mxu0
  %6127 = vmatprep.mubr.f32.mxu0 0.0
  %6128 = vmatmul.mubr.f32.gmra.mrb[0].mxu0 %v4211
  %v6129 = vpop.f32.mrb[0].mxu0
  %v6130 = vadd.f32 %v5745, %v6129
  %v6131 = vpop.f32.mrb[0].mxu0
  %6132 = vmatprep.mubr.f32.mxu0 0.0
  %6133 = vmatmul.mubr.f32.gmra.mrb[0].mxu0 %v4212
  %v6134 = vpop.f32.mrb[0].mxu0
  %v6135 = vadd.f32 %v5750, %v6134
  %v6136 = vpop.f32.mrb[0].mxu0
  %6137 = vmatprep.mubr.f32.mxu0 0.0
  %6138 = vmatmul.mubr.f32.gmra.mrb[0].mxu0 %v4213
  %v6139 = vpop.f32.mrb[0].mxu0
  %v6140 = vadd.f32 %v5755, %v6139
  %v6141 = vpop.f32.mrb[0].mxu0
  %6142 = vmatprep.mubr.f32.mxu0 0.0
  %6143 = vmatmul.mubr.f32.gmra.mrb[0].mxu0 %v4214
  %v6144 = vpop.f32.mrb[0].mxu0
  %v6145 = vadd.f32 %v5760, %v6144
  %v6146 = vpop.f32.mrb[0].mxu0
  %6147 = vmatprep.mubr.f32.mxu0 0.0
  %6148 = vmatmul.mubr.f32.gmra.mrb[0].mxu0 %v4215
  %v6149 = vpop.f32.mrb[0].mxu0
  %v6150 = vadd.f32 %v5765, %v6149
  %v6151 = vpop.f32.mrb[0].mxu0
  %6152 = vmatprep.mubr.f32.mxu0 0.0
  %6153 = vmatmul.mubr.f32.gmra.mrb[0].mxu0 %v4216
  %v6154 = vpop.f32.mrb[0].mxu0
  %v6155 = vadd.f32 %v5770, %v6154
  %v6156 = vpop.f32.mrb[0].mxu0
  %6157 = vmatprep.mubr.f32.mxu0 0.0
  %6158 = vmatmul.mubr.f32.gmra.mrb[0].mxu0 %v4217
  %v6159 = vpop.f32.mrb[0].mxu0
  %v6160 = vadd.f32 %v5775, %v6159
  %v6161 = vpop.f32.mrb[0].mxu0
  %6162 = vmatprep.mubr.f32.mxu0 0.0
  %6163 = vmatmul.mubr.f32.gmra.mrb[0].mxu0 %v4218
  %v6164 = vpop.f32.mrb[0].mxu0
  %v6165 = vadd.f32 %v5780, %v6164
  %v6166 = vpop.f32.mrb[0].mxu0
  %6167 = vmatprep.mubr.f32.mxu0 0.0
  %6168 = vmatmul.mubr.f32.gmra.mrb[0].mxu0 %v4219
  %v6169 = vpop.f32.mrb[0].mxu0
  %v6170 = vadd.f32 %v5785, %v6169
  %v6171 = vpop.f32.mrb[0].mxu0
  %6172 = vmatprep.mubr.f32.mxu0 0.0
  %6173 = vmatmul.mubr.f32.gmra.mrb[0].mxu0 %v4220
  %v6174 = vpop.f32.mrb[0].mxu0
  %v6175 = vadd.f32 %v5790, %v6174
  %v6176 = vpop.f32.mrb[0].mxu0
  %6177 = vmatprep.mubr.f32.mxu0 0.0
  %6178 = vmatmul.mubr.f32.gmra.mrb[0].mxu0 %v4221
  %v6179 = vpop.f32.mrb[0].mxu0
  %v6180 = vadd.f32 %v5795, %v6179
  %v6181 = vpop.f32.mrb[0].mxu0
  %6182 = vmatprep.mubr.f32.mxu0 0.0
  %6183 = vmatmul.mubr.f32.gmra.mrb[0].mxu0 %v4222
  %v6184 = vpop.f32.mrb[0].mxu0
  %v6185 = vadd.f32 %v5800, %v6184
  %v6186 = vpop.f32.mrb[0].mxu0
  %6187 = vmatprep.mubr.f32.mxu0 0.0
  %6188 = vmatmul.mubr.f32.gmra.mrb[0].mxu0 %v4223
  %v6189 = vpop.f32.mrb[0].mxu0
  %v6190 = vadd.f32 %v5805, %v6189
  %v6191 = vpop.f32.mrb[0].mxu0
  %6192 = vmatprep.mubr.f32.mxu0 0.0
  %6193 = vmatmul.mubr.f32.gmra.mrb[0].mxu0 %v4224
  %v6194 = vpop.f32.mrb[0].mxu0
  %v6195 = vadd.f32 %v5810, %v6194
  %v6196 = vpop.f32.mrb[0].mxu0
  %6197 = vmatprep.mubr.f32.mxu0 0.0
  %6198 = vmatmul.mubr.f32.gmra.mrb[0].mxu0 %v4225
  %v6199 = vpop.f32.mrb[0].mxu0
  %v6200 = vadd.f32 %v5815, %v6199
  %v6201 = vpop.f32.mrb[0].mxu0
  %6202 = vmatprep.mubr.f32.mxu0 0.0
  %6203 = vmatmul.mubr.f32.gmra.mrb[0].mxu0 %v4226
  %v6204 = vpop.f32.mrb[0].mxu0
  %v6205 = vadd.f32 %v5820, %v6204
  %v6206 = vpop.f32.mrb[0].mxu0
  %6207 = vmatprep.mubr.f32.mxu0 0.0
  %6208 = vmatmul.mubr.f32.gmra.mrb[0].mxu0 %v4227
  %v6209 = vpop.f32.mrb[0].mxu0
  %v6210 = vadd.f32 %v5825, %v6209
  %v6211 = vpop.f32.mrb[0].mxu0
  %6212 = vmatprep.mubr.f32.mxu0 0.0
  %6213 = vmatmul.mubr.f32.gmra.mrb[0].mxu0 %v4228
  %v6214 = vpop.f32.mrb[0].mxu0
  %v6215 = vadd.f32 %v5830, %v6214
  %v6216 = vpop.f32.mrb[0].mxu0
  %6217 = vmatprep.mubr.f32.mxu0 0.0
  %6218 = vmatmul.mubr.f32.gmra.mrb[0].mxu0 %v4229
  %v6219 = vpop.f32.mrb[0].mxu0
  %v6220 = vadd.f32 %v5835, %v6219
  %v6221 = vpop.f32.mrb[0].mxu0
  %6222 = vmatprep.mubr.f32.mxu0 0.0
  %6223 = vmatmul.mubr.f32.gmra.mrb[0].mxu0 %v4230
  %v6224 = vpop.f32.mrb[0].mxu0
  %v6225 = vadd.f32 %v5840, %v6224
  %v6226 = vpop.f32.mrb[0].mxu0
  %6227 = vmatprep.mubr.f32.mxu0 0.0
  %6228 = vmatmul.mubr.f32.gmra.mrb[0].mxu0 %v4231
  %v6229 = vpop.f32.mrb[0].mxu0
  %v6230 = vadd.f32 %v5845, %v6229
  %v6231 = vpop.f32.mrb[0].mxu0
  %6232 = vmatprep.mubr.f32.mxu0 0.0
  %6233 = vmatmul.mubr.f32.gmra.mrb[0].mxu0 %v4232
  %v6234 = vpop.f32.mrb[0].mxu0
  %v6235 = vadd.f32 %v5850, %v6234
  %v6236 = vpop.f32.mrb[0].mxu0
  %6237 = vmatprep.mubr.f32.mxu0 0.0
  %6238 = vmatmul.mubr.f32.gmra.mrb[0].mxu0 %v4233
  %v6239 = vpop.f32.mrb[0].mxu0
  %v6240 = vadd.f32 %v5855, %v6239
  %v6241 = vpop.f32.mrb[0].mxu0
  %6242 = vmatprep.mubr.f32.mxu0 0.0
  %6243 = vmatmul.mubr.f32.gmra.mrb[0].mxu0 %v4234
  %v6244 = vpop.f32.mrb[0].mxu0
  %v6245 = vadd.f32 %v5860, %v6244
  %v6246 = vpop.f32.mrb[0].mxu0
  %6247 = vmatprep.mubr.f32.mxu0 0.0
  %6248 = vmatmul.mubr.f32.gmra.mrb[0].mxu0 %v4235
  %v6249 = vpop.f32.mrb[0].mxu0
  %v6250 = vadd.f32 %v5865, %v6249
  %v6251 = vpop.f32.mrb[0].mxu0
  %6252 = vmatprep.mubr.f32.mxu0 0.0
  %6253 = vmatmul.mubr.f32.gmra.mrb[0].mxu0 %v4236
  %v6254 = vpop.f32.mrb[0].mxu0
  %v6255 = vadd.f32 %v5870, %v6254
  %v6256 = vpop.f32.mrb[0].mxu0
  %6257 = vmatprep.mubr.f32.mxu0 0.0
  %6258 = vmatmul.mubr.f32.gmra.mrb[0].mxu0 %v4237
  %v6259 = vpop.f32.mrb[0].mxu0
  %v6260 = vadd.f32 %v5875, %v6259
  %v6261 = vpop.f32.mrb[0].mxu0
  %6262 = vmatprep.mubr.f32.mxu0 0.0
  %6263 = vmatmul.mubr.f32.gmra.mrb[0].mxu0 %v4238
  %v6264 = vpop.f32.mrb[0].mxu0
  %v6265 = vadd.f32 %v5880, %v6264
  %v6266 = vpop.f32.mrb[0].mxu0
  %6267 = vmatprep.mubr.f32.mxu0 0.0
  %6268 = vmatmul.mubr.f32.gmra.mrb[0].mxu0 %v4239
  %v6269 = vpop.f32.mrb[0].mxu0
  %v6270 = vadd.f32 %v5885, %v6269
  %v6271 = vpop.f32.mrb[0].mxu0
  %6272 = vmatprep.mubr.f32.mxu0 0.0
  %6273 = vmatmul.mubr.f32.gmra.mrb[0].mxu0 %v4240
  %v6274 = vpop.f32.mrb[0].mxu0
  %v6275 = vadd.f32 %v5890, %v6274
  %v6276 = vpop.f32.mrb[0].mxu0
  %6277 = vmatprep.mubr.f32.mxu0 0.0
  %6278 = vmatmul.mubr.f32.gmra.mrb[0].mxu0 %v4241
  %v6279 = vpop.f32.mrb[0].mxu0
  %v6280 = vadd.f32 %v5895, %v6279
  %v6281 = vpop.f32.mrb[0].mxu0
  %6282 = vmatprep.mubr.f32.mxu0 0.0
  %6283 = vmatmul.mubr.f32.gmra.mrb[0].mxu0 %v4242
  %v6284 = vpop.f32.mrb[0].mxu0
  %v6285 = vadd.f32 %v5900, %v6284
  %v6286 = vpop.f32.mrb[0].mxu0
  %6287 = vmatprep.mubr.f32.mxu0 0.0
  %6288 = vmatmul.mubr.f32.gmra.mrb[0].mxu0 %v4243
  %v6289 = vpop.f32.mrb[0].mxu0
  %v6290 = vadd.f32 %v5905, %v6289
  %v6291 = vpop.f32.mrb[0].mxu0
  %6292 = vmatprep.mubr.f32.mxu0 0.0
  %6293 = vmatmul.mubr.f32.gmra.mrb[0].mxu0 %v4244
  %v6294 = vpop.f32.mrb[0].mxu0
  %v6295 = vadd.f32 %v5910, %v6294
  %v6296 = vpop.f32.mrb[0].mxu0
  %6297 = vmatprep.mubr.f32.mxu0 0.0
  %6298 = vmatmul.mubr.f32.gmra.mrb[0].mxu0 %v4245
  %v6299 = vpop.f32.mrb[0].mxu0
  %v6300 = vadd.f32 %v5915, %v6299
  %v6301 = vpop.f32.mrb[0].mxu0
  %6302 = vmatprep.mubr.f32.mxu0 0.0
  %6303 = vmatmul.mubr.f32.gmra.mrb[0].mxu0 %v4246
  %v6304 = vpop.f32.mrb[0].mxu0
  %v6305 = vadd.f32 %v5920, %v6304
  %v6306 = vpop.f32.mrb[0].mxu0
  %6307 = vmatprep.mubr.f32.mxu0 0.0
  %6308 = vmatmul.mubr.f32.gmra.mrb[0].mxu0 %v4247
  %v6309 = vpop.f32.mrb[0].mxu0
  %v6310 = vadd.f32 %v5925, %v6309
  %v6311 = vpop.f32.mrb[0].mxu0
  %6312 = vmatprep.mubr.f32.mxu0 0.0
  %6313 = vmatmul.mubr.f32.gmra.mrb[0].mxu0 %v4248
  %v6314 = vpop.f32.mrb[0].mxu0
  %v6315 = vadd.f32 %v5930, %v6314
  %v6316 = vpop.f32.mrb[0].mxu0
  %6317 = vmatprep.mubr.f32.mxu0 0.0
  %6318 = vmatmul.mubr.f32.gmra.mrb[0].mxu0 %v4249
  %v6319 = vpop.f32.mrb[0].mxu0
  %v6320 = vadd.f32 %v5935, %v6319
  %v6321 = vpop.f32.mrb[0].mxu0
  %6322 = vdwg.mxu0
  %v6323 = vld [vmem:[%s3 + $0x4] sm:$0x1]
  %v6324 = vld [vmem:[%s3 + $0x5] sm:$0x1]
  %v6325 = vadd.f32 %v6005, %v6010
  %v6326 = vadd.f32 %v6325, %v6015
  %v6327 = vadd.f32 %v6326, %v6020
  %v6328 = vadd.f32 %v6327, %v6025
  %v6329 = vadd.f32 %v6328, %v6030
  %v6330 = vadd.f32 %v6329, %v6035
  %v6331 = vadd.f32 %v6330, %v6040
  %v6332 = vadd.f32 %v6331, %v6045
  %v6333 = vadd.f32 %v6332, %v6050
  %v6334 = vadd.f32 %v6333, %v6055
  %v6335 = vadd.f32 %v6334, %v6060
  %v6336 = vadd.f32 %v6335, %v6065
  %v6337 = vadd.f32 %v6336, %v6070
  %v6338 = vadd.f32 %v6337, %v6075
  %v6339 = vadd.f32 %v6338, %v6080
  %v6340 = vadd.f32 %v6339, %v6085
  %v6341 = vadd.f32 %v6340, %v6090
  %v6342 = vadd.f32 %v6341, %v6095
  %v6343 = vadd.f32 %v6342, %v6100
  %v6344 = vadd.f32 %v6343, %v6105
  %v6345 = vadd.f32 %v6344, %v6110
  %v6346 = vadd.f32 %v6345, %v6115
  %v6347 = vadd.f32 %v6346, %v6120
  %v6348 = vadd.f32 %v6347, %v6125
  %v6349 = vadd.f32 %v6348, %v6130
  %v6350 = vadd.f32 %v6349, %v6135
  %v6351 = vadd.f32 %v6350, %v6140
  %v6352 = vadd.f32 %v6351, %v6145
  %v6353 = vadd.f32 %v6352, %v6150
  %v6354 = vadd.f32 %v6353, %v6155
  %v6355 = vadd.f32 %v6354, %v6160
  %v6356 = vadd.f32 %v6355, %v6165
  %v6357 = vadd.f32 %v6356, %v6170
  %v6358 = vadd.f32 %v6357, %v6175
  %v6359 = vadd.f32 %v6358, %v6180
  %v6360 = vadd.f32 %v6359, %v6185
  %v6361 = vadd.f32 %v6360, %v6190
  %v6362 = vadd.f32 %v6361, %v6195
  %v6363 = vadd.f32 %v6362, %v6200
  %v6364 = vadd.f32 %v6363, %v6205
  %v6365 = vadd.f32 %v6364, %v6210
  %v6366 = vadd.f32 %v6365, %v6215
  %v6367 = vadd.f32 %v6366, %v6220
  %v6368 = vadd.f32 %v6367, %v6225
  %v6369 = vadd.f32 %v6368, %v6230
  %v6370 = vadd.f32 %v6369, %v6235
  %v6371 = vadd.f32 %v6370, %v6240
  %v6372 = vadd.f32 %v6371, %v6245
  %v6373 = vadd.f32 %v6372, %v6250
  %v6374 = vadd.f32 %v6373, %v6255
  %v6375 = vadd.f32 %v6374, %v6260
  %v6376 = vadd.f32 %v6375, %v6265
  %v6377 = vadd.f32 %v6376, %v6270
  %v6378 = vadd.f32 %v6377, %v6275
  %v6379 = vadd.f32 %v6378, %v6280
  %v6380 = vadd.f32 %v6379, %v6285
  %v6381 = vadd.f32 %v6380, %v6290
  %v6382 = vadd.f32 %v6381, %v6295
  %v6383 = vadd.f32 %v6382, %v6300
  %v6384 = vadd.f32 %v6383, %v6305
  %v6385 = vadd.f32 %v6384, %v6310
  %v6386 = vadd.f32 %v6385, %v6315
  %v6387 = vadd.f32 %v6386, %v6320
  %v6388 = vrot.slane %v6387, 4
  %v6389 = vadd.f32 %v6387, %v6388
  %v6390 = vrot.slane %v6389, 2
  %v6391 = vadd.f32 %v6389, %v6390
  %v6392 = vrot.slane %v6391, 1
  %v6393 = vadd.f32 %v6391, %v6392
  %v6394 = vmul.f32 %v6393, %v3038
  %v6395 = vsub.f32 %v6005, %v6394
  %v6396 = vsub.f32 %v6010, %v6394
  %v6397 = vsub.f32 %v6015, %v6394
  %v6398 = vsub.f32 %v6020, %v6394
  %v6399 = vsub.f32 %v6025, %v6394
  %v6400 = vsub.f32 %v6030, %v6394
  %v6401 = vsub.f32 %v6035, %v6394
  %v6402 = vsub.f32 %v6040, %v6394
  %v6403 = vsub.f32 %v6045, %v6394
  %v6404 = vsub.f32 %v6050, %v6394
  %v6405 = vsub.f32 %v6055, %v6394
  %v6406 = vsub.f32 %v6060, %v6394
  %v6407 = vsub.f32 %v6065, %v6394
  %v6408 = vsub.f32 %v6070, %v6394
  %v6409 = vsub.f32 %v6075, %v6394
  %v6410 = vsub.f32 %v6080, %v6394
  %v6411 = vsub.f32 %v6085, %v6394
  %v6412 = vsub.f32 %v6090, %v6394
  %v6413 = vsub.f32 %v6095, %v6394
  %v6414 = vsub.f32 %v6100, %v6394
  %v6415 = vsub.f32 %v6105, %v6394
  %v6416 = vsub.f32 %v6110, %v6394
  %v6417 = vsub.f32 %v6115, %v6394
  %v6418 = vsub.f32 %v6120, %v6394
  %v6419 = vsub.f32 %v6125, %v6394
  %v6420 = vsub.f32 %v6130, %v6394
  %v6421 = vsub.f32 %v6135, %v6394
  %v6422 = vsub.f32 %v6140, %v6394
  %v6423 = vsub.f32 %v6145, %v6394
  %v6424 = vsub.f32 %v6150, %v6394
  %v6425 = vsub.f32 %v6155, %v6394
  %v6426 = vsub.f32 %v6160, %v6394
  %v6427 = vsub.f32 %v6165, %v6394
  %v6428 = vsub.f32 %v6170, %v6394
  %v6429 = vsub.f32 %v6175, %v6394
  %v6430 = vsub.f32 %v6180, %v6394
  %v6431 = vsub.f32 %v6185, %v6394
  %v6432 = vsub.f32 %v6190, %v6394
  %v6433 = vsub.f32 %v6195, %v6394
  %v6434 = vsub.f32 %v6200, %v6394
  %v6435 = vsub.f32 %v6205, %v6394
  %v6436 = vsub.f32 %v6210, %v6394
  %v6437 = vsub.f32 %v6215, %v6394
  %v6438 = vsub.f32 %v6220, %v6394
  %v6439 = vsub.f32 %v6225, %v6394
  %v6440 = vsub.f32 %v6230, %v6394
  %v6441 = vsub.f32 %v6235, %v6394
  %v6442 = vsub.f32 %v6240, %v6394
  %v6443 = vsub.f32 %v6245, %v6394
  %v6444 = vsub.f32 %v6250, %v6394
  %v6445 = vsub.f32 %v6255, %v6394
  %v6446 = vsub.f32 %v6260, %v6394
  %v6447 = vsub.f32 %v6265, %v6394
  %v6448 = vsub.f32 %v6270, %v6394
  %v6449 = vsub.f32 %v6275, %v6394
  %v6450 = vsub.f32 %v6280, %v6394
  %v6451 = vsub.f32 %v6285, %v6394
  %v6452 = vsub.f32 %v6290, %v6394
  %v6453 = vsub.f32 %v6295, %v6394
  %v6454 = vsub.f32 %v6300, %v6394
  %v6455 = vsub.f32 %v6305, %v6394
  %v6456 = vsub.f32 %v6310, %v6394
  %v6457 = vsub.f32 %v6315, %v6394
  %v6458 = vsub.f32 %v6320, %v6394
  %v6459 = vmul.f32 %v6395, %v6395
  %v6460 = vmul.f32 %v6396, %v6396
  %v6461 = vmul.f32 %v6397, %v6397
  %v6462 = vmul.f32 %v6398, %v6398
  %v6463 = vmul.f32 %v6399, %v6399
  %v6464 = vmul.f32 %v6400, %v6400
  %v6465 = vmul.f32 %v6401, %v6401
  %v6466 = vmul.f32 %v6402, %v6402
  %v6467 = vmul.f32 %v6403, %v6403
  %v6468 = vmul.f32 %v6404, %v6404
  %v6469 = vmul.f32 %v6405, %v6405
  %v6470 = vmul.f32 %v6406, %v6406
  %v6471 = vmul.f32 %v6407, %v6407
  %v6472 = vmul.f32 %v6408, %v6408
  %v6473 = vmul.f32 %v6409, %v6409
  %v6474 = vmul.f32 %v6410, %v6410
  %v6475 = vmul.f32 %v6411, %v6411
  %v6476 = vmul.f32 %v6412, %v6412
  %v6477 = vmul.f32 %v6413, %v6413
  %v6478 = vmul.f32 %v6414, %v6414
  %v6479 = vmul.f32 %v6415, %v6415
  %v6480 = vmul.f32 %v6416, %v6416
  %v6481 = vmul.f32 %v6417, %v6417
  %v6482 = vmul.f32 %v6418, %v6418
  %v6483 = vmul.f32 %v6419, %v6419
  %v6484 = vmul.f32 %v6420, %v6420
  %v6485 = vmul.f32 %v6421, %v6421
  %v6486 = vmul.f32 %v6422, %v6422
  %v6487 = vmul.f32 %v6423, %v6423
  %v6488 = vmul.f32 %v6424, %v6424
  %v6489 = vmul.f32 %v6425, %v6425
  %v6490 = vmul.f32 %v6426, %v6426
  %v6491 = vmul.f32 %v6427, %v6427
  %v6492 = vmul.f32 %v6428, %v6428
  %v6493 = vmul.f32 %v6429, %v6429
  %v6494 = vmul.f32 %v6430, %v6430
  %v6495 = vmul.f32 %v6431, %v6431
  %v6496 = vmul.f32 %v6432, %v6432
  %v6497 = vmul.f32 %v6433, %v6433
  %v6498 = vmul.f32 %v6434, %v6434
  %v6499 = vmul.f32 %v6435, %v6435
  %v6500 = vmul.f32 %v6436, %v6436
  %v6501 = vmul.f32 %v6437, %v6437
  %v6502 = vmul.f32 %v6438, %v6438
  %v6503 = vmul.f32 %v6439, %v6439
  %v6504 = vmul.f32 %v6440, %v6440
  %v6505 = vmul.f32 %v6441, %v6441
  %v6506 = vmul.f32 %v6442, %v6442
  %v6507 = vmul.f32 %v6443, %v6443
  %v6508 = vmul.f32 %v6444, %v6444
  %v6509 = vmul.f32 %v6445, %v6445
  %v6510 = vmul.f32 %v6446, %v6446
  %v6511 = vmul.f32 %v6447, %v6447
  %v6512 = vmul.f32 %v6448, %v6448
  %v6513 = vmul.f32 %v6449, %v6449
  %v6514 = vmul.f32 %v6450, %v6450
  %v6515 = vmul.f32 %v6451, %v6451
  %v6516 = vmul.f32 %v6452, %v6452
  %v6517 = vmul.f32 %v6453, %v6453
  %v6518 = vmul.f32 %v6454, %v6454
  %v6519 = vmul.f32 %v6455, %v6455
  %v6520 = vmul.f32 %v6456, %v6456
  %v6521 = vmul.f32 %v6457, %v6457
  %v6522 = vmul.f32 %v6458, %v6458
  %v6523 = vadd.f32 %v6459, %v6460
  %v6524 = vadd.f32 %v6523, %v6461
  %v6525 = vadd.f32 %v6524, %v6462
  %v6526 = vadd.f32 %v6525, %v6463
  %v6527 = vadd.f32 %v6526, %v6464
  %v6528 = vadd.f32 %v6527, %v6465
  %v6529 = vadd.f32 %v6528, %v6466
  %v6530 = vadd.f32 %v6529, %v6467
  %v6531 = vadd.f32 %v6530, %v6468
  %v6532 = vadd.f32 %v6531, %v6469
  %v6533 = vadd.f32 %v6532, %v6470
  %v6534 = vadd.f32 %v6533, %v6471
  %v6535 = vadd.f32 %v6534, %v6472
  %v6536 = vadd.f32 %v6535, %v6473
  %v6537 = vadd.f32 %v6536, %v6474
  %v6538 = vadd.f32 %v6537, %v6475
  %v6539 = vadd.f32 %v6538, %v6476
  %v6540 = vadd.f32 %v6539, %v6477
  %v6541 = vadd.f32 %v6540, %v6478
  %v6542 = vadd.f32 %v6541, %v6479
  %v6543 = vadd.f32 %v6542, %v6480
  %v6544 = vadd.f32 %v6543, %v6481
  %v6545 = vadd.f32 %v6544, %v6482
  %v6546 = vadd.f32 %v6545, %v6483
  %v6547 = vadd.f32 %v6546, %v6484
  %v6548 = vadd.f32 %v6547, %v6485
  %v6549 = vadd.f32 %v6548, %v6486
  %v6550 = vadd.f32 %v6549, %v6487
  %v6551 = vadd.f32 %v6550, %v6488
  %v6552 = vadd.f32 %v6551, %v6489
  %v6553 = vadd.f32 %v6552, %v6490
  %v6554 = vadd.f32 %v6553, %v6491
  %v6555 = vadd.f32 %v6554, %v6492
  %v6556 = vadd.f32 %v6555, %v6493
  %v6557 = vadd.f32 %v6556, %v6494
  %v6558 = vadd.f32 %v6557, %v6495
  %v6559 = vadd.f32 %v6558, %v6496
  %v6560 = vadd.f32 %v6559, %v6497
  %v6561 = vadd.f32 %v6560, %v6498
  %v6562 = vadd.f32 %v6561, %v6499
  %v6563 = vadd.f32 %v6562, %v6500
  %v6564 = vadd.f32 %v6563, %v6501
  %v6565 = vadd.f32 %v6564, %v6502
  %v6566 = vadd.f32 %v6565, %v6503
  %v6567 = vadd.f32 %v6566, %v6504
  %v6568 = vadd.f32 %v6567, %v6505
  %v6569 = vadd.f32 %v6568, %v6506
  %v6570 = vadd.f32 %v6569, %v6507
  %v6571 = vadd.f32 %v6570, %v6508
  %v6572 = vadd.f32 %v6571, %v6509
  %v6573 = vadd.f32 %v6572, %v6510
  %v6574 = vadd.f32 %v6573, %v6511
  %v6575 = vadd.f32 %v6574, %v6512
  %v6576 = vadd.f32 %v6575, %v6513
  %v6577 = vadd.f32 %v6576, %v6514
  %v6578 = vadd.f32 %v6577, %v6515
  %v6579 = vadd.f32 %v6578, %v6516
  %v6580 = vadd.f32 %v6579, %v6517
  %v6581 = vadd.f32 %v6580, %v6518
  %v6582 = vadd.f32 %v6581, %v6519
  %v6583 = vadd.f32 %v6582, %v6520
  %v6584 = vadd.f32 %v6583, %v6521
  %v6585 = vadd.f32 %v6584, %v6522
  %v6586 = vrot.slane %v6585, 4
  %v6587 = vadd.f32 %v6585, %v6586
  %v6588 = vrot.slane %v6587, 2
  %v6589 = vadd.f32 %v6587, %v6588
  %v6590 = vrot.slane %v6589, 1
  %v6591 = vadd.f32 %v6589, %v6590
  %v6592 = vmul.f32 %v6591, %v3038
  %v6593 = vadd.f32 %v6592, 1e-05
  %v6594 = vrsqrt.pop %v6593
  %v6595 = vmul.f32 %v6323, %v6594
  %v6596 = vlaneseq
  %v6597 = vshrl.u32 %v6596, 7
  %v6598 = vsub.s32 0, %v6597
  %v6599 = vrot.slane %v6595, %v6598
  %v6600 = vmul.f32 %v6395, %v6599
  %v6601 = vmul.f32 %v6396, %v6599
  %v6602 = vmul.f32 %v6397, %v6599
  %v6603 = vmul.f32 %v6398, %v6599
  %v6604 = vmul.f32 %v6399, %v6599
  %v6605 = vmul.f32 %v6400, %v6599
  %v6606 = vmul.f32 %v6401, %v6599
  %v6607 = vmul.f32 %v6402, %v6599
  %v6608 = vmul.f32 %v6403, %v6599
  %v6609 = vmul.f32 %v6404, %v6599
  %v6610 = vmul.f32 %v6405, %v6599
  %v6611 = vmul.f32 %v6406, %v6599
  %v6612 = vmul.f32 %v6407, %v6599
  %v6613 = vmul.f32 %v6408, %v6599
  %v6614 = vmul.f32 %v6409, %v6599
  %v6615 = vmul.f32 %v6410, %v6599
  %v6616 = vmul.f32 %v6411, %v6599
  %v6617 = vmul.f32 %v6412, %v6599
  %v6618 = vmul.f32 %v6413, %v6599
  %v6619 = vmul.f32 %v6414, %v6599
  %v6620 = vmul.f32 %v6415, %v6599
  %v6621 = vmul.f32 %v6416, %v6599
  %v6622 = vmul.f32 %v6417, %v6599
  %v6623 = vmul.f32 %v6418, %v6599
  %v6624 = vmul.f32 %v6419, %v6599
  %v6625 = vmul.f32 %v6420, %v6599
  %v6626 = vmul.f32 %v6421, %v6599
  %v6627 = vmul.f32 %v6422, %v6599
  %v6628 = vmul.f32 %v6423, %v6599
  %v6629 = vmul.f32 %v6424, %v6599
  %v6630 = vmul.f32 %v6425, %v6599
  %v6631 = vmul.f32 %v6426, %v6599
  %v6632 = vmul.f32 %v6427, %v6599
  %v6633 = vmul.f32 %v6428, %v6599
  %v6634 = vmul.f32 %v6429, %v6599
  %v6635 = vmul.f32 %v6430, %v6599
  %v6636 = vmul.f32 %v6431, %v6599
  %v6637 = vmul.f32 %v6432, %v6599
  %v6638 = vmul.f32 %v6433, %v6599
  %v6639 = vmul.f32 %v6434, %v6599
  %v6640 = vmul.f32 %v6435, %v6599
  %v6641 = vmul.f32 %v6436, %v6599
  %v6642 = vmul.f32 %v6437, %v6599
  %v6643 = vmul.f32 %v6438, %v6599
  %v6644 = vmul.f32 %v6439, %v6599
  %v6645 = vmul.f32 %v6440, %v6599
  %v6646 = vmul.f32 %v6441, %v6599
  %v6647 = vmul.f32 %v6442, %v6599
  %v6648 = vmul.f32 %v6443, %v6599
  %v6649 = vmul.f32 %v6444, %v6599
  %v6650 = vmul.f32 %v6445, %v6599
  %v6651 = vmul.f32 %v6446, %v6599
  %v6652 = vmul.f32 %v6447, %v6599
  %v6653 = vmul.f32 %v6448, %v6599
  %v6654 = vmul.f32 %v6449, %v6599
  %v6655 = vmul.f32 %v6450, %v6599
  %v6656 = vmul.f32 %v6451, %v6599
  %v6657 = vmul.f32 %v6452, %v6599
  %v6658 = vmul.f32 %v6453, %v6599
  %v6659 = vmul.f32 %v6454, %v6599
  %v6660 = vmul.f32 %v6455, %v6599
  %v6661 = vmul.f32 %v6456, %v6599
  %v6662 = vmul.f32 %v6457, %v6599
  %v6663 = vmul.f32 %v6458, %v6599
  %v6664 = vlaneseq
  %v6665 = vshrl.u32 %v6664, 7
  %v6666 = vsub.s32 0, %v6665
  %v6667 = vrot.slane %v6324, %v6666
  %v6668 = vadd.f32 %v6600, %v6667
  %v6669 = vadd.f32 %v6601, %v6667
  %v6670 = vadd.f32 %v6602, %v6667
  %v6671 = vadd.f32 %v6603, %v6667
  %v6672 = vadd.f32 %v6604, %v6667
  %v6673 = vadd.f32 %v6605, %v6667
  %v6674 = vadd.f32 %v6606, %v6667
  %v6675 = vadd.f32 %v6607, %v6667
  %v6676 = vadd.f32 %v6608, %v6667
  %v6677 = vadd.f32 %v6609, %v6667
  %v6678 = vadd.f32 %v6610, %v6667
  %v6679 = vadd.f32 %v6611, %v6667
  %v6680 = vadd.f32 %v6612, %v6667
  %v6681 = vadd.f32 %v6613, %v6667
  %v6682 = vadd.f32 %v6614, %v6667
  %v6683 = vadd.f32 %v6615, %v6667
  %v6684 = vadd.f32 %v6616, %v6667
  %v6685 = vadd.f32 %v6617, %v6667
  %v6686 = vadd.f32 %v6618, %v6667
  %v6687 = vadd.f32 %v6619, %v6667
  %v6688 = vadd.f32 %v6620, %v6667
  %v6689 = vadd.f32 %v6621, %v6667
  %v6690 = vadd.f32 %v6622, %v6667
  %v6691 = vadd.f32 %v6623, %v6667
  %v6692 = vadd.f32 %v6624, %v6667
  %v6693 = vadd.f32 %v6625, %v6667
  %v6694 = vadd.f32 %v6626, %v6667
  %v6695 = vadd.f32 %v6627, %v6667
  %v6696 = vadd.f32 %v6628, %v6667
  %v6697 = vadd.f32 %v6629, %v6667
  %v6698 = vadd.f32 %v6630, %v6667
  %v6699 = vadd.f32 %v6631, %v6667
  %v6700 = vadd.f32 %v6632, %v6667
  %v6701 = vadd.f32 %v6633, %v6667
  %v6702 = vadd.f32 %v6634, %v6667
  %v6703 = vadd.f32 %v6635, %v6667
  %v6704 = vadd.f32 %v6636, %v6667
  %v6705 = vadd.f32 %v6637, %v6667
  %v6706 = vadd.f32 %v6638, %v6667
  %v6707 = vadd.f32 %v6639, %v6667
  %v6708 = vadd.f32 %v6640, %v6667
  %v6709 = vadd.f32 %v6641, %v6667
  %v6710 = vadd.f32 %v6642, %v6667
  %v6711 = vadd.f32 %v6643, %v6667
  %v6712 = vadd.f32 %v6644, %v6667
  %v6713 = vadd.f32 %v6645, %v6667
  %v6714 = vadd.f32 %v6646, %v6667
  %v6715 = vadd.f32 %v6647, %v6667
  %v6716 = vadd.f32 %v6648, %v6667
  %v6717 = vadd.f32 %v6649, %v6667
  %v6718 = vadd.f32 %v6650, %v6667
  %v6719 = vadd.f32 %v6651, %v6667
  %v6720 = vadd.f32 %v6652, %v6667
  %v6721 = vadd.f32 %v6653, %v6667
  %v6722 = vadd.f32 %v6654, %v6667
  %v6723 = vadd.f32 %v6655, %v6667
  %v6724 = vadd.f32 %v6656, %v6667
  %v6725 = vadd.f32 %v6657, %v6667
  %v6726 = vadd.f32 %v6658, %v6667
  %v6727 = vadd.f32 %v6659, %v6667
  %v6728 = vadd.f32 %v6660, %v6667
  %v6729 = vadd.f32 %v6661, %v6667
  %v6730 = vadd.f32 %v6662, %v6667
  %v6731 = vadd.f32 %v6663, %v6667
  %v6732 = vmax.f32 %v6668, 0.0
  %v6733 = vmax.f32 %v6669, 0.0
  %v6734 = vmax.f32 %v6670, 0.0
  %v6735 = vmax.f32 %v6671, 0.0
  %v6736 = vmax.f32 %v6672, 0.0
  %v6737 = vmax.f32 %v6673, 0.0
  %v6738 = vmax.f32 %v6674, 0.0
  %v6739 = vmax.f32 %v6675, 0.0
  %v6740 = vmax.f32 %v6676, 0.0
  %v6741 = vmax.f32 %v6677, 0.0
  %v6742 = vmax.f32 %v6678, 0.0
  %v6743 = vmax.f32 %v6679, 0.0
  %v6744 = vmax.f32 %v6680, 0.0
  %v6745 = vmax.f32 %v6681, 0.0
  %v6746 = vmax.f32 %v6682, 0.0
  %v6747 = vmax.f32 %v6683, 0.0
  %v6748 = vmax.f32 %v6684, 0.0
  %v6749 = vmax.f32 %v6685, 0.0
  %v6750 = vmax.f32 %v6686, 0.0
  %v6751 = vmax.f32 %v6687, 0.0
  %v6752 = vmax.f32 %v6688, 0.0
  %v6753 = vmax.f32 %v6689, 0.0
  %v6754 = vmax.f32 %v6690, 0.0
  %v6755 = vmax.f32 %v6691, 0.0
  %v6756 = vmax.f32 %v6692, 0.0
  %v6757 = vmax.f32 %v6693, 0.0
  %v6758 = vmax.f32 %v6694, 0.0
  %v6759 = vmax.f32 %v6695, 0.0
  %v6760 = vmax.f32 %v6696, 0.0
  %v6761 = vmax.f32 %v6697, 0.0
  %v6762 = vmax.f32 %v6698, 0.0
  %v6763 = vmax.f32 %v6699, 0.0
  %v6764 = vmax.f32 %v6700, 0.0
  %v6765 = vmax.f32 %v6701, 0.0
  %v6766 = vmax.f32 %v6702, 0.0
  %v6767 = vmax.f32 %v6703, 0.0
  %v6768 = vmax.f32 %v6704, 0.0
  %v6769 = vmax.f32 %v6705, 0.0
  %v6770 = vmax.f32 %v6706, 0.0
  %v6771 = vmax.f32 %v6707, 0.0
  %v6772 = vmax.f32 %v6708, 0.0
  %v6773 = vmax.f32 %v6709, 0.0
  %v6774 = vmax.f32 %v6710, 0.0
  %v6775 = vmax.f32 %v6711, 0.0
  %v6776 = vmax.f32 %v6712, 0.0
  %v6777 = vmax.f32 %v6713, 0.0
  %v6778 = vmax.f32 %v6714, 0.0
  %v6779 = vmax.f32 %v6715, 0.0
  %v6780 = vmax.f32 %v6716, 0.0
  %v6781 = vmax.f32 %v6717, 0.0
  %v6782 = vmax.f32 %v6718, 0.0
  %v6783 = vmax.f32 %v6719, 0.0
  %v6784 = vmax.f32 %v6720, 0.0
  %v6785 = vmax.f32 %v6721, 0.0
  %v6786 = vmax.f32 %v6722, 0.0
  %v6787 = vmax.f32 %v6723, 0.0
  %v6788 = vmax.f32 %v6724, 0.0
  %v6789 = vmax.f32 %v6725, 0.0
  %v6790 = vmax.f32 %v6726, 0.0
  %v6791 = vmax.f32 %v6727, 0.0
  %v6792 = vmax.f32 %v6728, 0.0
  %v6793 = vmax.f32 %v6729, 0.0
  %v6794 = vmax.f32 %v6730, 0.0
  %v6795 = vmax.f32 %v6731, 0.0
  %6796 = vst [vmem:[%s4] sm:$0xff] %v6732
  %6797 = vst [vmem:[%s4 + $0x8] sm:$0xff] %v6733
  %6798 = vst [vmem:[%s4 + $0x10] sm:$0xff] %v6734
  %6799 = vst [vmem:[%s4 + $0x18] sm:$0xff] %v6735
  %6800 = vst [vmem:[%s4 + $0x20] sm:$0xff] %v6736
  %6801 = vst [vmem:[%s4 + $0x28] sm:$0xff] %v6737
  %6802 = vst [vmem:[%s4 + $0x30] sm:$0xff] %v6738
  %6803 = vst [vmem:[%s4 + $0x38] sm:$0xff] %v6739
  %6804 = vst [vmem:[%s4 + $0x40] sm:$0xff] %v6740
  %6805 = vst [vmem:[%s4 + $0x48] sm:$0xff] %v6741
  %6806 = vst [vmem:[%s4 + $0x50] sm:$0xff] %v6742
  %6807 = vst [vmem:[%s4 + $0x58] sm:$0xff] %v6743
  %6808 = vst [vmem:[%s4 + $0x60] sm:$0xff] %v6744
  %6809 = vst [vmem:[%s4 + $0x68] sm:$0xff] %v6745
  %6810 = vst [vmem:[%s4 + $0x70] sm:$0xff] %v6746
  %6811 = vst [vmem:[%s4 + $0x78] sm:$0xff] %v6747
  %6812 = vst [vmem:[%s4 + $0x80] sm:$0xff] %v6748
  %6813 = vst [vmem:[%s4 + $0x88] sm:$0xff] %v6749
  %6814 = vst [vmem:[%s4 + $0x90] sm:$0xff] %v6750
  %6815 = vst [vmem:[%s4 + $0x98] sm:$0xff] %v6751
  %6816 = vst [vmem:[%s4 + $0xa0] sm:$0xff] %v6752
  %6817 = vst [vmem:[%s4 + $0xa8] sm:$0xff] %v6753
  %6818 = vst [vmem:[%s4 + $0xb0] sm:$0xff] %v6754
  %6819 = vst [vmem:[%s4 + $0xb8] sm:$0xff] %v6755
  %6820 = vst [vmem:[%s4 + $0xc0] sm:$0xff] %v6756
  %6821 = vst [vmem:[%s4 + $0xc8] sm:$0xff] %v6757
  %6822 = vst [vmem:[%s4 + $0xd0] sm:$0xff] %v6758
  %6823 = vst [vmem:[%s4 + $0xd8] sm:$0xff] %v6759
  %6824 = vst [vmem:[%s4 + $0xe0] sm:$0xff] %v6760
  %6825 = vst [vmem:[%s4 + $0xe8] sm:$0xff] %v6761
  %6826 = vst [vmem:[%s4 + $0xf0] sm:$0xff] %v6762
  %6827 = vst [vmem:[%s4 + $0xf8] sm:$0xff] %v6763
  %6828 = vst [vmem:[%s4 + $0x100] sm:$0xff] %v6764
  %6829 = vst [vmem:[%s4 + $0x108] sm:$0xff] %v6765
  %6830 = vst [vmem:[%s4 + $0x110] sm:$0xff] %v6766
  %6831 = vst [vmem:[%s4 + $0x118] sm:$0xff] %v6767
  %6832 = vst [vmem:[%s4 + $0x120] sm:$0xff] %v6768
  %6833 = vst [vmem:[%s4 + $0x128] sm:$0xff] %v6769
  %6834 = vst [vmem:[%s4 + $0x130] sm:$0xff] %v6770
  %6835 = vst [vmem:[%s4 + $0x138] sm:$0xff] %v6771
  %6836 = vst [vmem:[%s4 + $0x140] sm:$0xff] %v6772
  %6837 = vst [vmem:[%s4 + $0x148] sm:$0xff] %v6773
  %6838 = vst [vmem:[%s4 + $0x150] sm:$0xff] %v6774
  %6839 = vst [vmem:[%s4 + $0x158] sm:$0xff] %v6775
  %6840 = vst [vmem:[%s4 + $0x160] sm:$0xff] %v6776
  %6841 = vst [vmem:[%s4 + $0x168] sm:$0xff] %v6777
  %6842 = vst [vmem:[%s4 + $0x170] sm:$0xff] %v6778
  %6843 = vst [vmem:[%s4 + $0x178] sm:$0xff] %v6779
  %6844 = vst [vmem:[%s4 + $0x180] sm:$0xff] %v6780
  %6845 = vst [vmem:[%s4 + $0x188] sm:$0xff] %v6781
  %6846 = vst [vmem:[%s4 + $0x190] sm:$0xff] %v6782
  %6847 = vst [vmem:[%s4 + $0x198] sm:$0xff] %v6783
  %6848 = vst [vmem:[%s4 + $0x1a0] sm:$0xff] %v6784
  %6849 = vst [vmem:[%s4 + $0x1a8] sm:$0xff] %v6785
  %6850 = vst [vmem:[%s4 + $0x1b0] sm:$0xff] %v6786
  %6851 = vst [vmem:[%s4 + $0x1b8] sm:$0xff] %v6787
  %6852 = vst [vmem:[%s4 + $0x1c0] sm:$0xff] %v6788
  %6853 = vst [vmem:[%s4 + $0x1c8] sm:$0xff] %v6789
  %6854 = vst [vmem:[%s4 + $0x1d0] sm:$0xff] %v6790
  %6855 = vst [vmem:[%s4 + $0x1d8] sm:$0xff] %v6791
  %6856 = vst [vmem:[%s4 + $0x1e0] sm:$0xff] %v6792
  %6857 = vst [vmem:[%s4 + $0x1e8] sm:$0xff] %v6793
  %6858 = vst [vmem:[%s4 + $0x1f0] sm:$0xff] %v6794
  %6859 = vst [vmem:[%s4 + $0x1f8] sm:$0xff] %v6795
  // Predicated region
  $region18: #{reflective_double_conv.1} parent=0 // pred_check
    _
  $region19: #{reflective_double_conv.1} parent=0 // pred_check_branch
    %6861 = sbr.rel (0) target = $region21
  $region20: #{reflective_double_conv.1} parent=0 // pred_region
    _
  $region21: #{reflective_double_conv.1} parent=0 // pred_fallthru
    _
  // Predicated region
  $region22: #{reflective_double_conv.1} parent=0 // pred_check
    _
  $region23: #{reflective_double_conv.1} parent=0 // pred_check_branch
    %6863 = sbr.rel (0) target = $region25
  $region24: #{reflective_double_conv.1} parent=0 // pred_region
    _
  $region25: #{reflective_double_conv.1} parent=0 // pred_fallthru
    _

</llo_original>
